<compile_context>
chip_gen: v6e
topology: v6e:2x2x1
jax: 0.10.0
libtpu: 0.0.40
codegen_flags: <defaults>
</compile_context>

<pallas_src>
import functools

import jax
import jax.numpy as jnp
from jax.experimental import pallas as pl
from jax.experimental.pallas import tpu as pltpu


_TAN_PI_8 = 0.41421356237309503
_PI = 3.141592653589793
_TWO_PI = 6.283185307179586
_INV_TWO_PI = 0.15915494309189535


def _atan2(y, x):
    """Elementwise atan2(y, x) (== torch.angle(x + i*y)) built only from
    mul/add/div/compare/select -- VPU-safe, ~1e-6 abs error in float32.
    Note: returns +pi (not -pi) for y == -0.0, x < 0 -- fine at 1e-2 tol."""
    ax = jnp.abs(x)
    ay = jnp.abs(y)
    hi = jnp.maximum(ax, ay)
    lo = jnp.minimum(ax, ay)
    t = lo / jnp.where(hi == 0.0, 1.0, hi)              # ratio in [0, 1]
    big = t > _TAN_PI_8
    tr = jnp.where(big, (t - 1.0) / (t + 1.0), t)       # |tr| <= tan(pi/8)
    z = tr * tr
    p = ((8.05374449538e-2 * z - 1.38776856032e-1) * z
         + 1.99777106478e-1) * z - 3.33329491539e-1
    a = p * z * tr + tr                                  # atan(tr)
    a = jnp.where(big, a + _PI / 4.0, a)                 # atan(t), t in [0, 1]
    a = jnp.where(ay > ax, _PI / 2.0 - a, a)             # atan(|y| / |x|)
    a = jnp.where(x < 0.0, _PI - a, a)                   # quadrants II / III
    return jnp.where(y < 0.0, -a, a)                     # sign of y


# ----------------------------------------------------------------------------
# Fused kernel: masked DFT over vertices -> abs/angle -> param_mag /
# param_phase MLPs -> concat-fusion MLP.  Grid = (B tiles, N chunks); the
# vertex axis is the trailing "arbitrary" reduction axis accumulated in VMEM.
# ----------------------------------------------------------------------------
def poly2vec_fused_kernel(px_ref, py_ref, len_ref, fu_ref, fv_ref,
                          w0m_ref, w1m_ref, b1m_ref, w2m_ref, b2m_ref,
                          w0p_ref, w1p_ref, b1p_ref, w2p_ref, b2p_ref,
                          wa_ref, ba_ref, wb_ref, bb_ref,
                          out_ref,
                          real_acc, imag_acc,
                          *, sub_chunk, use_bf16_trig):
    n_id = pl.program_id(1)

    @pl.when(n_id == 0)
    def _init():
        real_acc[...] = jnp.zeros_like(real_acc)
        imag_acc[...] = jnp.zeros_like(imag_acc)

    bt, nc = px_ref.shape
    f = fu_ref.shape[0]
    lens = len_ref[...]                                   # (bt, 1) int32

    # Frequencies broadcast once, hoisted out of the inner loop (JAX does not
    # CSE broadcast_in_dim).  Lane-dense shape (1, F, sub_chunk).
    fu = jnp.broadcast_to(fu_ref[...].reshape(1, f, 1), (1, f, sub_chunk))
    fv = jnp.broadcast_to(fv_ref[...].reshape(1, f, 1), (1, f, sub_chunk))

    base = n_id * nc
    num_sub = nc // sub_chunk

    def accumulate(off):
        px = px_ref[:, pl.ds(off, sub_chunk)]             # (bt, ncc)
        py = py_ref[:, pl.ds(off, sub_chunk)]
        # (bt, F, ncc): vertex chunk on the 128-lane axis -> dense vregs for
        # the EUP-bound cos/sin and the VPU mask-multiply.
        phase = px[:, None, :] * fu + py[:, None, :] * fv
        if use_bf16_trig:
            # f32 range reduction first, then the narrow cast (bf16 EUP on
            # v6e/v7x); accumulate stays f32.
            phase = phase - _TWO_PI * jnp.floor(phase * _INV_TWO_PI)
            phase = phase.astype(jnp.bfloat16)
        cos_v = jnp.cos(phase).astype(jnp.float32)
        sin_v = jnp.sin(phase).astype(jnp.float32)
        # Valid-vertex mask for this chunk (int32 iota compare, one f32 mul).
        n_idx = base + off + jax.lax.broadcasted_iota(
            jnp.int32, (bt, sub_chunk), 1)
        m = (n_idx < lens).astype(jnp.float32)[:, None, :]   # (bt, 1, ncc)
        # Lane-axis reduce (XLU slot, separate from VPU/EUP); `-=` drops the
        # elementwise negate of the imaginary part.
        real_acc[...] += jnp.sum(cos_v * m, axis=-1)
        imag_acc[...] -= jnp.sum(sin_v * m, axis=-1)

    if num_sub == 1:
        accumulate(0)
    else:
        def body(c, carry):
            accumulate(pl.multiple_of(c * sub_chunk, sub_chunk))
            return carry
        jax.lax.fori_loop(0, num_sub, body, None, unroll=True)

    @pl.when(n_id == pl.num_programs(1) - 1)
    def _mlp():
        real = real_acc[...]
        imag = imag_acc[...]
        mag = jnp.sqrt(real * real + imag * imag)          # torch.abs
        ph = _atan2(imag, real)                            # torch.angle

        def lin(v, w, b=None):
            y = jnp.dot(v, w, preferred_element_type=jnp.float32)
            return y + b if b is not None else y

        # param_mag = Linear(D, D, bias=False) -> MLP(w1, relu, [dropout], w2)
        m_ = lin(mag, w0m_ref[...])
        m_ = lin(jnp.maximum(lin(m_, w1m_ref[...], b1m_ref[...]), 0.0),
                 w2m_ref[...], b2m_ref[...])
        # param_phase
        p_ = lin(ph, w0p_ref[...])
        p_ = lin(jnp.maximum(lin(p_, w1p_ref[...], b1p_ref[...]), 0.0),
                 w2p_ref[...], b2p_ref[...])

        # fusion 'concat': concat([m, p]) @ Wa == m @ Wa[:D] + p @ Wa[D:]
        d = m_.shape[1]
        h = jnp.maximum(lin(m_, wa_ref[:d, :]) + lin(p_, wa_ref[d:, :])
                        + ba_ref[...], 0.0)
        out_ref[...] = lin(h, wb_ref[...], bb_ref[...])


# ----------------------------------------------------------------------------
# Wrapper: padding, generation-aware tiling / VMEM budget, pallas_call.
# ----------------------------------------------------------------------------
_WEIGHT_ORDER = ("w0m", "w1m", "b1m", "w2m", "b2m",
                 "w0p", "w1p", "b1p", "w2p", "b2p",
                 "wa", "ba", "wb", "bb")


def _round_up(v, m):
    return ((v + m - 1) // m) * m


def _resident_spec(shape):
    """Full-array block that stays resident across the whole grid."""
    nd = len(shape)
    return pl.BlockSpec(shape, lambda i, n, _nd=nd: (0,) * _nd)


def poly2vec_forward(x, lengths, freqs, params, d_out, *, use_bf16_trig=False):
    B, N, _ = x.shape
    F = freqs.shape[0]
    D = params["w0m"].shape[0]
    assert F == D, "Fourier feature count must equal d_input"

    # --- per-generation VMEM capacity (128 MiB v5e/v6e, 64 MiB/TC v7x) -----
    try:
        vmem_cap = int(pltpu.get_tpu_info().vmem_capacity_bytes)
    except Exception:  # pragma: no cover - conservative fallback
        vmem_cap = 64 << 20
    vmem_soft = int(vmem_cap * 0.7)

    weight_bytes = 2 * sum(int(params[k].size) * params[k].dtype.itemsize
                           for k in _WEIGHT_ORDER)

    # --- batch tiling: pad to 8; keep >= 2 tiles when possible (v7x: 2 TCs) -
    B8 = _round_up(B, 8)
    if B8 >= 16:
        bt = min(128, _round_up((B8 + 1) // 2, 8))
    else:
        bt = B8

    # --- vertex tiling: pad to 128; big DMA tile, bounded compute chunk -----
    N128 = _round_up(N, 128)
    if N128 >= 512:
        nc = 512
    elif N128 >= 256:
        nc = 256
    else:
        nc = 128
    sub_chunk = min(256, nc)

    def _budget(bt_, nc_, sc_):
        temps = 6 * bt_ * F * sc_ * 4          # phase / cos / sin / masked + slack
        io = 2 * 2 * bt_ * nc_ * 4             # double-buffered px & py tiles
        accs = 2 * bt_ * F * 4                 # real / imag accumulators
        outb = 2 * bt_ * max(d_out, 128) * 4
        return temps + io + accs + outb + weight_bytes + (2 << 20)

    # Shrink compute chunk, then DMA tile, then batch tile until it fits.
    while _budget(bt, nc, sub_chunk) > vmem_soft and sub_chunk > 128:
        sub_chunk //= 2
    while _budget(bt, nc, sub_chunk) > vmem_soft and nc > 128:
        nc //= 2
        sub_chunk = min(sub_chunk, nc)
    while _budget(bt, nc, sub_chunk) > vmem_soft and bt > 8:
        bt = max(8, ((bt // 2) // 8) * 8)

    B_pad = _round_up(B8, bt)
    N_pad = _round_up(N128, nc)
    vmem_limit = int(min(max(_budget(bt, nc, sub_chunk), 32 << 20), vmem_soft))
    grid = (B_pad // bt, N_pad // nc)

    # --- pad inputs (padded vertices / rows are masked via `lengths`) -------
    px = jnp.zeros((B_pad, N_pad), jnp.float32).at[:B, :N].set(
        x[:, :, 0].astype(jnp.float32))
    py = jnp.zeros((B_pad, N_pad), jnp.float32).at[:B, :N].set(
        x[:, :, 1].astype(jnp.float32))
    lens = jnp.zeros((B_pad, 1), jnp.int32).at[:B, 0].set(
        lengths.astype(jnp.int32))
    fu = freqs[:, 0].reshape(F, 1).astype(jnp.float32)
    fv = freqs[:, 1].reshape(F, 1).astype(jnp.float32)

    in_specs = [
        pl.BlockSpec((bt, nc), lambda i, n: (i, n)),    # px
        pl.BlockSpec((bt, nc), lambda i, n: (i, n)),    # py
        pl.BlockSpec((bt, 1), lambda i, n: (i, 0)),     # lengths (int32)
        _resident_spec(fu.shape),                       # freq u  (F, 1)
        _resident_spec(fv.shape),                       # freq v  (F, 1)
    ] + [_resident_spec(params[k].shape) for k in _WEIGHT_ORDER]

    out_specs = pl.BlockSpec((bt, d_out), lambda i, n: (i, 0))

    grid_spec = pltpu.PrefetchScalarGridSpec(
        num_scalar_prefetch=0,
        grid=grid,
        in_specs=in_specs,
        out_specs=out_specs,
        scratch_shapes=[pltpu.VMEM((bt, F), jnp.float32),
                        pltpu.VMEM((bt, F), jnp.float32)],
    )

    kernel = functools.partial(poly2vec_fused_kernel,
                               sub_chunk=sub_chunk,
                               use_bf16_trig=use_bf16_trig)

    args = (px, py, lens, fu, fv) + tuple(params[k] for k in _WEIGHT_ORDER)
    out = pl.pallas_call(
        kernel,
        out_shape=jax.ShapeDtypeStruct((B_pad, d_out), jnp.float32),
        grid_spec=grid_spec,
        compiler_params=pltpu.CompilerParams(
            dimension_semantics=("parallel", "arbitrary"),
            vmem_limit_bytes=vmem_limit),
    )(*args)
    return out[:B]


# ----------------------------------------------------------------------------
# Deterministic parameter init (shapes from Poly2Vec.__init__).
# ----------------------------------------------------------------------------
def init_params(key, D, H, O):
    names_shapes = [
        ("w0m", (D, D)), ("w1m", (D, 2 * D)), ("b1m", (1, 2 * D)),
        ("w2m", (2 * D, D)), ("b2m", (1, D)),
        ("w0p", (D, D)), ("w1p", (D, 2 * D)), ("b1p", (1, 2 * D)),
        ("w2p", (2 * D, D)), ("b2p", (1, D)),
        ("wa", (2 * D, H)), ("ba", (1, H)),
        ("wb", (H, O)), ("bb", (1, O)),
    ]
    keys = jax.random.split(key, len(names_shapes))
    params = {}
    for (name, shape), k in zip(names_shapes, keys):
        fan_in = shape[1] if name.startswith("b") else shape[0]
        scale = 1.0 / jnp.sqrt(jnp.float32(fan_in))
        params[name] = scale * jax.random.normal(k, shape, jnp.float32)
    return params


# ----------------------------------------------------------------------------
# Pure-JAX reference (mirrors the PyTorch forward) for a sanity check.
# ----------------------------------------------------------------------------
def reference(x, lengths, freqs, params):
    B, N, _ = x.shape
    phase = jnp.einsum("bnc,fc->bnf", x, freqs)
    mask = (jnp.arange(N)[None, :, None]
            < lengths[:, None, None]).astype(jnp.float32)
    real = jnp.sum(mask * jnp.cos(phase), axis=1)
    imag = jnp.sum(mask * (-jnp.sin(phase)), axis=1)
    mag = jnp.sqrt(real ** 2 + imag ** 2)
    ph = jnp.arctan2(imag, real)

    def lin(v, w, b=None):
        y = v @ w
        return y + b if b is not None else y

    m = lin(mag, params["w0m"])
    m = lin(jnp.maximum(lin(m, params["w1m"], params["b1m"]), 0.0),
            params["w2m"], params["b2m"])
    p = lin(ph, params["w0p"])
    p = lin(jnp.maximum(lin(p, params["w1p"], params["b1p"]), 0.0),
            params["w2p"], params["b2p"])
    x_ = jnp.concatenate([m, p], axis=1)
    h = jnp.maximum(lin(x_, params["wa"], params["ba"]), 0.0)
    return lin(h, params["wb"], params["bb"])


if __name__ == "__main__":
    B, N, D, H, O = 2, 8, 32, 64, 16   # batch, vertices, d_input, d_hid, d_out

    key = jax.random.PRNGKey(0)
    kx, kp = jax.random.split(key)

    # geometry: B polygons with N (padded) vertices, per-shape valid lengths
    x = jax.random.uniform(kx, (B, N, 2), jnp.float32)
    lengths = jnp.array([8, 5], dtype=jnp.int32)

    # fixed frequency grid (stand-in for the encoder's frequency sampling), F = D = 32
    u = jnp.linspace(0.1, 1.0, 8)
    v = jnp.linspace(0.1, 1.0, 4)
    uu, vv = jnp.meshgrid(u, v, indexing="ij")
    freqs = jnp.stack([uu.reshape(-1), vv.reshape(-1)], axis=1).astype(jnp.float32)

    params = init_params(kp, D, H, O)

    emb = poly2vec_forward(x, lengths, freqs, params, O)
    emb = jax.block_until_ready(emb)

    ref = reference(x, lengths, freqs, params)
    assert emb.shape == (B, O)
    assert jnp.allclose(emb, ref, atol=1e-2, rtol=1e-2)

    print("KERNEL_OK")
</pallas_src>

<mosaic_0001>
module attributes {stable_mosaic.version = 11 : i64} {
  func.func @poly2vec_fused_kernel(%arg0: i32, %arg1: i32, %arg2: memref<8x128xf32, #tpu.memory_space<vmem>>, %arg3: memref<8x128xf32, #tpu.memory_space<vmem>>, %arg4: memref<8x1xi32, #tpu.memory_space<vmem>>, %arg5: memref<32x1xf32, #tpu.memory_space<vmem>>, %arg6: memref<32x1xf32, #tpu.memory_space<vmem>>, %arg7: memref<32x32xf32, #tpu.memory_space<vmem>>, %arg8: memref<32x64xf32, #tpu.memory_space<vmem>>, %arg9: memref<1x64xf32, #tpu.memory_space<vmem>>, %arg10: memref<64x32xf32, #tpu.memory_space<vmem>>, %arg11: memref<1x32xf32, #tpu.memory_space<vmem>>, %arg12: memref<32x32xf32, #tpu.memory_space<vmem>>, %arg13: memref<32x64xf32, #tpu.memory_space<vmem>>, %arg14: memref<1x64xf32, #tpu.memory_space<vmem>>, %arg15: memref<64x32xf32, #tpu.memory_space<vmem>>, %arg16: memref<1x32xf32, #tpu.memory_space<vmem>>, %arg17: memref<64x64xf32, #tpu.memory_space<vmem>>, %arg18: memref<1x64xf32, #tpu.memory_space<vmem>>, %arg19: memref<64x16xf32, #tpu.memory_space<vmem>>, %arg20: memref<1x16xf32, #tpu.memory_space<vmem>>, %arg21: memref<8x16xf32, #tpu.memory_space<vmem>>, %arg22: memref<8x32xf32, #tpu.memory_space<vmem>>, %arg23: memref<8x32xf32, #tpu.memory_space<vmem>>) attributes {dimension_semantics = [#tpu.dimension_semantics<parallel>, #tpu.dimension_semantics<arbitrary>], iteration_bounds = array<i64: 1, 1>, scalar_prefetch = 0 : i64, scratch_operands = 2 : i64, tpu.core_type = #tpu.core_type<tc>, window_params = [{transform_indices = @transform_0, window_bounds = array<i64: 8, 128>}, {transform_indices = @transform_1, window_bounds = array<i64: 8, 128>}, {transform_indices = @transform_2, window_bounds = array<i64: 8, 1>}, {pipeline_mode = #tpu.pipeline_mode<synchronous>, transform_indices = @transform_3, window_bounds = array<i64: 32, 1>}, {pipeline_mode = #tpu.pipeline_mode<synchronous>, transform_indices = @transform_4, window_bounds = array<i64: 32, 1>}, {pipeline_mode = #tpu.pipeline_mode<synchronous>, transform_indices = @transform_5, window_bounds = array<i64: 32, 32>}, {pipeline_mode = #tpu.pipeline_mode<synchronous>, transform_indices = @transform_6, window_bounds = array<i64: 32, 64>}, {pipeline_mode = #tpu.pipeline_mode<synchronous>, transform_indices = @transform_7, window_bounds = array<i64: 1, 64>}, {pipeline_mode = #tpu.pipeline_mode<synchronous>, transform_indices = @transform_8, window_bounds = array<i64: 64, 32>}, {pipeline_mode = #tpu.pipeline_mode<synchronous>, transform_indices = @transform_9, window_bounds = array<i64: 1, 32>}, {pipeline_mode = #tpu.pipeline_mode<synchronous>, transform_indices = @transform_10, window_bounds = array<i64: 32, 32>}, {pipeline_mode = #tpu.pipeline_mode<synchronous>, transform_indices = @transform_11, window_bounds = array<i64: 32, 64>}, {pipeline_mode = #tpu.pipeline_mode<synchronous>, transform_indices = @transform_12, window_bounds = array<i64: 1, 64>}, {pipeline_mode = #tpu.pipeline_mode<synchronous>, transform_indices = @transform_13, window_bounds = array<i64: 64, 32>}, {pipeline_mode = #tpu.pipeline_mode<synchronous>, transform_indices = @transform_14, window_bounds = array<i64: 1, 32>}, {pipeline_mode = #tpu.pipeline_mode<synchronous>, transform_indices = @transform_15, window_bounds = array<i64: 64, 64>}, {pipeline_mode = #tpu.pipeline_mode<synchronous>, transform_indices = @transform_16, window_bounds = array<i64: 1, 64>}, {pipeline_mode = #tpu.pipeline_mode<synchronous>, transform_indices = @transform_17, window_bounds = array<i64: 64, 16>}, {pipeline_mode = #tpu.pipeline_mode<synchronous>, transform_indices = @transform_18, window_bounds = array<i64: 1, 16>}, {transform_indices = @transform_19, window_bounds = array<i64: 8, 16>}]} {
    %c0_i32 = arith.constant 0 : i32
    %0 = arith.cmpi eq, %arg1, %c0_i32 : i32
    %1 = arith.extui %0 : i1 to i32
    %c0_i32_0 = arith.constant 0 : i32
    %2 = arith.cmpi ne, %1, %c0_i32_0 : i32
    scf.if %2 {
      %cst_22 = arith.constant 0.000000e+00 : f32
      %50 = vector.broadcast %cst_22 : f32 to vector<8x32xf32>
      %c0_23 = arith.constant 0 : index
      %c0_24 = arith.constant 0 : index
      %51 = vector.load %arg22[%c0_23, %c0_24] : memref<8x32xf32, #tpu.memory_space<vmem>>, vector<8x32xf32>
      tpu.vector_store %arg22[%c0_23, %c0_24], %50 {strides = array<i32>} : memref<8x32xf32, #tpu.memory_space<vmem>>, vector<8x32xf32>,
      %cst_25 = arith.constant 0.000000e+00 : f32
      %52 = vector.broadcast %cst_25 : f32 to vector<8x32xf32>
      %c0_26 = arith.constant 0 : index
      %c0_27 = arith.constant 0 : index
      %53 = vector.load %arg23[%c0_26, %c0_27] : memref<8x32xf32, #tpu.memory_space<vmem>>, vector<8x32xf32>
      tpu.vector_store %arg23[%c0_26, %c0_27], %52 {strides = array<i32>} : memref<8x32xf32, #tpu.memory_space<vmem>>, vector<8x32xf32>,
    } else {
    }
    %c0 = arith.constant 0 : index
    %c0_1 = arith.constant 0 : index
    %3 = vector.load %arg4[%c0, %c0_1] : memref<8x1xi32, #tpu.memory_space<vmem>>, vector<8x1xi32>
    %c0_2 = arith.constant 0 : index
    %c0_3 = arith.constant 0 : index
    %4 = vector.load %arg5[%c0_2, %c0_3] : memref<32x1xf32, #tpu.memory_space<vmem>>, vector<32x1xf32>
    %5 = vector.shape_cast %4 : vector<32x1xf32> to vector<1x32x1xf32>
    %6 = vector.shape_cast %5 : vector<1x32x1xf32> to vector<1x32x1xf32>
    %7 = vector.broadcast %6 : vector<1x32x1xf32> to vector<1x32x128xf32>
    %c0_4 = arith.constant 0 : index
    %c0_5 = arith.constant 0 : index
    %8 = vector.load %arg6[%c0_4, %c0_5] : memref<32x1xf32, #tpu.memory_space<vmem>>, vector<32x1xf32>
    %9 = vector.shape_cast %8 : vector<32x1xf32> to vector<1x32x1xf32>
    %10 = vector.shape_cast %9 : vector<1x32x1xf32> to vector<1x32x1xf32>
    %11 = vector.broadcast %10 : vector<1x32x1xf32> to vector<1x32x128xf32>
    %c128_i32 = arith.constant 128 : i32
    %12 = arith.muli %arg1, %c128_i32 : i32
    %c0_6 = arith.constant 0 : index
    %c0_7 = arith.constant 0 : index
    %13 = vector.load %arg2[%c0_6, %c0_7] : memref<8x128xf32, #tpu.memory_space<vmem>>, vector<8x128xf32>
    %c0_8 = arith.constant 0 : index
    %c0_9 = arith.constant 0 : index
    %14 = vector.load %arg3[%c0_8, %c0_9] : memref<8x128xf32, #tpu.memory_space<vmem>>, vector<8x128xf32>
    %15 = vector.shape_cast %13 : vector<8x128xf32> to vector<8x1x128xf32>
    %16 = vector.broadcast %15 : vector<8x1x128xf32> to vector<8x32x128xf32>
    %17 = vector.broadcast %7 : vector<1x32x128xf32> to vector<8x32x128xf32>
    %18 = arith.mulf %16, %17 : vector<8x32x128xf32>
    %19 = vector.shape_cast %14 : vector<8x128xf32> to vector<8x1x128xf32>
    %20 = vector.broadcast %19 : vector<8x1x128xf32> to vector<8x32x128xf32>
    %21 = vector.broadcast %11 : vector<1x32x128xf32> to vector<8x32x128xf32>
    %22 = arith.mulf %20, %21 : vector<8x32x128xf32>
    %23 = arith.addf %18, %22 : vector<8x32x128xf32>
    %24 = math.cos %23 : vector<8x32x128xf32>
    %25 = math.sin %23 : vector<8x32x128xf32>
    %c0_i32_10 = arith.constant 0 : i32
    %26 = arith.addi %12, %c0_i32_10 : i32
    %27 = tpu.iota {dimensions = array<i32: 1>} : vector<8x128xi32>
    %28 = vector.broadcast %26 : i32 to vector<8x128xi32>
    %29 = arith.addi %28, %27 : vector<8x128xi32>
    %30 = vector.broadcast %3 : vector<8x1xi32> to vector<8x128xi32>
    %31 = arith.cmpi slt, %29, %30 : vector<8x128xi32>
    %32 = arith.extui %31 : vector<8x128xi1> to vector<8x128xi32>
    %33 = arith.sitofp %32 : vector<8x128xi32> to vector<8x128xf32>
    %34 = vector.shape_cast %33 : vector<8x128xf32> to vector<8x1x128xf32>
    %c0_11 = arith.constant 0 : index
    %c0_12 = arith.constant 0 : index
    %35 = vector.load %arg22[%c0_11, %c0_12] : memref<8x32xf32, #tpu.memory_space<vmem>>, vector<8x32xf32>
    %36 = vector.broadcast %34 : vector<8x1x128xf32> to vector<8x32x128xf32>
    %37 = arith.mulf %24, %36 : vector<8x32x128xf32>
    %cst = arith.constant dense<0.000000e+00> : vector<8x32xf32>
    %38 = vector.multi_reduction <add>, %37, %cst [2] : vector<8x32x128xf32> to vector<8x32xf32>
    %39 = arith.addf %35, %38 : vector<8x32xf32>
    %c0_13 = arith.constant 0 : index
    %c0_14 = arith.constant 0 : index
    %40 = vector.load %arg22[%c0_13, %c0_14] : memref<8x32xf32, #tpu.memory_space<vmem>>, vector<8x32xf32>
    tpu.vector_store %arg22[%c0_13, %c0_14], %39 {strides = array<i32>} : memref<8x32xf32, #tpu.memory_space<vmem>>, vector<8x32xf32>,
    %c0_15 = arith.constant 0 : index
    %c0_16 = arith.constant 0 : index
    %41 = vector.load %arg23[%c0_15, %c0_16] : memref<8x32xf32, #tpu.memory_space<vmem>>, vector<8x32xf32>
    %42 = vector.broadcast %34 : vector<8x1x128xf32> to vector<8x32x128xf32>
    %43 = arith.mulf %25, %42 : vector<8x32x128xf32>
    %cst_17 = arith.constant dense<0.000000e+00> : vector<8x32xf32>
    %44 = vector.multi_reduction <add>, %43, %cst_17 [2] : vector<8x32x128xf32> to vector<8x32xf32>
    %45 = arith.subf %41, %44 : vector<8x32xf32>
    %c0_18 = arith.constant 0 : index
    %c0_19 = arith.constant 0 : index
    %46 = vector.load %arg23[%c0_18, %c0_19] : memref<8x32xf32, #tpu.memory_space<vmem>>, vector<8x32xf32>
    tpu.vector_store %arg23[%c0_18, %c0_19], %45 {strides = array<i32>} : memref<8x32xf32, #tpu.memory_space<vmem>>, vector<8x32xf32>,
    %c0_i32_20 = arith.constant 0 : i32
    %47 = arith.cmpi eq, %arg1, %c0_i32_20 : i32
    %48 = arith.extui %47 : i1 to i32
    %c0_i32_21 = arith.constant 0 : i32
    %49 = arith.cmpi ne, %48, %c0_i32_21 : i32
    scf.if %49 {
      %c0_22 = arith.constant 0 : index
      %c0_23 = arith.constant 0 : index
      %50 = vector.load %arg22[%c0_22, %c0_23] : memref<8x32xf32, #tpu.memory_space<vmem>>, vector<8x32xf32>
      %c0_24 = arith.constant 0 : index
      %c0_25 = arith.constant 0 : index
      %51 = vector.load %arg23[%c0_24, %c0_25] : memref<8x32xf32, #tpu.memory_space<vmem>>, vector<8x32xf32>
      %52 = arith.mulf %50, %50 : vector<8x32xf32>
      %53 = arith.mulf %51, %51 : vector<8x32xf32>
      %54 = arith.addf %52, %53 : vector<8x32xf32>
      %55 = math.sqrt %54 : vector<8x32xf32>
      %56 = math.absf %50 : vector<8x32xf32>
      %57 = math.absf %51 : vector<8x32xf32>
      %58 = arith.maximumf %56, %57 : vector<8x32xf32>
      %59 = arith.minimumf %56, %57 : vector<8x32xf32>
      %cst_26 = arith.constant 0.000000e+00 : f32
      %60 = vector.broadcast %cst_26 : f32 to vector<8x32xf32>
      %61 = arith.cmpf oeq, %58, %60 : vector<8x32xf32>
      %cst_27 = arith.constant 1.000000e+00 : f32
      %62 = vector.broadcast %cst_27 : f32 to vector<8x32xf32>
      %63 = arith.select %61, %62, %58 : vector<8x32xi1>, vector<8x32xf32>
      %64 = arith.divf %59, %63 : vector<8x32xf32>
      %cst_28 = arith.constant 0.414213568 : f32
      %65 = vector.broadcast %cst_28 : f32 to vector<8x32xf32>
      %66 = arith.cmpf ogt, %64, %65 : vector<8x32xf32>
      %cst_29 = arith.constant 1.000000e+00 : f32
      %67 = vector.broadcast %cst_29 : f32 to vector<8x32xf32>
      %68 = arith.subf %64, %67 : vector<8x32xf32>
      %cst_30 = arith.constant 1.000000e+00 : f32
      %69 = vector.broadcast %cst_30 : f32 to vector<8x32xf32>
      %70 = arith.addf %64, %69 : vector<8x32xf32>
      %71 = arith.divf %68, %70 : vector<8x32xf32>
      %72 = arith.select %66, %71, %64 : vector<8x32xi1>, vector<8x32xf32>
      %73 = arith.mulf %72, %72 : vector<8x32xf32>
      %cst_31 = arith.constant 0.0805374458 : f32
      %74 = vector.broadcast %cst_31 : f32 to vector<8x32xf32>
      %75 = arith.mulf %74, %73 : vector<8x32xf32>
      %cst_32 = arith.constant 0.138776854 : f32
      %76 = vector.broadcast %cst_32 : f32 to vector<8x32xf32>
      %77 = arith.subf %75, %76 : vector<8x32xf32>
      %78 = arith.mulf %77, %73 : vector<8x32xf32>
      %cst_33 = arith.constant 0.199777111 : f32
      %79 = vector.broadcast %cst_33 : f32 to vector<8x32xf32>
      %80 = arith.addf %78, %79 : vector<8x32xf32>
      %81 = arith.mulf %80, %73 : vector<8x32xf32>
      %cst_34 = arith.constant 0.333329499 : f32
      %82 = vector.broadcast %cst_34 : f32 to vector<8x32xf32>
      %83 = arith.subf %81, %82 : vector<8x32xf32>
      %84 = arith.mulf %83, %73 : vector<8x32xf32>
      %85 = arith.mulf %84, %72 : vector<8x32xf32>
      %86 = arith.addf %85, %72 : vector<8x32xf32>
      %cst_35 = arith.constant 0.785398185 : f32
      %87 = vector.broadcast %cst_35 : f32 to vector<8x32xf32>
      %88 = arith.addf %86, %87 : vector<8x32xf32>
      %89 = arith.select %66, %88, %86 : vector<8x32xi1>, vector<8x32xf32>
      %90 = arith.cmpf ogt, %57, %56 : vector<8x32xf32>
      %cst_36 = arith.constant 1.57079637 : f32
      %91 = vector.broadcast %cst_36 : f32 to vector<8x32xf32>
      %92 = arith.subf %91, %89 : vector<8x32xf32>
      %93 = arith.select %90, %92, %89 : vector<8x32xi1>, vector<8x32xf32>
      %cst_37 = arith.constant 0.000000e+00 : f32
      %94 = vector.broadcast %cst_37 : f32 to vector<8x32xf32>
      %95 = arith.cmpf olt, %50, %94 : vector<8x32xf32>
      %cst_38 = arith.constant 3.14159274 : f32
      %96 = vector.broadcast %cst_38 : f32 to vector<8x32xf32>
      %97 = arith.subf %96, %93 : vector<8x32xf32>
      %98 = arith.select %95, %97, %93 : vector<8x32xi1>, vector<8x32xf32>
      %cst_39 = arith.constant 0.000000e+00 : f32
      %99 = vector.broadcast %cst_39 : f32 to vector<8x32xf32>
      %100 = arith.cmpf olt, %51, %99 : vector<8x32xf32>
      %cst_40 = arith.constant 0.000000e+00 : f32
      %101 = vector.broadcast %cst_40 : f32 to vector<8x32xf32>
      %102 = arith.subf %101, %98 : vector<8x32xf32>
      %103 = arith.select %100, %102, %98 : vector<8x32xi1>, vector<8x32xf32>
      %c0_41 = arith.constant 0 : index
      %c0_42 = arith.constant 0 : index
      %104 = vector.load %arg7[%c0_41, %c0_42] : memref<32x32xf32, #tpu.memory_space<vmem>>, vector<32x32xf32>
      %cst_43 = arith.constant dense<0.000000e+00> : vector<8x32xf32>
      %105 = tpu.matmul %55, %104, %cst_43 {dimension_numbers = #tpu.dot_dimension_numbers<[1], [0], [0], [1], [0, 0, 1, 1], [], []>} : vector<8x32xf32>, vector<32x32xf32>, vector<8x32xf32> -> vector<8x32xf32>
      %c0_44 = arith.constant 0 : index
      %c0_45 = arith.constant 0 : index
      %106 = vector.load %arg8[%c0_44, %c0_45] : memref<32x64xf32, #tpu.memory_space<vmem>>, vector<32x64xf32>
      %c0_46 = arith.constant 0 : index
      %c0_47 = arith.constant 0 : index
      %107 = vector.load %arg9[%c0_46, %c0_47] : memref<1x64xf32, #tpu.memory_space<vmem>>, vector<1x64xf32>
      %cst_48 = arith.constant dense<0.000000e+00> : vector<8x64xf32>
      %108 = tpu.matmul %105, %106, %cst_48 {dimension_numbers = #tpu.dot_dimension_numbers<[1], [0], [0], [1], [0, 0, 1, 1], [], []>} : vector<8x32xf32>, vector<32x64xf32>, vector<8x64xf32> -> vector<8x64xf32>
      %109 = vector.broadcast %107 : vector<1x64xf32> to vector<8x64xf32>
      %110 = arith.addf %108, %109 : vector<8x64xf32>
      %cst_49 = arith.constant 0.000000e+00 : f32
      %111 = vector.broadcast %cst_49 : f32 to vector<8x64xf32>
      %112 = arith.maximumf %110, %111 : vector<8x64xf32>
      %c0_50 = arith.constant 0 : index
      %c0_51 = arith.constant 0 : index
      %113 = vector.load %arg10[%c0_50, %c0_51] : memref<64x32xf32, #tpu.memory_space<vmem>>, vector<64x32xf32>
      %c0_52 = arith.constant 0 : index
      %c0_53 = arith.constant 0 : index
      %114 = vector.load %arg11[%c0_52, %c0_53] : memref<1x32xf32, #tpu.memory_space<vmem>>, vector<1x32xf32>
      %cst_54 = arith.constant dense<0.000000e+00> : vector<8x32xf32>
      %115 = tpu.matmul %112, %113, %cst_54 {dimension_numbers = #tpu.dot_dimension_numbers<[1], [0], [0], [1], [0, 0, 1, 1], [], []>} : vector<8x64xf32>, vector<64x32xf32>, vector<8x32xf32> -> vector<8x32xf32>
      %116 = vector.broadcast %114 : vector<1x32xf32> to vector<8x32xf32>
      %117 = arith.addf %115, %116 : vector<8x32xf32>
      %c0_55 = arith.constant 0 : index
      %c0_56 = arith.constant 0 : index
      %118 = vector.load %arg12[%c0_55, %c0_56] : memref<32x32xf32, #tpu.memory_space<vmem>>, vector<32x32xf32>
      %cst_57 = arith.constant dense<0.000000e+00> : vector<8x32xf32>
      %119 = tpu.matmul %103, %118, %cst_57 {dimension_numbers = #tpu.dot_dimension_numbers<[1], [0], [0], [1], [0, 0, 1, 1], [], []>} : vector<8x32xf32>, vector<32x32xf32>, vector<8x32xf32> -> vector<8x32xf32>
      %c0_58 = arith.constant 0 : index
      %c0_59 = arith.constant 0 : index
      %120 = vector.load %arg13[%c0_58, %c0_59] : memref<32x64xf32, #tpu.memory_space<vmem>>, vector<32x64xf32>
      %c0_60 = arith.constant 0 : index
      %c0_61 = arith.constant 0 : index
      %121 = vector.load %arg14[%c0_60, %c0_61] : memref<1x64xf32, #tpu.memory_space<vmem>>, vector<1x64xf32>
      %cst_62 = arith.constant dense<0.000000e+00> : vector<8x64xf32>
      %122 = tpu.matmul %119, %120, %cst_62 {dimension_numbers = #tpu.dot_dimension_numbers<[1], [0], [0], [1], [0, 0, 1, 1], [], []>} : vector<8x32xf32>, vector<32x64xf32>, vector<8x64xf32> -> vector<8x64xf32>
      %123 = vector.broadcast %121 : vector<1x64xf32> to vector<8x64xf32>
      %124 = arith.addf %122, %123 : vector<8x64xf32>
      %cst_63 = arith.constant 0.000000e+00 : f32
      %125 = vector.broadcast %cst_63 : f32 to vector<8x64xf32>
      %126 = arith.maximumf %124, %125 : vector<8x64xf32>
      %c0_64 = arith.constant 0 : index
      %c0_65 = arith.constant 0 : index
      %127 = vector.load %arg15[%c0_64, %c0_65] : memref<64x32xf32, #tpu.memory_space<vmem>>, vector<64x32xf32>
      %c0_66 = arith.constant 0 : index
      %c0_67 = arith.constant 0 : index
      %128 = vector.load %arg16[%c0_66, %c0_67] : memref<1x32xf32, #tpu.memory_space<vmem>>, vector<1x32xf32>
      %cst_68 = arith.constant dense<0.000000e+00> : vector<8x32xf32>
      %129 = tpu.matmul %126, %127, %cst_68 {dimension_numbers = #tpu.dot_dimension_numbers<[1], [0], [0], [1], [0, 0, 1, 1], [], []>} : vector<8x64xf32>, vector<64x32xf32>, vector<8x32xf32> -> vector<8x32xf32>
      %130 = vector.broadcast %128 : vector<1x32xf32> to vector<8x32xf32>
      %131 = arith.addf %129, %130 : vector<8x32xf32>
      %c0_69 = arith.constant 0 : index
      %c0_70 = arith.constant 0 : index
      %132 = vector.load %arg17[%c0_69, %c0_70] : memref<64x64xf32, #tpu.memory_space<vmem>>, vector<32x64xf32>
      %cst_71 = arith.constant dense<0.000000e+00> : vector<8x64xf32>
      %133 = tpu.matmul %117, %132, %cst_71 {dimension_numbers = #tpu.dot_dimension_numbers<[1], [0], [0], [1], [0, 0, 1, 1], [], []>} : vector<8x32xf32>, vector<32x64xf32>, vector<8x64xf32> -> vector<8x64xf32>
      %c32 = arith.constant 32 : index
      %c0_72 = arith.constant 0 : index
      %134 = vector.load %arg17[%c32, %c0_72] : memref<64x64xf32, #tpu.memory_space<vmem>>, vector<32x64xf32>
      %cst_73 = arith.constant dense<0.000000e+00> : vector<8x64xf32>
      %135 = tpu.matmul %131, %134, %cst_73 {dimension_numbers = #tpu.dot_dimension_numbers<[1], [0], [0], [1], [0, 0, 1, 1], [], []>} : vector<8x32xf32>, vector<32x64xf32>, vector<8x64xf32> -> vector<8x64xf32>
      %136 = arith.addf %133, %135 : vector<8x64xf32>
      %c0_74 = arith.constant 0 : index
      %c0_75 = arith.constant 0 : index
      %137 = vector.load %arg18[%c0_74, %c0_75] : memref<1x64xf32, #tpu.memory_space<vmem>>, vector<1x64xf32>
      %138 = vector.broadcast %137 : vector<1x64xf32> to vector<8x64xf32>
      %139 = arith.addf %136, %138 : vector<8x64xf32>
      %cst_76 = arith.constant 0.000000e+00 : f32
      %140 = vector.broadcast %cst_76 : f32 to vector<8x64xf32>
      %141 = arith.maximumf %139, %140 : vector<8x64xf32>
      %c0_77 = arith.constant 0 : index
      %c0_78 = arith.constant 0 : index
      %142 = vector.load %arg19[%c0_77, %c0_78] : memref<64x16xf32, #tpu.memory_space<vmem>>, vector<64x16xf32>
      %c0_79 = arith.constant 0 : index
      %c0_80 = arith.constant 0 : index
      %143 = vector.load %arg20[%c0_79, %c0_80] : memref<1x16xf32, #tpu.memory_space<vmem>>, vector<1x16xf32>
      %cst_81 = arith.constant dense<0.000000e+00> : vector<8x16xf32>
      %144 = tpu.matmul %141, %142, %cst_81 {dimension_numbers = #tpu.dot_dimension_numbers<[1], [0], [0], [1], [0, 0, 1, 1], [], []>} : vector<8x64xf32>, vector<64x16xf32>, vector<8x16xf32> -> vector<8x16xf32>
      %145 = vector.broadcast %143 : vector<1x16xf32> to vector<8x16xf32>
      %146 = arith.addf %144, %145 : vector<8x16xf32>
      %c0_82 = arith.constant 0 : index
      %c0_83 = arith.constant 0 : index
      %147 = vector.load %arg21[%c0_82, %c0_83] : memref<8x16xf32, #tpu.memory_space<vmem>>, vector<8x16xf32>
      tpu.vector_store %arg21[%c0_82, %c0_83], %146 {strides = array<i32>} : memref<8x16xf32, #tpu.memory_space<vmem>>, vector<8x16xf32>,
    } else {
    }
    return
  }
  func.func @transform_0(%arg0: i32, %arg1: i32) -> (i32, i32) {
    %c0_i32 = arith.constant 0 : i32
    return %arg0, %arg1 : i32, i32
  }
  func.func @transform_1(%arg0: i32, %arg1: i32) -> (i32, i32) {
    %c0_i32 = arith.constant 0 : i32
    return %arg0, %arg1 : i32, i32
  }
  func.func @transform_2(%arg0: i32, %arg1: i32) -> (i32, i32) {
    %c0_i32 = arith.constant 0 : i32
    %c0_i32_0 = arith.constant 0 : i32
    return %arg0, %c0_i32 : i32, i32
  }
  func.func @transform_3(%arg0: i32, %arg1: i32) -> (i32, i32) {
    %c0_i32 = arith.constant 0 : i32
    %c0_i32_0 = arith.constant 0 : i32
    %c0_i32_1 = arith.constant 0 : i32
    return %c0_i32, %c0_i32_0 : i32, i32
  }
  func.func @transform_4(%arg0: i32, %arg1: i32) -> (i32, i32) {
    %c0_i32 = arith.constant 0 : i32
    %c0_i32_0 = arith.constant 0 : i32
    %c0_i32_1 = arith.constant 0 : i32
    return %c0_i32, %c0_i32_0 : i32, i32
  }
  func.func @transform_5(%arg0: i32, %arg1: i32) -> (i32, i32) {
    %c0_i32 = arith.constant 0 : i32
    %c0_i32_0 = arith.constant 0 : i32
    %c0_i32_1 = arith.constant 0 : i32
    return %c0_i32, %c0_i32_0 : i32, i32
  }
  func.func @transform_6(%arg0: i32, %arg1: i32) -> (i32, i32) {
    %c0_i32 = arith.constant 0 : i32
    %c0_i32_0 = arith.constant 0 : i32
    %c0_i32_1 = arith.constant 0 : i32
    return %c0_i32, %c0_i32_0 : i32, i32
  }
  func.func @transform_7(%arg0: i32, %arg1: i32) -> (i32, i32) {
    %c0_i32 = arith.constant 0 : i32
    %c0_i32_0 = arith.constant 0 : i32
    %c0_i32_1 = arith.constant 0 : i32
    return %c0_i32, %c0_i32_0 : i32, i32
  }
  func.func @transform_8(%arg0: i32, %arg1: i32) -> (i32, i32) {
    %c0_i32 = arith.constant 0 : i32
    %c0_i32_0 = arith.constant 0 : i32
    %c0_i32_1 = arith.constant 0 : i32
    return %c0_i32, %c0_i32_0 : i32, i32
  }
  func.func @transform_9(%arg0: i32, %arg1: i32) -> (i32, i32) {
    %c0_i32 = arith.constant 0 : i32
    %c0_i32_0 = arith.constant 0 : i32
    %c0_i32_1 = arith.constant 0 : i32
    return %c0_i32, %c0_i32_0 : i32, i32
  }
  func.func @transform_10(%arg0: i32, %arg1: i32) -> (i32, i32) {
    %c0_i32 = arith.constant 0 : i32
    %c0_i32_0 = arith.constant 0 : i32
    %c0_i32_1 = arith.constant 0 : i32
    return %c0_i32, %c0_i32_0 : i32, i32
  }
  func.func @transform_11(%arg0: i32, %arg1: i32) -> (i32, i32) {
    %c0_i32 = arith.constant 0 : i32
    %c0_i32_0 = arith.constant 0 : i32
    %c0_i32_1 = arith.constant 0 : i32
    return %c0_i32, %c0_i32_0 : i32, i32
  }
  func.func @transform_12(%arg0: i32, %arg1: i32) -> (i32, i32) {
    %c0_i32 = arith.constant 0 : i32
    %c0_i32_0 = arith.constant 0 : i32
    %c0_i32_1 = arith.constant 0 : i32
    return %c0_i32, %c0_i32_0 : i32, i32
  }
  func.func @transform_13(%arg0: i32, %arg1: i32) -> (i32, i32) {
    %c0_i32 = arith.constant 0 : i32
    %c0_i32_0 = arith.constant 0 : i32
    %c0_i32_1 = arith.constant 0 : i32
    return %c0_i32, %c0_i32_0 : i32, i32
  }
  func.func @transform_14(%arg0: i32, %arg1: i32) -> (i32, i32) {
    %c0_i32 = arith.constant 0 : i32
    %c0_i32_0 = arith.constant 0 : i32
    %c0_i32_1 = arith.constant 0 : i32
    return %c0_i32, %c0_i32_0 : i32, i32
  }
  func.func @transform_15(%arg0: i32, %arg1: i32) -> (i32, i32) {
    %c0_i32 = arith.constant 0 : i32
    %c0_i32_0 = arith.constant 0 : i32
    %c0_i32_1 = arith.constant 0 : i32
    return %c0_i32, %c0_i32_0 : i32, i32
  }
  func.func @transform_16(%arg0: i32, %arg1: i32) -> (i32, i32) {
    %c0_i32 = arith.constant 0 : i32
    %c0_i32_0 = arith.constant 0 : i32
    %c0_i32_1 = arith.constant 0 : i32
    return %c0_i32, %c0_i32_0 : i32, i32
  }
  func.func @transform_17(%arg0: i32, %arg1: i32) -> (i32, i32) {
    %c0_i32 = arith.constant 0 : i32
    %c0_i32_0 = arith.constant 0 : i32
    %c0_i32_1 = arith.constant 0 : i32
    return %c0_i32, %c0_i32_0 : i32, i32
  }
  func.func @transform_18(%arg0: i32, %arg1: i32) -> (i32, i32) {
    %c0_i32 = arith.constant 0 : i32
    %c0_i32_0 = arith.constant 0 : i32
    %c0_i32_1 = arith.constant 0 : i32
    return %c0_i32, %c0_i32_0 : i32, i32
  }
  func.func @transform_19(%arg0: i32, %arg1: i32) -> (i32, i32) {
    %c0_i32 = arith.constant 0 : i32
    %c0_i32_0 = arith.constant 0 : i32
    return %arg0, %c0_i32 : i32, i32
  }
}

</mosaic_0001>

<llo_original>
// kernel: tpu_custom_call.1
$region0: #{tpu_custom_call.1}
  #allocation0 [shape = 'u32[]', space=smem, size = 0x4, offset = 0x4, fixed_abs, tag = 'smem constant byte address 0x4 - core index']
  #allocation1 [shape = 'u32[144,128]{1,0:T(1,128)}', space=vmem, size = 0x12000, scoped, tag = 'internal scratch']
  #allocation2 [shape = 'f32[8,32]{1,0:T(8,128)}', space=vmem, size = 0x1000, scoped, tag = 'scratch operand']
  #allocation3 [shape = 'f32[8,32]{1,0:T(8,128)}', space=vmem, size = 0x1000, scoped, tag = 'scratch operand']
  %s0 = inlined_call_operand.vmem [shape: f32[8,128], index: 0, kind: input, shape index: {}]
  %s1 = inlined_call_operand.vmem [shape: f32[8,128], index: 1, kind: input, shape index: {}]
  %s2 = inlined_call_operand.vmem [shape: s32[8,1], index: 2, kind: input, shape index: {}]
  %s3 = inlined_call_operand.vmem [shape: f32[32,1], index: 3, kind: input, shape index: {}]
  %s4 = inlined_call_operand.vmem [shape: f32[32,1], index: 4, kind: input, shape index: {}]
  %s5 = inlined_call_operand.vmem [shape: f32[32,32], index: 5, kind: input, shape index: {}]
  %s6 = inlined_call_operand.vmem [shape: f32[32,64], index: 6, kind: input, shape index: {}]
  %s7 = inlined_call_operand.vmem [shape: f32[1,64], index: 7, kind: input, shape index: {}]
  %s8 = inlined_call_operand.vmem [shape: f32[64,32], index: 8, kind: input, shape index: {}]
  %s9 = inlined_call_operand.vmem [shape: f32[1,32], index: 9, kind: input, shape index: {}]
  %s10 = inlined_call_operand.vmem [shape: f32[32,32], index: 10, kind: input, shape index: {}]
  %s11 = inlined_call_operand.vmem [shape: f32[32,64], index: 11, kind: input, shape index: {}]
  %s12 = inlined_call_operand.vmem [shape: f32[1,64], index: 12, kind: input, shape index: {}]
  %s13 = inlined_call_operand.vmem [shape: f32[64,32], index: 13, kind: input, shape index: {}]
  %s14 = inlined_call_operand.vmem [shape: f32[1,32], index: 14, kind: input, shape index: {}]
  %s15 = inlined_call_operand.vmem [shape: f32[64,64], index: 15, kind: input, shape index: {}]
  %s16 = inlined_call_operand.vmem [shape: f32[1,64], index: 16, kind: input, shape index: {}]
  %s17 = inlined_call_operand.vmem [shape: f32[64,16], index: 17, kind: input, shape index: {}]
  %s18 = inlined_call_operand.vmem [shape: f32[1,16], index: 18, kind: input, shape index: {}]
  %s19 = inlined_call_operand.hbm [shape: f32[8,16], index: 19, kind: output, shape index: {}]
  %s20 = sld [smem:[#allocation0]]
  $region94: #{tpu_custom_call.1} parent=0
    _
  %s22 = ssub.s32 1, %s20
  %s23 = scalar_select 0, %s22, %s20
  $region1: #{tpu_custom_call.1} parent=0
    #allocation4 [shape = 'u8[4096]{0}', space=vmem, size = 0x1000, scoped, tag = 'output window, operand 0, single buffered']
    #allocation5 [shape = 's32[1]{0}', space=sflag, size = 0x4, scoped, tag = 'scoped memory for tpu_custom_call.1']
    %24 = vsyncpa [#allocation5], 0
    // Predicated region
    $region2: #{tpu_custom_call.1} parent=1 // pred_check
      _
    $region3: #{tpu_custom_call.1} parent=1 // pred_check_branch
      %26 = sbr.rel (0) target = $region5
    $region4: #{tpu_custom_call.1} parent=1 // pred_region
      _
    $region5: #{tpu_custom_call.1} parent=1 // pred_fallthru
      _
    // Predicated region
    $region6: #{tpu_custom_call.1} parent=1 // pred_check
      _
    $region7: #{tpu_custom_call.1} parent=1 // pred_check_branch
      %28 = sbr.rel (0) target = $region9
    $region8: #{tpu_custom_call.1} parent=1 // pred_region
      _
    $region9: #{tpu_custom_call.1} parent=1 // pred_fallthru
      _
    // Predicated region
    $region10: #{tpu_custom_call.1} parent=1 // pred_check
      _
    $region11: #{tpu_custom_call.1} parent=1 // pred_check_branch
      %30 = sbr.rel (0) target = $region13
    $region12: #{tpu_custom_call.1} parent=1 // pred_region
      _
    $region13: #{tpu_custom_call.1} parent=1 // pred_fallthru
      _
    // Predicated region
    $region14: #{tpu_custom_call.1} parent=1 // pred_check
      _
    $region15: #{tpu_custom_call.1} parent=1 // pred_check_branch
      %32 = sbr.rel (0) target = $region17
    $region16: #{tpu_custom_call.1} parent=1 // pred_region
      _
    $region17: #{tpu_custom_call.1} parent=1 // pred_fallthru
      _
    // Predicated region
    $region18: #{tpu_custom_call.1} parent=1 // pred_check
      _
    $region19: #{tpu_custom_call.1} parent=1 // pred_check_branch
      %34 = sbr.rel (0) target = $region21
    $region20: #{tpu_custom_call.1} parent=1 // pred_region
      _
    $region21: #{tpu_custom_call.1} parent=1 // pred_fallthru
      _
    // Predicated region
    $region22: #{tpu_custom_call.1} parent=1 // pred_check
      _
    $region23: #{tpu_custom_call.1} parent=1 // pred_check_branch
      %36 = sbr.rel (0) target = $region25
    $region24: #{tpu_custom_call.1} parent=1 // pred_region
      _
    $region25: #{tpu_custom_call.1} parent=1 // pred_fallthru
      _
    // Predicated region
    $region26: #{tpu_custom_call.1} parent=1 // pred_check
      _
    $region27: #{tpu_custom_call.1} parent=1 // pred_check_branch
      %38 = sbr.rel (0) target = $region29
    $region28: #{tpu_custom_call.1} parent=1 // pred_region
      _
    $region29: #{tpu_custom_call.1} parent=1 // pred_fallthru
      _
    // Predicated region
    $region30: #{tpu_custom_call.1} parent=1 // pred_check
      _
    $region31: #{tpu_custom_call.1} parent=1 // pred_check_branch
      %40 = sbr.rel (0) target = $region33
    $region32: #{tpu_custom_call.1} parent=1 // pred_region
      _
    $region33: #{tpu_custom_call.1} parent=1 // pred_fallthru
      _
    // Predicated region
    $region34: #{tpu_custom_call.1} parent=1 // pred_check
      _
    $region35: #{tpu_custom_call.1} parent=1 // pred_check_branch
      %42 = sbr.rel (0) target = $region37
    $region36: #{tpu_custom_call.1} parent=1 // pred_region
      _
    $region37: #{tpu_custom_call.1} parent=1 // pred_fallthru
      _
    // Predicated region
    $region38: #{tpu_custom_call.1} parent=1 // pred_check
      _
    $region39: #{tpu_custom_call.1} parent=1 // pred_check_branch
      %44 = sbr.rel (0) target = $region41
    $region40: #{tpu_custom_call.1} parent=1 // pred_region
      _
    $region41: #{tpu_custom_call.1} parent=1 // pred_fallthru
      _
    // Predicated region
    $region42: #{tpu_custom_call.1} parent=1 // pred_check
      _
    $region43: #{tpu_custom_call.1} parent=1 // pred_check_branch
      %46 = sbr.rel (0) target = $region45
    $region44: #{tpu_custom_call.1} parent=1 // pred_region
      _
    $region45: #{tpu_custom_call.1} parent=1 // pred_fallthru
      _
    // Predicated region
    $region46: #{tpu_custom_call.1} parent=1 // pred_check
      _
    $region47: #{tpu_custom_call.1} parent=1 // pred_check_branch
      %48 = sbr.rel (0) target = $region49
    $region48: #{tpu_custom_call.1} parent=1 // pred_region
      _
    $region49: #{tpu_custom_call.1} parent=1 // pred_fallthru
      _
    // Predicated region
    $region50: #{tpu_custom_call.1} parent=1 // pred_check
      _
    $region51: #{tpu_custom_call.1} parent=1 // pred_check_branch
      %50 = sbr.rel (0) target = $region53
    $region52: #{tpu_custom_call.1} parent=1 // pred_region
      _
    $region53: #{tpu_custom_call.1} parent=1 // pred_fallthru
      _
    // Predicated region
    $region54: #{tpu_custom_call.1} parent=1 // pred_check
      _
    $region55: #{tpu_custom_call.1} parent=1 // pred_check_branch
      %52 = sbr.rel (0) target = $region57
    $region56: #{tpu_custom_call.1} parent=1 // pred_region
      _
    $region57: #{tpu_custom_call.1} parent=1 // pred_fallthru
      _
    // Predicated region
    $region58: #{tpu_custom_call.1} parent=1 // pred_check
      _
    $region59: #{tpu_custom_call.1} parent=1 // pred_check_branch
      %54 = sbr.rel (0) target = $region61
    $region60: #{tpu_custom_call.1} parent=1 // pred_region
      _
    $region61: #{tpu_custom_call.1} parent=1 // pred_fallthru
      _
    // Predicated region
    $region62: #{tpu_custom_call.1} parent=1 // pred_check
      _
    $region63: #{tpu_custom_call.1} parent=1 // pred_check_branch
      %56 = sbr.rel (0) target = $region65
    $region64: #{tpu_custom_call.1} parent=1 // pred_region
      _
    $region65: #{tpu_custom_call.1} parent=1 // pred_fallthru
      _
    // Predicated region
    $region66: #{tpu_custom_call.1} parent=1 // pred_check
      _
    $region67: #{tpu_custom_call.1} parent=1 // pred_check_branch
      %58 = sbr.rel (0) target = $region69
    $region68: #{tpu_custom_call.1} parent=1 // pred_region
      _
    $region69: #{tpu_custom_call.1} parent=1 // pred_fallthru
      _
    // Predicated region
    $region70: #{tpu_custom_call.1} parent=1 // pred_check
      _
    $region71: #{tpu_custom_call.1} parent=1 // pred_check_branch
      %60 = sbr.rel (0) target = $region73
    $region72: #{tpu_custom_call.1} parent=1 // pred_region
      _
    $region73: #{tpu_custom_call.1} parent=1 // pred_fallthru
      _
    // Predicated region
    $region74: #{tpu_custom_call.1} parent=1 // pred_check
      _
    $region75: #{tpu_custom_call.1} parent=1 // pred_check_branch
      %62 = sbr.rel (0) target = $region77
    $region76: #{tpu_custom_call.1} parent=1 // pred_region
      _
    $region77: #{tpu_custom_call.1} parent=1 // pred_fallthru
      _
    %p63 = scmp.eq.s32.totalorder 0, 0
    // Predicated region
    $region78: #{tpu_custom_call.1} parent=1 // pred_check
      %p64 = pneg %p63
    $region79: #{tpu_custom_call.1} parent=1 // pred_check_branch
      %66 = sbr.rel (%p64) target = $region81
    $region80: #{tpu_custom_call.1} parent=1 // pred_region
      %vm67 = vcmask 261120
      %68 = vst.msk [vmem:[#allocation2] sm:$0xff] %vm67, 0.0
      %69 = vst.msk [vmem:[#allocation3] sm:$0xff] %vm67, 0.0
    $region81: #{tpu_custom_call.1} parent=1 // pred_fallthru
      _
    %v70 = vld [vmem:[%s2] sm:$0xff]
    %v71 = vld [vmem:[%s3] sm:$0xff]
    %v72 = vld [vmem:[%s3 + $0x8] sm:$0xff]
    %v73 = vld [vmem:[%s3 + $0x10] sm:$0xff]
    %v74 = vld [vmem:[%s3 + $0x18] sm:$0xff]
    %v75 = vld [vmem:[%s4] sm:$0xff]
    %v76 = vld [vmem:[%s4 + $0x8] sm:$0xff]
    %v77 = vld [vmem:[%s4 + $0x10] sm:$0xff]
    %v78 = vld [vmem:[%s4 + $0x18] sm:$0xff]
    %s79 = smul.u32 0, 128
    %v80 = vld [vmem:[%s0] sm:$0xff]
    %v81 = vld [vmem:[%s1] sm:$0xff]
    %v83 = vcombine.high %v80, %v80
    %v85 = vunpack.c.l.s4 1966171168
    %v86 = vunpack.c.0.s8 %v85
    %v87 = vlaneseq
    %v88 = vshrl.u32 %v87, 7
    %v89 = vsub.s32 %v86, %v88
    %v90 = vrot.slane %v80, %v89
    %v92 = vunpack.c.l.s4 1966171168
    %v93 = vunpack.c.0.s8 %v92
    %v94 = vlaneseq
    %v95 = vshrl.u32 %v94, 7
    %v96 = vsub.s32 %v93, %v95
    %v97 = vrot.slane %v83, %v96
    %v98 = vcombine.high %v90, %v90
    %v99 = vcombine.high %v97, %v97
    %v101 = vunpack.c.l.s4 1966171168
    %v102 = vunpack.c.0.s8 %v101
    %v103 = vlaneseq
    %v104 = vshrl.u32 %v103, 7
    %v105 = vsub.s32 %v102, %v104
    %v106 = vrot.slane %v90, %v105
    %v108 = vunpack.c.l.s4 1966171168
    %v109 = vunpack.c.0.s8 %v108
    %v110 = vlaneseq
    %v111 = vshrl.u32 %v110, 7
    %v112 = vsub.s32 %v109, %v111
    %v113 = vrot.slane %v97, %v112
    %v115 = vunpack.c.l.s4 1966171168
    %v116 = vunpack.c.0.s8 %v115
    %v117 = vlaneseq
    %v118 = vshrl.u32 %v117, 7
    %v119 = vsub.s32 %v116, %v118
    %v120 = vrot.slane %v98, %v119
    %v122 = vunpack.c.l.s4 1966171168
    %v123 = vunpack.c.0.s8 %v122
    %v124 = vlaneseq
    %v125 = vshrl.u32 %v124, 7
    %v126 = vsub.s32 %v123, %v125
    %v127 = vrot.slane %v99, %v126
    %v128 = vcombine.high %v106, %v106
    %v129 = vcombine.high %v113, %v113
    %v130 = vcombine.high %v120, %v120
    %v131 = vcombine.high %v127, %v127
    %v132 = vlaneseq
    %v133 = vshrl.u32 %v132, 7
    %v134 = vsub.s32 0, %v133
    %v135 = vrot.slane %v106, %v134
    %v136 = vlaneseq
    %v137 = vshrl.u32 %v136, 7
    %v138 = vsub.s32 0, %v137
    %v139 = vrot.slane %v120, %v138
    %v140 = vlaneseq
    %v141 = vshrl.u32 %v140, 7
    %v142 = vsub.s32 0, %v141
    %v143 = vrot.slane %v128, %v142
    %v144 = vlaneseq
    %v145 = vshrl.u32 %v144, 7
    %v146 = vsub.s32 0, %v145
    %v147 = vrot.slane %v130, %v146
    %v148 = vlaneseq
    %v149 = vshrl.u32 %v148, 7
    %v150 = vsub.s32 0, %v149
    %v151 = vrot.slane %v113, %v150
    %v152 = vlaneseq
    %v153 = vshrl.u32 %v152, 7
    %v154 = vsub.s32 0, %v153
    %v155 = vrot.slane %v127, %v154
    %v156 = vlaneseq
    %v157 = vshrl.u32 %v156, 7
    %v158 = vsub.s32 0, %v157
    %v159 = vrot.slane %v129, %v158
    %v160 = vlaneseq
    %v161 = vshrl.u32 %v160, 7
    %v162 = vsub.s32 0, %v161
    %v163 = vrot.slane %v131, %v162
    %173 = vset.pattern.permute.xlu0 0
    %174 = vperm.xlu0 %173, %v71
    %v175 = vpop.permute.xlu0 %174
    %178 = vset.pattern.permute.xlu0 0
    %179 = vperm.xlu0 %178, %v72
    %v180 = vpop.permute.xlu0 %179
    %183 = vset.pattern.permute.xlu0 0
    %184 = vperm.xlu0 %183, %v73
    %v185 = vpop.permute.xlu0 %184
    %188 = vset.pattern.permute.xlu0 0
    %189 = vperm.xlu0 %188, %v74
    %v190 = vpop.permute.xlu0 %189
    %v192 = vmul.f32 %v135, %v175
    %v193 = vmul.f32 %v135, %v180
    %v194 = vmul.f32 %v135, %v185
    %v195 = vmul.f32 %v135, %v190
    %v196 = vmul.f32 %v139, %v175
    %v197 = vmul.f32 %v139, %v180
    %v198 = vmul.f32 %v139, %v185
    %v199 = vmul.f32 %v139, %v190
    %v200 = vmul.f32 %v143, %v175
    %v201 = vmul.f32 %v143, %v180
    %v202 = vmul.f32 %v143, %v185
    %v203 = vmul.f32 %v143, %v190
    %v204 = vmul.f32 %v147, %v175
    %v205 = vmul.f32 %v147, %v180
    %v206 = vmul.f32 %v147, %v185
    %v207 = vmul.f32 %v147, %v190
    %v208 = vmul.f32 %v151, %v175
    %v209 = vmul.f32 %v151, %v180
    %v210 = vmul.f32 %v151, %v185
    %v211 = vmul.f32 %v151, %v190
    %v212 = vmul.f32 %v155, %v175
    %v213 = vmul.f32 %v155, %v180
    %v214 = vmul.f32 %v155, %v185
    %v215 = vmul.f32 %v155, %v190
    %v216 = vmul.f32 %v159, %v175
    %v217 = vmul.f32 %v159, %v180
    %v218 = vmul.f32 %v159, %v185
    %v219 = vmul.f32 %v159, %v190
    %v220 = vmul.f32 %v163, %v175
    %v221 = vmul.f32 %v163, %v180
    %v222 = vmul.f32 %v163, %v185
    %v223 = vmul.f32 %v163, %v190
    %v225 = vcombine.high %v81, %v81
    %v227 = vunpack.c.l.s4 1966171168
    %v228 = vunpack.c.0.s8 %v227
    %v229 = vlaneseq
    %v230 = vshrl.u32 %v229, 7
    %v231 = vsub.s32 %v228, %v230
    %v232 = vrot.slane %v81, %v231
    %v234 = vunpack.c.l.s4 1966171168
    %v235 = vunpack.c.0.s8 %v234
    %v236 = vlaneseq
    %v237 = vshrl.u32 %v236, 7
    %v238 = vsub.s32 %v235, %v237
    %v239 = vrot.slane %v225, %v238
    %v240 = vcombine.high %v232, %v232
    %v241 = vcombine.high %v239, %v239
    %v243 = vunpack.c.l.s4 1966171168
    %v244 = vunpack.c.0.s8 %v243
    %v245 = vlaneseq
    %v246 = vshrl.u32 %v245, 7
    %v247 = vsub.s32 %v244, %v246
    %v248 = vrot.slane %v232, %v247
    %v250 = vunpack.c.l.s4 1966171168
    %v251 = vunpack.c.0.s8 %v250
    %v252 = vlaneseq
    %v253 = vshrl.u32 %v252, 7
    %v254 = vsub.s32 %v251, %v253
    %v255 = vrot.slane %v239, %v254
    %v257 = vunpack.c.l.s4 1966171168
    %v258 = vunpack.c.0.s8 %v257
    %v259 = vlaneseq
    %v260 = vshrl.u32 %v259, 7
    %v261 = vsub.s32 %v258, %v260
    %v262 = vrot.slane %v240, %v261
    %v264 = vunpack.c.l.s4 1966171168
    %v265 = vunpack.c.0.s8 %v264
    %v266 = vlaneseq
    %v267 = vshrl.u32 %v266, 7
    %v268 = vsub.s32 %v265, %v267
    %v269 = vrot.slane %v241, %v268
    %v270 = vcombine.high %v248, %v248
    %v271 = vcombine.high %v255, %v255
    %v272 = vcombine.high %v262, %v262
    %v273 = vcombine.high %v269, %v269
    %v274 = vlaneseq
    %v275 = vshrl.u32 %v274, 7
    %v276 = vsub.s32 0, %v275
    %v277 = vrot.slane %v248, %v276
    %v278 = vlaneseq
    %v279 = vshrl.u32 %v278, 7
    %v280 = vsub.s32 0, %v279
    %v281 = vrot.slane %v262, %v280
    %v282 = vlaneseq
    %v283 = vshrl.u32 %v282, 7
    %v284 = vsub.s32 0, %v283
    %v285 = vrot.slane %v270, %v284
    %v286 = vlaneseq
    %v287 = vshrl.u32 %v286, 7
    %v288 = vsub.s32 0, %v287
    %v289 = vrot.slane %v272, %v288
    %v290 = vlaneseq
    %v291 = vshrl.u32 %v290, 7
    %v292 = vsub.s32 0, %v291
    %v293 = vrot.slane %v255, %v292
    %v294 = vlaneseq
    %v295 = vshrl.u32 %v294, 7
    %v296 = vsub.s32 0, %v295
    %v297 = vrot.slane %v269, %v296
    %v298 = vlaneseq
    %v299 = vshrl.u32 %v298, 7
    %v300 = vsub.s32 0, %v299
    %v301 = vrot.slane %v271, %v300
    %v302 = vlaneseq
    %v303 = vshrl.u32 %v302, 7
    %v304 = vsub.s32 0, %v303
    %v305 = vrot.slane %v273, %v304
    %315 = vset.pattern.permute.xlu0 0
    %316 = vperm.xlu0 %315, %v75
    %v317 = vpop.permute.xlu0 %316
    %320 = vset.pattern.permute.xlu0 0
    %321 = vperm.xlu0 %320, %v76
    %v322 = vpop.permute.xlu0 %321
    %325 = vset.pattern.permute.xlu0 0
    %326 = vperm.xlu0 %325, %v77
    %v327 = vpop.permute.xlu0 %326
    %330 = vset.pattern.permute.xlu0 0
    %331 = vperm.xlu0 %330, %v78
    %v332 = vpop.permute.xlu0 %331
    %v334 = vmul.f32 %v277, %v317
    %v335 = vmul.f32 %v277, %v322
    %v336 = vmul.f32 %v277, %v327
    %v337 = vmul.f32 %v277, %v332
    %v338 = vmul.f32 %v281, %v317
    %v339 = vmul.f32 %v281, %v322
    %v340 = vmul.f32 %v281, %v327
    %v341 = vmul.f32 %v281, %v332
    %v342 = vmul.f32 %v285, %v317
    %v343 = vmul.f32 %v285, %v322
    %v344 = vmul.f32 %v285, %v327
    %v345 = vmul.f32 %v285, %v332
    %v346 = vmul.f32 %v289, %v317
    %v347 = vmul.f32 %v289, %v322
    %v348 = vmul.f32 %v289, %v327
    %v349 = vmul.f32 %v289, %v332
    %v350 = vmul.f32 %v293, %v317
    %v351 = vmul.f32 %v293, %v322
    %v352 = vmul.f32 %v293, %v327
    %v353 = vmul.f32 %v293, %v332
    %v354 = vmul.f32 %v297, %v317
    %v355 = vmul.f32 %v297, %v322
    %v356 = vmul.f32 %v297, %v327
    %v357 = vmul.f32 %v297, %v332
    %v358 = vmul.f32 %v301, %v317
    %v359 = vmul.f32 %v301, %v322
    %v360 = vmul.f32 %v301, %v327
    %v361 = vmul.f32 %v301, %v332
    %v362 = vmul.f32 %v305, %v317
    %v363 = vmul.f32 %v305, %v322
    %v364 = vmul.f32 %v305, %v327
    %v365 = vmul.f32 %v305, %v332
    %v366 = vadd.f32 %v192, %v334
    %v367 = vadd.f32 %v193, %v335
    %v368 = vadd.f32 %v194, %v336
    %v369 = vadd.f32 %v195, %v337
    %v370 = vadd.f32 %v196, %v338
    %v371 = vadd.f32 %v197, %v339
    %v372 = vadd.f32 %v198, %v340
    %v373 = vadd.f32 %v199, %v341
    %v374 = vadd.f32 %v200, %v342
    %v375 = vadd.f32 %v201, %v343
    %v376 = vadd.f32 %v202, %v344
    %v377 = vadd.f32 %v203, %v345
    %v378 = vadd.f32 %v204, %v346
    %v379 = vadd.f32 %v205, %v347
    %v380 = vadd.f32 %v206, %v348
    %v381 = vadd.f32 %v207, %v349
    %v382 = vadd.f32 %v208, %v350
    %v383 = vadd.f32 %v209, %v351
    %v384 = vadd.f32 %v210, %v352
    %v385 = vadd.f32 %v211, %v353
    %v386 = vadd.f32 %v212, %v354
    %v387 = vadd.f32 %v213, %v355
    %v388 = vadd.f32 %v214, %v356
    %v389 = vadd.f32 %v215, %v357
    %v390 = vadd.f32 %v216, %v358
    %v391 = vadd.f32 %v217, %v359
    %v392 = vadd.f32 %v218, %v360
    %v393 = vadd.f32 %v219, %v361
    %v394 = vadd.f32 %v220, %v362
    %v395 = vadd.f32 %v221, %v363
    %v396 = vadd.f32 %v222, %v364
    %v397 = vadd.f32 %v223, %v365
    %v398 = vand.u32 2147483647, %v366
    %vm399 = vcmp.le.f32.partialorder %v398, 0.7853982
    %vm400 = vcmp.lt.s32.totalorder %v366, 0
    %v401 = vand.u32 %v366, 2139095040
    %v402 = vshrl.u32 %v401, 23
    %v403 = vsub.s32 %v402, 127
    %v404 = vand.u32 2147483647, %v366
    %v405 = vand.u32 %v404, 8388607
    %v406 = vor.u32 %v405, 8388608
    %v407 = vsub.s32 0, %v406
    %v408 = vadd.s32 %v403, 1
    %vm409 = vcmp.gt.s32.totalorder %v408, 0
    %v410 = vsel %vm409, %v408, 0
    %v411 = vshrl.u32 %v410, 5
    %v412 = vand.u32 %v410, 31
    %v413 = vsub.s32 32, %v412
    %v414 = vshrl.u32 683565275, %v413
    %v415 = vshll.u32 683565275, %v412
    %v416 = vshrl.u32 2475754826, %v413
    %v417 = vor.u32 %v415, %v416
    %v418 = vshll.u32 2475754826, %v412
    %v419 = vshrl.u32 2131351028, %v413
    %v420 = vor.u32 %v418, %v419
    %v421 = vshll.u32 2131351028, %v412
    %v422 = vshrl.u32 2102212464, %v413
    %v423 = vor.u32 %v421, %v422
    %v424 = vshll.u32 2102212464, %v412
    %v425 = vshrl.u32 920167782, %v413
    %v426 = vor.u32 %v424, %v425
    %v427 = vshll.u32 920167782, %v412
    %v428 = vshrl.u32 1326507024, %v413
    %v429 = vor.u32 %v427, %v428
    %vm430 = vcmp.lt.s32.totalorder %v411, 1
    %vm431 = vcmp.lt.s32.totalorder %v411, 2
    %vm432 = vcmp.lt.s32.totalorder %v411, 3
    %vm433 = vcmp.lt.s32.totalorder %v411, 4
    %v434 = vsel %vm430, %v414, %v417
    %v435 = vsel %vm433, %v423, 2102212464
    %v436 = vsel %vm432, %v420, %v435
    %v437 = vsel %vm431, %v434, %v436
    %v438 = vsel %vm430, %v417, %v420
    %v439 = vsel %vm433, %v426, 920167782
    %v440 = vsel %vm432, %v423, %v439
    %v441 = vsel %vm431, %v438, %v440
    %v442 = vsel %vm430, %v420, %v423
    %v443 = vsel %vm433, %v429, 1326507024
    %v444 = vsel %vm432, %v426, %v443
    %v445 = vsel %vm431, %v442, %v444
    %v446 = vshll.u32 %v406, 8
    %v447 = vmul.u32.u64.compose %v446, %v445
    %v448 = vextract.low.u32 %v447
    %v449 = vextract.high.u32 %v447
    %v450 = vmul.u32.u64.compose %v446, %v441
    %v451 = vextract.low.u32 %v450
    %v452 = vextract.high.u32 %v450
    %v453 = vmul.u32 %v446, %v437
    %v454 = vadd.s32 %v449, %v451
    %vm455 = vc.u32 %v449, %v451
    %v456 = vadd.s32 %v452, 1
    %v457 = vsel %vm455, %v456, %v452
    %v458 = vadd.s32 %v453, %v457
    %v459 = vadd.s32 %v458, 536870912
    %v460 = vshrl.u32 %v459, 30
    %v461 = vshll.u32 %v460, 30
    %v462 = vsub.s32 %v458, %v461
    %vm463 = vcmp.lt.s32.totalorder %v462, 0
    %v464 = vsub.s32 0, %v462
    %v465 = vsel %vm463, %v464, %v462
    %v466 = vclz %v465
    %v467 = vsub.s32 %v466, 2
    %vm468 = vcmp.gt.s32.totalorder 0, %v467
    %v469 = vsel %vm468, 0, %v467
    %v470 = vsub.s32 32, %v469
    %v471 = vshll.u32 %v462, %v469
    %v472 = vshrl.u32 %v454, %v470
    %v473 = vor.u32 %v471, %v472
    %v474 = vsub.s32 4294967266, %v469
    %v475 = vadd.s32 %v474, 127
    %v476 = vshll.u32 %v475, 23
    %v477 = vor.u32 4788187, %v476
    %v478 = vand.u32 2147483647, %v477
    %v480 = vcvt.s32.f32 %v473
    %v481 = vmul.f32 %v480, %v478
    %v482 = vxor.u32 %v481, 2147483648
    %v483 = vsel %vm400, %v482, %v481
    %v484 = vsub.s32 4, %v460
    %v485 = vsel %vm400, %v484, %v460
    %v486 = vsel %vm399, %v366, %v483
    %v487 = vsel %vm399, 0, %v485
    %v488 = vcosq.f32.pop %v486
    %v489 = vsinq.f32.pop %v486
    %vm490 = vweird.f32 %v366
    %v491 = vand.u32 %v487, 3
    %vm492 = vcmp.lt.s32.totalorder %v491, 2
    %vm493 = vcmp.eq.s32.totalorder %v491, 0
    %v494 = vxor.u32 %v489, 2147483648
    %v495 = vsel %vm493, %v488, %v494
    %vm496 = vcmp.eq.s32.totalorder %v491, 2
    %v497 = vxor.u32 %v488, 2147483648
    %v498 = vsel %vm496, %v497, %v489
    %v499 = vsel %vm492, %v495, %v498
    %v500 = vsel %vm490, nan, %v499
    %v501 = vand.u32 2147483647, %v367
    %vm502 = vcmp.le.f32.partialorder %v501, 0.7853982
    %vm503 = vcmp.lt.s32.totalorder %v367, 0
    %v504 = vand.u32 %v367, 2139095040
    %v505 = vshrl.u32 %v504, 23
    %v506 = vsub.s32 %v505, 127
    %v507 = vand.u32 2147483647, %v367
    %v508 = vand.u32 %v507, 8388607
    %v509 = vor.u32 %v508, 8388608
    %v510 = vsub.s32 0, %v509
    %v511 = vadd.s32 %v506, 1
    %vm512 = vcmp.gt.s32.totalorder %v511, 0
    %v513 = vsel %vm512, %v511, 0
    %v514 = vshrl.u32 %v513, 5
    %v515 = vand.u32 %v513, 31
    %v516 = vsub.s32 32, %v515
    %v517 = vshrl.u32 683565275, %v516
    %v518 = vshll.u32 683565275, %v515
    %v519 = vshrl.u32 2475754826, %v516
    %v520 = vor.u32 %v518, %v519
    %v521 = vshll.u32 2475754826, %v515
    %v522 = vshrl.u32 2131351028, %v516
    %v523 = vor.u32 %v521, %v522
    %v524 = vshll.u32 2131351028, %v515
    %v525 = vshrl.u32 2102212464, %v516
    %v526 = vor.u32 %v524, %v525
    %v527 = vshll.u32 2102212464, %v515
    %v528 = vshrl.u32 920167782, %v516
    %v529 = vor.u32 %v527, %v528
    %v530 = vshll.u32 920167782, %v515
    %v531 = vshrl.u32 1326507024, %v516
    %v532 = vor.u32 %v530, %v531
    %vm533 = vcmp.lt.s32.totalorder %v514, 1
    %vm534 = vcmp.lt.s32.totalorder %v514, 2
    %vm535 = vcmp.lt.s32.totalorder %v514, 3
    %vm536 = vcmp.lt.s32.totalorder %v514, 4
    %v537 = vsel %vm533, %v517, %v520
    %v538 = vsel %vm536, %v526, 2102212464
    %v539 = vsel %vm535, %v523, %v538
    %v540 = vsel %vm534, %v537, %v539
    %v541 = vsel %vm533, %v520, %v523
    %v542 = vsel %vm536, %v529, 920167782
    %v543 = vsel %vm535, %v526, %v542
    %v544 = vsel %vm534, %v541, %v543
    %v545 = vsel %vm533, %v523, %v526
    %v546 = vsel %vm536, %v532, 1326507024
    %v547 = vsel %vm535, %v529, %v546
    %v548 = vsel %vm534, %v545, %v547
    %v549 = vshll.u32 %v509, 8
    %v550 = vmul.u32.u64.compose %v549, %v548
    %v551 = vextract.low.u32 %v550
    %v552 = vextract.high.u32 %v550
    %v553 = vmul.u32.u64.compose %v549, %v544
    %v554 = vextract.low.u32 %v553
    %v555 = vextract.high.u32 %v553
    %v556 = vmul.u32 %v549, %v540
    %v557 = vadd.s32 %v552, %v554
    %vm558 = vc.u32 %v552, %v554
    %v559 = vadd.s32 %v555, 1
    %v560 = vsel %vm558, %v559, %v555
    %v561 = vadd.s32 %v556, %v560
    %v562 = vadd.s32 %v561, 536870912
    %v563 = vshrl.u32 %v562, 30
    %v564 = vshll.u32 %v563, 30
    %v565 = vsub.s32 %v561, %v564
    %vm566 = vcmp.lt.s32.totalorder %v565, 0
    %v567 = vsub.s32 0, %v565
    %v568 = vsel %vm566, %v567, %v565
    %v569 = vclz %v568
    %v570 = vsub.s32 %v569, 2
    %vm571 = vcmp.gt.s32.totalorder 0, %v570
    %v572 = vsel %vm571, 0, %v570
    %v573 = vsub.s32 32, %v572
    %v574 = vshll.u32 %v565, %v572
    %v575 = vshrl.u32 %v557, %v573
    %v576 = vor.u32 %v574, %v575
    %v577 = vsub.s32 4294967266, %v572
    %v578 = vadd.s32 %v577, 127
    %v579 = vshll.u32 %v578, 23
    %v580 = vor.u32 4788187, %v579
    %v581 = vand.u32 2147483647, %v580
    %v583 = vcvt.s32.f32 %v576
    %v584 = vmul.f32 %v583, %v581
    %v585 = vxor.u32 %v584, 2147483648
    %v586 = vsel %vm503, %v585, %v584
    %v587 = vsub.s32 4, %v563
    %v588 = vsel %vm503, %v587, %v563
    %v589 = vsel %vm502, %v367, %v586
    %v590 = vsel %vm502, 0, %v588
    %v591 = vcosq.f32.pop %v589
    %v592 = vsinq.f32.pop %v589
    %vm593 = vweird.f32 %v367
    %v594 = vand.u32 %v590, 3
    %vm595 = vcmp.lt.s32.totalorder %v594, 2
    %vm596 = vcmp.eq.s32.totalorder %v594, 0
    %v597 = vxor.u32 %v592, 2147483648
    %v598 = vsel %vm596, %v591, %v597
    %vm599 = vcmp.eq.s32.totalorder %v594, 2
    %v600 = vxor.u32 %v591, 2147483648
    %v601 = vsel %vm599, %v600, %v592
    %v602 = vsel %vm595, %v598, %v601
    %v603 = vsel %vm593, nan, %v602
    %v604 = vand.u32 2147483647, %v368
    %vm605 = vcmp.le.f32.partialorder %v604, 0.7853982
    %vm606 = vcmp.lt.s32.totalorder %v368, 0
    %v607 = vand.u32 %v368, 2139095040
    %v608 = vshrl.u32 %v607, 23
    %v609 = vsub.s32 %v608, 127
    %v610 = vand.u32 2147483647, %v368
    %v611 = vand.u32 %v610, 8388607
    %v612 = vor.u32 %v611, 8388608
    %v613 = vsub.s32 0, %v612
    %v614 = vadd.s32 %v609, 1
    %vm615 = vcmp.gt.s32.totalorder %v614, 0
    %v616 = vsel %vm615, %v614, 0
    %v617 = vshrl.u32 %v616, 5
    %v618 = vand.u32 %v616, 31
    %v619 = vsub.s32 32, %v618
    %v620 = vshrl.u32 683565275, %v619
    %v621 = vshll.u32 683565275, %v618
    %v622 = vshrl.u32 2475754826, %v619
    %v623 = vor.u32 %v621, %v622
    %v624 = vshll.u32 2475754826, %v618
    %v625 = vshrl.u32 2131351028, %v619
    %v626 = vor.u32 %v624, %v625
    %v627 = vshll.u32 2131351028, %v618
    %v628 = vshrl.u32 2102212464, %v619
    %v629 = vor.u32 %v627, %v628
    %v630 = vshll.u32 2102212464, %v618
    %v631 = vshrl.u32 920167782, %v619
    %v632 = vor.u32 %v630, %v631
    %v633 = vshll.u32 920167782, %v618
    %v634 = vshrl.u32 1326507024, %v619
    %v635 = vor.u32 %v633, %v634
    %vm636 = vcmp.lt.s32.totalorder %v617, 1
    %vm637 = vcmp.lt.s32.totalorder %v617, 2
    %vm638 = vcmp.lt.s32.totalorder %v617, 3
    %vm639 = vcmp.lt.s32.totalorder %v617, 4
    %v640 = vsel %vm636, %v620, %v623
    %v641 = vsel %vm639, %v629, 2102212464
    %v642 = vsel %vm638, %v626, %v641
    %v643 = vsel %vm637, %v640, %v642
    %v644 = vsel %vm636, %v623, %v626
    %v645 = vsel %vm639, %v632, 920167782
    %v646 = vsel %vm638, %v629, %v645
    %v647 = vsel %vm637, %v644, %v646
    %v648 = vsel %vm636, %v626, %v629
    %v649 = vsel %vm639, %v635, 1326507024
    %v650 = vsel %vm638, %v632, %v649
    %v651 = vsel %vm637, %v648, %v650
    %v652 = vshll.u32 %v612, 8
    %v653 = vmul.u32.u64.compose %v652, %v651
    %v654 = vextract.low.u32 %v653
    %v655 = vextract.high.u32 %v653
    %v656 = vmul.u32.u64.compose %v652, %v647
    %v657 = vextract.low.u32 %v656
    %v658 = vextract.high.u32 %v656
    %v659 = vmul.u32 %v652, %v643
    %v660 = vadd.s32 %v655, %v657
    %vm661 = vc.u32 %v655, %v657
    %v662 = vadd.s32 %v658, 1
    %v663 = vsel %vm661, %v662, %v658
    %v664 = vadd.s32 %v659, %v663
    %v665 = vadd.s32 %v664, 536870912
    %v666 = vshrl.u32 %v665, 30
    %v667 = vshll.u32 %v666, 30
    %v668 = vsub.s32 %v664, %v667
    %vm669 = vcmp.lt.s32.totalorder %v668, 0
    %v670 = vsub.s32 0, %v668
    %v671 = vsel %vm669, %v670, %v668
    %v672 = vclz %v671
    %v673 = vsub.s32 %v672, 2
    %vm674 = vcmp.gt.s32.totalorder 0, %v673
    %v675 = vsel %vm674, 0, %v673
    %v676 = vsub.s32 32, %v675
    %v677 = vshll.u32 %v668, %v675
    %v678 = vshrl.u32 %v660, %v676
    %v679 = vor.u32 %v677, %v678
    %v680 = vsub.s32 4294967266, %v675
    %v681 = vadd.s32 %v680, 127
    %v682 = vshll.u32 %v681, 23
    %v683 = vor.u32 4788187, %v682
    %v684 = vand.u32 2147483647, %v683
    %v686 = vcvt.s32.f32 %v679
    %v687 = vmul.f32 %v686, %v684
    %v688 = vxor.u32 %v687, 2147483648
    %v689 = vsel %vm606, %v688, %v687
    %v690 = vsub.s32 4, %v666
    %v691 = vsel %vm606, %v690, %v666
    %v692 = vsel %vm605, %v368, %v689
    %v693 = vsel %vm605, 0, %v691
    %v694 = vcosq.f32.pop %v692
    %v695 = vsinq.f32.pop %v692
    %vm696 = vweird.f32 %v368
    %v697 = vand.u32 %v693, 3
    %vm698 = vcmp.lt.s32.totalorder %v697, 2
    %vm699 = vcmp.eq.s32.totalorder %v697, 0
    %v700 = vxor.u32 %v695, 2147483648
    %v701 = vsel %vm699, %v694, %v700
    %vm702 = vcmp.eq.s32.totalorder %v697, 2
    %v703 = vxor.u32 %v694, 2147483648
    %v704 = vsel %vm702, %v703, %v695
    %v705 = vsel %vm698, %v701, %v704
    %v706 = vsel %vm696, nan, %v705
    %v707 = vand.u32 2147483647, %v369
    %vm708 = vcmp.le.f32.partialorder %v707, 0.7853982
    %vm709 = vcmp.lt.s32.totalorder %v369, 0
    %v710 = vand.u32 %v369, 2139095040
    %v711 = vshrl.u32 %v710, 23
    %v712 = vsub.s32 %v711, 127
    %v713 = vand.u32 2147483647, %v369
    %v714 = vand.u32 %v713, 8388607
    %v715 = vor.u32 %v714, 8388608
    %v716 = vsub.s32 0, %v715
    %v717 = vadd.s32 %v712, 1
    %vm718 = vcmp.gt.s32.totalorder %v717, 0
    %v719 = vsel %vm718, %v717, 0
    %v720 = vshrl.u32 %v719, 5
    %v721 = vand.u32 %v719, 31
    %v722 = vsub.s32 32, %v721
    %v723 = vshrl.u32 683565275, %v722
    %v724 = vshll.u32 683565275, %v721
    %v725 = vshrl.u32 2475754826, %v722
    %v726 = vor.u32 %v724, %v725
    %v727 = vshll.u32 2475754826, %v721
    %v728 = vshrl.u32 2131351028, %v722
    %v729 = vor.u32 %v727, %v728
    %v730 = vshll.u32 2131351028, %v721
    %v731 = vshrl.u32 2102212464, %v722
    %v732 = vor.u32 %v730, %v731
    %v733 = vshll.u32 2102212464, %v721
    %v734 = vshrl.u32 920167782, %v722
    %v735 = vor.u32 %v733, %v734
    %v736 = vshll.u32 920167782, %v721
    %v737 = vshrl.u32 1326507024, %v722
    %v738 = vor.u32 %v736, %v737
    %vm739 = vcmp.lt.s32.totalorder %v720, 1
    %vm740 = vcmp.lt.s32.totalorder %v720, 2
    %vm741 = vcmp.lt.s32.totalorder %v720, 3
    %vm742 = vcmp.lt.s32.totalorder %v720, 4
    %v743 = vsel %vm739, %v723, %v726
    %v744 = vsel %vm742, %v732, 2102212464
    %v745 = vsel %vm741, %v729, %v744
    %v746 = vsel %vm740, %v743, %v745
    %v747 = vsel %vm739, %v726, %v729
    %v748 = vsel %vm742, %v735, 920167782
    %v749 = vsel %vm741, %v732, %v748
    %v750 = vsel %vm740, %v747, %v749
    %v751 = vsel %vm739, %v729, %v732
    %v752 = vsel %vm742, %v738, 1326507024
    %v753 = vsel %vm741, %v735, %v752
    %v754 = vsel %vm740, %v751, %v753
    %v755 = vshll.u32 %v715, 8
    %v756 = vmul.u32.u64.compose %v755, %v754
    %v757 = vextract.low.u32 %v756
    %v758 = vextract.high.u32 %v756
    %v759 = vmul.u32.u64.compose %v755, %v750
    %v760 = vextract.low.u32 %v759
    %v761 = vextract.high.u32 %v759
    %v762 = vmul.u32 %v755, %v746
    %v763 = vadd.s32 %v758, %v760
    %vm764 = vc.u32 %v758, %v760
    %v765 = vadd.s32 %v761, 1
    %v766 = vsel %vm764, %v765, %v761
    %v767 = vadd.s32 %v762, %v766
    %v768 = vadd.s32 %v767, 536870912
    %v769 = vshrl.u32 %v768, 30
    %v770 = vshll.u32 %v769, 30
    %v771 = vsub.s32 %v767, %v770
    %vm772 = vcmp.lt.s32.totalorder %v771, 0
    %v773 = vsub.s32 0, %v771
    %v774 = vsel %vm772, %v773, %v771
    %v775 = vclz %v774
    %v776 = vsub.s32 %v775, 2
    %vm777 = vcmp.gt.s32.totalorder 0, %v776
    %v778 = vsel %vm777, 0, %v776
    %v779 = vsub.s32 32, %v778
    %v780 = vshll.u32 %v771, %v778
    %v781 = vshrl.u32 %v763, %v779
    %v782 = vor.u32 %v780, %v781
    %v783 = vsub.s32 4294967266, %v778
    %v784 = vadd.s32 %v783, 127
    %v785 = vshll.u32 %v784, 23
    %v786 = vor.u32 4788187, %v785
    %v787 = vand.u32 2147483647, %v786
    %v789 = vcvt.s32.f32 %v782
    %v790 = vmul.f32 %v789, %v787
    %v791 = vxor.u32 %v790, 2147483648
    %v792 = vsel %vm709, %v791, %v790
    %v793 = vsub.s32 4, %v769
    %v794 = vsel %vm709, %v793, %v769
    %v795 = vsel %vm708, %v369, %v792
    %v796 = vsel %vm708, 0, %v794
    %v797 = vcosq.f32.pop %v795
    %v798 = vsinq.f32.pop %v795
    %vm799 = vweird.f32 %v369
    %v800 = vand.u32 %v796, 3
    %vm801 = vcmp.lt.s32.totalorder %v800, 2
    %vm802 = vcmp.eq.s32.totalorder %v800, 0
    %v803 = vxor.u32 %v798, 2147483648
    %v804 = vsel %vm802, %v797, %v803
    %vm805 = vcmp.eq.s32.totalorder %v800, 2
    %v806 = vxor.u32 %v797, 2147483648
    %v807 = vsel %vm805, %v806, %v798
    %v808 = vsel %vm801, %v804, %v807
    %v809 = vsel %vm799, nan, %v808
    %v810 = vand.u32 2147483647, %v370
    %vm811 = vcmp.le.f32.partialorder %v810, 0.7853982
    %vm812 = vcmp.lt.s32.totalorder %v370, 0
    %v813 = vand.u32 %v370, 2139095040
    %v814 = vshrl.u32 %v813, 23
    %v815 = vsub.s32 %v814, 127
    %v816 = vand.u32 2147483647, %v370
    %v817 = vand.u32 %v816, 8388607
    %v818 = vor.u32 %v817, 8388608
    %v819 = vsub.s32 0, %v818
    %v820 = vadd.s32 %v815, 1
    %vm821 = vcmp.gt.s32.totalorder %v820, 0
    %v822 = vsel %vm821, %v820, 0
    %v823 = vshrl.u32 %v822, 5
    %v824 = vand.u32 %v822, 31
    %v825 = vsub.s32 32, %v824
    %v826 = vshrl.u32 683565275, %v825
    %v827 = vshll.u32 683565275, %v824
    %v828 = vshrl.u32 2475754826, %v825
    %v829 = vor.u32 %v827, %v828
    %v830 = vshll.u32 2475754826, %v824
    %v831 = vshrl.u32 2131351028, %v825
    %v832 = vor.u32 %v830, %v831
    %v833 = vshll.u32 2131351028, %v824
    %v834 = vshrl.u32 2102212464, %v825
    %v835 = vor.u32 %v833, %v834
    %v836 = vshll.u32 2102212464, %v824
    %v837 = vshrl.u32 920167782, %v825
    %v838 = vor.u32 %v836, %v837
    %v839 = vshll.u32 920167782, %v824
    %v840 = vshrl.u32 1326507024, %v825
    %v841 = vor.u32 %v839, %v840
    %vm842 = vcmp.lt.s32.totalorder %v823, 1
    %vm843 = vcmp.lt.s32.totalorder %v823, 2
    %vm844 = vcmp.lt.s32.totalorder %v823, 3
    %vm845 = vcmp.lt.s32.totalorder %v823, 4
    %v846 = vsel %vm842, %v826, %v829
    %v847 = vsel %vm845, %v835, 2102212464
    %v848 = vsel %vm844, %v832, %v847
    %v849 = vsel %vm843, %v846, %v848
    %v850 = vsel %vm842, %v829, %v832
    %v851 = vsel %vm845, %v838, 920167782
    %v852 = vsel %vm844, %v835, %v851
    %v853 = vsel %vm843, %v850, %v852
    %v854 = vsel %vm842, %v832, %v835
    %v855 = vsel %vm845, %v841, 1326507024
    %v856 = vsel %vm844, %v838, %v855
    %v857 = vsel %vm843, %v854, %v856
    %v858 = vshll.u32 %v818, 8
    %v859 = vmul.u32.u64.compose %v858, %v857
    %v860 = vextract.low.u32 %v859
    %v861 = vextract.high.u32 %v859
    %v862 = vmul.u32.u64.compose %v858, %v853
    %v863 = vextract.low.u32 %v862
    %v864 = vextract.high.u32 %v862
    %v865 = vmul.u32 %v858, %v849
    %v866 = vadd.s32 %v861, %v863
    %vm867 = vc.u32 %v861, %v863
    %v868 = vadd.s32 %v864, 1
    %v869 = vsel %vm867, %v868, %v864
    %v870 = vadd.s32 %v865, %v869
    %v871 = vadd.s32 %v870, 536870912
    %v872 = vshrl.u32 %v871, 30
    %v873 = vshll.u32 %v872, 30
    %v874 = vsub.s32 %v870, %v873
    %vm875 = vcmp.lt.s32.totalorder %v874, 0
    %v876 = vsub.s32 0, %v874
    %v877 = vsel %vm875, %v876, %v874
    %v878 = vclz %v877
    %v879 = vsub.s32 %v878, 2
    %vm880 = vcmp.gt.s32.totalorder 0, %v879
    %v881 = vsel %vm880, 0, %v879
    %v882 = vsub.s32 32, %v881
    %v883 = vshll.u32 %v874, %v881
    %v884 = vshrl.u32 %v866, %v882
    %v885 = vor.u32 %v883, %v884
    %v886 = vsub.s32 4294967266, %v881
    %v887 = vadd.s32 %v886, 127
    %v888 = vshll.u32 %v887, 23
    %v889 = vor.u32 4788187, %v888
    %v890 = vand.u32 2147483647, %v889
    %v892 = vcvt.s32.f32 %v885
    %v893 = vmul.f32 %v892, %v890
    %v894 = vxor.u32 %v893, 2147483648
    %v895 = vsel %vm812, %v894, %v893
    %v896 = vsub.s32 4, %v872
    %v897 = vsel %vm812, %v896, %v872
    %v898 = vsel %vm811, %v370, %v895
    %v899 = vsel %vm811, 0, %v897
    %v900 = vcosq.f32.pop %v898
    %v901 = vsinq.f32.pop %v898
    %vm902 = vweird.f32 %v370
    %v903 = vand.u32 %v899, 3
    %vm904 = vcmp.lt.s32.totalorder %v903, 2
    %vm905 = vcmp.eq.s32.totalorder %v903, 0
    %v906 = vxor.u32 %v901, 2147483648
    %v907 = vsel %vm905, %v900, %v906
    %vm908 = vcmp.eq.s32.totalorder %v903, 2
    %v909 = vxor.u32 %v900, 2147483648
    %v910 = vsel %vm908, %v909, %v901
    %v911 = vsel %vm904, %v907, %v910
    %v912 = vsel %vm902, nan, %v911
    %v913 = vand.u32 2147483647, %v371
    %vm914 = vcmp.le.f32.partialorder %v913, 0.7853982
    %vm915 = vcmp.lt.s32.totalorder %v371, 0
    %v916 = vand.u32 %v371, 2139095040
    %v917 = vshrl.u32 %v916, 23
    %v918 = vsub.s32 %v917, 127
    %v919 = vand.u32 2147483647, %v371
    %v920 = vand.u32 %v919, 8388607
    %v921 = vor.u32 %v920, 8388608
    %v922 = vsub.s32 0, %v921
    %v923 = vadd.s32 %v918, 1
    %vm924 = vcmp.gt.s32.totalorder %v923, 0
    %v925 = vsel %vm924, %v923, 0
    %v926 = vshrl.u32 %v925, 5
    %v927 = vand.u32 %v925, 31
    %v928 = vsub.s32 32, %v927
    %v929 = vshrl.u32 683565275, %v928
    %v930 = vshll.u32 683565275, %v927
    %v931 = vshrl.u32 2475754826, %v928
    %v932 = vor.u32 %v930, %v931
    %v933 = vshll.u32 2475754826, %v927
    %v934 = vshrl.u32 2131351028, %v928
    %v935 = vor.u32 %v933, %v934
    %v936 = vshll.u32 2131351028, %v927
    %v937 = vshrl.u32 2102212464, %v928
    %v938 = vor.u32 %v936, %v937
    %v939 = vshll.u32 2102212464, %v927
    %v940 = vshrl.u32 920167782, %v928
    %v941 = vor.u32 %v939, %v940
    %v942 = vshll.u32 920167782, %v927
    %v943 = vshrl.u32 1326507024, %v928
    %v944 = vor.u32 %v942, %v943
    %vm945 = vcmp.lt.s32.totalorder %v926, 1
    %vm946 = vcmp.lt.s32.totalorder %v926, 2
    %vm947 = vcmp.lt.s32.totalorder %v926, 3
    %vm948 = vcmp.lt.s32.totalorder %v926, 4
    %v949 = vsel %vm945, %v929, %v932
    %v950 = vsel %vm948, %v938, 2102212464
    %v951 = vsel %vm947, %v935, %v950
    %v952 = vsel %vm946, %v949, %v951
    %v953 = vsel %vm945, %v932, %v935
    %v954 = vsel %vm948, %v941, 920167782
    %v955 = vsel %vm947, %v938, %v954
    %v956 = vsel %vm946, %v953, %v955
    %v957 = vsel %vm945, %v935, %v938
    %v958 = vsel %vm948, %v944, 1326507024
    %v959 = vsel %vm947, %v941, %v958
    %v960 = vsel %vm946, %v957, %v959
    %v961 = vshll.u32 %v921, 8
    %v962 = vmul.u32.u64.compose %v961, %v960
    %v963 = vextract.low.u32 %v962
    %v964 = vextract.high.u32 %v962
    %v965 = vmul.u32.u64.compose %v961, %v956
    %v966 = vextract.low.u32 %v965
    %v967 = vextract.high.u32 %v965
    %v968 = vmul.u32 %v961, %v952
    %v969 = vadd.s32 %v964, %v966
    %vm970 = vc.u32 %v964, %v966
    %v971 = vadd.s32 %v967, 1
    %v972 = vsel %vm970, %v971, %v967
    %v973 = vadd.s32 %v968, %v972
    %v974 = vadd.s32 %v973, 536870912
    %v975 = vshrl.u32 %v974, 30
    %v976 = vshll.u32 %v975, 30
    %v977 = vsub.s32 %v973, %v976
    %vm978 = vcmp.lt.s32.totalorder %v977, 0
    %v979 = vsub.s32 0, %v977
    %v980 = vsel %vm978, %v979, %v977
    %v981 = vclz %v980
    %v982 = vsub.s32 %v981, 2
    %vm983 = vcmp.gt.s32.totalorder 0, %v982
    %v984 = vsel %vm983, 0, %v982
    %v985 = vsub.s32 32, %v984
    %v986 = vshll.u32 %v977, %v984
    %v987 = vshrl.u32 %v969, %v985
    %v988 = vor.u32 %v986, %v987
    %v989 = vsub.s32 4294967266, %v984
    %v990 = vadd.s32 %v989, 127
    %v991 = vshll.u32 %v990, 23
    %v992 = vor.u32 4788187, %v991
    %v993 = vand.u32 2147483647, %v992
    %v995 = vcvt.s32.f32 %v988
    %v996 = vmul.f32 %v995, %v993
    %v997 = vxor.u32 %v996, 2147483648
    %v998 = vsel %vm915, %v997, %v996
    %v999 = vsub.s32 4, %v975
    %v1000 = vsel %vm915, %v999, %v975
    %v1001 = vsel %vm914, %v371, %v998
    %v1002 = vsel %vm914, 0, %v1000
    %v1003 = vcosq.f32.pop %v1001
    %v1004 = vsinq.f32.pop %v1001
    %vm1005 = vweird.f32 %v371
    %v1006 = vand.u32 %v1002, 3
    %vm1007 = vcmp.lt.s32.totalorder %v1006, 2
    %vm1008 = vcmp.eq.s32.totalorder %v1006, 0
    %v1009 = vxor.u32 %v1004, 2147483648
    %v1010 = vsel %vm1008, %v1003, %v1009
    %vm1011 = vcmp.eq.s32.totalorder %v1006, 2
    %v1012 = vxor.u32 %v1003, 2147483648
    %v1013 = vsel %vm1011, %v1012, %v1004
    %v1014 = vsel %vm1007, %v1010, %v1013
    %v1015 = vsel %vm1005, nan, %v1014
    %v1016 = vand.u32 2147483647, %v372
    %vm1017 = vcmp.le.f32.partialorder %v1016, 0.7853982
    %vm1018 = vcmp.lt.s32.totalorder %v372, 0
    %v1019 = vand.u32 %v372, 2139095040
    %v1020 = vshrl.u32 %v1019, 23
    %v1021 = vsub.s32 %v1020, 127
    %v1022 = vand.u32 2147483647, %v372
    %v1023 = vand.u32 %v1022, 8388607
    %v1024 = vor.u32 %v1023, 8388608
    %v1025 = vsub.s32 0, %v1024
    %v1026 = vadd.s32 %v1021, 1
    %vm1027 = vcmp.gt.s32.totalorder %v1026, 0
    %v1028 = vsel %vm1027, %v1026, 0
    %v1029 = vshrl.u32 %v1028, 5
    %v1030 = vand.u32 %v1028, 31
    %v1031 = vsub.s32 32, %v1030
    %v1032 = vshrl.u32 683565275, %v1031
    %v1033 = vshll.u32 683565275, %v1030
    %v1034 = vshrl.u32 2475754826, %v1031
    %v1035 = vor.u32 %v1033, %v1034
    %v1036 = vshll.u32 2475754826, %v1030
    %v1037 = vshrl.u32 2131351028, %v1031
    %v1038 = vor.u32 %v1036, %v1037
    %v1039 = vshll.u32 2131351028, %v1030
    %v1040 = vshrl.u32 2102212464, %v1031
    %v1041 = vor.u32 %v1039, %v1040
    %v1042 = vshll.u32 2102212464, %v1030
    %v1043 = vshrl.u32 920167782, %v1031
    %v1044 = vor.u32 %v1042, %v1043
    %v1045 = vshll.u32 920167782, %v1030
    %v1046 = vshrl.u32 1326507024, %v1031
    %v1047 = vor.u32 %v1045, %v1046
    %vm1048 = vcmp.lt.s32.totalorder %v1029, 1
    %vm1049 = vcmp.lt.s32.totalorder %v1029, 2
    %vm1050 = vcmp.lt.s32.totalorder %v1029, 3
    %vm1051 = vcmp.lt.s32.totalorder %v1029, 4
    %v1052 = vsel %vm1048, %v1032, %v1035
    %v1053 = vsel %vm1051, %v1041, 2102212464
    %v1054 = vsel %vm1050, %v1038, %v1053
    %v1055 = vsel %vm1049, %v1052, %v1054
    %v1056 = vsel %vm1048, %v1035, %v1038
    %v1057 = vsel %vm1051, %v1044, 920167782
    %v1058 = vsel %vm1050, %v1041, %v1057
    %v1059 = vsel %vm1049, %v1056, %v1058
    %v1060 = vsel %vm1048, %v1038, %v1041
    %v1061 = vsel %vm1051, %v1047, 1326507024
    %v1062 = vsel %vm1050, %v1044, %v1061
    %v1063 = vsel %vm1049, %v1060, %v1062
    %v1064 = vshll.u32 %v1024, 8
    %v1065 = vmul.u32.u64.compose %v1064, %v1063
    %v1066 = vextract.low.u32 %v1065
    %v1067 = vextract.high.u32 %v1065
    %v1068 = vmul.u32.u64.compose %v1064, %v1059
    %v1069 = vextract.low.u32 %v1068
    %v1070 = vextract.high.u32 %v1068
    %v1071 = vmul.u32 %v1064, %v1055
    %v1072 = vadd.s32 %v1067, %v1069
    %vm1073 = vc.u32 %v1067, %v1069
    %v1074 = vadd.s32 %v1070, 1
    %v1075 = vsel %vm1073, %v1074, %v1070
    %v1076 = vadd.s32 %v1071, %v1075
    %v1077 = vadd.s32 %v1076, 536870912
    %v1078 = vshrl.u32 %v1077, 30
    %v1079 = vshll.u32 %v1078, 30
    %v1080 = vsub.s32 %v1076, %v1079
    %vm1081 = vcmp.lt.s32.totalorder %v1080, 0
    %v1082 = vsub.s32 0, %v1080
    %v1083 = vsel %vm1081, %v1082, %v1080
    %v1084 = vclz %v1083
    %v1085 = vsub.s32 %v1084, 2
    %vm1086 = vcmp.gt.s32.totalorder 0, %v1085
    %v1087 = vsel %vm1086, 0, %v1085
    %v1088 = vsub.s32 32, %v1087
    %v1089 = vshll.u32 %v1080, %v1087
    %v1090 = vshrl.u32 %v1072, %v1088
    %v1091 = vor.u32 %v1089, %v1090
    %v1092 = vsub.s32 4294967266, %v1087
    %v1093 = vadd.s32 %v1092, 127
    %v1094 = vshll.u32 %v1093, 23
    %v1095 = vor.u32 4788187, %v1094
    %v1096 = vand.u32 2147483647, %v1095
    %v1098 = vcvt.s32.f32 %v1091
    %v1099 = vmul.f32 %v1098, %v1096
    %v1100 = vxor.u32 %v1099, 2147483648
    %v1101 = vsel %vm1018, %v1100, %v1099
    %v1102 = vsub.s32 4, %v1078
    %v1103 = vsel %vm1018, %v1102, %v1078
    %v1104 = vsel %vm1017, %v372, %v1101
    %v1105 = vsel %vm1017, 0, %v1103
    %v1106 = vcosq.f32.pop %v1104
    %v1107 = vsinq.f32.pop %v1104
    %vm1108 = vweird.f32 %v372
    %v1109 = vand.u32 %v1105, 3
    %vm1110 = vcmp.lt.s32.totalorder %v1109, 2
    %vm1111 = vcmp.eq.s32.totalorder %v1109, 0
    %v1112 = vxor.u32 %v1107, 2147483648
    %v1113 = vsel %vm1111, %v1106, %v1112
    %vm1114 = vcmp.eq.s32.totalorder %v1109, 2
    %v1115 = vxor.u32 %v1106, 2147483648
    %v1116 = vsel %vm1114, %v1115, %v1107
    %v1117 = vsel %vm1110, %v1113, %v1116
    %v1118 = vsel %vm1108, nan, %v1117
    %v1119 = vand.u32 2147483647, %v373
    %vm1120 = vcmp.le.f32.partialorder %v1119, 0.7853982
    %vm1121 = vcmp.lt.s32.totalorder %v373, 0
    %v1122 = vand.u32 %v373, 2139095040
    %v1123 = vshrl.u32 %v1122, 23
    %v1124 = vsub.s32 %v1123, 127
    %v1125 = vand.u32 2147483647, %v373
    %v1126 = vand.u32 %v1125, 8388607
    %v1127 = vor.u32 %v1126, 8388608
    %v1128 = vsub.s32 0, %v1127
    %v1129 = vadd.s32 %v1124, 1
    %vm1130 = vcmp.gt.s32.totalorder %v1129, 0
    %v1131 = vsel %vm1130, %v1129, 0
    %v1132 = vshrl.u32 %v1131, 5
    %v1133 = vand.u32 %v1131, 31
    %v1134 = vsub.s32 32, %v1133
    %v1135 = vshrl.u32 683565275, %v1134
    %v1136 = vshll.u32 683565275, %v1133
    %v1137 = vshrl.u32 2475754826, %v1134
    %v1138 = vor.u32 %v1136, %v1137
    %v1139 = vshll.u32 2475754826, %v1133
    %v1140 = vshrl.u32 2131351028, %v1134
    %v1141 = vor.u32 %v1139, %v1140
    %v1142 = vshll.u32 2131351028, %v1133
    %v1143 = vshrl.u32 2102212464, %v1134
    %v1144 = vor.u32 %v1142, %v1143
    %v1145 = vshll.u32 2102212464, %v1133
    %v1146 = vshrl.u32 920167782, %v1134
    %v1147 = vor.u32 %v1145, %v1146
    %v1148 = vshll.u32 920167782, %v1133
    %v1149 = vshrl.u32 1326507024, %v1134
    %v1150 = vor.u32 %v1148, %v1149
    %vm1151 = vcmp.lt.s32.totalorder %v1132, 1
    %vm1152 = vcmp.lt.s32.totalorder %v1132, 2
    %vm1153 = vcmp.lt.s32.totalorder %v1132, 3
    %vm1154 = vcmp.lt.s32.totalorder %v1132, 4
    %v1155 = vsel %vm1151, %v1135, %v1138
    %v1156 = vsel %vm1154, %v1144, 2102212464
    %v1157 = vsel %vm1153, %v1141, %v1156
    %v1158 = vsel %vm1152, %v1155, %v1157
    %v1159 = vsel %vm1151, %v1138, %v1141
    %v1160 = vsel %vm1154, %v1147, 920167782
    %v1161 = vsel %vm1153, %v1144, %v1160
    %v1162 = vsel %vm1152, %v1159, %v1161
    %v1163 = vsel %vm1151, %v1141, %v1144
    %v1164 = vsel %vm1154, %v1150, 1326507024
    %v1165 = vsel %vm1153, %v1147, %v1164
    %v1166 = vsel %vm1152, %v1163, %v1165
    %v1167 = vshll.u32 %v1127, 8
    %v1168 = vmul.u32.u64.compose %v1167, %v1166
    %v1169 = vextract.low.u32 %v1168
    %v1170 = vextract.high.u32 %v1168
    %v1171 = vmul.u32.u64.compose %v1167, %v1162
    %v1172 = vextract.low.u32 %v1171
    %v1173 = vextract.high.u32 %v1171
    %v1174 = vmul.u32 %v1167, %v1158
    %v1175 = vadd.s32 %v1170, %v1172
    %vm1176 = vc.u32 %v1170, %v1172
    %v1177 = vadd.s32 %v1173, 1
    %v1178 = vsel %vm1176, %v1177, %v1173
    %v1179 = vadd.s32 %v1174, %v1178
    %v1180 = vadd.s32 %v1179, 536870912
    %v1181 = vshrl.u32 %v1180, 30
    %v1182 = vshll.u32 %v1181, 30
    %v1183 = vsub.s32 %v1179, %v1182
    %vm1184 = vcmp.lt.s32.totalorder %v1183, 0
    %v1185 = vsub.s32 0, %v1183
    %v1186 = vsel %vm1184, %v1185, %v1183
    %v1187 = vclz %v1186
    %v1188 = vsub.s32 %v1187, 2
    %vm1189 = vcmp.gt.s32.totalorder 0, %v1188
    %v1190 = vsel %vm1189, 0, %v1188
    %v1191 = vsub.s32 32, %v1190
    %v1192 = vshll.u32 %v1183, %v1190
    %v1193 = vshrl.u32 %v1175, %v1191
    %v1194 = vor.u32 %v1192, %v1193
    %v1195 = vsub.s32 4294967266, %v1190
    %v1196 = vadd.s32 %v1195, 127
    %v1197 = vshll.u32 %v1196, 23
    %v1198 = vor.u32 4788187, %v1197
    %v1199 = vand.u32 2147483647, %v1198
    %v1201 = vcvt.s32.f32 %v1194
    %v1202 = vmul.f32 %v1201, %v1199
    %v1203 = vxor.u32 %v1202, 2147483648
    %v1204 = vsel %vm1121, %v1203, %v1202
    %v1205 = vsub.s32 4, %v1181
    %v1206 = vsel %vm1121, %v1205, %v1181
    %v1207 = vsel %vm1120, %v373, %v1204
    %v1208 = vsel %vm1120, 0, %v1206
    %v1209 = vcosq.f32.pop %v1207
    %v1210 = vsinq.f32.pop %v1207
    %vm1211 = vweird.f32 %v373
    %v1212 = vand.u32 %v1208, 3
    %vm1213 = vcmp.lt.s32.totalorder %v1212, 2
    %vm1214 = vcmp.eq.s32.totalorder %v1212, 0
    %v1215 = vxor.u32 %v1210, 2147483648
    %v1216 = vsel %vm1214, %v1209, %v1215
    %vm1217 = vcmp.eq.s32.totalorder %v1212, 2
    %v1218 = vxor.u32 %v1209, 2147483648
    %v1219 = vsel %vm1217, %v1218, %v1210
    %v1220 = vsel %vm1213, %v1216, %v1219
    %v1221 = vsel %vm1211, nan, %v1220
    %v1222 = vand.u32 2147483647, %v374
    %vm1223 = vcmp.le.f32.partialorder %v1222, 0.7853982
    %vm1224 = vcmp.lt.s32.totalorder %v374, 0
    %v1225 = vand.u32 %v374, 2139095040
    %v1226 = vshrl.u32 %v1225, 23
    %v1227 = vsub.s32 %v1226, 127
    %v1228 = vand.u32 2147483647, %v374
    %v1229 = vand.u32 %v1228, 8388607
    %v1230 = vor.u32 %v1229, 8388608
    %v1231 = vsub.s32 0, %v1230
    %v1232 = vadd.s32 %v1227, 1
    %vm1233 = vcmp.gt.s32.totalorder %v1232, 0
    %v1234 = vsel %vm1233, %v1232, 0
    %v1235 = vshrl.u32 %v1234, 5
    %v1236 = vand.u32 %v1234, 31
    %v1237 = vsub.s32 32, %v1236
    %v1238 = vshrl.u32 683565275, %v1237
    %v1239 = vshll.u32 683565275, %v1236
    %v1240 = vshrl.u32 2475754826, %v1237
    %v1241 = vor.u32 %v1239, %v1240
    %v1242 = vshll.u32 2475754826, %v1236
    %v1243 = vshrl.u32 2131351028, %v1237
    %v1244 = vor.u32 %v1242, %v1243
    %v1245 = vshll.u32 2131351028, %v1236
    %v1246 = vshrl.u32 2102212464, %v1237
    %v1247 = vor.u32 %v1245, %v1246
    %v1248 = vshll.u32 2102212464, %v1236
    %v1249 = vshrl.u32 920167782, %v1237
    %v1250 = vor.u32 %v1248, %v1249
    %v1251 = vshll.u32 920167782, %v1236
    %v1252 = vshrl.u32 1326507024, %v1237
    %v1253 = vor.u32 %v1251, %v1252
    %vm1254 = vcmp.lt.s32.totalorder %v1235, 1
    %vm1255 = vcmp.lt.s32.totalorder %v1235, 2
    %vm1256 = vcmp.lt.s32.totalorder %v1235, 3
    %vm1257 = vcmp.lt.s32.totalorder %v1235, 4
    %v1258 = vsel %vm1254, %v1238, %v1241
    %v1259 = vsel %vm1257, %v1247, 2102212464
    %v1260 = vsel %vm1256, %v1244, %v1259
    %v1261 = vsel %vm1255, %v1258, %v1260
    %v1262 = vsel %vm1254, %v1241, %v1244
    %v1263 = vsel %vm1257, %v1250, 920167782
    %v1264 = vsel %vm1256, %v1247, %v1263
    %v1265 = vsel %vm1255, %v1262, %v1264
    %v1266 = vsel %vm1254, %v1244, %v1247
    %v1267 = vsel %vm1257, %v1253, 1326507024
    %v1268 = vsel %vm1256, %v1250, %v1267
    %v1269 = vsel %vm1255, %v1266, %v1268
    %v1270 = vshll.u32 %v1230, 8
    %v1271 = vmul.u32.u64.compose %v1270, %v1269
    %v1272 = vextract.low.u32 %v1271
    %v1273 = vextract.high.u32 %v1271
    %v1274 = vmul.u32.u64.compose %v1270, %v1265
    %v1275 = vextract.low.u32 %v1274
    %v1276 = vextract.high.u32 %v1274
    %v1277 = vmul.u32 %v1270, %v1261
    %v1278 = vadd.s32 %v1273, %v1275
    %vm1279 = vc.u32 %v1273, %v1275
    %v1280 = vadd.s32 %v1276, 1
    %v1281 = vsel %vm1279, %v1280, %v1276
    %v1282 = vadd.s32 %v1277, %v1281
    %v1283 = vadd.s32 %v1282, 536870912
    %v1284 = vshrl.u32 %v1283, 30
    %v1285 = vshll.u32 %v1284, 30
    %v1286 = vsub.s32 %v1282, %v1285
    %vm1287 = vcmp.lt.s32.totalorder %v1286, 0
    %v1288 = vsub.s32 0, %v1286
    %v1289 = vsel %vm1287, %v1288, %v1286
    %v1290 = vclz %v1289
    %v1291 = vsub.s32 %v1290, 2
    %vm1292 = vcmp.gt.s32.totalorder 0, %v1291
    %v1293 = vsel %vm1292, 0, %v1291
    %v1294 = vsub.s32 32, %v1293
    %v1295 = vshll.u32 %v1286, %v1293
    %v1296 = vshrl.u32 %v1278, %v1294
    %v1297 = vor.u32 %v1295, %v1296
    %v1298 = vsub.s32 4294967266, %v1293
    %v1299 = vadd.s32 %v1298, 127
    %v1300 = vshll.u32 %v1299, 23
    %v1301 = vor.u32 4788187, %v1300
    %v1302 = vand.u32 2147483647, %v1301
    %v1304 = vcvt.s32.f32 %v1297
    %v1305 = vmul.f32 %v1304, %v1302
    %v1306 = vxor.u32 %v1305, 2147483648
    %v1307 = vsel %vm1224, %v1306, %v1305
    %v1308 = vsub.s32 4, %v1284
    %v1309 = vsel %vm1224, %v1308, %v1284
    %v1310 = vsel %vm1223, %v374, %v1307
    %v1311 = vsel %vm1223, 0, %v1309
    %v1312 = vcosq.f32.pop %v1310
    %v1313 = vsinq.f32.pop %v1310
    %vm1314 = vweird.f32 %v374
    %v1315 = vand.u32 %v1311, 3
    %vm1316 = vcmp.lt.s32.totalorder %v1315, 2
    %vm1317 = vcmp.eq.s32.totalorder %v1315, 0
    %v1318 = vxor.u32 %v1313, 2147483648
    %v1319 = vsel %vm1317, %v1312, %v1318
    %vm1320 = vcmp.eq.s32.totalorder %v1315, 2
    %v1321 = vxor.u32 %v1312, 2147483648
    %v1322 = vsel %vm1320, %v1321, %v1313
    %v1323 = vsel %vm1316, %v1319, %v1322
    %v1324 = vsel %vm1314, nan, %v1323
    %v1325 = vand.u32 2147483647, %v375
    %vm1326 = vcmp.le.f32.partialorder %v1325, 0.7853982
    %vm1327 = vcmp.lt.s32.totalorder %v375, 0
    %v1328 = vand.u32 %v375, 2139095040
    %v1329 = vshrl.u32 %v1328, 23
    %v1330 = vsub.s32 %v1329, 127
    %v1331 = vand.u32 2147483647, %v375
    %v1332 = vand.u32 %v1331, 8388607
    %v1333 = vor.u32 %v1332, 8388608
    %v1334 = vsub.s32 0, %v1333
    %v1335 = vadd.s32 %v1330, 1
    %vm1336 = vcmp.gt.s32.totalorder %v1335, 0
    %v1337 = vsel %vm1336, %v1335, 0
    %v1338 = vshrl.u32 %v1337, 5
    %v1339 = vand.u32 %v1337, 31
    %v1340 = vsub.s32 32, %v1339
    %v1341 = vshrl.u32 683565275, %v1340
    %v1342 = vshll.u32 683565275, %v1339
    %v1343 = vshrl.u32 2475754826, %v1340
    %v1344 = vor.u32 %v1342, %v1343
    %v1345 = vshll.u32 2475754826, %v1339
    %v1346 = vshrl.u32 2131351028, %v1340
    %v1347 = vor.u32 %v1345, %v1346
    %v1348 = vshll.u32 2131351028, %v1339
    %v1349 = vshrl.u32 2102212464, %v1340
    %v1350 = vor.u32 %v1348, %v1349
    %v1351 = vshll.u32 2102212464, %v1339
    %v1352 = vshrl.u32 920167782, %v1340
    %v1353 = vor.u32 %v1351, %v1352
    %v1354 = vshll.u32 920167782, %v1339
    %v1355 = vshrl.u32 1326507024, %v1340
    %v1356 = vor.u32 %v1354, %v1355
    %vm1357 = vcmp.lt.s32.totalorder %v1338, 1
    %vm1358 = vcmp.lt.s32.totalorder %v1338, 2
    %vm1359 = vcmp.lt.s32.totalorder %v1338, 3
    %vm1360 = vcmp.lt.s32.totalorder %v1338, 4
    %v1361 = vsel %vm1357, %v1341, %v1344
    %v1362 = vsel %vm1360, %v1350, 2102212464
    %v1363 = vsel %vm1359, %v1347, %v1362
    %v1364 = vsel %vm1358, %v1361, %v1363
    %v1365 = vsel %vm1357, %v1344, %v1347
    %v1366 = vsel %vm1360, %v1353, 920167782
    %v1367 = vsel %vm1359, %v1350, %v1366
    %v1368 = vsel %vm1358, %v1365, %v1367
    %v1369 = vsel %vm1357, %v1347, %v1350
    %v1370 = vsel %vm1360, %v1356, 1326507024
    %v1371 = vsel %vm1359, %v1353, %v1370
    %v1372 = vsel %vm1358, %v1369, %v1371
    %v1373 = vshll.u32 %v1333, 8
    %v1374 = vmul.u32.u64.compose %v1373, %v1372
    %v1375 = vextract.low.u32 %v1374
    %v1376 = vextract.high.u32 %v1374
    %v1377 = vmul.u32.u64.compose %v1373, %v1368
    %v1378 = vextract.low.u32 %v1377
    %v1379 = vextract.high.u32 %v1377
    %v1380 = vmul.u32 %v1373, %v1364
    %v1381 = vadd.s32 %v1376, %v1378
    %vm1382 = vc.u32 %v1376, %v1378
    %v1383 = vadd.s32 %v1379, 1
    %v1384 = vsel %vm1382, %v1383, %v1379
    %v1385 = vadd.s32 %v1380, %v1384
    %v1386 = vadd.s32 %v1385, 536870912
    %v1387 = vshrl.u32 %v1386, 30
    %v1388 = vshll.u32 %v1387, 30
    %v1389 = vsub.s32 %v1385, %v1388
    %vm1390 = vcmp.lt.s32.totalorder %v1389, 0
    %v1391 = vsub.s32 0, %v1389
    %v1392 = vsel %vm1390, %v1391, %v1389
    %v1393 = vclz %v1392
    %v1394 = vsub.s32 %v1393, 2
    %vm1395 = vcmp.gt.s32.totalorder 0, %v1394
    %v1396 = vsel %vm1395, 0, %v1394
    %v1397 = vsub.s32 32, %v1396
    %v1398 = vshll.u32 %v1389, %v1396
    %v1399 = vshrl.u32 %v1381, %v1397
    %v1400 = vor.u32 %v1398, %v1399
    %v1401 = vsub.s32 4294967266, %v1396
    %v1402 = vadd.s32 %v1401, 127
    %v1403 = vshll.u32 %v1402, 23
    %v1404 = vor.u32 4788187, %v1403
    %v1405 = vand.u32 2147483647, %v1404
    %v1407 = vcvt.s32.f32 %v1400
    %v1408 = vmul.f32 %v1407, %v1405
    %v1409 = vxor.u32 %v1408, 2147483648
    %v1410 = vsel %vm1327, %v1409, %v1408
    %v1411 = vsub.s32 4, %v1387
    %v1412 = vsel %vm1327, %v1411, %v1387
    %v1413 = vsel %vm1326, %v375, %v1410
    %v1414 = vsel %vm1326, 0, %v1412
    %v1415 = vcosq.f32.pop %v1413
    %v1416 = vsinq.f32.pop %v1413
    %vm1417 = vweird.f32 %v375
    %v1418 = vand.u32 %v1414, 3
    %vm1419 = vcmp.lt.s32.totalorder %v1418, 2
    %vm1420 = vcmp.eq.s32.totalorder %v1418, 0
    %v1421 = vxor.u32 %v1416, 2147483648
    %v1422 = vsel %vm1420, %v1415, %v1421
    %vm1423 = vcmp.eq.s32.totalorder %v1418, 2
    %v1424 = vxor.u32 %v1415, 2147483648
    %v1425 = vsel %vm1423, %v1424, %v1416
    %v1426 = vsel %vm1419, %v1422, %v1425
    %v1427 = vsel %vm1417, nan, %v1426
    %v1428 = vand.u32 2147483647, %v376
    %vm1429 = vcmp.le.f32.partialorder %v1428, 0.7853982
    %vm1430 = vcmp.lt.s32.totalorder %v376, 0
    %v1431 = vand.u32 %v376, 2139095040
    %v1432 = vshrl.u32 %v1431, 23
    %v1433 = vsub.s32 %v1432, 127
    %v1434 = vand.u32 2147483647, %v376
    %v1435 = vand.u32 %v1434, 8388607
    %v1436 = vor.u32 %v1435, 8388608
    %v1437 = vsub.s32 0, %v1436
    %v1438 = vadd.s32 %v1433, 1
    %vm1439 = vcmp.gt.s32.totalorder %v1438, 0
    %v1440 = vsel %vm1439, %v1438, 0
    %v1441 = vshrl.u32 %v1440, 5
    %v1442 = vand.u32 %v1440, 31
    %v1443 = vsub.s32 32, %v1442
    %v1444 = vshrl.u32 683565275, %v1443
    %v1445 = vshll.u32 683565275, %v1442
    %v1446 = vshrl.u32 2475754826, %v1443
    %v1447 = vor.u32 %v1445, %v1446
    %v1448 = vshll.u32 2475754826, %v1442
    %v1449 = vshrl.u32 2131351028, %v1443
    %v1450 = vor.u32 %v1448, %v1449
    %v1451 = vshll.u32 2131351028, %v1442
    %v1452 = vshrl.u32 2102212464, %v1443
    %v1453 = vor.u32 %v1451, %v1452
    %v1454 = vshll.u32 2102212464, %v1442
    %v1455 = vshrl.u32 920167782, %v1443
    %v1456 = vor.u32 %v1454, %v1455
    %v1457 = vshll.u32 920167782, %v1442
    %v1458 = vshrl.u32 1326507024, %v1443
    %v1459 = vor.u32 %v1457, %v1458
    %vm1460 = vcmp.lt.s32.totalorder %v1441, 1
    %vm1461 = vcmp.lt.s32.totalorder %v1441, 2
    %vm1462 = vcmp.lt.s32.totalorder %v1441, 3
    %vm1463 = vcmp.lt.s32.totalorder %v1441, 4
    %v1464 = vsel %vm1460, %v1444, %v1447
    %v1465 = vsel %vm1463, %v1453, 2102212464
    %v1466 = vsel %vm1462, %v1450, %v1465
    %v1467 = vsel %vm1461, %v1464, %v1466
    %v1468 = vsel %vm1460, %v1447, %v1450
    %v1469 = vsel %vm1463, %v1456, 920167782
    %v1470 = vsel %vm1462, %v1453, %v1469
    %v1471 = vsel %vm1461, %v1468, %v1470
    %v1472 = vsel %vm1460, %v1450, %v1453
    %v1473 = vsel %vm1463, %v1459, 1326507024
    %v1474 = vsel %vm1462, %v1456, %v1473
    %v1475 = vsel %vm1461, %v1472, %v1474
    %v1476 = vshll.u32 %v1436, 8
    %v1477 = vmul.u32.u64.compose %v1476, %v1475
    %v1478 = vextract.low.u32 %v1477
    %v1479 = vextract.high.u32 %v1477
    %v1480 = vmul.u32.u64.compose %v1476, %v1471
    %v1481 = vextract.low.u32 %v1480
    %v1482 = vextract.high.u32 %v1480
    %v1483 = vmul.u32 %v1476, %v1467
    %v1484 = vadd.s32 %v1479, %v1481
    %vm1485 = vc.u32 %v1479, %v1481
    %v1486 = vadd.s32 %v1482, 1
    %v1487 = vsel %vm1485, %v1486, %v1482
    %v1488 = vadd.s32 %v1483, %v1487
    %v1489 = vadd.s32 %v1488, 536870912
    %v1490 = vshrl.u32 %v1489, 30
    %v1491 = vshll.u32 %v1490, 30
    %v1492 = vsub.s32 %v1488, %v1491
    %vm1493 = vcmp.lt.s32.totalorder %v1492, 0
    %v1494 = vsub.s32 0, %v1492
    %v1495 = vsel %vm1493, %v1494, %v1492
    %v1496 = vclz %v1495
    %v1497 = vsub.s32 %v1496, 2
    %vm1498 = vcmp.gt.s32.totalorder 0, %v1497
    %v1499 = vsel %vm1498, 0, %v1497
    %v1500 = vsub.s32 32, %v1499
    %v1501 = vshll.u32 %v1492, %v1499
    %v1502 = vshrl.u32 %v1484, %v1500
    %v1503 = vor.u32 %v1501, %v1502
    %v1504 = vsub.s32 4294967266, %v1499
    %v1505 = vadd.s32 %v1504, 127
    %v1506 = vshll.u32 %v1505, 23
    %v1507 = vor.u32 4788187, %v1506
    %v1508 = vand.u32 2147483647, %v1507
    %v1510 = vcvt.s32.f32 %v1503
    %v1511 = vmul.f32 %v1510, %v1508
    %v1512 = vxor.u32 %v1511, 2147483648
    %v1513 = vsel %vm1430, %v1512, %v1511
    %v1514 = vsub.s32 4, %v1490
    %v1515 = vsel %vm1430, %v1514, %v1490
    %v1516 = vsel %vm1429, %v376, %v1513
    %v1517 = vsel %vm1429, 0, %v1515
    %v1518 = vcosq.f32.pop %v1516
    %v1519 = vsinq.f32.pop %v1516
    %vm1520 = vweird.f32 %v376
    %v1521 = vand.u32 %v1517, 3
    %vm1522 = vcmp.lt.s32.totalorder %v1521, 2
    %vm1523 = vcmp.eq.s32.totalorder %v1521, 0
    %v1524 = vxor.u32 %v1519, 2147483648
    %v1525 = vsel %vm1523, %v1518, %v1524
    %vm1526 = vcmp.eq.s32.totalorder %v1521, 2
    %v1527 = vxor.u32 %v1518, 2147483648
    %v1528 = vsel %vm1526, %v1527, %v1519
    %v1529 = vsel %vm1522, %v1525, %v1528
    %v1530 = vsel %vm1520, nan, %v1529
    %v1531 = vand.u32 2147483647, %v377
    %vm1532 = vcmp.le.f32.partialorder %v1531, 0.7853982
    %vm1533 = vcmp.lt.s32.totalorder %v377, 0
    %v1534 = vand.u32 %v377, 2139095040
    %v1535 = vshrl.u32 %v1534, 23
    %v1536 = vsub.s32 %v1535, 127
    %v1537 = vand.u32 2147483647, %v377
    %v1538 = vand.u32 %v1537, 8388607
    %v1539 = vor.u32 %v1538, 8388608
    %v1540 = vsub.s32 0, %v1539
    %v1541 = vadd.s32 %v1536, 1
    %vm1542 = vcmp.gt.s32.totalorder %v1541, 0
    %v1543 = vsel %vm1542, %v1541, 0
    %v1544 = vshrl.u32 %v1543, 5
    %v1545 = vand.u32 %v1543, 31
    %v1546 = vsub.s32 32, %v1545
    %v1547 = vshrl.u32 683565275, %v1546
    %v1548 = vshll.u32 683565275, %v1545
    %v1549 = vshrl.u32 2475754826, %v1546
    %v1550 = vor.u32 %v1548, %v1549
    %v1551 = vshll.u32 2475754826, %v1545
    %v1552 = vshrl.u32 2131351028, %v1546
    %v1553 = vor.u32 %v1551, %v1552
    %v1554 = vshll.u32 2131351028, %v1545
    %v1555 = vshrl.u32 2102212464, %v1546
    %v1556 = vor.u32 %v1554, %v1555
    %v1557 = vshll.u32 2102212464, %v1545
    %v1558 = vshrl.u32 920167782, %v1546
    %v1559 = vor.u32 %v1557, %v1558
    %v1560 = vshll.u32 920167782, %v1545
    %v1561 = vshrl.u32 1326507024, %v1546
    %v1562 = vor.u32 %v1560, %v1561
    %vm1563 = vcmp.lt.s32.totalorder %v1544, 1
    %vm1564 = vcmp.lt.s32.totalorder %v1544, 2
    %vm1565 = vcmp.lt.s32.totalorder %v1544, 3
    %vm1566 = vcmp.lt.s32.totalorder %v1544, 4
    %v1567 = vsel %vm1563, %v1547, %v1550
    %v1568 = vsel %vm1566, %v1556, 2102212464
    %v1569 = vsel %vm1565, %v1553, %v1568
    %v1570 = vsel %vm1564, %v1567, %v1569
    %v1571 = vsel %vm1563, %v1550, %v1553
    %v1572 = vsel %vm1566, %v1559, 920167782
    %v1573 = vsel %vm1565, %v1556, %v1572
    %v1574 = vsel %vm1564, %v1571, %v1573
    %v1575 = vsel %vm1563, %v1553, %v1556
    %v1576 = vsel %vm1566, %v1562, 1326507024
    %v1577 = vsel %vm1565, %v1559, %v1576
    %v1578 = vsel %vm1564, %v1575, %v1577
    %v1579 = vshll.u32 %v1539, 8
    %v1580 = vmul.u32.u64.compose %v1579, %v1578
    %v1581 = vextract.low.u32 %v1580
    %v1582 = vextract.high.u32 %v1580
    %v1583 = vmul.u32.u64.compose %v1579, %v1574
    %v1584 = vextract.low.u32 %v1583
    %v1585 = vextract.high.u32 %v1583
    %v1586 = vmul.u32 %v1579, %v1570
    %v1587 = vadd.s32 %v1582, %v1584
    %vm1588 = vc.u32 %v1582, %v1584
    %v1589 = vadd.s32 %v1585, 1
    %v1590 = vsel %vm1588, %v1589, %v1585
    %v1591 = vadd.s32 %v1586, %v1590
    %v1592 = vadd.s32 %v1591, 536870912
    %v1593 = vshrl.u32 %v1592, 30
    %v1594 = vshll.u32 %v1593, 30
    %v1595 = vsub.s32 %v1591, %v1594
    %vm1596 = vcmp.lt.s32.totalorder %v1595, 0
    %v1597 = vsub.s32 0, %v1595
    %v1598 = vsel %vm1596, %v1597, %v1595
    %v1599 = vclz %v1598
    %v1600 = vsub.s32 %v1599, 2
    %vm1601 = vcmp.gt.s32.totalorder 0, %v1600
    %v1602 = vsel %vm1601, 0, %v1600
    %v1603 = vsub.s32 32, %v1602
    %v1604 = vshll.u32 %v1595, %v1602
    %v1605 = vshrl.u32 %v1587, %v1603
    %v1606 = vor.u32 %v1604, %v1605
    %v1607 = vsub.s32 4294967266, %v1602
    %v1608 = vadd.s32 %v1607, 127
    %v1609 = vshll.u32 %v1608, 23
    %v1610 = vor.u32 4788187, %v1609
    %v1611 = vand.u32 2147483647, %v1610
    %v1613 = vcvt.s32.f32 %v1606
    %v1614 = vmul.f32 %v1613, %v1611
    %v1615 = vxor.u32 %v1614, 2147483648
    %v1616 = vsel %vm1533, %v1615, %v1614
    %v1617 = vsub.s32 4, %v1593
    %v1618 = vsel %vm1533, %v1617, %v1593
    %v1619 = vsel %vm1532, %v377, %v1616
    %v1620 = vsel %vm1532, 0, %v1618
    %v1621 = vcosq.f32.pop %v1619
    %v1622 = vsinq.f32.pop %v1619
    %vm1623 = vweird.f32 %v377
    %v1624 = vand.u32 %v1620, 3
    %vm1625 = vcmp.lt.s32.totalorder %v1624, 2
    %vm1626 = vcmp.eq.s32.totalorder %v1624, 0
    %v1627 = vxor.u32 %v1622, 2147483648
    %v1628 = vsel %vm1626, %v1621, %v1627
    %vm1629 = vcmp.eq.s32.totalorder %v1624, 2
    %v1630 = vxor.u32 %v1621, 2147483648
    %v1631 = vsel %vm1629, %v1630, %v1622
    %v1632 = vsel %vm1625, %v1628, %v1631
    %v1633 = vsel %vm1623, nan, %v1632
    %v1634 = vand.u32 2147483647, %v378
    %vm1635 = vcmp.le.f32.partialorder %v1634, 0.7853982
    %vm1636 = vcmp.lt.s32.totalorder %v378, 0
    %v1637 = vand.u32 %v378, 2139095040
    %v1638 = vshrl.u32 %v1637, 23
    %v1639 = vsub.s32 %v1638, 127
    %v1640 = vand.u32 2147483647, %v378
    %v1641 = vand.u32 %v1640, 8388607
    %v1642 = vor.u32 %v1641, 8388608
    %v1643 = vsub.s32 0, %v1642
    %v1644 = vadd.s32 %v1639, 1
    %vm1645 = vcmp.gt.s32.totalorder %v1644, 0
    %v1646 = vsel %vm1645, %v1644, 0
    %v1647 = vshrl.u32 %v1646, 5
    %v1648 = vand.u32 %v1646, 31
    %v1649 = vsub.s32 32, %v1648
    %v1650 = vshrl.u32 683565275, %v1649
    %v1651 = vshll.u32 683565275, %v1648
    %v1652 = vshrl.u32 2475754826, %v1649
    %v1653 = vor.u32 %v1651, %v1652
    %v1654 = vshll.u32 2475754826, %v1648
    %v1655 = vshrl.u32 2131351028, %v1649
    %v1656 = vor.u32 %v1654, %v1655
    %v1657 = vshll.u32 2131351028, %v1648
    %v1658 = vshrl.u32 2102212464, %v1649
    %v1659 = vor.u32 %v1657, %v1658
    %v1660 = vshll.u32 2102212464, %v1648
    %v1661 = vshrl.u32 920167782, %v1649
    %v1662 = vor.u32 %v1660, %v1661
    %v1663 = vshll.u32 920167782, %v1648
    %v1664 = vshrl.u32 1326507024, %v1649
    %v1665 = vor.u32 %v1663, %v1664
    %vm1666 = vcmp.lt.s32.totalorder %v1647, 1
    %vm1667 = vcmp.lt.s32.totalorder %v1647, 2
    %vm1668 = vcmp.lt.s32.totalorder %v1647, 3
    %vm1669 = vcmp.lt.s32.totalorder %v1647, 4
    %v1670 = vsel %vm1666, %v1650, %v1653
    %v1671 = vsel %vm1669, %v1659, 2102212464
    %v1672 = vsel %vm1668, %v1656, %v1671
    %v1673 = vsel %vm1667, %v1670, %v1672
    %v1674 = vsel %vm1666, %v1653, %v1656
    %v1675 = vsel %vm1669, %v1662, 920167782
    %v1676 = vsel %vm1668, %v1659, %v1675
    %v1677 = vsel %vm1667, %v1674, %v1676
    %v1678 = vsel %vm1666, %v1656, %v1659
    %v1679 = vsel %vm1669, %v1665, 1326507024
    %v1680 = vsel %vm1668, %v1662, %v1679
    %v1681 = vsel %vm1667, %v1678, %v1680
    %v1682 = vshll.u32 %v1642, 8
    %v1683 = vmul.u32.u64.compose %v1682, %v1681
    %v1684 = vextract.low.u32 %v1683
    %v1685 = vextract.high.u32 %v1683
    %v1686 = vmul.u32.u64.compose %v1682, %v1677
    %v1687 = vextract.low.u32 %v1686
    %v1688 = vextract.high.u32 %v1686
    %v1689 = vmul.u32 %v1682, %v1673
    %v1690 = vadd.s32 %v1685, %v1687
    %vm1691 = vc.u32 %v1685, %v1687
    %v1692 = vadd.s32 %v1688, 1
    %v1693 = vsel %vm1691, %v1692, %v1688
    %v1694 = vadd.s32 %v1689, %v1693
    %v1695 = vadd.s32 %v1694, 536870912
    %v1696 = vshrl.u32 %v1695, 30
    %v1697 = vshll.u32 %v1696, 30
    %v1698 = vsub.s32 %v1694, %v1697
    %vm1699 = vcmp.lt.s32.totalorder %v1698, 0
    %v1700 = vsub.s32 0, %v1698
    %v1701 = vsel %vm1699, %v1700, %v1698
    %v1702 = vclz %v1701
    %v1703 = vsub.s32 %v1702, 2
    %vm1704 = vcmp.gt.s32.totalorder 0, %v1703
    %v1705 = vsel %vm1704, 0, %v1703
    %v1706 = vsub.s32 32, %v1705
    %v1707 = vshll.u32 %v1698, %v1705
    %v1708 = vshrl.u32 %v1690, %v1706
    %v1709 = vor.u32 %v1707, %v1708
    %v1710 = vsub.s32 4294967266, %v1705
    %v1711 = vadd.s32 %v1710, 127
    %v1712 = vshll.u32 %v1711, 23
    %v1713 = vor.u32 4788187, %v1712
    %v1714 = vand.u32 2147483647, %v1713
    %v1716 = vcvt.s32.f32 %v1709
    %v1717 = vmul.f32 %v1716, %v1714
    %v1718 = vxor.u32 %v1717, 2147483648
    %v1719 = vsel %vm1636, %v1718, %v1717
    %v1720 = vsub.s32 4, %v1696
    %v1721 = vsel %vm1636, %v1720, %v1696
    %v1722 = vsel %vm1635, %v378, %v1719
    %v1723 = vsel %vm1635, 0, %v1721
    %v1724 = vcosq.f32.pop %v1722
    %v1725 = vsinq.f32.pop %v1722
    %vm1726 = vweird.f32 %v378
    %v1727 = vand.u32 %v1723, 3
    %vm1728 = vcmp.lt.s32.totalorder %v1727, 2
    %vm1729 = vcmp.eq.s32.totalorder %v1727, 0
    %v1730 = vxor.u32 %v1725, 2147483648
    %v1731 = vsel %vm1729, %v1724, %v1730
    %vm1732 = vcmp.eq.s32.totalorder %v1727, 2
    %v1733 = vxor.u32 %v1724, 2147483648
    %v1734 = vsel %vm1732, %v1733, %v1725
    %v1735 = vsel %vm1728, %v1731, %v1734
    %v1736 = vsel %vm1726, nan, %v1735
    %v1737 = vand.u32 2147483647, %v379
    %vm1738 = vcmp.le.f32.partialorder %v1737, 0.7853982
    %vm1739 = vcmp.lt.s32.totalorder %v379, 0
    %v1740 = vand.u32 %v379, 2139095040
    %v1741 = vshrl.u32 %v1740, 23
    %v1742 = vsub.s32 %v1741, 127
    %v1743 = vand.u32 2147483647, %v379
    %v1744 = vand.u32 %v1743, 8388607
    %v1745 = vor.u32 %v1744, 8388608
    %v1746 = vsub.s32 0, %v1745
    %v1747 = vadd.s32 %v1742, 1
    %vm1748 = vcmp.gt.s32.totalorder %v1747, 0
    %v1749 = vsel %vm1748, %v1747, 0
    %v1750 = vshrl.u32 %v1749, 5
    %v1751 = vand.u32 %v1749, 31
    %v1752 = vsub.s32 32, %v1751
    %v1753 = vshrl.u32 683565275, %v1752
    %v1754 = vshll.u32 683565275, %v1751
    %v1755 = vshrl.u32 2475754826, %v1752
    %v1756 = vor.u32 %v1754, %v1755
    %v1757 = vshll.u32 2475754826, %v1751
    %v1758 = vshrl.u32 2131351028, %v1752
    %v1759 = vor.u32 %v1757, %v1758
    %v1760 = vshll.u32 2131351028, %v1751
    %v1761 = vshrl.u32 2102212464, %v1752
    %v1762 = vor.u32 %v1760, %v1761
    %v1763 = vshll.u32 2102212464, %v1751
    %v1764 = vshrl.u32 920167782, %v1752
    %v1765 = vor.u32 %v1763, %v1764
    %v1766 = vshll.u32 920167782, %v1751
    %v1767 = vshrl.u32 1326507024, %v1752
    %v1768 = vor.u32 %v1766, %v1767
    %vm1769 = vcmp.lt.s32.totalorder %v1750, 1
    %vm1770 = vcmp.lt.s32.totalorder %v1750, 2
    %vm1771 = vcmp.lt.s32.totalorder %v1750, 3
    %vm1772 = vcmp.lt.s32.totalorder %v1750, 4
    %v1773 = vsel %vm1769, %v1753, %v1756
    %v1774 = vsel %vm1772, %v1762, 2102212464
    %v1775 = vsel %vm1771, %v1759, %v1774
    %v1776 = vsel %vm1770, %v1773, %v1775
    %v1777 = vsel %vm1769, %v1756, %v1759
    %v1778 = vsel %vm1772, %v1765, 920167782
    %v1779 = vsel %vm1771, %v1762, %v1778
    %v1780 = vsel %vm1770, %v1777, %v1779
    %v1781 = vsel %vm1769, %v1759, %v1762
    %v1782 = vsel %vm1772, %v1768, 1326507024
    %v1783 = vsel %vm1771, %v1765, %v1782
    %v1784 = vsel %vm1770, %v1781, %v1783
    %v1785 = vshll.u32 %v1745, 8
    %v1786 = vmul.u32.u64.compose %v1785, %v1784
    %v1787 = vextract.low.u32 %v1786
    %v1788 = vextract.high.u32 %v1786
    %v1789 = vmul.u32.u64.compose %v1785, %v1780
    %v1790 = vextract.low.u32 %v1789
    %v1791 = vextract.high.u32 %v1789
    %v1792 = vmul.u32 %v1785, %v1776
    %v1793 = vadd.s32 %v1788, %v1790
    %vm1794 = vc.u32 %v1788, %v1790
    %v1795 = vadd.s32 %v1791, 1
    %v1796 = vsel %vm1794, %v1795, %v1791
    %v1797 = vadd.s32 %v1792, %v1796
    %v1798 = vadd.s32 %v1797, 536870912
    %v1799 = vshrl.u32 %v1798, 30
    %v1800 = vshll.u32 %v1799, 30
    %v1801 = vsub.s32 %v1797, %v1800
    %vm1802 = vcmp.lt.s32.totalorder %v1801, 0
    %v1803 = vsub.s32 0, %v1801
    %v1804 = vsel %vm1802, %v1803, %v1801
    %v1805 = vclz %v1804
    %v1806 = vsub.s32 %v1805, 2
    %vm1807 = vcmp.gt.s32.totalorder 0, %v1806
    %v1808 = vsel %vm1807, 0, %v1806
    %v1809 = vsub.s32 32, %v1808
    %v1810 = vshll.u32 %v1801, %v1808
    %v1811 = vshrl.u32 %v1793, %v1809
    %v1812 = vor.u32 %v1810, %v1811
    %v1813 = vsub.s32 4294967266, %v1808
    %v1814 = vadd.s32 %v1813, 127
    %v1815 = vshll.u32 %v1814, 23
    %v1816 = vor.u32 4788187, %v1815
    %v1817 = vand.u32 2147483647, %v1816
    %v1819 = vcvt.s32.f32 %v1812
    %v1820 = vmul.f32 %v1819, %v1817
    %v1821 = vxor.u32 %v1820, 2147483648
    %v1822 = vsel %vm1739, %v1821, %v1820
    %v1823 = vsub.s32 4, %v1799
    %v1824 = vsel %vm1739, %v1823, %v1799
    %v1825 = vsel %vm1738, %v379, %v1822
    %v1826 = vsel %vm1738, 0, %v1824
    %v1827 = vcosq.f32.pop %v1825
    %v1828 = vsinq.f32.pop %v1825
    %vm1829 = vweird.f32 %v379
    %v1830 = vand.u32 %v1826, 3
    %vm1831 = vcmp.lt.s32.totalorder %v1830, 2
    %vm1832 = vcmp.eq.s32.totalorder %v1830, 0
    %v1833 = vxor.u32 %v1828, 2147483648
    %v1834 = vsel %vm1832, %v1827, %v1833
    %vm1835 = vcmp.eq.s32.totalorder %v1830, 2
    %v1836 = vxor.u32 %v1827, 2147483648
    %v1837 = vsel %vm1835, %v1836, %v1828
    %v1838 = vsel %vm1831, %v1834, %v1837
    %v1839 = vsel %vm1829, nan, %v1838
    %v1840 = vand.u32 2147483647, %v380
    %vm1841 = vcmp.le.f32.partialorder %v1840, 0.7853982
    %vm1842 = vcmp.lt.s32.totalorder %v380, 0
    %v1843 = vand.u32 %v380, 2139095040
    %v1844 = vshrl.u32 %v1843, 23
    %v1845 = vsub.s32 %v1844, 127
    %v1846 = vand.u32 2147483647, %v380
    %v1847 = vand.u32 %v1846, 8388607
    %v1848 = vor.u32 %v1847, 8388608
    %v1849 = vsub.s32 0, %v1848
    %v1850 = vadd.s32 %v1845, 1
    %vm1851 = vcmp.gt.s32.totalorder %v1850, 0
    %v1852 = vsel %vm1851, %v1850, 0
    %v1853 = vshrl.u32 %v1852, 5
    %v1854 = vand.u32 %v1852, 31
    %v1855 = vsub.s32 32, %v1854
    %v1856 = vshrl.u32 683565275, %v1855
    %v1857 = vshll.u32 683565275, %v1854
    %v1858 = vshrl.u32 2475754826, %v1855
    %v1859 = vor.u32 %v1857, %v1858
    %v1860 = vshll.u32 2475754826, %v1854
    %v1861 = vshrl.u32 2131351028, %v1855
    %v1862 = vor.u32 %v1860, %v1861
    %v1863 = vshll.u32 2131351028, %v1854
    %v1864 = vshrl.u32 2102212464, %v1855
    %v1865 = vor.u32 %v1863, %v1864
    %v1866 = vshll.u32 2102212464, %v1854
    %v1867 = vshrl.u32 920167782, %v1855
    %v1868 = vor.u32 %v1866, %v1867
    %v1869 = vshll.u32 920167782, %v1854
    %v1870 = vshrl.u32 1326507024, %v1855
    %v1871 = vor.u32 %v1869, %v1870
    %vm1872 = vcmp.lt.s32.totalorder %v1853, 1
    %vm1873 = vcmp.lt.s32.totalorder %v1853, 2
    %vm1874 = vcmp.lt.s32.totalorder %v1853, 3
    %vm1875 = vcmp.lt.s32.totalorder %v1853, 4
    %v1876 = vsel %vm1872, %v1856, %v1859
    %v1877 = vsel %vm1875, %v1865, 2102212464
    %v1878 = vsel %vm1874, %v1862, %v1877
    %v1879 = vsel %vm1873, %v1876, %v1878
    %v1880 = vsel %vm1872, %v1859, %v1862
    %v1881 = vsel %vm1875, %v1868, 920167782
    %v1882 = vsel %vm1874, %v1865, %v1881
    %v1883 = vsel %vm1873, %v1880, %v1882
    %v1884 = vsel %vm1872, %v1862, %v1865
    %v1885 = vsel %vm1875, %v1871, 1326507024
    %v1886 = vsel %vm1874, %v1868, %v1885
    %v1887 = vsel %vm1873, %v1884, %v1886
    %v1888 = vshll.u32 %v1848, 8
    %v1889 = vmul.u32.u64.compose %v1888, %v1887
    %v1890 = vextract.low.u32 %v1889
    %v1891 = vextract.high.u32 %v1889
    %v1892 = vmul.u32.u64.compose %v1888, %v1883
    %v1893 = vextract.low.u32 %v1892
    %v1894 = vextract.high.u32 %v1892
    %v1895 = vmul.u32 %v1888, %v1879
    %v1896 = vadd.s32 %v1891, %v1893
    %vm1897 = vc.u32 %v1891, %v1893
    %v1898 = vadd.s32 %v1894, 1
    %v1899 = vsel %vm1897, %v1898, %v1894
    %v1900 = vadd.s32 %v1895, %v1899
    %v1901 = vadd.s32 %v1900, 536870912
    %v1902 = vshrl.u32 %v1901, 30
    %v1903 = vshll.u32 %v1902, 30
    %v1904 = vsub.s32 %v1900, %v1903
    %vm1905 = vcmp.lt.s32.totalorder %v1904, 0
    %v1906 = vsub.s32 0, %v1904
    %v1907 = vsel %vm1905, %v1906, %v1904
    %v1908 = vclz %v1907
    %v1909 = vsub.s32 %v1908, 2
    %vm1910 = vcmp.gt.s32.totalorder 0, %v1909
    %v1911 = vsel %vm1910, 0, %v1909
    %v1912 = vsub.s32 32, %v1911
    %v1913 = vshll.u32 %v1904, %v1911
    %v1914 = vshrl.u32 %v1896, %v1912
    %v1915 = vor.u32 %v1913, %v1914
    %v1916 = vsub.s32 4294967266, %v1911
    %v1917 = vadd.s32 %v1916, 127
    %v1918 = vshll.u32 %v1917, 23
    %v1919 = vor.u32 4788187, %v1918
    %v1920 = vand.u32 2147483647, %v1919
    %v1922 = vcvt.s32.f32 %v1915
    %v1923 = vmul.f32 %v1922, %v1920
    %v1924 = vxor.u32 %v1923, 2147483648
    %v1925 = vsel %vm1842, %v1924, %v1923
    %v1926 = vsub.s32 4, %v1902
    %v1927 = vsel %vm1842, %v1926, %v1902
    %v1928 = vsel %vm1841, %v380, %v1925
    %v1929 = vsel %vm1841, 0, %v1927
    %v1930 = vcosq.f32.pop %v1928
    %v1931 = vsinq.f32.pop %v1928
    %vm1932 = vweird.f32 %v380
    %v1933 = vand.u32 %v1929, 3
    %vm1934 = vcmp.lt.s32.totalorder %v1933, 2
    %vm1935 = vcmp.eq.s32.totalorder %v1933, 0
    %v1936 = vxor.u32 %v1931, 2147483648
    %v1937 = vsel %vm1935, %v1930, %v1936
    %vm1938 = vcmp.eq.s32.totalorder %v1933, 2
    %v1939 = vxor.u32 %v1930, 2147483648
    %v1940 = vsel %vm1938, %v1939, %v1931
    %v1941 = vsel %vm1934, %v1937, %v1940
    %v1942 = vsel %vm1932, nan, %v1941
    %v1943 = vand.u32 2147483647, %v381
    %vm1944 = vcmp.le.f32.partialorder %v1943, 0.7853982
    %vm1945 = vcmp.lt.s32.totalorder %v381, 0
    %v1946 = vand.u32 %v381, 2139095040
    %v1947 = vshrl.u32 %v1946, 23
    %v1948 = vsub.s32 %v1947, 127
    %v1949 = vand.u32 2147483647, %v381
    %v1950 = vand.u32 %v1949, 8388607
    %v1951 = vor.u32 %v1950, 8388608
    %v1952 = vsub.s32 0, %v1951
    %v1953 = vadd.s32 %v1948, 1
    %vm1954 = vcmp.gt.s32.totalorder %v1953, 0
    %v1955 = vsel %vm1954, %v1953, 0
    %v1956 = vshrl.u32 %v1955, 5
    %v1957 = vand.u32 %v1955, 31
    %v1958 = vsub.s32 32, %v1957
    %v1959 = vshrl.u32 683565275, %v1958
    %v1960 = vshll.u32 683565275, %v1957
    %v1961 = vshrl.u32 2475754826, %v1958
    %v1962 = vor.u32 %v1960, %v1961
    %v1963 = vshll.u32 2475754826, %v1957
    %v1964 = vshrl.u32 2131351028, %v1958
    %v1965 = vor.u32 %v1963, %v1964
    %v1966 = vshll.u32 2131351028, %v1957
    %v1967 = vshrl.u32 2102212464, %v1958
    %v1968 = vor.u32 %v1966, %v1967
    %v1969 = vshll.u32 2102212464, %v1957
    %v1970 = vshrl.u32 920167782, %v1958
    %v1971 = vor.u32 %v1969, %v1970
    %v1972 = vshll.u32 920167782, %v1957
    %v1973 = vshrl.u32 1326507024, %v1958
    %v1974 = vor.u32 %v1972, %v1973
    %vm1975 = vcmp.lt.s32.totalorder %v1956, 1
    %vm1976 = vcmp.lt.s32.totalorder %v1956, 2
    %vm1977 = vcmp.lt.s32.totalorder %v1956, 3
    %vm1978 = vcmp.lt.s32.totalorder %v1956, 4
    %v1979 = vsel %vm1975, %v1959, %v1962
    %v1980 = vsel %vm1978, %v1968, 2102212464
    %v1981 = vsel %vm1977, %v1965, %v1980
    %v1982 = vsel %vm1976, %v1979, %v1981
    %v1983 = vsel %vm1975, %v1962, %v1965
    %v1984 = vsel %vm1978, %v1971, 920167782
    %v1985 = vsel %vm1977, %v1968, %v1984
    %v1986 = vsel %vm1976, %v1983, %v1985
    %v1987 = vsel %vm1975, %v1965, %v1968
    %v1988 = vsel %vm1978, %v1974, 1326507024
    %v1989 = vsel %vm1977, %v1971, %v1988
    %v1990 = vsel %vm1976, %v1987, %v1989
    %v1991 = vshll.u32 %v1951, 8
    %v1992 = vmul.u32.u64.compose %v1991, %v1990
    %v1993 = vextract.low.u32 %v1992
    %v1994 = vextract.high.u32 %v1992
    %v1995 = vmul.u32.u64.compose %v1991, %v1986
    %v1996 = vextract.low.u32 %v1995
    %v1997 = vextract.high.u32 %v1995
    %v1998 = vmul.u32 %v1991, %v1982
    %v1999 = vadd.s32 %v1994, %v1996
    %vm2000 = vc.u32 %v1994, %v1996
    %v2001 = vadd.s32 %v1997, 1
    %v2002 = vsel %vm2000, %v2001, %v1997
    %v2003 = vadd.s32 %v1998, %v2002
    %v2004 = vadd.s32 %v2003, 536870912
    %v2005 = vshrl.u32 %v2004, 30
    %v2006 = vshll.u32 %v2005, 30
    %v2007 = vsub.s32 %v2003, %v2006
    %vm2008 = vcmp.lt.s32.totalorder %v2007, 0
    %v2009 = vsub.s32 0, %v2007
    %v2010 = vsel %vm2008, %v2009, %v2007
    %v2011 = vclz %v2010
    %v2012 = vsub.s32 %v2011, 2
    %vm2013 = vcmp.gt.s32.totalorder 0, %v2012
    %v2014 = vsel %vm2013, 0, %v2012
    %v2015 = vsub.s32 32, %v2014
    %v2016 = vshll.u32 %v2007, %v2014
    %v2017 = vshrl.u32 %v1999, %v2015
    %v2018 = vor.u32 %v2016, %v2017
    %v2019 = vsub.s32 4294967266, %v2014
    %v2020 = vadd.s32 %v2019, 127
    %v2021 = vshll.u32 %v2020, 23
    %v2022 = vor.u32 4788187, %v2021
    %v2023 = vand.u32 2147483647, %v2022
    %v2025 = vcvt.s32.f32 %v2018
    %v2026 = vmul.f32 %v2025, %v2023
    %v2027 = vxor.u32 %v2026, 2147483648
    %v2028 = vsel %vm1945, %v2027, %v2026
    %v2029 = vsub.s32 4, %v2005
    %v2030 = vsel %vm1945, %v2029, %v2005
    %v2031 = vsel %vm1944, %v381, %v2028
    %v2032 = vsel %vm1944, 0, %v2030
    %v2033 = vcosq.f32.pop %v2031
    %v2034 = vsinq.f32.pop %v2031
    %vm2035 = vweird.f32 %v381
    %v2036 = vand.u32 %v2032, 3
    %vm2037 = vcmp.lt.s32.totalorder %v2036, 2
    %vm2038 = vcmp.eq.s32.totalorder %v2036, 0
    %v2039 = vxor.u32 %v2034, 2147483648
    %v2040 = vsel %vm2038, %v2033, %v2039
    %vm2041 = vcmp.eq.s32.totalorder %v2036, 2
    %v2042 = vxor.u32 %v2033, 2147483648
    %v2043 = vsel %vm2041, %v2042, %v2034
    %v2044 = vsel %vm2037, %v2040, %v2043
    %v2045 = vsel %vm2035, nan, %v2044
    %v2046 = vand.u32 2147483647, %v382
    %vm2047 = vcmp.le.f32.partialorder %v2046, 0.7853982
    %vm2048 = vcmp.lt.s32.totalorder %v382, 0
    %v2049 = vand.u32 %v382, 2139095040
    %v2050 = vshrl.u32 %v2049, 23
    %v2051 = vsub.s32 %v2050, 127
    %v2052 = vand.u32 2147483647, %v382
    %v2053 = vand.u32 %v2052, 8388607
    %v2054 = vor.u32 %v2053, 8388608
    %v2055 = vsub.s32 0, %v2054
    %v2056 = vadd.s32 %v2051, 1
    %vm2057 = vcmp.gt.s32.totalorder %v2056, 0
    %v2058 = vsel %vm2057, %v2056, 0
    %v2059 = vshrl.u32 %v2058, 5
    %v2060 = vand.u32 %v2058, 31
    %v2061 = vsub.s32 32, %v2060
    %v2062 = vshrl.u32 683565275, %v2061
    %v2063 = vshll.u32 683565275, %v2060
    %v2064 = vshrl.u32 2475754826, %v2061
    %v2065 = vor.u32 %v2063, %v2064
    %v2066 = vshll.u32 2475754826, %v2060
    %v2067 = vshrl.u32 2131351028, %v2061
    %v2068 = vor.u32 %v2066, %v2067
    %v2069 = vshll.u32 2131351028, %v2060
    %v2070 = vshrl.u32 2102212464, %v2061
    %v2071 = vor.u32 %v2069, %v2070
    %v2072 = vshll.u32 2102212464, %v2060
    %v2073 = vshrl.u32 920167782, %v2061
    %v2074 = vor.u32 %v2072, %v2073
    %v2075 = vshll.u32 920167782, %v2060
    %v2076 = vshrl.u32 1326507024, %v2061
    %v2077 = vor.u32 %v2075, %v2076
    %vm2078 = vcmp.lt.s32.totalorder %v2059, 1
    %vm2079 = vcmp.lt.s32.totalorder %v2059, 2
    %vm2080 = vcmp.lt.s32.totalorder %v2059, 3
    %vm2081 = vcmp.lt.s32.totalorder %v2059, 4
    %v2082 = vsel %vm2078, %v2062, %v2065
    %v2083 = vsel %vm2081, %v2071, 2102212464
    %v2084 = vsel %vm2080, %v2068, %v2083
    %v2085 = vsel %vm2079, %v2082, %v2084
    %v2086 = vsel %vm2078, %v2065, %v2068
    %v2087 = vsel %vm2081, %v2074, 920167782
    %v2088 = vsel %vm2080, %v2071, %v2087
    %v2089 = vsel %vm2079, %v2086, %v2088
    %v2090 = vsel %vm2078, %v2068, %v2071
    %v2091 = vsel %vm2081, %v2077, 1326507024
    %v2092 = vsel %vm2080, %v2074, %v2091
    %v2093 = vsel %vm2079, %v2090, %v2092
    %v2094 = vshll.u32 %v2054, 8
    %v2095 = vmul.u32.u64.compose %v2094, %v2093
    %v2096 = vextract.low.u32 %v2095
    %v2097 = vextract.high.u32 %v2095
    %v2098 = vmul.u32.u64.compose %v2094, %v2089
    %v2099 = vextract.low.u32 %v2098
    %v2100 = vextract.high.u32 %v2098
    %v2101 = vmul.u32 %v2094, %v2085
    %v2102 = vadd.s32 %v2097, %v2099
    %vm2103 = vc.u32 %v2097, %v2099
    %v2104 = vadd.s32 %v2100, 1
    %v2105 = vsel %vm2103, %v2104, %v2100
    %v2106 = vadd.s32 %v2101, %v2105
    %v2107 = vadd.s32 %v2106, 536870912
    %v2108 = vshrl.u32 %v2107, 30
    %v2109 = vshll.u32 %v2108, 30
    %v2110 = vsub.s32 %v2106, %v2109
    %vm2111 = vcmp.lt.s32.totalorder %v2110, 0
    %v2112 = vsub.s32 0, %v2110
    %v2113 = vsel %vm2111, %v2112, %v2110
    %v2114 = vclz %v2113
    %v2115 = vsub.s32 %v2114, 2
    %vm2116 = vcmp.gt.s32.totalorder 0, %v2115
    %v2117 = vsel %vm2116, 0, %v2115
    %v2118 = vsub.s32 32, %v2117
    %v2119 = vshll.u32 %v2110, %v2117
    %v2120 = vshrl.u32 %v2102, %v2118
    %v2121 = vor.u32 %v2119, %v2120
    %v2122 = vsub.s32 4294967266, %v2117
    %v2123 = vadd.s32 %v2122, 127
    %v2124 = vshll.u32 %v2123, 23
    %v2125 = vor.u32 4788187, %v2124
    %v2126 = vand.u32 2147483647, %v2125
    %v2128 = vcvt.s32.f32 %v2121
    %v2129 = vmul.f32 %v2128, %v2126
    %v2130 = vxor.u32 %v2129, 2147483648
    %v2131 = vsel %vm2048, %v2130, %v2129
    %v2132 = vsub.s32 4, %v2108
    %v2133 = vsel %vm2048, %v2132, %v2108
    %v2134 = vsel %vm2047, %v382, %v2131
    %v2135 = vsel %vm2047, 0, %v2133
    %v2136 = vcosq.f32.pop %v2134
    %v2137 = vsinq.f32.pop %v2134
    %vm2138 = vweird.f32 %v382
    %v2139 = vand.u32 %v2135, 3
    %vm2140 = vcmp.lt.s32.totalorder %v2139, 2
    %vm2141 = vcmp.eq.s32.totalorder %v2139, 0
    %v2142 = vxor.u32 %v2137, 2147483648
    %v2143 = vsel %vm2141, %v2136, %v2142
    %vm2144 = vcmp.eq.s32.totalorder %v2139, 2
    %v2145 = vxor.u32 %v2136, 2147483648
    %v2146 = vsel %vm2144, %v2145, %v2137
    %v2147 = vsel %vm2140, %v2143, %v2146
    %v2148 = vsel %vm2138, nan, %v2147
    %v2149 = vand.u32 2147483647, %v383
    %vm2150 = vcmp.le.f32.partialorder %v2149, 0.7853982
    %vm2151 = vcmp.lt.s32.totalorder %v383, 0
    %v2152 = vand.u32 %v383, 2139095040
    %v2153 = vshrl.u32 %v2152, 23
    %v2154 = vsub.s32 %v2153, 127
    %v2155 = vand.u32 2147483647, %v383
    %v2156 = vand.u32 %v2155, 8388607
    %v2157 = vor.u32 %v2156, 8388608
    %v2158 = vsub.s32 0, %v2157
    %v2159 = vadd.s32 %v2154, 1
    %vm2160 = vcmp.gt.s32.totalorder %v2159, 0
    %v2161 = vsel %vm2160, %v2159, 0
    %v2162 = vshrl.u32 %v2161, 5
    %v2163 = vand.u32 %v2161, 31
    %v2164 = vsub.s32 32, %v2163
    %v2165 = vshrl.u32 683565275, %v2164
    %v2166 = vshll.u32 683565275, %v2163
    %v2167 = vshrl.u32 2475754826, %v2164
    %v2168 = vor.u32 %v2166, %v2167
    %v2169 = vshll.u32 2475754826, %v2163
    %v2170 = vshrl.u32 2131351028, %v2164
    %v2171 = vor.u32 %v2169, %v2170
    %v2172 = vshll.u32 2131351028, %v2163
    %v2173 = vshrl.u32 2102212464, %v2164
    %v2174 = vor.u32 %v2172, %v2173
    %v2175 = vshll.u32 2102212464, %v2163
    %v2176 = vshrl.u32 920167782, %v2164
    %v2177 = vor.u32 %v2175, %v2176
    %v2178 = vshll.u32 920167782, %v2163
    %v2179 = vshrl.u32 1326507024, %v2164
    %v2180 = vor.u32 %v2178, %v2179
    %vm2181 = vcmp.lt.s32.totalorder %v2162, 1
    %vm2182 = vcmp.lt.s32.totalorder %v2162, 2
    %vm2183 = vcmp.lt.s32.totalorder %v2162, 3
    %vm2184 = vcmp.lt.s32.totalorder %v2162, 4
    %v2185 = vsel %vm2181, %v2165, %v2168
    %v2186 = vsel %vm2184, %v2174, 2102212464
    %v2187 = vsel %vm2183, %v2171, %v2186
    %v2188 = vsel %vm2182, %v2185, %v2187
    %v2189 = vsel %vm2181, %v2168, %v2171
    %v2190 = vsel %vm2184, %v2177, 920167782
    %v2191 = vsel %vm2183, %v2174, %v2190
    %v2192 = vsel %vm2182, %v2189, %v2191
    %v2193 = vsel %vm2181, %v2171, %v2174
    %v2194 = vsel %vm2184, %v2180, 1326507024
    %v2195 = vsel %vm2183, %v2177, %v2194
    %v2196 = vsel %vm2182, %v2193, %v2195
    %v2197 = vshll.u32 %v2157, 8
    %v2198 = vmul.u32.u64.compose %v2197, %v2196
    %v2199 = vextract.low.u32 %v2198
    %v2200 = vextract.high.u32 %v2198
    %v2201 = vmul.u32.u64.compose %v2197, %v2192
    %v2202 = vextract.low.u32 %v2201
    %v2203 = vextract.high.u32 %v2201
    %v2204 = vmul.u32 %v2197, %v2188
    %v2205 = vadd.s32 %v2200, %v2202
    %vm2206 = vc.u32 %v2200, %v2202
    %v2207 = vadd.s32 %v2203, 1
    %v2208 = vsel %vm2206, %v2207, %v2203
    %v2209 = vadd.s32 %v2204, %v2208
    %v2210 = vadd.s32 %v2209, 536870912
    %v2211 = vshrl.u32 %v2210, 30
    %v2212 = vshll.u32 %v2211, 30
    %v2213 = vsub.s32 %v2209, %v2212
    %vm2214 = vcmp.lt.s32.totalorder %v2213, 0
    %v2215 = vsub.s32 0, %v2213
    %v2216 = vsel %vm2214, %v2215, %v2213
    %v2217 = vclz %v2216
    %v2218 = vsub.s32 %v2217, 2
    %vm2219 = vcmp.gt.s32.totalorder 0, %v2218
    %v2220 = vsel %vm2219, 0, %v2218
    %v2221 = vsub.s32 32, %v2220
    %v2222 = vshll.u32 %v2213, %v2220
    %v2223 = vshrl.u32 %v2205, %v2221
    %v2224 = vor.u32 %v2222, %v2223
    %v2225 = vsub.s32 4294967266, %v2220
    %v2226 = vadd.s32 %v2225, 127
    %v2227 = vshll.u32 %v2226, 23
    %v2228 = vor.u32 4788187, %v2227
    %v2229 = vand.u32 2147483647, %v2228
    %v2231 = vcvt.s32.f32 %v2224
    %v2232 = vmul.f32 %v2231, %v2229
    %v2233 = vxor.u32 %v2232, 2147483648
    %v2234 = vsel %vm2151, %v2233, %v2232
    %v2235 = vsub.s32 4, %v2211
    %v2236 = vsel %vm2151, %v2235, %v2211
    %v2237 = vsel %vm2150, %v383, %v2234
    %v2238 = vsel %vm2150, 0, %v2236
    %v2239 = vcosq.f32.pop %v2237
    %v2240 = vsinq.f32.pop %v2237
    %vm2241 = vweird.f32 %v383
    %v2242 = vand.u32 %v2238, 3
    %vm2243 = vcmp.lt.s32.totalorder %v2242, 2
    %vm2244 = vcmp.eq.s32.totalorder %v2242, 0
    %v2245 = vxor.u32 %v2240, 2147483648
    %v2246 = vsel %vm2244, %v2239, %v2245
    %vm2247 = vcmp.eq.s32.totalorder %v2242, 2
    %v2248 = vxor.u32 %v2239, 2147483648
    %v2249 = vsel %vm2247, %v2248, %v2240
    %v2250 = vsel %vm2243, %v2246, %v2249
    %v2251 = vsel %vm2241, nan, %v2250
    %v2252 = vand.u32 2147483647, %v384
    %vm2253 = vcmp.le.f32.partialorder %v2252, 0.7853982
    %vm2254 = vcmp.lt.s32.totalorder %v384, 0
    %v2255 = vand.u32 %v384, 2139095040
    %v2256 = vshrl.u32 %v2255, 23
    %v2257 = vsub.s32 %v2256, 127
    %v2258 = vand.u32 2147483647, %v384
    %v2259 = vand.u32 %v2258, 8388607
    %v2260 = vor.u32 %v2259, 8388608
    %v2261 = vsub.s32 0, %v2260
    %v2262 = vadd.s32 %v2257, 1
    %vm2263 = vcmp.gt.s32.totalorder %v2262, 0
    %v2264 = vsel %vm2263, %v2262, 0
    %v2265 = vshrl.u32 %v2264, 5
    %v2266 = vand.u32 %v2264, 31
    %v2267 = vsub.s32 32, %v2266
    %v2268 = vshrl.u32 683565275, %v2267
    %v2269 = vshll.u32 683565275, %v2266
    %v2270 = vshrl.u32 2475754826, %v2267
    %v2271 = vor.u32 %v2269, %v2270
    %v2272 = vshll.u32 2475754826, %v2266
    %v2273 = vshrl.u32 2131351028, %v2267
    %v2274 = vor.u32 %v2272, %v2273
    %v2275 = vshll.u32 2131351028, %v2266
    %v2276 = vshrl.u32 2102212464, %v2267
    %v2277 = vor.u32 %v2275, %v2276
    %v2278 = vshll.u32 2102212464, %v2266
    %v2279 = vshrl.u32 920167782, %v2267
    %v2280 = vor.u32 %v2278, %v2279
    %v2281 = vshll.u32 920167782, %v2266
    %v2282 = vshrl.u32 1326507024, %v2267
    %v2283 = vor.u32 %v2281, %v2282
    %vm2284 = vcmp.lt.s32.totalorder %v2265, 1
    %vm2285 = vcmp.lt.s32.totalorder %v2265, 2
    %vm2286 = vcmp.lt.s32.totalorder %v2265, 3
    %vm2287 = vcmp.lt.s32.totalorder %v2265, 4
    %v2288 = vsel %vm2284, %v2268, %v2271
    %v2289 = vsel %vm2287, %v2277, 2102212464
    %v2290 = vsel %vm2286, %v2274, %v2289
    %v2291 = vsel %vm2285, %v2288, %v2290
    %v2292 = vsel %vm2284, %v2271, %v2274
    %v2293 = vsel %vm2287, %v2280, 920167782
    %v2294 = vsel %vm2286, %v2277, %v2293
    %v2295 = vsel %vm2285, %v2292, %v2294
    %v2296 = vsel %vm2284, %v2274, %v2277
    %v2297 = vsel %vm2287, %v2283, 1326507024
    %v2298 = vsel %vm2286, %v2280, %v2297
    %v2299 = vsel %vm2285, %v2296, %v2298
    %v2300 = vshll.u32 %v2260, 8
    %v2301 = vmul.u32.u64.compose %v2300, %v2299
    %v2302 = vextract.low.u32 %v2301
    %v2303 = vextract.high.u32 %v2301
    %v2304 = vmul.u32.u64.compose %v2300, %v2295
    %v2305 = vextract.low.u32 %v2304
    %v2306 = vextract.high.u32 %v2304
    %v2307 = vmul.u32 %v2300, %v2291
    %v2308 = vadd.s32 %v2303, %v2305
    %vm2309 = vc.u32 %v2303, %v2305
    %v2310 = vadd.s32 %v2306, 1
    %v2311 = vsel %vm2309, %v2310, %v2306
    %v2312 = vadd.s32 %v2307, %v2311
    %v2313 = vadd.s32 %v2312, 536870912
    %v2314 = vshrl.u32 %v2313, 30
    %v2315 = vshll.u32 %v2314, 30
    %v2316 = vsub.s32 %v2312, %v2315
    %vm2317 = vcmp.lt.s32.totalorder %v2316, 0
    %v2318 = vsub.s32 0, %v2316
    %v2319 = vsel %vm2317, %v2318, %v2316
    %v2320 = vclz %v2319
    %v2321 = vsub.s32 %v2320, 2
    %vm2322 = vcmp.gt.s32.totalorder 0, %v2321
    %v2323 = vsel %vm2322, 0, %v2321
    %v2324 = vsub.s32 32, %v2323
    %v2325 = vshll.u32 %v2316, %v2323
    %v2326 = vshrl.u32 %v2308, %v2324
    %v2327 = vor.u32 %v2325, %v2326
    %v2328 = vsub.s32 4294967266, %v2323
    %v2329 = vadd.s32 %v2328, 127
    %v2330 = vshll.u32 %v2329, 23
    %v2331 = vor.u32 4788187, %v2330
    %v2332 = vand.u32 2147483647, %v2331
    %v2334 = vcvt.s32.f32 %v2327
    %v2335 = vmul.f32 %v2334, %v2332
    %v2336 = vxor.u32 %v2335, 2147483648
    %v2337 = vsel %vm2254, %v2336, %v2335
    %v2338 = vsub.s32 4, %v2314
    %v2339 = vsel %vm2254, %v2338, %v2314
    %v2340 = vsel %vm2253, %v384, %v2337
    %v2341 = vsel %vm2253, 0, %v2339
    %v2342 = vcosq.f32.pop %v2340
    %v2343 = vsinq.f32.pop %v2340
    %vm2344 = vweird.f32 %v384
    %v2345 = vand.u32 %v2341, 3
    %vm2346 = vcmp.lt.s32.totalorder %v2345, 2
    %vm2347 = vcmp.eq.s32.totalorder %v2345, 0
    %v2348 = vxor.u32 %v2343, 2147483648
    %v2349 = vsel %vm2347, %v2342, %v2348
    %vm2350 = vcmp.eq.s32.totalorder %v2345, 2
    %v2351 = vxor.u32 %v2342, 2147483648
    %v2352 = vsel %vm2350, %v2351, %v2343
    %v2353 = vsel %vm2346, %v2349, %v2352
    %v2354 = vsel %vm2344, nan, %v2353
    %v2355 = vand.u32 2147483647, %v385
    %vm2356 = vcmp.le.f32.partialorder %v2355, 0.7853982
    %vm2357 = vcmp.lt.s32.totalorder %v385, 0
    %v2358 = vand.u32 %v385, 2139095040
    %v2359 = vshrl.u32 %v2358, 23
    %v2360 = vsub.s32 %v2359, 127
    %v2361 = vand.u32 2147483647, %v385
    %v2362 = vand.u32 %v2361, 8388607
    %v2363 = vor.u32 %v2362, 8388608
    %v2364 = vsub.s32 0, %v2363
    %v2365 = vadd.s32 %v2360, 1
    %vm2366 = vcmp.gt.s32.totalorder %v2365, 0
    %v2367 = vsel %vm2366, %v2365, 0
    %v2368 = vshrl.u32 %v2367, 5
    %v2369 = vand.u32 %v2367, 31
    %v2370 = vsub.s32 32, %v2369
    %v2371 = vshrl.u32 683565275, %v2370
    %v2372 = vshll.u32 683565275, %v2369
    %v2373 = vshrl.u32 2475754826, %v2370
    %v2374 = vor.u32 %v2372, %v2373
    %v2375 = vshll.u32 2475754826, %v2369
    %v2376 = vshrl.u32 2131351028, %v2370
    %v2377 = vor.u32 %v2375, %v2376
    %v2378 = vshll.u32 2131351028, %v2369
    %v2379 = vshrl.u32 2102212464, %v2370
    %v2380 = vor.u32 %v2378, %v2379
    %v2381 = vshll.u32 2102212464, %v2369
    %v2382 = vshrl.u32 920167782, %v2370
    %v2383 = vor.u32 %v2381, %v2382
    %v2384 = vshll.u32 920167782, %v2369
    %v2385 = vshrl.u32 1326507024, %v2370
    %v2386 = vor.u32 %v2384, %v2385
    %vm2387 = vcmp.lt.s32.totalorder %v2368, 1
    %vm2388 = vcmp.lt.s32.totalorder %v2368, 2
    %vm2389 = vcmp.lt.s32.totalorder %v2368, 3
    %vm2390 = vcmp.lt.s32.totalorder %v2368, 4
    %v2391 = vsel %vm2387, %v2371, %v2374
    %v2392 = vsel %vm2390, %v2380, 2102212464
    %v2393 = vsel %vm2389, %v2377, %v2392
    %v2394 = vsel %vm2388, %v2391, %v2393
    %v2395 = vsel %vm2387, %v2374, %v2377
    %v2396 = vsel %vm2390, %v2383, 920167782
    %v2397 = vsel %vm2389, %v2380, %v2396
    %v2398 = vsel %vm2388, %v2395, %v2397
    %v2399 = vsel %vm2387, %v2377, %v2380
    %v2400 = vsel %vm2390, %v2386, 1326507024
    %v2401 = vsel %vm2389, %v2383, %v2400
    %v2402 = vsel %vm2388, %v2399, %v2401
    %v2403 = vshll.u32 %v2363, 8
    %v2404 = vmul.u32.u64.compose %v2403, %v2402
    %v2405 = vextract.low.u32 %v2404
    %v2406 = vextract.high.u32 %v2404
    %v2407 = vmul.u32.u64.compose %v2403, %v2398
    %v2408 = vextract.low.u32 %v2407
    %v2409 = vextract.high.u32 %v2407
    %v2410 = vmul.u32 %v2403, %v2394
    %v2411 = vadd.s32 %v2406, %v2408
    %vm2412 = vc.u32 %v2406, %v2408
    %v2413 = vadd.s32 %v2409, 1
    %v2414 = vsel %vm2412, %v2413, %v2409
    %v2415 = vadd.s32 %v2410, %v2414
    %v2416 = vadd.s32 %v2415, 536870912
    %v2417 = vshrl.u32 %v2416, 30
    %v2418 = vshll.u32 %v2417, 30
    %v2419 = vsub.s32 %v2415, %v2418
    %vm2420 = vcmp.lt.s32.totalorder %v2419, 0
    %v2421 = vsub.s32 0, %v2419
    %v2422 = vsel %vm2420, %v2421, %v2419
    %v2423 = vclz %v2422
    %v2424 = vsub.s32 %v2423, 2
    %vm2425 = vcmp.gt.s32.totalorder 0, %v2424
    %v2426 = vsel %vm2425, 0, %v2424
    %v2427 = vsub.s32 32, %v2426
    %v2428 = vshll.u32 %v2419, %v2426
    %v2429 = vshrl.u32 %v2411, %v2427
    %v2430 = vor.u32 %v2428, %v2429
    %v2431 = vsub.s32 4294967266, %v2426
    %v2432 = vadd.s32 %v2431, 127
    %v2433 = vshll.u32 %v2432, 23
    %v2434 = vor.u32 4788187, %v2433
    %v2435 = vand.u32 2147483647, %v2434
    %v2437 = vcvt.s32.f32 %v2430
    %v2438 = vmul.f32 %v2437, %v2435
    %v2439 = vxor.u32 %v2438, 2147483648
    %v2440 = vsel %vm2357, %v2439, %v2438
    %v2441 = vsub.s32 4, %v2417
    %v2442 = vsel %vm2357, %v2441, %v2417
    %v2443 = vsel %vm2356, %v385, %v2440
    %v2444 = vsel %vm2356, 0, %v2442
    %v2445 = vcosq.f32.pop %v2443
    %v2446 = vsinq.f32.pop %v2443
    %vm2447 = vweird.f32 %v385
    %v2448 = vand.u32 %v2444, 3
    %vm2449 = vcmp.lt.s32.totalorder %v2448, 2
    %vm2450 = vcmp.eq.s32.totalorder %v2448, 0
    %v2451 = vxor.u32 %v2446, 2147483648
    %v2452 = vsel %vm2450, %v2445, %v2451
    %vm2453 = vcmp.eq.s32.totalorder %v2448, 2
    %v2454 = vxor.u32 %v2445, 2147483648
    %v2455 = vsel %vm2453, %v2454, %v2446
    %v2456 = vsel %vm2449, %v2452, %v2455
    %v2457 = vsel %vm2447, nan, %v2456
    %v2458 = vand.u32 2147483647, %v386
    %vm2459 = vcmp.le.f32.partialorder %v2458, 0.7853982
    %vm2460 = vcmp.lt.s32.totalorder %v386, 0
    %v2461 = vand.u32 %v386, 2139095040
    %v2462 = vshrl.u32 %v2461, 23
    %v2463 = vsub.s32 %v2462, 127
    %v2464 = vand.u32 2147483647, %v386
    %v2465 = vand.u32 %v2464, 8388607
    %v2466 = vor.u32 %v2465, 8388608
    %v2467 = vsub.s32 0, %v2466
    %v2468 = vadd.s32 %v2463, 1
    %vm2469 = vcmp.gt.s32.totalorder %v2468, 0
    %v2470 = vsel %vm2469, %v2468, 0
    %v2471 = vshrl.u32 %v2470, 5
    %v2472 = vand.u32 %v2470, 31
    %v2473 = vsub.s32 32, %v2472
    %v2474 = vshrl.u32 683565275, %v2473
    %v2475 = vshll.u32 683565275, %v2472
    %v2476 = vshrl.u32 2475754826, %v2473
    %v2477 = vor.u32 %v2475, %v2476
    %v2478 = vshll.u32 2475754826, %v2472
    %v2479 = vshrl.u32 2131351028, %v2473
    %v2480 = vor.u32 %v2478, %v2479
    %v2481 = vshll.u32 2131351028, %v2472
    %v2482 = vshrl.u32 2102212464, %v2473
    %v2483 = vor.u32 %v2481, %v2482
    %v2484 = vshll.u32 2102212464, %v2472
    %v2485 = vshrl.u32 920167782, %v2473
    %v2486 = vor.u32 %v2484, %v2485
    %v2487 = vshll.u32 920167782, %v2472
    %v2488 = vshrl.u32 1326507024, %v2473
    %v2489 = vor.u32 %v2487, %v2488
    %vm2490 = vcmp.lt.s32.totalorder %v2471, 1
    %vm2491 = vcmp.lt.s32.totalorder %v2471, 2
    %vm2492 = vcmp.lt.s32.totalorder %v2471, 3
    %vm2493 = vcmp.lt.s32.totalorder %v2471, 4
    %v2494 = vsel %vm2490, %v2474, %v2477
    %v2495 = vsel %vm2493, %v2483, 2102212464
    %v2496 = vsel %vm2492, %v2480, %v2495
    %v2497 = vsel %vm2491, %v2494, %v2496
    %v2498 = vsel %vm2490, %v2477, %v2480
    %v2499 = vsel %vm2493, %v2486, 920167782
    %v2500 = vsel %vm2492, %v2483, %v2499
    %v2501 = vsel %vm2491, %v2498, %v2500
    %v2502 = vsel %vm2490, %v2480, %v2483
    %v2503 = vsel %vm2493, %v2489, 1326507024
    %v2504 = vsel %vm2492, %v2486, %v2503
    %v2505 = vsel %vm2491, %v2502, %v2504
    %v2506 = vshll.u32 %v2466, 8
    %v2507 = vmul.u32.u64.compose %v2506, %v2505
    %v2508 = vextract.low.u32 %v2507
    %v2509 = vextract.high.u32 %v2507
    %v2510 = vmul.u32.u64.compose %v2506, %v2501
    %v2511 = vextract.low.u32 %v2510
    %v2512 = vextract.high.u32 %v2510
    %v2513 = vmul.u32 %v2506, %v2497
    %v2514 = vadd.s32 %v2509, %v2511
    %vm2515 = vc.u32 %v2509, %v2511
    %v2516 = vadd.s32 %v2512, 1
    %v2517 = vsel %vm2515, %v2516, %v2512
    %v2518 = vadd.s32 %v2513, %v2517
    %v2519 = vadd.s32 %v2518, 536870912
    %v2520 = vshrl.u32 %v2519, 30
    %v2521 = vshll.u32 %v2520, 30
    %v2522 = vsub.s32 %v2518, %v2521
    %vm2523 = vcmp.lt.s32.totalorder %v2522, 0
    %v2524 = vsub.s32 0, %v2522
    %v2525 = vsel %vm2523, %v2524, %v2522
    %v2526 = vclz %v2525
    %v2527 = vsub.s32 %v2526, 2
    %vm2528 = vcmp.gt.s32.totalorder 0, %v2527
    %v2529 = vsel %vm2528, 0, %v2527
    %v2530 = vsub.s32 32, %v2529
    %v2531 = vshll.u32 %v2522, %v2529
    %v2532 = vshrl.u32 %v2514, %v2530
    %v2533 = vor.u32 %v2531, %v2532
    %v2534 = vsub.s32 4294967266, %v2529
    %v2535 = vadd.s32 %v2534, 127
    %v2536 = vshll.u32 %v2535, 23
    %v2537 = vor.u32 4788187, %v2536
    %v2538 = vand.u32 2147483647, %v2537
    %v2540 = vcvt.s32.f32 %v2533
    %v2541 = vmul.f32 %v2540, %v2538
    %v2542 = vxor.u32 %v2541, 2147483648
    %v2543 = vsel %vm2460, %v2542, %v2541
    %v2544 = vsub.s32 4, %v2520
    %v2545 = vsel %vm2460, %v2544, %v2520
    %v2546 = vsel %vm2459, %v386, %v2543
    %v2547 = vsel %vm2459, 0, %v2545
    %v2548 = vcosq.f32.pop %v2546
    %v2549 = vsinq.f32.pop %v2546
    %vm2550 = vweird.f32 %v386
    %v2551 = vand.u32 %v2547, 3
    %vm2552 = vcmp.lt.s32.totalorder %v2551, 2
    %vm2553 = vcmp.eq.s32.totalorder %v2551, 0
    %v2554 = vxor.u32 %v2549, 2147483648
    %v2555 = vsel %vm2553, %v2548, %v2554
    %vm2556 = vcmp.eq.s32.totalorder %v2551, 2
    %v2557 = vxor.u32 %v2548, 2147483648
    %v2558 = vsel %vm2556, %v2557, %v2549
    %v2559 = vsel %vm2552, %v2555, %v2558
    %v2560 = vsel %vm2550, nan, %v2559
    %v2561 = vand.u32 2147483647, %v387
    %vm2562 = vcmp.le.f32.partialorder %v2561, 0.7853982
    %vm2563 = vcmp.lt.s32.totalorder %v387, 0
    %v2564 = vand.u32 %v387, 2139095040
    %v2565 = vshrl.u32 %v2564, 23
    %v2566 = vsub.s32 %v2565, 127
    %v2567 = vand.u32 2147483647, %v387
    %v2568 = vand.u32 %v2567, 8388607
    %v2569 = vor.u32 %v2568, 8388608
    %v2570 = vsub.s32 0, %v2569
    %v2571 = vadd.s32 %v2566, 1
    %vm2572 = vcmp.gt.s32.totalorder %v2571, 0
    %v2573 = vsel %vm2572, %v2571, 0
    %v2574 = vshrl.u32 %v2573, 5
    %v2575 = vand.u32 %v2573, 31
    %v2576 = vsub.s32 32, %v2575
    %v2577 = vshrl.u32 683565275, %v2576
    %v2578 = vshll.u32 683565275, %v2575
    %v2579 = vshrl.u32 2475754826, %v2576
    %v2580 = vor.u32 %v2578, %v2579
    %v2581 = vshll.u32 2475754826, %v2575
    %v2582 = vshrl.u32 2131351028, %v2576
    %v2583 = vor.u32 %v2581, %v2582
    %v2584 = vshll.u32 2131351028, %v2575
    %v2585 = vshrl.u32 2102212464, %v2576
    %v2586 = vor.u32 %v2584, %v2585
    %v2587 = vshll.u32 2102212464, %v2575
    %v2588 = vshrl.u32 920167782, %v2576
    %v2589 = vor.u32 %v2587, %v2588
    %v2590 = vshll.u32 920167782, %v2575
    %v2591 = vshrl.u32 1326507024, %v2576
    %v2592 = vor.u32 %v2590, %v2591
    %vm2593 = vcmp.lt.s32.totalorder %v2574, 1
    %vm2594 = vcmp.lt.s32.totalorder %v2574, 2
    %vm2595 = vcmp.lt.s32.totalorder %v2574, 3
    %vm2596 = vcmp.lt.s32.totalorder %v2574, 4
    %v2597 = vsel %vm2593, %v2577, %v2580
    %v2598 = vsel %vm2596, %v2586, 2102212464
    %v2599 = vsel %vm2595, %v2583, %v2598
    %v2600 = vsel %vm2594, %v2597, %v2599
    %v2601 = vsel %vm2593, %v2580, %v2583
    %v2602 = vsel %vm2596, %v2589, 920167782
    %v2603 = vsel %vm2595, %v2586, %v2602
    %v2604 = vsel %vm2594, %v2601, %v2603
    %v2605 = vsel %vm2593, %v2583, %v2586
    %v2606 = vsel %vm2596, %v2592, 1326507024
    %v2607 = vsel %vm2595, %v2589, %v2606
    %v2608 = vsel %vm2594, %v2605, %v2607
    %v2609 = vshll.u32 %v2569, 8
    %v2610 = vmul.u32.u64.compose %v2609, %v2608
    %v2611 = vextract.low.u32 %v2610
    %v2612 = vextract.high.u32 %v2610
    %v2613 = vmul.u32.u64.compose %v2609, %v2604
    %v2614 = vextract.low.u32 %v2613
    %v2615 = vextract.high.u32 %v2613
    %v2616 = vmul.u32 %v2609, %v2600
    %v2617 = vadd.s32 %v2612, %v2614
    %vm2618 = vc.u32 %v2612, %v2614
    %v2619 = vadd.s32 %v2615, 1
    %v2620 = vsel %vm2618, %v2619, %v2615
    %v2621 = vadd.s32 %v2616, %v2620
    %v2622 = vadd.s32 %v2621, 536870912
    %v2623 = vshrl.u32 %v2622, 30
    %v2624 = vshll.u32 %v2623, 30
    %v2625 = vsub.s32 %v2621, %v2624
    %vm2626 = vcmp.lt.s32.totalorder %v2625, 0
    %v2627 = vsub.s32 0, %v2625
    %v2628 = vsel %vm2626, %v2627, %v2625
    %v2629 = vclz %v2628
    %v2630 = vsub.s32 %v2629, 2
    %vm2631 = vcmp.gt.s32.totalorder 0, %v2630
    %v2632 = vsel %vm2631, 0, %v2630
    %v2633 = vsub.s32 32, %v2632
    %v2634 = vshll.u32 %v2625, %v2632
    %v2635 = vshrl.u32 %v2617, %v2633
    %v2636 = vor.u32 %v2634, %v2635
    %v2637 = vsub.s32 4294967266, %v2632
    %v2638 = vadd.s32 %v2637, 127
    %v2639 = vshll.u32 %v2638, 23
    %v2640 = vor.u32 4788187, %v2639
    %v2641 = vand.u32 2147483647, %v2640
    %v2643 = vcvt.s32.f32 %v2636
    %v2644 = vmul.f32 %v2643, %v2641
    %v2645 = vxor.u32 %v2644, 2147483648
    %v2646 = vsel %vm2563, %v2645, %v2644
    %v2647 = vsub.s32 4, %v2623
    %v2648 = vsel %vm2563, %v2647, %v2623
    %v2649 = vsel %vm2562, %v387, %v2646
    %v2650 = vsel %vm2562, 0, %v2648
    %v2651 = vcosq.f32.pop %v2649
    %v2652 = vsinq.f32.pop %v2649
    %vm2653 = vweird.f32 %v387
    %v2654 = vand.u32 %v2650, 3
    %vm2655 = vcmp.lt.s32.totalorder %v2654, 2
    %vm2656 = vcmp.eq.s32.totalorder %v2654, 0
    %v2657 = vxor.u32 %v2652, 2147483648
    %v2658 = vsel %vm2656, %v2651, %v2657
    %vm2659 = vcmp.eq.s32.totalorder %v2654, 2
    %v2660 = vxor.u32 %v2651, 2147483648
    %v2661 = vsel %vm2659, %v2660, %v2652
    %v2662 = vsel %vm2655, %v2658, %v2661
    %v2663 = vsel %vm2653, nan, %v2662
    %v2664 = vand.u32 2147483647, %v388
    %vm2665 = vcmp.le.f32.partialorder %v2664, 0.7853982
    %vm2666 = vcmp.lt.s32.totalorder %v388, 0
    %v2667 = vand.u32 %v388, 2139095040
    %v2668 = vshrl.u32 %v2667, 23
    %v2669 = vsub.s32 %v2668, 127
    %v2670 = vand.u32 2147483647, %v388
    %v2671 = vand.u32 %v2670, 8388607
    %v2672 = vor.u32 %v2671, 8388608
    %v2673 = vsub.s32 0, %v2672
    %v2674 = vadd.s32 %v2669, 1
    %vm2675 = vcmp.gt.s32.totalorder %v2674, 0
    %v2676 = vsel %vm2675, %v2674, 0
    %v2677 = vshrl.u32 %v2676, 5
    %v2678 = vand.u32 %v2676, 31
    %v2679 = vsub.s32 32, %v2678
    %v2680 = vshrl.u32 683565275, %v2679
    %v2681 = vshll.u32 683565275, %v2678
    %v2682 = vshrl.u32 2475754826, %v2679
    %v2683 = vor.u32 %v2681, %v2682
    %v2684 = vshll.u32 2475754826, %v2678
    %v2685 = vshrl.u32 2131351028, %v2679
    %v2686 = vor.u32 %v2684, %v2685
    %v2687 = vshll.u32 2131351028, %v2678
    %v2688 = vshrl.u32 2102212464, %v2679
    %v2689 = vor.u32 %v2687, %v2688
    %v2690 = vshll.u32 2102212464, %v2678
    %v2691 = vshrl.u32 920167782, %v2679
    %v2692 = vor.u32 %v2690, %v2691
    %v2693 = vshll.u32 920167782, %v2678
    %v2694 = vshrl.u32 1326507024, %v2679
    %v2695 = vor.u32 %v2693, %v2694
    %vm2696 = vcmp.lt.s32.totalorder %v2677, 1
    %vm2697 = vcmp.lt.s32.totalorder %v2677, 2
    %vm2698 = vcmp.lt.s32.totalorder %v2677, 3
    %vm2699 = vcmp.lt.s32.totalorder %v2677, 4
    %v2700 = vsel %vm2696, %v2680, %v2683
    %v2701 = vsel %vm2699, %v2689, 2102212464
    %v2702 = vsel %vm2698, %v2686, %v2701
    %v2703 = vsel %vm2697, %v2700, %v2702
    %v2704 = vsel %vm2696, %v2683, %v2686
    %v2705 = vsel %vm2699, %v2692, 920167782
    %v2706 = vsel %vm2698, %v2689, %v2705
    %v2707 = vsel %vm2697, %v2704, %v2706
    %v2708 = vsel %vm2696, %v2686, %v2689
    %v2709 = vsel %vm2699, %v2695, 1326507024
    %v2710 = vsel %vm2698, %v2692, %v2709
    %v2711 = vsel %vm2697, %v2708, %v2710
    %v2712 = vshll.u32 %v2672, 8
    %v2713 = vmul.u32.u64.compose %v2712, %v2711
    %v2714 = vextract.low.u32 %v2713
    %v2715 = vextract.high.u32 %v2713
    %v2716 = vmul.u32.u64.compose %v2712, %v2707
    %v2717 = vextract.low.u32 %v2716
    %v2718 = vextract.high.u32 %v2716
    %v2719 = vmul.u32 %v2712, %v2703
    %v2720 = vadd.s32 %v2715, %v2717
    %vm2721 = vc.u32 %v2715, %v2717
    %v2722 = vadd.s32 %v2718, 1
    %v2723 = vsel %vm2721, %v2722, %v2718
    %v2724 = vadd.s32 %v2719, %v2723
    %v2725 = vadd.s32 %v2724, 536870912
    %v2726 = vshrl.u32 %v2725, 30
    %v2727 = vshll.u32 %v2726, 30
    %v2728 = vsub.s32 %v2724, %v2727
    %vm2729 = vcmp.lt.s32.totalorder %v2728, 0
    %v2730 = vsub.s32 0, %v2728
    %v2731 = vsel %vm2729, %v2730, %v2728
    %v2732 = vclz %v2731
    %v2733 = vsub.s32 %v2732, 2
    %vm2734 = vcmp.gt.s32.totalorder 0, %v2733
    %v2735 = vsel %vm2734, 0, %v2733
    %v2736 = vsub.s32 32, %v2735
    %v2737 = vshll.u32 %v2728, %v2735
    %v2738 = vshrl.u32 %v2720, %v2736
    %v2739 = vor.u32 %v2737, %v2738
    %v2740 = vsub.s32 4294967266, %v2735
    %v2741 = vadd.s32 %v2740, 127
    %v2742 = vshll.u32 %v2741, 23
    %v2743 = vor.u32 4788187, %v2742
    %v2744 = vand.u32 2147483647, %v2743
    %v2746 = vcvt.s32.f32 %v2739
    %v2747 = vmul.f32 %v2746, %v2744
    %v2748 = vxor.u32 %v2747, 2147483648
    %v2749 = vsel %vm2666, %v2748, %v2747
    %v2750 = vsub.s32 4, %v2726
    %v2751 = vsel %vm2666, %v2750, %v2726
    %v2752 = vsel %vm2665, %v388, %v2749
    %v2753 = vsel %vm2665, 0, %v2751
    %v2754 = vcosq.f32.pop %v2752
    %v2755 = vsinq.f32.pop %v2752
    %vm2756 = vweird.f32 %v388
    %v2757 = vand.u32 %v2753, 3
    %vm2758 = vcmp.lt.s32.totalorder %v2757, 2
    %vm2759 = vcmp.eq.s32.totalorder %v2757, 0
    %v2760 = vxor.u32 %v2755, 2147483648
    %v2761 = vsel %vm2759, %v2754, %v2760
    %vm2762 = vcmp.eq.s32.totalorder %v2757, 2
    %v2763 = vxor.u32 %v2754, 2147483648
    %v2764 = vsel %vm2762, %v2763, %v2755
    %v2765 = vsel %vm2758, %v2761, %v2764
    %v2766 = vsel %vm2756, nan, %v2765
    %v2767 = vand.u32 2147483647, %v389
    %vm2768 = vcmp.le.f32.partialorder %v2767, 0.7853982
    %vm2769 = vcmp.lt.s32.totalorder %v389, 0
    %v2770 = vand.u32 %v389, 2139095040
    %v2771 = vshrl.u32 %v2770, 23
    %v2772 = vsub.s32 %v2771, 127
    %v2773 = vand.u32 2147483647, %v389
    %v2774 = vand.u32 %v2773, 8388607
    %v2775 = vor.u32 %v2774, 8388608
    %v2776 = vsub.s32 0, %v2775
    %v2777 = vadd.s32 %v2772, 1
    %vm2778 = vcmp.gt.s32.totalorder %v2777, 0
    %v2779 = vsel %vm2778, %v2777, 0
    %v2780 = vshrl.u32 %v2779, 5
    %v2781 = vand.u32 %v2779, 31
    %v2782 = vsub.s32 32, %v2781
    %v2783 = vshrl.u32 683565275, %v2782
    %v2784 = vshll.u32 683565275, %v2781
    %v2785 = vshrl.u32 2475754826, %v2782
    %v2786 = vor.u32 %v2784, %v2785
    %v2787 = vshll.u32 2475754826, %v2781
    %v2788 = vshrl.u32 2131351028, %v2782
    %v2789 = vor.u32 %v2787, %v2788
    %v2790 = vshll.u32 2131351028, %v2781
    %v2791 = vshrl.u32 2102212464, %v2782
    %v2792 = vor.u32 %v2790, %v2791
    %v2793 = vshll.u32 2102212464, %v2781
    %v2794 = vshrl.u32 920167782, %v2782
    %v2795 = vor.u32 %v2793, %v2794
    %v2796 = vshll.u32 920167782, %v2781
    %v2797 = vshrl.u32 1326507024, %v2782
    %v2798 = vor.u32 %v2796, %v2797
    %vm2799 = vcmp.lt.s32.totalorder %v2780, 1
    %vm2800 = vcmp.lt.s32.totalorder %v2780, 2
    %vm2801 = vcmp.lt.s32.totalorder %v2780, 3
    %vm2802 = vcmp.lt.s32.totalorder %v2780, 4
    %v2803 = vsel %vm2799, %v2783, %v2786
    %v2804 = vsel %vm2802, %v2792, 2102212464
    %v2805 = vsel %vm2801, %v2789, %v2804
    %v2806 = vsel %vm2800, %v2803, %v2805
    %v2807 = vsel %vm2799, %v2786, %v2789
    %v2808 = vsel %vm2802, %v2795, 920167782
    %v2809 = vsel %vm2801, %v2792, %v2808
    %v2810 = vsel %vm2800, %v2807, %v2809
    %v2811 = vsel %vm2799, %v2789, %v2792
    %v2812 = vsel %vm2802, %v2798, 1326507024
    %v2813 = vsel %vm2801, %v2795, %v2812
    %v2814 = vsel %vm2800, %v2811, %v2813
    %v2815 = vshll.u32 %v2775, 8
    %v2816 = vmul.u32.u64.compose %v2815, %v2814
    %v2817 = vextract.low.u32 %v2816
    %v2818 = vextract.high.u32 %v2816
    %v2819 = vmul.u32.u64.compose %v2815, %v2810
    %v2820 = vextract.low.u32 %v2819
    %v2821 = vextract.high.u32 %v2819
    %v2822 = vmul.u32 %v2815, %v2806
    %v2823 = vadd.s32 %v2818, %v2820
    %vm2824 = vc.u32 %v2818, %v2820
    %v2825 = vadd.s32 %v2821, 1
    %v2826 = vsel %vm2824, %v2825, %v2821
    %v2827 = vadd.s32 %v2822, %v2826
    %v2828 = vadd.s32 %v2827, 536870912
    %v2829 = vshrl.u32 %v2828, 30
    %v2830 = vshll.u32 %v2829, 30
    %v2831 = vsub.s32 %v2827, %v2830
    %vm2832 = vcmp.lt.s32.totalorder %v2831, 0
    %v2833 = vsub.s32 0, %v2831
    %v2834 = vsel %vm2832, %v2833, %v2831
    %v2835 = vclz %v2834
    %v2836 = vsub.s32 %v2835, 2
    %vm2837 = vcmp.gt.s32.totalorder 0, %v2836
    %v2838 = vsel %vm2837, 0, %v2836
    %v2839 = vsub.s32 32, %v2838
    %v2840 = vshll.u32 %v2831, %v2838
    %v2841 = vshrl.u32 %v2823, %v2839
    %v2842 = vor.u32 %v2840, %v2841
    %v2843 = vsub.s32 4294967266, %v2838
    %v2844 = vadd.s32 %v2843, 127
    %v2845 = vshll.u32 %v2844, 23
    %v2846 = vor.u32 4788187, %v2845
    %v2847 = vand.u32 2147483647, %v2846
    %v2849 = vcvt.s32.f32 %v2842
    %v2850 = vmul.f32 %v2849, %v2847
    %v2851 = vxor.u32 %v2850, 2147483648
    %v2852 = vsel %vm2769, %v2851, %v2850
    %v2853 = vsub.s32 4, %v2829
    %v2854 = vsel %vm2769, %v2853, %v2829
    %v2855 = vsel %vm2768, %v389, %v2852
    %v2856 = vsel %vm2768, 0, %v2854
    %v2857 = vcosq.f32.pop %v2855
    %v2858 = vsinq.f32.pop %v2855
    %vm2859 = vweird.f32 %v389
    %v2860 = vand.u32 %v2856, 3
    %vm2861 = vcmp.lt.s32.totalorder %v2860, 2
    %vm2862 = vcmp.eq.s32.totalorder %v2860, 0
    %v2863 = vxor.u32 %v2858, 2147483648
    %v2864 = vsel %vm2862, %v2857, %v2863
    %vm2865 = vcmp.eq.s32.totalorder %v2860, 2
    %v2866 = vxor.u32 %v2857, 2147483648
    %v2867 = vsel %vm2865, %v2866, %v2858
    %v2868 = vsel %vm2861, %v2864, %v2867
    %v2869 = vsel %vm2859, nan, %v2868
    %v2870 = vand.u32 2147483647, %v390
    %vm2871 = vcmp.le.f32.partialorder %v2870, 0.7853982
    %vm2872 = vcmp.lt.s32.totalorder %v390, 0
    %v2873 = vand.u32 %v390, 2139095040
    %v2874 = vshrl.u32 %v2873, 23
    %v2875 = vsub.s32 %v2874, 127
    %v2876 = vand.u32 2147483647, %v390
    %v2877 = vand.u32 %v2876, 8388607
    %v2878 = vor.u32 %v2877, 8388608
    %v2879 = vsub.s32 0, %v2878
    %v2880 = vadd.s32 %v2875, 1
    %vm2881 = vcmp.gt.s32.totalorder %v2880, 0
    %v2882 = vsel %vm2881, %v2880, 0
    %v2883 = vshrl.u32 %v2882, 5
    %v2884 = vand.u32 %v2882, 31
    %v2885 = vsub.s32 32, %v2884
    %v2886 = vshrl.u32 683565275, %v2885
    %v2887 = vshll.u32 683565275, %v2884
    %v2888 = vshrl.u32 2475754826, %v2885
    %v2889 = vor.u32 %v2887, %v2888
    %v2890 = vshll.u32 2475754826, %v2884
    %v2891 = vshrl.u32 2131351028, %v2885
    %v2892 = vor.u32 %v2890, %v2891
    %v2893 = vshll.u32 2131351028, %v2884
    %v2894 = vshrl.u32 2102212464, %v2885
    %v2895 = vor.u32 %v2893, %v2894
    %v2896 = vshll.u32 2102212464, %v2884
    %v2897 = vshrl.u32 920167782, %v2885
    %v2898 = vor.u32 %v2896, %v2897
    %v2899 = vshll.u32 920167782, %v2884
    %v2900 = vshrl.u32 1326507024, %v2885
    %v2901 = vor.u32 %v2899, %v2900
    %vm2902 = vcmp.lt.s32.totalorder %v2883, 1
    %vm2903 = vcmp.lt.s32.totalorder %v2883, 2
    %vm2904 = vcmp.lt.s32.totalorder %v2883, 3
    %vm2905 = vcmp.lt.s32.totalorder %v2883, 4
    %v2906 = vsel %vm2902, %v2886, %v2889
    %v2907 = vsel %vm2905, %v2895, 2102212464
    %v2908 = vsel %vm2904, %v2892, %v2907
    %v2909 = vsel %vm2903, %v2906, %v2908
    %v2910 = vsel %vm2902, %v2889, %v2892
    %v2911 = vsel %vm2905, %v2898, 920167782
    %v2912 = vsel %vm2904, %v2895, %v2911
    %v2913 = vsel %vm2903, %v2910, %v2912
    %v2914 = vsel %vm2902, %v2892, %v2895
    %v2915 = vsel %vm2905, %v2901, 1326507024
    %v2916 = vsel %vm2904, %v2898, %v2915
    %v2917 = vsel %vm2903, %v2914, %v2916
    %v2918 = vshll.u32 %v2878, 8
    %v2919 = vmul.u32.u64.compose %v2918, %v2917
    %v2920 = vextract.low.u32 %v2919
    %v2921 = vextract.high.u32 %v2919
    %v2922 = vmul.u32.u64.compose %v2918, %v2913
    %v2923 = vextract.low.u32 %v2922
    %v2924 = vextract.high.u32 %v2922
    %v2925 = vmul.u32 %v2918, %v2909
    %v2926 = vadd.s32 %v2921, %v2923
    %vm2927 = vc.u32 %v2921, %v2923
    %v2928 = vadd.s32 %v2924, 1
    %v2929 = vsel %vm2927, %v2928, %v2924
    %v2930 = vadd.s32 %v2925, %v2929
    %v2931 = vadd.s32 %v2930, 536870912
    %v2932 = vshrl.u32 %v2931, 30
    %v2933 = vshll.u32 %v2932, 30
    %v2934 = vsub.s32 %v2930, %v2933
    %vm2935 = vcmp.lt.s32.totalorder %v2934, 0
    %v2936 = vsub.s32 0, %v2934
    %v2937 = vsel %vm2935, %v2936, %v2934
    %v2938 = vclz %v2937
    %v2939 = vsub.s32 %v2938, 2
    %vm2940 = vcmp.gt.s32.totalorder 0, %v2939
    %v2941 = vsel %vm2940, 0, %v2939
    %v2942 = vsub.s32 32, %v2941
    %v2943 = vshll.u32 %v2934, %v2941
    %v2944 = vshrl.u32 %v2926, %v2942
    %v2945 = vor.u32 %v2943, %v2944
    %v2946 = vsub.s32 4294967266, %v2941
    %v2947 = vadd.s32 %v2946, 127
    %v2948 = vshll.u32 %v2947, 23
    %v2949 = vor.u32 4788187, %v2948
    %v2950 = vand.u32 2147483647, %v2949
    %v2952 = vcvt.s32.f32 %v2945
    %v2953 = vmul.f32 %v2952, %v2950
    %v2954 = vxor.u32 %v2953, 2147483648
    %v2955 = vsel %vm2872, %v2954, %v2953
    %v2956 = vsub.s32 4, %v2932
    %v2957 = vsel %vm2872, %v2956, %v2932
    %v2958 = vsel %vm2871, %v390, %v2955
    %v2959 = vsel %vm2871, 0, %v2957
    %v2960 = vcosq.f32.pop %v2958
    %v2961 = vsinq.f32.pop %v2958
    %vm2962 = vweird.f32 %v390
    %v2963 = vand.u32 %v2959, 3
    %vm2964 = vcmp.lt.s32.totalorder %v2963, 2
    %vm2965 = vcmp.eq.s32.totalorder %v2963, 0
    %v2966 = vxor.u32 %v2961, 2147483648
    %v2967 = vsel %vm2965, %v2960, %v2966
    %vm2968 = vcmp.eq.s32.totalorder %v2963, 2
    %v2969 = vxor.u32 %v2960, 2147483648
    %v2970 = vsel %vm2968, %v2969, %v2961
    %v2971 = vsel %vm2964, %v2967, %v2970
    %v2972 = vsel %vm2962, nan, %v2971
    %v2973 = vand.u32 2147483647, %v391
    %vm2974 = vcmp.le.f32.partialorder %v2973, 0.7853982
    %vm2975 = vcmp.lt.s32.totalorder %v391, 0
    %v2976 = vand.u32 %v391, 2139095040
    %v2977 = vshrl.u32 %v2976, 23
    %v2978 = vsub.s32 %v2977, 127
    %v2979 = vand.u32 2147483647, %v391
    %v2980 = vand.u32 %v2979, 8388607
    %v2981 = vor.u32 %v2980, 8388608
    %v2982 = vsub.s32 0, %v2981
    %v2983 = vadd.s32 %v2978, 1
    %vm2984 = vcmp.gt.s32.totalorder %v2983, 0
    %v2985 = vsel %vm2984, %v2983, 0
    %v2986 = vshrl.u32 %v2985, 5
    %v2987 = vand.u32 %v2985, 31
    %v2988 = vsub.s32 32, %v2987
    %v2989 = vshrl.u32 683565275, %v2988
    %v2990 = vshll.u32 683565275, %v2987
    %v2991 = vshrl.u32 2475754826, %v2988
    %v2992 = vor.u32 %v2990, %v2991
    %v2993 = vshll.u32 2475754826, %v2987
    %v2994 = vshrl.u32 2131351028, %v2988
    %v2995 = vor.u32 %v2993, %v2994
    %v2996 = vshll.u32 2131351028, %v2987
    %v2997 = vshrl.u32 2102212464, %v2988
    %v2998 = vor.u32 %v2996, %v2997
    %v2999 = vshll.u32 2102212464, %v2987
    %v3000 = vshrl.u32 920167782, %v2988
    %v3001 = vor.u32 %v2999, %v3000
    %v3002 = vshll.u32 920167782, %v2987
    %v3003 = vshrl.u32 1326507024, %v2988
    %v3004 = vor.u32 %v3002, %v3003
    %vm3005 = vcmp.lt.s32.totalorder %v2986, 1
    %vm3006 = vcmp.lt.s32.totalorder %v2986, 2
    %vm3007 = vcmp.lt.s32.totalorder %v2986, 3
    %vm3008 = vcmp.lt.s32.totalorder %v2986, 4
    %v3009 = vsel %vm3005, %v2989, %v2992
    %v3010 = vsel %vm3008, %v2998, 2102212464
    %v3011 = vsel %vm3007, %v2995, %v3010
    %v3012 = vsel %vm3006, %v3009, %v3011
    %v3013 = vsel %vm3005, %v2992, %v2995
    %v3014 = vsel %vm3008, %v3001, 920167782
    %v3015 = vsel %vm3007, %v2998, %v3014
    %v3016 = vsel %vm3006, %v3013, %v3015
    %v3017 = vsel %vm3005, %v2995, %v2998
    %v3018 = vsel %vm3008, %v3004, 1326507024
    %v3019 = vsel %vm3007, %v3001, %v3018
    %v3020 = vsel %vm3006, %v3017, %v3019
    %v3021 = vshll.u32 %v2981, 8
    %v3022 = vmul.u32.u64.compose %v3021, %v3020
    %v3023 = vextract.low.u32 %v3022
    %v3024 = vextract.high.u32 %v3022
    %v3025 = vmul.u32.u64.compose %v3021, %v3016
    %v3026 = vextract.low.u32 %v3025
    %v3027 = vextract.high.u32 %v3025
    %v3028 = vmul.u32 %v3021, %v3012
    %v3029 = vadd.s32 %v3024, %v3026
    %vm3030 = vc.u32 %v3024, %v3026
    %v3031 = vadd.s32 %v3027, 1
    %v3032 = vsel %vm3030, %v3031, %v3027
    %v3033 = vadd.s32 %v3028, %v3032
    %v3034 = vadd.s32 %v3033, 536870912
    %v3035 = vshrl.u32 %v3034, 30
    %v3036 = vshll.u32 %v3035, 30
    %v3037 = vsub.s32 %v3033, %v3036
    %vm3038 = vcmp.lt.s32.totalorder %v3037, 0
    %v3039 = vsub.s32 0, %v3037
    %v3040 = vsel %vm3038, %v3039, %v3037
    %v3041 = vclz %v3040
    %v3042 = vsub.s32 %v3041, 2
    %vm3043 = vcmp.gt.s32.totalorder 0, %v3042
    %v3044 = vsel %vm3043, 0, %v3042
    %v3045 = vsub.s32 32, %v3044
    %v3046 = vshll.u32 %v3037, %v3044
    %v3047 = vshrl.u32 %v3029, %v3045
    %v3048 = vor.u32 %v3046, %v3047
    %v3049 = vsub.s32 4294967266, %v3044
    %v3050 = vadd.s32 %v3049, 127
    %v3051 = vshll.u32 %v3050, 23
    %v3052 = vor.u32 4788187, %v3051
    %v3053 = vand.u32 2147483647, %v3052
    %v3055 = vcvt.s32.f32 %v3048
    %v3056 = vmul.f32 %v3055, %v3053
    %v3057 = vxor.u32 %v3056, 2147483648
    %v3058 = vsel %vm2975, %v3057, %v3056
    %v3059 = vsub.s32 4, %v3035
    %v3060 = vsel %vm2975, %v3059, %v3035
    %v3061 = vsel %vm2974, %v391, %v3058
    %v3062 = vsel %vm2974, 0, %v3060
    %v3063 = vcosq.f32.pop %v3061
    %v3064 = vsinq.f32.pop %v3061
    %vm3065 = vweird.f32 %v391
    %v3066 = vand.u32 %v3062, 3
    %vm3067 = vcmp.lt.s32.totalorder %v3066, 2
    %vm3068 = vcmp.eq.s32.totalorder %v3066, 0
    %v3069 = vxor.u32 %v3064, 2147483648
    %v3070 = vsel %vm3068, %v3063, %v3069
    %vm3071 = vcmp.eq.s32.totalorder %v3066, 2
    %v3072 = vxor.u32 %v3063, 2147483648
    %v3073 = vsel %vm3071, %v3072, %v3064
    %v3074 = vsel %vm3067, %v3070, %v3073
    %v3075 = vsel %vm3065, nan, %v3074
    %v3076 = vand.u32 2147483647, %v392
    %vm3077 = vcmp.le.f32.partialorder %v3076, 0.7853982
    %vm3078 = vcmp.lt.s32.totalorder %v392, 0
    %v3079 = vand.u32 %v392, 2139095040
    %v3080 = vshrl.u32 %v3079, 23
    %v3081 = vsub.s32 %v3080, 127
    %v3082 = vand.u32 2147483647, %v392
    %v3083 = vand.u32 %v3082, 8388607
    %v3084 = vor.u32 %v3083, 8388608
    %v3085 = vsub.s32 0, %v3084
    %v3086 = vadd.s32 %v3081, 1
    %vm3087 = vcmp.gt.s32.totalorder %v3086, 0
    %v3088 = vsel %vm3087, %v3086, 0
    %v3089 = vshrl.u32 %v3088, 5
    %v3090 = vand.u32 %v3088, 31
    %v3091 = vsub.s32 32, %v3090
    %v3092 = vshrl.u32 683565275, %v3091
    %v3093 = vshll.u32 683565275, %v3090
    %v3094 = vshrl.u32 2475754826, %v3091
    %v3095 = vor.u32 %v3093, %v3094
    %v3096 = vshll.u32 2475754826, %v3090
    %v3097 = vshrl.u32 2131351028, %v3091
    %v3098 = vor.u32 %v3096, %v3097
    %v3099 = vshll.u32 2131351028, %v3090
    %v3100 = vshrl.u32 2102212464, %v3091
    %v3101 = vor.u32 %v3099, %v3100
    %v3102 = vshll.u32 2102212464, %v3090
    %v3103 = vshrl.u32 920167782, %v3091
    %v3104 = vor.u32 %v3102, %v3103
    %v3105 = vshll.u32 920167782, %v3090
    %v3106 = vshrl.u32 1326507024, %v3091
    %v3107 = vor.u32 %v3105, %v3106
    %vm3108 = vcmp.lt.s32.totalorder %v3089, 1
    %vm3109 = vcmp.lt.s32.totalorder %v3089, 2
    %vm3110 = vcmp.lt.s32.totalorder %v3089, 3
    %vm3111 = vcmp.lt.s32.totalorder %v3089, 4
    %v3112 = vsel %vm3108, %v3092, %v3095
    %v3113 = vsel %vm3111, %v3101, 2102212464
    %v3114 = vsel %vm3110, %v3098, %v3113
    %v3115 = vsel %vm3109, %v3112, %v3114
    %v3116 = vsel %vm3108, %v3095, %v3098
    %v3117 = vsel %vm3111, %v3104, 920167782
    %v3118 = vsel %vm3110, %v3101, %v3117
    %v3119 = vsel %vm3109, %v3116, %v3118
    %v3120 = vsel %vm3108, %v3098, %v3101
    %v3121 = vsel %vm3111, %v3107, 1326507024
    %v3122 = vsel %vm3110, %v3104, %v3121
    %v3123 = vsel %vm3109, %v3120, %v3122
    %v3124 = vshll.u32 %v3084, 8
    %v3125 = vmul.u32.u64.compose %v3124, %v3123
    %v3126 = vextract.low.u32 %v3125
    %v3127 = vextract.high.u32 %v3125
    %v3128 = vmul.u32.u64.compose %v3124, %v3119
    %v3129 = vextract.low.u32 %v3128
    %v3130 = vextract.high.u32 %v3128
    %v3131 = vmul.u32 %v3124, %v3115
    %v3132 = vadd.s32 %v3127, %v3129
    %vm3133 = vc.u32 %v3127, %v3129
    %v3134 = vadd.s32 %v3130, 1
    %v3135 = vsel %vm3133, %v3134, %v3130
    %v3136 = vadd.s32 %v3131, %v3135
    %v3137 = vadd.s32 %v3136, 536870912
    %v3138 = vshrl.u32 %v3137, 30
    %v3139 = vshll.u32 %v3138, 30
    %v3140 = vsub.s32 %v3136, %v3139
    %vm3141 = vcmp.lt.s32.totalorder %v3140, 0
    %v3142 = vsub.s32 0, %v3140
    %v3143 = vsel %vm3141, %v3142, %v3140
    %v3144 = vclz %v3143
    %v3145 = vsub.s32 %v3144, 2
    %vm3146 = vcmp.gt.s32.totalorder 0, %v3145
    %v3147 = vsel %vm3146, 0, %v3145
    %v3148 = vsub.s32 32, %v3147
    %v3149 = vshll.u32 %v3140, %v3147
    %v3150 = vshrl.u32 %v3132, %v3148
    %v3151 = vor.u32 %v3149, %v3150
    %v3152 = vsub.s32 4294967266, %v3147
    %v3153 = vadd.s32 %v3152, 127
    %v3154 = vshll.u32 %v3153, 23
    %v3155 = vor.u32 4788187, %v3154
    %v3156 = vand.u32 2147483647, %v3155
    %v3158 = vcvt.s32.f32 %v3151
    %v3159 = vmul.f32 %v3158, %v3156
    %v3160 = vxor.u32 %v3159, 2147483648
    %v3161 = vsel %vm3078, %v3160, %v3159
    %v3162 = vsub.s32 4, %v3138
    %v3163 = vsel %vm3078, %v3162, %v3138
    %v3164 = vsel %vm3077, %v392, %v3161
    %v3165 = vsel %vm3077, 0, %v3163
    %v3166 = vcosq.f32.pop %v3164
    %v3167 = vsinq.f32.pop %v3164
    %vm3168 = vweird.f32 %v392
    %v3169 = vand.u32 %v3165, 3
    %vm3170 = vcmp.lt.s32.totalorder %v3169, 2
    %vm3171 = vcmp.eq.s32.totalorder %v3169, 0
    %v3172 = vxor.u32 %v3167, 2147483648
    %v3173 = vsel %vm3171, %v3166, %v3172
    %vm3174 = vcmp.eq.s32.totalorder %v3169, 2
    %v3175 = vxor.u32 %v3166, 2147483648
    %v3176 = vsel %vm3174, %v3175, %v3167
    %v3177 = vsel %vm3170, %v3173, %v3176
    %v3178 = vsel %vm3168, nan, %v3177
    %v3179 = vand.u32 2147483647, %v393
    %vm3180 = vcmp.le.f32.partialorder %v3179, 0.7853982
    %vm3181 = vcmp.lt.s32.totalorder %v393, 0
    %v3182 = vand.u32 %v393, 2139095040
    %v3183 = vshrl.u32 %v3182, 23
    %v3184 = vsub.s32 %v3183, 127
    %v3185 = vand.u32 2147483647, %v393
    %v3186 = vand.u32 %v3185, 8388607
    %v3187 = vor.u32 %v3186, 8388608
    %v3188 = vsub.s32 0, %v3187
    %v3189 = vadd.s32 %v3184, 1
    %vm3190 = vcmp.gt.s32.totalorder %v3189, 0
    %v3191 = vsel %vm3190, %v3189, 0
    %v3192 = vshrl.u32 %v3191, 5
    %v3193 = vand.u32 %v3191, 31
    %v3194 = vsub.s32 32, %v3193
    %v3195 = vshrl.u32 683565275, %v3194
    %v3196 = vshll.u32 683565275, %v3193
    %v3197 = vshrl.u32 2475754826, %v3194
    %v3198 = vor.u32 %v3196, %v3197
    %v3199 = vshll.u32 2475754826, %v3193
    %v3200 = vshrl.u32 2131351028, %v3194
    %v3201 = vor.u32 %v3199, %v3200
    %v3202 = vshll.u32 2131351028, %v3193
    %v3203 = vshrl.u32 2102212464, %v3194
    %v3204 = vor.u32 %v3202, %v3203
    %v3205 = vshll.u32 2102212464, %v3193
    %v3206 = vshrl.u32 920167782, %v3194
    %v3207 = vor.u32 %v3205, %v3206
    %v3208 = vshll.u32 920167782, %v3193
    %v3209 = vshrl.u32 1326507024, %v3194
    %v3210 = vor.u32 %v3208, %v3209
    %vm3211 = vcmp.lt.s32.totalorder %v3192, 1
    %vm3212 = vcmp.lt.s32.totalorder %v3192, 2
    %vm3213 = vcmp.lt.s32.totalorder %v3192, 3
    %vm3214 = vcmp.lt.s32.totalorder %v3192, 4
    %v3215 = vsel %vm3211, %v3195, %v3198
    %v3216 = vsel %vm3214, %v3204, 2102212464
    %v3217 = vsel %vm3213, %v3201, %v3216
    %v3218 = vsel %vm3212, %v3215, %v3217
    %v3219 = vsel %vm3211, %v3198, %v3201
    %v3220 = vsel %vm3214, %v3207, 920167782
    %v3221 = vsel %vm3213, %v3204, %v3220
    %v3222 = vsel %vm3212, %v3219, %v3221
    %v3223 = vsel %vm3211, %v3201, %v3204
    %v3224 = vsel %vm3214, %v3210, 1326507024
    %v3225 = vsel %vm3213, %v3207, %v3224
    %v3226 = vsel %vm3212, %v3223, %v3225
    %v3227 = vshll.u32 %v3187, 8
    %v3228 = vmul.u32.u64.compose %v3227, %v3226
    %v3229 = vextract.low.u32 %v3228
    %v3230 = vextract.high.u32 %v3228
    %v3231 = vmul.u32.u64.compose %v3227, %v3222
    %v3232 = vextract.low.u32 %v3231
    %v3233 = vextract.high.u32 %v3231
    %v3234 = vmul.u32 %v3227, %v3218
    %v3235 = vadd.s32 %v3230, %v3232
    %vm3236 = vc.u32 %v3230, %v3232
    %v3237 = vadd.s32 %v3233, 1
    %v3238 = vsel %vm3236, %v3237, %v3233
    %v3239 = vadd.s32 %v3234, %v3238
    %v3240 = vadd.s32 %v3239, 536870912
    %v3241 = vshrl.u32 %v3240, 30
    %v3242 = vshll.u32 %v3241, 30
    %v3243 = vsub.s32 %v3239, %v3242
    %vm3244 = vcmp.lt.s32.totalorder %v3243, 0
    %v3245 = vsub.s32 0, %v3243
    %v3246 = vsel %vm3244, %v3245, %v3243
    %v3247 = vclz %v3246
    %v3248 = vsub.s32 %v3247, 2
    %vm3249 = vcmp.gt.s32.totalorder 0, %v3248
    %v3250 = vsel %vm3249, 0, %v3248
    %v3251 = vsub.s32 32, %v3250
    %v3252 = vshll.u32 %v3243, %v3250
    %v3253 = vshrl.u32 %v3235, %v3251
    %v3254 = vor.u32 %v3252, %v3253
    %v3255 = vsub.s32 4294967266, %v3250
    %v3256 = vadd.s32 %v3255, 127
    %v3257 = vshll.u32 %v3256, 23
    %v3258 = vor.u32 4788187, %v3257
    %v3259 = vand.u32 2147483647, %v3258
    %v3261 = vcvt.s32.f32 %v3254
    %v3262 = vmul.f32 %v3261, %v3259
    %v3263 = vxor.u32 %v3262, 2147483648
    %v3264 = vsel %vm3181, %v3263, %v3262
    %v3265 = vsub.s32 4, %v3241
    %v3266 = vsel %vm3181, %v3265, %v3241
    %v3267 = vsel %vm3180, %v393, %v3264
    %v3268 = vsel %vm3180, 0, %v3266
    %v3269 = vcosq.f32.pop %v3267
    %v3270 = vsinq.f32.pop %v3267
    %vm3271 = vweird.f32 %v393
    %v3272 = vand.u32 %v3268, 3
    %vm3273 = vcmp.lt.s32.totalorder %v3272, 2
    %vm3274 = vcmp.eq.s32.totalorder %v3272, 0
    %v3275 = vxor.u32 %v3270, 2147483648
    %v3276 = vsel %vm3274, %v3269, %v3275
    %vm3277 = vcmp.eq.s32.totalorder %v3272, 2
    %v3278 = vxor.u32 %v3269, 2147483648
    %v3279 = vsel %vm3277, %v3278, %v3270
    %v3280 = vsel %vm3273, %v3276, %v3279
    %v3281 = vsel %vm3271, nan, %v3280
    %v3282 = vand.u32 2147483647, %v394
    %vm3283 = vcmp.le.f32.partialorder %v3282, 0.7853982
    %vm3284 = vcmp.lt.s32.totalorder %v394, 0
    %v3285 = vand.u32 %v394, 2139095040
    %v3286 = vshrl.u32 %v3285, 23
    %v3287 = vsub.s32 %v3286, 127
    %v3288 = vand.u32 2147483647, %v394
    %v3289 = vand.u32 %v3288, 8388607
    %v3290 = vor.u32 %v3289, 8388608
    %v3291 = vsub.s32 0, %v3290
    %v3292 = vadd.s32 %v3287, 1
    %vm3293 = vcmp.gt.s32.totalorder %v3292, 0
    %v3294 = vsel %vm3293, %v3292, 0
    %v3295 = vshrl.u32 %v3294, 5
    %v3296 = vand.u32 %v3294, 31
    %v3297 = vsub.s32 32, %v3296
    %v3298 = vshrl.u32 683565275, %v3297
    %v3299 = vshll.u32 683565275, %v3296
    %v3300 = vshrl.u32 2475754826, %v3297
    %v3301 = vor.u32 %v3299, %v3300
    %v3302 = vshll.u32 2475754826, %v3296
    %v3303 = vshrl.u32 2131351028, %v3297
    %v3304 = vor.u32 %v3302, %v3303
    %v3305 = vshll.u32 2131351028, %v3296
    %v3306 = vshrl.u32 2102212464, %v3297
    %v3307 = vor.u32 %v3305, %v3306
    %v3308 = vshll.u32 2102212464, %v3296
    %v3309 = vshrl.u32 920167782, %v3297
    %v3310 = vor.u32 %v3308, %v3309
    %v3311 = vshll.u32 920167782, %v3296
    %v3312 = vshrl.u32 1326507024, %v3297
    %v3313 = vor.u32 %v3311, %v3312
    %vm3314 = vcmp.lt.s32.totalorder %v3295, 1
    %vm3315 = vcmp.lt.s32.totalorder %v3295, 2
    %vm3316 = vcmp.lt.s32.totalorder %v3295, 3
    %vm3317 = vcmp.lt.s32.totalorder %v3295, 4
    %v3318 = vsel %vm3314, %v3298, %v3301
    %v3319 = vsel %vm3317, %v3307, 2102212464
    %v3320 = vsel %vm3316, %v3304, %v3319
    %v3321 = vsel %vm3315, %v3318, %v3320
    %v3322 = vsel %vm3314, %v3301, %v3304
    %v3323 = vsel %vm3317, %v3310, 920167782
    %v3324 = vsel %vm3316, %v3307, %v3323
    %v3325 = vsel %vm3315, %v3322, %v3324
    %v3326 = vsel %vm3314, %v3304, %v3307
    %v3327 = vsel %vm3317, %v3313, 1326507024
    %v3328 = vsel %vm3316, %v3310, %v3327
    %v3329 = vsel %vm3315, %v3326, %v3328
    %v3330 = vshll.u32 %v3290, 8
    %v3331 = vmul.u32.u64.compose %v3330, %v3329
    %v3332 = vextract.low.u32 %v3331
    %v3333 = vextract.high.u32 %v3331
    %v3334 = vmul.u32.u64.compose %v3330, %v3325
    %v3335 = vextract.low.u32 %v3334
    %v3336 = vextract.high.u32 %v3334
    %v3337 = vmul.u32 %v3330, %v3321
    %v3338 = vadd.s32 %v3333, %v3335
    %vm3339 = vc.u32 %v3333, %v3335
    %v3340 = vadd.s32 %v3336, 1
    %v3341 = vsel %vm3339, %v3340, %v3336
    %v3342 = vadd.s32 %v3337, %v3341
    %v3343 = vadd.s32 %v3342, 536870912
    %v3344 = vshrl.u32 %v3343, 30
    %v3345 = vshll.u32 %v3344, 30
    %v3346 = vsub.s32 %v3342, %v3345
    %vm3347 = vcmp.lt.s32.totalorder %v3346, 0
    %v3348 = vsub.s32 0, %v3346
    %v3349 = vsel %vm3347, %v3348, %v3346
    %v3350 = vclz %v3349
    %v3351 = vsub.s32 %v3350, 2
    %vm3352 = vcmp.gt.s32.totalorder 0, %v3351
    %v3353 = vsel %vm3352, 0, %v3351
    %v3354 = vsub.s32 32, %v3353
    %v3355 = vshll.u32 %v3346, %v3353
    %v3356 = vshrl.u32 %v3338, %v3354
    %v3357 = vor.u32 %v3355, %v3356
    %v3358 = vsub.s32 4294967266, %v3353
    %v3359 = vadd.s32 %v3358, 127
    %v3360 = vshll.u32 %v3359, 23
    %v3361 = vor.u32 4788187, %v3360
    %v3362 = vand.u32 2147483647, %v3361
    %v3364 = vcvt.s32.f32 %v3357
    %v3365 = vmul.f32 %v3364, %v3362
    %v3366 = vxor.u32 %v3365, 2147483648
    %v3367 = vsel %vm3284, %v3366, %v3365
    %v3368 = vsub.s32 4, %v3344
    %v3369 = vsel %vm3284, %v3368, %v3344
    %v3370 = vsel %vm3283, %v394, %v3367
    %v3371 = vsel %vm3283, 0, %v3369
    %v3372 = vcosq.f32.pop %v3370
    %v3373 = vsinq.f32.pop %v3370
    %vm3374 = vweird.f32 %v394
    %v3375 = vand.u32 %v3371, 3
    %vm3376 = vcmp.lt.s32.totalorder %v3375, 2
    %vm3377 = vcmp.eq.s32.totalorder %v3375, 0
    %v3378 = vxor.u32 %v3373, 2147483648
    %v3379 = vsel %vm3377, %v3372, %v3378
    %vm3380 = vcmp.eq.s32.totalorder %v3375, 2
    %v3381 = vxor.u32 %v3372, 2147483648
    %v3382 = vsel %vm3380, %v3381, %v3373
    %v3383 = vsel %vm3376, %v3379, %v3382
    %v3384 = vsel %vm3374, nan, %v3383
    %v3385 = vand.u32 2147483647, %v395
    %vm3386 = vcmp.le.f32.partialorder %v3385, 0.7853982
    %vm3387 = vcmp.lt.s32.totalorder %v395, 0
    %v3388 = vand.u32 %v395, 2139095040
    %v3389 = vshrl.u32 %v3388, 23
    %v3390 = vsub.s32 %v3389, 127
    %v3391 = vand.u32 2147483647, %v395
    %v3392 = vand.u32 %v3391, 8388607
    %v3393 = vor.u32 %v3392, 8388608
    %v3394 = vsub.s32 0, %v3393
    %v3395 = vadd.s32 %v3390, 1
    %vm3396 = vcmp.gt.s32.totalorder %v3395, 0
    %v3397 = vsel %vm3396, %v3395, 0
    %v3398 = vshrl.u32 %v3397, 5
    %v3399 = vand.u32 %v3397, 31
    %v3400 = vsub.s32 32, %v3399
    %v3401 = vshrl.u32 683565275, %v3400
    %v3402 = vshll.u32 683565275, %v3399
    %v3403 = vshrl.u32 2475754826, %v3400
    %v3404 = vor.u32 %v3402, %v3403
    %v3405 = vshll.u32 2475754826, %v3399
    %v3406 = vshrl.u32 2131351028, %v3400
    %v3407 = vor.u32 %v3405, %v3406
    %v3408 = vshll.u32 2131351028, %v3399
    %v3409 = vshrl.u32 2102212464, %v3400
    %v3410 = vor.u32 %v3408, %v3409
    %v3411 = vshll.u32 2102212464, %v3399
    %v3412 = vshrl.u32 920167782, %v3400
    %v3413 = vor.u32 %v3411, %v3412
    %v3414 = vshll.u32 920167782, %v3399
    %v3415 = vshrl.u32 1326507024, %v3400
    %v3416 = vor.u32 %v3414, %v3415
    %vm3417 = vcmp.lt.s32.totalorder %v3398, 1
    %vm3418 = vcmp.lt.s32.totalorder %v3398, 2
    %vm3419 = vcmp.lt.s32.totalorder %v3398, 3
    %vm3420 = vcmp.lt.s32.totalorder %v3398, 4
    %v3421 = vsel %vm3417, %v3401, %v3404
    %v3422 = vsel %vm3420, %v3410, 2102212464
    %v3423 = vsel %vm3419, %v3407, %v3422
    %v3424 = vsel %vm3418, %v3421, %v3423
    %v3425 = vsel %vm3417, %v3404, %v3407
    %v3426 = vsel %vm3420, %v3413, 920167782
    %v3427 = vsel %vm3419, %v3410, %v3426
    %v3428 = vsel %vm3418, %v3425, %v3427
    %v3429 = vsel %vm3417, %v3407, %v3410
    %v3430 = vsel %vm3420, %v3416, 1326507024
    %v3431 = vsel %vm3419, %v3413, %v3430
    %v3432 = vsel %vm3418, %v3429, %v3431
    %v3433 = vshll.u32 %v3393, 8
    %v3434 = vmul.u32.u64.compose %v3433, %v3432
    %v3435 = vextract.low.u32 %v3434
    %v3436 = vextract.high.u32 %v3434
    %v3437 = vmul.u32.u64.compose %v3433, %v3428
    %v3438 = vextract.low.u32 %v3437
    %v3439 = vextract.high.u32 %v3437
    %v3440 = vmul.u32 %v3433, %v3424
    %v3441 = vadd.s32 %v3436, %v3438
    %vm3442 = vc.u32 %v3436, %v3438
    %v3443 = vadd.s32 %v3439, 1
    %v3444 = vsel %vm3442, %v3443, %v3439
    %v3445 = vadd.s32 %v3440, %v3444
    %v3446 = vadd.s32 %v3445, 536870912
    %v3447 = vshrl.u32 %v3446, 30
    %v3448 = vshll.u32 %v3447, 30
    %v3449 = vsub.s32 %v3445, %v3448
    %vm3450 = vcmp.lt.s32.totalorder %v3449, 0
    %v3451 = vsub.s32 0, %v3449
    %v3452 = vsel %vm3450, %v3451, %v3449
    %v3453 = vclz %v3452
    %v3454 = vsub.s32 %v3453, 2
    %vm3455 = vcmp.gt.s32.totalorder 0, %v3454
    %v3456 = vsel %vm3455, 0, %v3454
    %v3457 = vsub.s32 32, %v3456
    %v3458 = vshll.u32 %v3449, %v3456
    %v3459 = vshrl.u32 %v3441, %v3457
    %v3460 = vor.u32 %v3458, %v3459
    %v3461 = vsub.s32 4294967266, %v3456
    %v3462 = vadd.s32 %v3461, 127
    %v3463 = vshll.u32 %v3462, 23
    %v3464 = vor.u32 4788187, %v3463
    %v3465 = vand.u32 2147483647, %v3464
    %v3467 = vcvt.s32.f32 %v3460
    %v3468 = vmul.f32 %v3467, %v3465
    %v3469 = vxor.u32 %v3468, 2147483648
    %v3470 = vsel %vm3387, %v3469, %v3468
    %v3471 = vsub.s32 4, %v3447
    %v3472 = vsel %vm3387, %v3471, %v3447
    %v3473 = vsel %vm3386, %v395, %v3470
    %v3474 = vsel %vm3386, 0, %v3472
    %v3475 = vcosq.f32.pop %v3473
    %v3476 = vsinq.f32.pop %v3473
    %vm3477 = vweird.f32 %v395
    %v3478 = vand.u32 %v3474, 3
    %vm3479 = vcmp.lt.s32.totalorder %v3478, 2
    %vm3480 = vcmp.eq.s32.totalorder %v3478, 0
    %v3481 = vxor.u32 %v3476, 2147483648
    %v3482 = vsel %vm3480, %v3475, %v3481
    %vm3483 = vcmp.eq.s32.totalorder %v3478, 2
    %v3484 = vxor.u32 %v3475, 2147483648
    %v3485 = vsel %vm3483, %v3484, %v3476
    %v3486 = vsel %vm3479, %v3482, %v3485
    %v3487 = vsel %vm3477, nan, %v3486
    %v3488 = vand.u32 2147483647, %v396
    %vm3489 = vcmp.le.f32.partialorder %v3488, 0.7853982
    %vm3490 = vcmp.lt.s32.totalorder %v396, 0
    %v3491 = vand.u32 %v396, 2139095040
    %v3492 = vshrl.u32 %v3491, 23
    %v3493 = vsub.s32 %v3492, 127
    %v3494 = vand.u32 2147483647, %v396
    %v3495 = vand.u32 %v3494, 8388607
    %v3496 = vor.u32 %v3495, 8388608
    %v3497 = vsub.s32 0, %v3496
    %v3498 = vadd.s32 %v3493, 1
    %vm3499 = vcmp.gt.s32.totalorder %v3498, 0
    %v3500 = vsel %vm3499, %v3498, 0
    %v3501 = vshrl.u32 %v3500, 5
    %v3502 = vand.u32 %v3500, 31
    %v3503 = vsub.s32 32, %v3502
    %v3504 = vshrl.u32 683565275, %v3503
    %v3505 = vshll.u32 683565275, %v3502
    %v3506 = vshrl.u32 2475754826, %v3503
    %v3507 = vor.u32 %v3505, %v3506
    %v3508 = vshll.u32 2475754826, %v3502
    %v3509 = vshrl.u32 2131351028, %v3503
    %v3510 = vor.u32 %v3508, %v3509
    %v3511 = vshll.u32 2131351028, %v3502
    %v3512 = vshrl.u32 2102212464, %v3503
    %v3513 = vor.u32 %v3511, %v3512
    %v3514 = vshll.u32 2102212464, %v3502
    %v3515 = vshrl.u32 920167782, %v3503
    %v3516 = vor.u32 %v3514, %v3515
    %v3517 = vshll.u32 920167782, %v3502
    %v3518 = vshrl.u32 1326507024, %v3503
    %v3519 = vor.u32 %v3517, %v3518
    %vm3520 = vcmp.lt.s32.totalorder %v3501, 1
    %vm3521 = vcmp.lt.s32.totalorder %v3501, 2
    %vm3522 = vcmp.lt.s32.totalorder %v3501, 3
    %vm3523 = vcmp.lt.s32.totalorder %v3501, 4
    %v3524 = vsel %vm3520, %v3504, %v3507
    %v3525 = vsel %vm3523, %v3513, 2102212464
    %v3526 = vsel %vm3522, %v3510, %v3525
    %v3527 = vsel %vm3521, %v3524, %v3526
    %v3528 = vsel %vm3520, %v3507, %v3510
    %v3529 = vsel %vm3523, %v3516, 920167782
    %v3530 = vsel %vm3522, %v3513, %v3529
    %v3531 = vsel %vm3521, %v3528, %v3530
    %v3532 = vsel %vm3520, %v3510, %v3513
    %v3533 = vsel %vm3523, %v3519, 1326507024
    %v3534 = vsel %vm3522, %v3516, %v3533
    %v3535 = vsel %vm3521, %v3532, %v3534
    %v3536 = vshll.u32 %v3496, 8
    %v3537 = vmul.u32.u64.compose %v3536, %v3535
    %v3538 = vextract.low.u32 %v3537
    %v3539 = vextract.high.u32 %v3537
    %v3540 = vmul.u32.u64.compose %v3536, %v3531
    %v3541 = vextract.low.u32 %v3540
    %v3542 = vextract.high.u32 %v3540
    %v3543 = vmul.u32 %v3536, %v3527
    %v3544 = vadd.s32 %v3539, %v3541
    %vm3545 = vc.u32 %v3539, %v3541
    %v3546 = vadd.s32 %v3542, 1
    %v3547 = vsel %vm3545, %v3546, %v3542
    %v3548 = vadd.s32 %v3543, %v3547
    %v3549 = vadd.s32 %v3548, 536870912
    %v3550 = vshrl.u32 %v3549, 30
    %v3551 = vshll.u32 %v3550, 30
    %v3552 = vsub.s32 %v3548, %v3551
    %vm3553 = vcmp.lt.s32.totalorder %v3552, 0
    %v3554 = vsub.s32 0, %v3552
    %v3555 = vsel %vm3553, %v3554, %v3552
    %v3556 = vclz %v3555
    %v3557 = vsub.s32 %v3556, 2
    %vm3558 = vcmp.gt.s32.totalorder 0, %v3557
    %v3559 = vsel %vm3558, 0, %v3557
    %v3560 = vsub.s32 32, %v3559
    %v3561 = vshll.u32 %v3552, %v3559
    %v3562 = vshrl.u32 %v3544, %v3560
    %v3563 = vor.u32 %v3561, %v3562
    %v3564 = vsub.s32 4294967266, %v3559
    %v3565 = vadd.s32 %v3564, 127
    %v3566 = vshll.u32 %v3565, 23
    %v3567 = vor.u32 4788187, %v3566
    %v3568 = vand.u32 2147483647, %v3567
    %v3570 = vcvt.s32.f32 %v3563
    %v3571 = vmul.f32 %v3570, %v3568
    %v3572 = vxor.u32 %v3571, 2147483648
    %v3573 = vsel %vm3490, %v3572, %v3571
    %v3574 = vsub.s32 4, %v3550
    %v3575 = vsel %vm3490, %v3574, %v3550
    %v3576 = vsel %vm3489, %v396, %v3573
    %v3577 = vsel %vm3489, 0, %v3575
    %v3578 = vcosq.f32.pop %v3576
    %v3579 = vsinq.f32.pop %v3576
    %vm3580 = vweird.f32 %v396
    %v3581 = vand.u32 %v3577, 3
    %vm3582 = vcmp.lt.s32.totalorder %v3581, 2
    %vm3583 = vcmp.eq.s32.totalorder %v3581, 0
    %v3584 = vxor.u32 %v3579, 2147483648
    %v3585 = vsel %vm3583, %v3578, %v3584
    %vm3586 = vcmp.eq.s32.totalorder %v3581, 2
    %v3587 = vxor.u32 %v3578, 2147483648
    %v3588 = vsel %vm3586, %v3587, %v3579
    %v3589 = vsel %vm3582, %v3585, %v3588
    %v3590 = vsel %vm3580, nan, %v3589
    %v3591 = vand.u32 2147483647, %v397
    %vm3592 = vcmp.le.f32.partialorder %v3591, 0.7853982
    %vm3593 = vcmp.lt.s32.totalorder %v397, 0
    %v3594 = vand.u32 %v397, 2139095040
    %v3595 = vshrl.u32 %v3594, 23
    %v3596 = vsub.s32 %v3595, 127
    %v3597 = vand.u32 2147483647, %v397
    %v3598 = vand.u32 %v3597, 8388607
    %v3599 = vor.u32 %v3598, 8388608
    %v3600 = vsub.s32 0, %v3599
    %v3601 = vadd.s32 %v3596, 1
    %vm3602 = vcmp.gt.s32.totalorder %v3601, 0
    %v3603 = vsel %vm3602, %v3601, 0
    %v3604 = vshrl.u32 %v3603, 5
    %v3605 = vand.u32 %v3603, 31
    %v3606 = vsub.s32 32, %v3605
    %v3607 = vshrl.u32 683565275, %v3606
    %v3608 = vshll.u32 683565275, %v3605
    %v3609 = vshrl.u32 2475754826, %v3606
    %v3610 = vor.u32 %v3608, %v3609
    %v3611 = vshll.u32 2475754826, %v3605
    %v3612 = vshrl.u32 2131351028, %v3606
    %v3613 = vor.u32 %v3611, %v3612
    %v3614 = vshll.u32 2131351028, %v3605
    %v3615 = vshrl.u32 2102212464, %v3606
    %v3616 = vor.u32 %v3614, %v3615
    %v3617 = vshll.u32 2102212464, %v3605
    %v3618 = vshrl.u32 920167782, %v3606
    %v3619 = vor.u32 %v3617, %v3618
    %v3620 = vshll.u32 920167782, %v3605
    %v3621 = vshrl.u32 1326507024, %v3606
    %v3622 = vor.u32 %v3620, %v3621
    %vm3623 = vcmp.lt.s32.totalorder %v3604, 1
    %vm3624 = vcmp.lt.s32.totalorder %v3604, 2
    %vm3625 = vcmp.lt.s32.totalorder %v3604, 3
    %vm3626 = vcmp.lt.s32.totalorder %v3604, 4
    %v3627 = vsel %vm3623, %v3607, %v3610
    %v3628 = vsel %vm3626, %v3616, 2102212464
    %v3629 = vsel %vm3625, %v3613, %v3628
    %v3630 = vsel %vm3624, %v3627, %v3629
    %v3631 = vsel %vm3623, %v3610, %v3613
    %v3632 = vsel %vm3626, %v3619, 920167782
    %v3633 = vsel %vm3625, %v3616, %v3632
    %v3634 = vsel %vm3624, %v3631, %v3633
    %v3635 = vsel %vm3623, %v3613, %v3616
    %v3636 = vsel %vm3626, %v3622, 1326507024
    %v3637 = vsel %vm3625, %v3619, %v3636
    %v3638 = vsel %vm3624, %v3635, %v3637
    %v3639 = vshll.u32 %v3599, 8
    %v3640 = vmul.u32.u64.compose %v3639, %v3638
    %v3641 = vextract.low.u32 %v3640
    %v3642 = vextract.high.u32 %v3640
    %v3643 = vmul.u32.u64.compose %v3639, %v3634
    %v3644 = vextract.low.u32 %v3643
    %v3645 = vextract.high.u32 %v3643
    %v3646 = vmul.u32 %v3639, %v3630
    %v3647 = vadd.s32 %v3642, %v3644
    %vm3648 = vc.u32 %v3642, %v3644
    %v3649 = vadd.s32 %v3645, 1
    %v3650 = vsel %vm3648, %v3649, %v3645
    %v3651 = vadd.s32 %v3646, %v3650
    %v3652 = vadd.s32 %v3651, 536870912
    %v3653 = vshrl.u32 %v3652, 30
    %v3654 = vshll.u32 %v3653, 30
    %v3655 = vsub.s32 %v3651, %v3654
    %vm3656 = vcmp.lt.s32.totalorder %v3655, 0
    %v3657 = vsub.s32 0, %v3655
    %v3658 = vsel %vm3656, %v3657, %v3655
    %v3659 = vclz %v3658
    %v3660 = vsub.s32 %v3659, 2
    %vm3661 = vcmp.gt.s32.totalorder 0, %v3660
    %v3662 = vsel %vm3661, 0, %v3660
    %v3663 = vsub.s32 32, %v3662
    %v3664 = vshll.u32 %v3655, %v3662
    %v3665 = vshrl.u32 %v3647, %v3663
    %v3666 = vor.u32 %v3664, %v3665
    %v3667 = vsub.s32 4294967266, %v3662
    %v3668 = vadd.s32 %v3667, 127
    %v3669 = vshll.u32 %v3668, 23
    %v3670 = vor.u32 4788187, %v3669
    %v3671 = vand.u32 2147483647, %v3670
    %v3673 = vcvt.s32.f32 %v3666
    %v3674 = vmul.f32 %v3673, %v3671
    %v3675 = vxor.u32 %v3674, 2147483648
    %v3676 = vsel %vm3593, %v3675, %v3674
    %v3677 = vsub.s32 4, %v3653
    %v3678 = vsel %vm3593, %v3677, %v3653
    %v3679 = vsel %vm3592, %v397, %v3676
    %v3680 = vsel %vm3592, 0, %v3678
    %v3681 = vcosq.f32.pop %v3679
    %v3682 = vsinq.f32.pop %v3679
    %vm3683 = vweird.f32 %v397
    %v3684 = vand.u32 %v3680, 3
    %vm3685 = vcmp.lt.s32.totalorder %v3684, 2
    %vm3686 = vcmp.eq.s32.totalorder %v3684, 0
    %v3687 = vxor.u32 %v3682, 2147483648
    %v3688 = vsel %vm3686, %v3681, %v3687
    %vm3689 = vcmp.eq.s32.totalorder %v3684, 2
    %v3690 = vxor.u32 %v3681, 2147483648
    %v3691 = vsel %vm3689, %v3690, %v3682
    %v3692 = vsel %vm3685, %v3688, %v3691
    %v3693 = vsel %vm3683, nan, %v3692
    %v3694 = vand.u32 2147483647, %v366
    %vm3695 = vcmp.le.f32.partialorder %v3694, 0.7853982
    %vm3696 = vcmp.lt.s32.totalorder %v366, 0
    %v3697 = vand.u32 %v366, 2139095040
    %v3698 = vshrl.u32 %v3697, 23
    %v3699 = vsub.s32 %v3698, 127
    %v3700 = vand.u32 2147483647, %v366
    %v3701 = vand.u32 %v3700, 8388607
    %v3702 = vor.u32 %v3701, 8388608
    %v3703 = vsub.s32 0, %v3702
    %v3704 = vadd.s32 %v3699, 1
    %vm3705 = vcmp.gt.s32.totalorder %v3704, 0
    %v3706 = vsel %vm3705, %v3704, 0
    %v3707 = vshrl.u32 %v3706, 5
    %v3708 = vand.u32 %v3706, 31
    %v3709 = vsub.s32 32, %v3708
    %v3710 = vshrl.u32 683565275, %v3709
    %v3711 = vshll.u32 683565275, %v3708
    %v3712 = vshrl.u32 2475754826, %v3709
    %v3713 = vor.u32 %v3711, %v3712
    %v3714 = vshll.u32 2475754826, %v3708
    %v3715 = vshrl.u32 2131351028, %v3709
    %v3716 = vor.u32 %v3714, %v3715
    %v3717 = vshll.u32 2131351028, %v3708
    %v3718 = vshrl.u32 2102212464, %v3709
    %v3719 = vor.u32 %v3717, %v3718
    %v3720 = vshll.u32 2102212464, %v3708
    %v3721 = vshrl.u32 920167782, %v3709
    %v3722 = vor.u32 %v3720, %v3721
    %v3723 = vshll.u32 920167782, %v3708
    %v3724 = vshrl.u32 1326507024, %v3709
    %v3725 = vor.u32 %v3723, %v3724
    %vm3726 = vcmp.lt.s32.totalorder %v3707, 1
    %vm3727 = vcmp.lt.s32.totalorder %v3707, 2
    %vm3728 = vcmp.lt.s32.totalorder %v3707, 3
    %vm3729 = vcmp.lt.s32.totalorder %v3707, 4
    %v3730 = vsel %vm3726, %v3710, %v3713
    %v3731 = vsel %vm3729, %v3719, 2102212464
    %v3732 = vsel %vm3728, %v3716, %v3731
    %v3733 = vsel %vm3727, %v3730, %v3732
    %v3734 = vsel %vm3726, %v3713, %v3716
    %v3735 = vsel %vm3729, %v3722, 920167782
    %v3736 = vsel %vm3728, %v3719, %v3735
    %v3737 = vsel %vm3727, %v3734, %v3736
    %v3738 = vsel %vm3726, %v3716, %v3719
    %v3739 = vsel %vm3729, %v3725, 1326507024
    %v3740 = vsel %vm3728, %v3722, %v3739
    %v3741 = vsel %vm3727, %v3738, %v3740
    %v3742 = vshll.u32 %v3702, 8
    %v3743 = vmul.u32.u64.compose %v3742, %v3741
    %v3744 = vextract.low.u32 %v3743
    %v3745 = vextract.high.u32 %v3743
    %v3746 = vmul.u32.u64.compose %v3742, %v3737
    %v3747 = vextract.low.u32 %v3746
    %v3748 = vextract.high.u32 %v3746
    %v3749 = vmul.u32 %v3742, %v3733
    %v3750 = vadd.s32 %v3745, %v3747
    %vm3751 = vc.u32 %v3745, %v3747
    %v3752 = vadd.s32 %v3748, 1
    %v3753 = vsel %vm3751, %v3752, %v3748
    %v3754 = vadd.s32 %v3749, %v3753
    %v3755 = vadd.s32 %v3754, 536870912
    %v3756 = vshrl.u32 %v3755, 30
    %v3757 = vshll.u32 %v3756, 30
    %v3758 = vsub.s32 %v3754, %v3757
    %vm3759 = vcmp.lt.s32.totalorder %v3758, 0
    %v3760 = vsub.s32 0, %v3758
    %v3761 = vsel %vm3759, %v3760, %v3758
    %v3762 = vclz %v3761
    %v3763 = vsub.s32 %v3762, 2
    %vm3764 = vcmp.gt.s32.totalorder 0, %v3763
    %v3765 = vsel %vm3764, 0, %v3763
    %v3766 = vsub.s32 32, %v3765
    %v3767 = vshll.u32 %v3758, %v3765
    %v3768 = vshrl.u32 %v3750, %v3766
    %v3769 = vor.u32 %v3767, %v3768
    %v3770 = vsub.s32 4294967266, %v3765
    %v3771 = vadd.s32 %v3770, 127
    %v3772 = vshll.u32 %v3771, 23
    %v3773 = vor.u32 4788187, %v3772
    %v3774 = vand.u32 2147483647, %v3773
    %v3776 = vcvt.s32.f32 %v3769
    %v3777 = vmul.f32 %v3776, %v3774
    %v3778 = vxor.u32 %v3777, 2147483648
    %v3779 = vsel %vm3696, %v3778, %v3777
    %v3780 = vsub.s32 4, %v3756
    %v3781 = vsel %vm3696, %v3780, %v3756
    %v3782 = vsel %vm3695, %v366, %v3779
    %v3783 = vsel %vm3695, 0, %v3781
    %v3784 = vcosq.f32.pop %v3782
    %v3785 = vsinq.f32.pop %v3782
    %vm3786 = vweird.f32 %v366
    %v3787 = vadd.s32 %v3783, 3
    %v3788 = vand.u32 %v3787, 3
    %vm3789 = vcmp.lt.s32.totalorder %v3788, 2
    %vm3790 = vcmp.eq.s32.totalorder %v3788, 0
    %v3791 = vxor.u32 %v3785, 2147483648
    %v3792 = vsel %vm3790, %v3784, %v3791
    %vm3793 = vcmp.eq.s32.totalorder %v3788, 2
    %v3794 = vxor.u32 %v3784, 2147483648
    %v3795 = vsel %vm3793, %v3794, %v3785
    %v3796 = vsel %vm3789, %v3792, %v3795
    %v3797 = vsel %vm3786, nan, %v3796
    %v3798 = vand.u32 2147483647, %v367
    %vm3799 = vcmp.le.f32.partialorder %v3798, 0.7853982
    %vm3800 = vcmp.lt.s32.totalorder %v367, 0
    %v3801 = vand.u32 %v367, 2139095040
    %v3802 = vshrl.u32 %v3801, 23
    %v3803 = vsub.s32 %v3802, 127
    %v3804 = vand.u32 2147483647, %v367
    %v3805 = vand.u32 %v3804, 8388607
    %v3806 = vor.u32 %v3805, 8388608
    %v3807 = vsub.s32 0, %v3806
    %v3808 = vadd.s32 %v3803, 1
    %vm3809 = vcmp.gt.s32.totalorder %v3808, 0
    %v3810 = vsel %vm3809, %v3808, 0
    %v3811 = vshrl.u32 %v3810, 5
    %v3812 = vand.u32 %v3810, 31
    %v3813 = vsub.s32 32, %v3812
    %v3814 = vshrl.u32 683565275, %v3813
    %v3815 = vshll.u32 683565275, %v3812
    %v3816 = vshrl.u32 2475754826, %v3813
    %v3817 = vor.u32 %v3815, %v3816
    %v3818 = vshll.u32 2475754826, %v3812
    %v3819 = vshrl.u32 2131351028, %v3813
    %v3820 = vor.u32 %v3818, %v3819
    %v3821 = vshll.u32 2131351028, %v3812
    %v3822 = vshrl.u32 2102212464, %v3813
    %v3823 = vor.u32 %v3821, %v3822
    %v3824 = vshll.u32 2102212464, %v3812
    %v3825 = vshrl.u32 920167782, %v3813
    %v3826 = vor.u32 %v3824, %v3825
    %v3827 = vshll.u32 920167782, %v3812
    %v3828 = vshrl.u32 1326507024, %v3813
    %v3829 = vor.u32 %v3827, %v3828
    %vm3830 = vcmp.lt.s32.totalorder %v3811, 1
    %vm3831 = vcmp.lt.s32.totalorder %v3811, 2
    %vm3832 = vcmp.lt.s32.totalorder %v3811, 3
    %vm3833 = vcmp.lt.s32.totalorder %v3811, 4
    %v3834 = vsel %vm3830, %v3814, %v3817
    %v3835 = vsel %vm3833, %v3823, 2102212464
    %v3836 = vsel %vm3832, %v3820, %v3835
    %v3837 = vsel %vm3831, %v3834, %v3836
    %v3838 = vsel %vm3830, %v3817, %v3820
    %v3839 = vsel %vm3833, %v3826, 920167782
    %v3840 = vsel %vm3832, %v3823, %v3839
    %v3841 = vsel %vm3831, %v3838, %v3840
    %v3842 = vsel %vm3830, %v3820, %v3823
    %v3843 = vsel %vm3833, %v3829, 1326507024
    %v3844 = vsel %vm3832, %v3826, %v3843
    %v3845 = vsel %vm3831, %v3842, %v3844
    %v3846 = vshll.u32 %v3806, 8
    %v3847 = vmul.u32.u64.compose %v3846, %v3845
    %v3848 = vextract.low.u32 %v3847
    %v3849 = vextract.high.u32 %v3847
    %v3850 = vmul.u32.u64.compose %v3846, %v3841
    %v3851 = vextract.low.u32 %v3850
    %v3852 = vextract.high.u32 %v3850
    %v3853 = vmul.u32 %v3846, %v3837
    %v3854 = vadd.s32 %v3849, %v3851
    %vm3855 = vc.u32 %v3849, %v3851
    %v3856 = vadd.s32 %v3852, 1
    %v3857 = vsel %vm3855, %v3856, %v3852
    %v3858 = vadd.s32 %v3853, %v3857
    %v3859 = vadd.s32 %v3858, 536870912
    %v3860 = vshrl.u32 %v3859, 30
    %v3861 = vshll.u32 %v3860, 30
    %v3862 = vsub.s32 %v3858, %v3861
    %vm3863 = vcmp.lt.s32.totalorder %v3862, 0
    %v3864 = vsub.s32 0, %v3862
    %v3865 = vsel %vm3863, %v3864, %v3862
    %v3866 = vclz %v3865
    %v3867 = vsub.s32 %v3866, 2
    %vm3868 = vcmp.gt.s32.totalorder 0, %v3867
    %v3869 = vsel %vm3868, 0, %v3867
    %v3870 = vsub.s32 32, %v3869
    %v3871 = vshll.u32 %v3862, %v3869
    %v3872 = vshrl.u32 %v3854, %v3870
    %v3873 = vor.u32 %v3871, %v3872
    %v3874 = vsub.s32 4294967266, %v3869
    %v3875 = vadd.s32 %v3874, 127
    %v3876 = vshll.u32 %v3875, 23
    %v3877 = vor.u32 4788187, %v3876
    %v3878 = vand.u32 2147483647, %v3877
    %v3880 = vcvt.s32.f32 %v3873
    %v3881 = vmul.f32 %v3880, %v3878
    %v3882 = vxor.u32 %v3881, 2147483648
    %v3883 = vsel %vm3800, %v3882, %v3881
    %v3884 = vsub.s32 4, %v3860
    %v3885 = vsel %vm3800, %v3884, %v3860
    %v3886 = vsel %vm3799, %v367, %v3883
    %v3887 = vsel %vm3799, 0, %v3885
    %v3888 = vcosq.f32.pop %v3886
    %v3889 = vsinq.f32.pop %v3886
    %vm3890 = vweird.f32 %v367
    %v3891 = vadd.s32 %v3887, 3
    %v3892 = vand.u32 %v3891, 3
    %vm3893 = vcmp.lt.s32.totalorder %v3892, 2
    %vm3894 = vcmp.eq.s32.totalorder %v3892, 0
    %v3895 = vxor.u32 %v3889, 2147483648
    %v3896 = vsel %vm3894, %v3888, %v3895
    %vm3897 = vcmp.eq.s32.totalorder %v3892, 2
    %v3898 = vxor.u32 %v3888, 2147483648
    %v3899 = vsel %vm3897, %v3898, %v3889
    %v3900 = vsel %vm3893, %v3896, %v3899
    %v3901 = vsel %vm3890, nan, %v3900
    %v3902 = vand.u32 2147483647, %v368
    %vm3903 = vcmp.le.f32.partialorder %v3902, 0.7853982
    %vm3904 = vcmp.lt.s32.totalorder %v368, 0
    %v3905 = vand.u32 %v368, 2139095040
    %v3906 = vshrl.u32 %v3905, 23
    %v3907 = vsub.s32 %v3906, 127
    %v3908 = vand.u32 2147483647, %v368
    %v3909 = vand.u32 %v3908, 8388607
    %v3910 = vor.u32 %v3909, 8388608
    %v3911 = vsub.s32 0, %v3910
    %v3912 = vadd.s32 %v3907, 1
    %vm3913 = vcmp.gt.s32.totalorder %v3912, 0
    %v3914 = vsel %vm3913, %v3912, 0
    %v3915 = vshrl.u32 %v3914, 5
    %v3916 = vand.u32 %v3914, 31
    %v3917 = vsub.s32 32, %v3916
    %v3918 = vshrl.u32 683565275, %v3917
    %v3919 = vshll.u32 683565275, %v3916
    %v3920 = vshrl.u32 2475754826, %v3917
    %v3921 = vor.u32 %v3919, %v3920
    %v3922 = vshll.u32 2475754826, %v3916
    %v3923 = vshrl.u32 2131351028, %v3917
    %v3924 = vor.u32 %v3922, %v3923
    %v3925 = vshll.u32 2131351028, %v3916
    %v3926 = vshrl.u32 2102212464, %v3917
    %v3927 = vor.u32 %v3925, %v3926
    %v3928 = vshll.u32 2102212464, %v3916
    %v3929 = vshrl.u32 920167782, %v3917
    %v3930 = vor.u32 %v3928, %v3929
    %v3931 = vshll.u32 920167782, %v3916
    %v3932 = vshrl.u32 1326507024, %v3917
    %v3933 = vor.u32 %v3931, %v3932
    %vm3934 = vcmp.lt.s32.totalorder %v3915, 1
    %vm3935 = vcmp.lt.s32.totalorder %v3915, 2
    %vm3936 = vcmp.lt.s32.totalorder %v3915, 3
    %vm3937 = vcmp.lt.s32.totalorder %v3915, 4
    %v3938 = vsel %vm3934, %v3918, %v3921
    %v3939 = vsel %vm3937, %v3927, 2102212464
    %v3940 = vsel %vm3936, %v3924, %v3939
    %v3941 = vsel %vm3935, %v3938, %v3940
    %v3942 = vsel %vm3934, %v3921, %v3924
    %v3943 = vsel %vm3937, %v3930, 920167782
    %v3944 = vsel %vm3936, %v3927, %v3943
    %v3945 = vsel %vm3935, %v3942, %v3944
    %v3946 = vsel %vm3934, %v3924, %v3927
    %v3947 = vsel %vm3937, %v3933, 1326507024
    %v3948 = vsel %vm3936, %v3930, %v3947
    %v3949 = vsel %vm3935, %v3946, %v3948
    %v3950 = vshll.u32 %v3910, 8
    %v3951 = vmul.u32.u64.compose %v3950, %v3949
    %v3952 = vextract.low.u32 %v3951
    %v3953 = vextract.high.u32 %v3951
    %v3954 = vmul.u32.u64.compose %v3950, %v3945
    %v3955 = vextract.low.u32 %v3954
    %v3956 = vextract.high.u32 %v3954
    %v3957 = vmul.u32 %v3950, %v3941
    %v3958 = vadd.s32 %v3953, %v3955
    %vm3959 = vc.u32 %v3953, %v3955
    %v3960 = vadd.s32 %v3956, 1
    %v3961 = vsel %vm3959, %v3960, %v3956
    %v3962 = vadd.s32 %v3957, %v3961
    %v3963 = vadd.s32 %v3962, 536870912
    %v3964 = vshrl.u32 %v3963, 30
    %v3965 = vshll.u32 %v3964, 30
    %v3966 = vsub.s32 %v3962, %v3965
    %vm3967 = vcmp.lt.s32.totalorder %v3966, 0
    %v3968 = vsub.s32 0, %v3966
    %v3969 = vsel %vm3967, %v3968, %v3966
    %v3970 = vclz %v3969
    %v3971 = vsub.s32 %v3970, 2
    %vm3972 = vcmp.gt.s32.totalorder 0, %v3971
    %v3973 = vsel %vm3972, 0, %v3971
    %v3974 = vsub.s32 32, %v3973
    %v3975 = vshll.u32 %v3966, %v3973
    %v3976 = vshrl.u32 %v3958, %v3974
    %v3977 = vor.u32 %v3975, %v3976
    %v3978 = vsub.s32 4294967266, %v3973
    %v3979 = vadd.s32 %v3978, 127
    %v3980 = vshll.u32 %v3979, 23
    %v3981 = vor.u32 4788187, %v3980
    %v3982 = vand.u32 2147483647, %v3981
    %v3984 = vcvt.s32.f32 %v3977
    %v3985 = vmul.f32 %v3984, %v3982
    %v3986 = vxor.u32 %v3985, 2147483648
    %v3987 = vsel %vm3904, %v3986, %v3985
    %v3988 = vsub.s32 4, %v3964
    %v3989 = vsel %vm3904, %v3988, %v3964
    %v3990 = vsel %vm3903, %v368, %v3987
    %v3991 = vsel %vm3903, 0, %v3989
    %v3992 = vcosq.f32.pop %v3990
    %v3993 = vsinq.f32.pop %v3990
    %vm3994 = vweird.f32 %v368
    %v3995 = vadd.s32 %v3991, 3
    %v3996 = vand.u32 %v3995, 3
    %vm3997 = vcmp.lt.s32.totalorder %v3996, 2
    %vm3998 = vcmp.eq.s32.totalorder %v3996, 0
    %v3999 = vxor.u32 %v3993, 2147483648
    %v4000 = vsel %vm3998, %v3992, %v3999
    %vm4001 = vcmp.eq.s32.totalorder %v3996, 2
    %v4002 = vxor.u32 %v3992, 2147483648
    %v4003 = vsel %vm4001, %v4002, %v3993
    %v4004 = vsel %vm3997, %v4000, %v4003
    %v4005 = vsel %vm3994, nan, %v4004
    %v4006 = vand.u32 2147483647, %v369
    %vm4007 = vcmp.le.f32.partialorder %v4006, 0.7853982
    %vm4008 = vcmp.lt.s32.totalorder %v369, 0
    %v4009 = vand.u32 %v369, 2139095040
    %v4010 = vshrl.u32 %v4009, 23
    %v4011 = vsub.s32 %v4010, 127
    %v4012 = vand.u32 2147483647, %v369
    %v4013 = vand.u32 %v4012, 8388607
    %v4014 = vor.u32 %v4013, 8388608
    %v4015 = vsub.s32 0, %v4014
    %v4016 = vadd.s32 %v4011, 1
    %vm4017 = vcmp.gt.s32.totalorder %v4016, 0
    %v4018 = vsel %vm4017, %v4016, 0
    %v4019 = vshrl.u32 %v4018, 5
    %v4020 = vand.u32 %v4018, 31
    %v4021 = vsub.s32 32, %v4020
    %v4022 = vshrl.u32 683565275, %v4021
    %v4023 = vshll.u32 683565275, %v4020
    %v4024 = vshrl.u32 2475754826, %v4021
    %v4025 = vor.u32 %v4023, %v4024
    %v4026 = vshll.u32 2475754826, %v4020
    %v4027 = vshrl.u32 2131351028, %v4021
    %v4028 = vor.u32 %v4026, %v4027
    %v4029 = vshll.u32 2131351028, %v4020
    %v4030 = vshrl.u32 2102212464, %v4021
    %v4031 = vor.u32 %v4029, %v4030
    %v4032 = vshll.u32 2102212464, %v4020
    %v4033 = vshrl.u32 920167782, %v4021
    %v4034 = vor.u32 %v4032, %v4033
    %v4035 = vshll.u32 920167782, %v4020
    %v4036 = vshrl.u32 1326507024, %v4021
    %v4037 = vor.u32 %v4035, %v4036
    %vm4038 = vcmp.lt.s32.totalorder %v4019, 1
    %vm4039 = vcmp.lt.s32.totalorder %v4019, 2
    %vm4040 = vcmp.lt.s32.totalorder %v4019, 3
    %vm4041 = vcmp.lt.s32.totalorder %v4019, 4
    %v4042 = vsel %vm4038, %v4022, %v4025
    %v4043 = vsel %vm4041, %v4031, 2102212464
    %v4044 = vsel %vm4040, %v4028, %v4043
    %v4045 = vsel %vm4039, %v4042, %v4044
    %v4046 = vsel %vm4038, %v4025, %v4028
    %v4047 = vsel %vm4041, %v4034, 920167782
    %v4048 = vsel %vm4040, %v4031, %v4047
    %v4049 = vsel %vm4039, %v4046, %v4048
    %v4050 = vsel %vm4038, %v4028, %v4031
    %v4051 = vsel %vm4041, %v4037, 1326507024
    %v4052 = vsel %vm4040, %v4034, %v4051
    %v4053 = vsel %vm4039, %v4050, %v4052
    %v4054 = vshll.u32 %v4014, 8
    %v4055 = vmul.u32.u64.compose %v4054, %v4053
    %v4056 = vextract.low.u32 %v4055
    %v4057 = vextract.high.u32 %v4055
    %v4058 = vmul.u32.u64.compose %v4054, %v4049
    %v4059 = vextract.low.u32 %v4058
    %v4060 = vextract.high.u32 %v4058
    %v4061 = vmul.u32 %v4054, %v4045
    %v4062 = vadd.s32 %v4057, %v4059
    %vm4063 = vc.u32 %v4057, %v4059
    %v4064 = vadd.s32 %v4060, 1
    %v4065 = vsel %vm4063, %v4064, %v4060
    %v4066 = vadd.s32 %v4061, %v4065
    %v4067 = vadd.s32 %v4066, 536870912
    %v4068 = vshrl.u32 %v4067, 30
    %v4069 = vshll.u32 %v4068, 30
    %v4070 = vsub.s32 %v4066, %v4069
    %vm4071 = vcmp.lt.s32.totalorder %v4070, 0
    %v4072 = vsub.s32 0, %v4070
    %v4073 = vsel %vm4071, %v4072, %v4070
    %v4074 = vclz %v4073
    %v4075 = vsub.s32 %v4074, 2
    %vm4076 = vcmp.gt.s32.totalorder 0, %v4075
    %v4077 = vsel %vm4076, 0, %v4075
    %v4078 = vsub.s32 32, %v4077
    %v4079 = vshll.u32 %v4070, %v4077
    %v4080 = vshrl.u32 %v4062, %v4078
    %v4081 = vor.u32 %v4079, %v4080
    %v4082 = vsub.s32 4294967266, %v4077
    %v4083 = vadd.s32 %v4082, 127
    %v4084 = vshll.u32 %v4083, 23
    %v4085 = vor.u32 4788187, %v4084
    %v4086 = vand.u32 2147483647, %v4085
    %v4088 = vcvt.s32.f32 %v4081
    %v4089 = vmul.f32 %v4088, %v4086
    %v4090 = vxor.u32 %v4089, 2147483648
    %v4091 = vsel %vm4008, %v4090, %v4089
    %v4092 = vsub.s32 4, %v4068
    %v4093 = vsel %vm4008, %v4092, %v4068
    %v4094 = vsel %vm4007, %v369, %v4091
    %v4095 = vsel %vm4007, 0, %v4093
    %v4096 = vcosq.f32.pop %v4094
    %v4097 = vsinq.f32.pop %v4094
    %vm4098 = vweird.f32 %v369
    %v4099 = vadd.s32 %v4095, 3
    %v4100 = vand.u32 %v4099, 3
    %vm4101 = vcmp.lt.s32.totalorder %v4100, 2
    %vm4102 = vcmp.eq.s32.totalorder %v4100, 0
    %v4103 = vxor.u32 %v4097, 2147483648
    %v4104 = vsel %vm4102, %v4096, %v4103
    %vm4105 = vcmp.eq.s32.totalorder %v4100, 2
    %v4106 = vxor.u32 %v4096, 2147483648
    %v4107 = vsel %vm4105, %v4106, %v4097
    %v4108 = vsel %vm4101, %v4104, %v4107
    %v4109 = vsel %vm4098, nan, %v4108
    %v4110 = vand.u32 2147483647, %v370
    %vm4111 = vcmp.le.f32.partialorder %v4110, 0.7853982
    %vm4112 = vcmp.lt.s32.totalorder %v370, 0
    %v4113 = vand.u32 %v370, 2139095040
    %v4114 = vshrl.u32 %v4113, 23
    %v4115 = vsub.s32 %v4114, 127
    %v4116 = vand.u32 2147483647, %v370
    %v4117 = vand.u32 %v4116, 8388607
    %v4118 = vor.u32 %v4117, 8388608
    %v4119 = vsub.s32 0, %v4118
    %v4120 = vadd.s32 %v4115, 1
    %vm4121 = vcmp.gt.s32.totalorder %v4120, 0
    %v4122 = vsel %vm4121, %v4120, 0
    %v4123 = vshrl.u32 %v4122, 5
    %v4124 = vand.u32 %v4122, 31
    %v4125 = vsub.s32 32, %v4124
    %v4126 = vshrl.u32 683565275, %v4125
    %v4127 = vshll.u32 683565275, %v4124
    %v4128 = vshrl.u32 2475754826, %v4125
    %v4129 = vor.u32 %v4127, %v4128
    %v4130 = vshll.u32 2475754826, %v4124
    %v4131 = vshrl.u32 2131351028, %v4125
    %v4132 = vor.u32 %v4130, %v4131
    %v4133 = vshll.u32 2131351028, %v4124
    %v4134 = vshrl.u32 2102212464, %v4125
    %v4135 = vor.u32 %v4133, %v4134
    %v4136 = vshll.u32 2102212464, %v4124
    %v4137 = vshrl.u32 920167782, %v4125
    %v4138 = vor.u32 %v4136, %v4137
    %v4139 = vshll.u32 920167782, %v4124
    %v4140 = vshrl.u32 1326507024, %v4125
    %v4141 = vor.u32 %v4139, %v4140
    %vm4142 = vcmp.lt.s32.totalorder %v4123, 1
    %vm4143 = vcmp.lt.s32.totalorder %v4123, 2
    %vm4144 = vcmp.lt.s32.totalorder %v4123, 3
    %vm4145 = vcmp.lt.s32.totalorder %v4123, 4
    %v4146 = vsel %vm4142, %v4126, %v4129
    %v4147 = vsel %vm4145, %v4135, 2102212464
    %v4148 = vsel %vm4144, %v4132, %v4147
    %v4149 = vsel %vm4143, %v4146, %v4148
    %v4150 = vsel %vm4142, %v4129, %v4132
    %v4151 = vsel %vm4145, %v4138, 920167782
    %v4152 = vsel %vm4144, %v4135, %v4151
    %v4153 = vsel %vm4143, %v4150, %v4152
    %v4154 = vsel %vm4142, %v4132, %v4135
    %v4155 = vsel %vm4145, %v4141, 1326507024
    %v4156 = vsel %vm4144, %v4138, %v4155
    %v4157 = vsel %vm4143, %v4154, %v4156
    %v4158 = vshll.u32 %v4118, 8
    %v4159 = vmul.u32.u64.compose %v4158, %v4157
    %v4160 = vextract.low.u32 %v4159
    %v4161 = vextract.high.u32 %v4159
    %v4162 = vmul.u32.u64.compose %v4158, %v4153
    %v4163 = vextract.low.u32 %v4162
    %v4164 = vextract.high.u32 %v4162
    %v4165 = vmul.u32 %v4158, %v4149
    %v4166 = vadd.s32 %v4161, %v4163
    %vm4167 = vc.u32 %v4161, %v4163
    %v4168 = vadd.s32 %v4164, 1
    %v4169 = vsel %vm4167, %v4168, %v4164
    %v4170 = vadd.s32 %v4165, %v4169
    %v4171 = vadd.s32 %v4170, 536870912
    %v4172 = vshrl.u32 %v4171, 30
    %v4173 = vshll.u32 %v4172, 30
    %v4174 = vsub.s32 %v4170, %v4173
    %vm4175 = vcmp.lt.s32.totalorder %v4174, 0
    %v4176 = vsub.s32 0, %v4174
    %v4177 = vsel %vm4175, %v4176, %v4174
    %v4178 = vclz %v4177
    %v4179 = vsub.s32 %v4178, 2
    %vm4180 = vcmp.gt.s32.totalorder 0, %v4179
    %v4181 = vsel %vm4180, 0, %v4179
    %v4182 = vsub.s32 32, %v4181
    %v4183 = vshll.u32 %v4174, %v4181
    %v4184 = vshrl.u32 %v4166, %v4182
    %v4185 = vor.u32 %v4183, %v4184
    %v4186 = vsub.s32 4294967266, %v4181
    %v4187 = vadd.s32 %v4186, 127
    %v4188 = vshll.u32 %v4187, 23
    %v4189 = vor.u32 4788187, %v4188
    %v4190 = vand.u32 2147483647, %v4189
    %v4192 = vcvt.s32.f32 %v4185
    %v4193 = vmul.f32 %v4192, %v4190
    %v4194 = vxor.u32 %v4193, 2147483648
    %v4195 = vsel %vm4112, %v4194, %v4193
    %v4196 = vsub.s32 4, %v4172
    %v4197 = vsel %vm4112, %v4196, %v4172
    %v4198 = vsel %vm4111, %v370, %v4195
    %v4199 = vsel %vm4111, 0, %v4197
    %v4200 = vcosq.f32.pop %v4198
    %v4201 = vsinq.f32.pop %v4198
    %vm4202 = vweird.f32 %v370
    %v4203 = vadd.s32 %v4199, 3
    %v4204 = vand.u32 %v4203, 3
    %vm4205 = vcmp.lt.s32.totalorder %v4204, 2
    %vm4206 = vcmp.eq.s32.totalorder %v4204, 0
    %v4207 = vxor.u32 %v4201, 2147483648
    %v4208 = vsel %vm4206, %v4200, %v4207
    %vm4209 = vcmp.eq.s32.totalorder %v4204, 2
    %v4210 = vxor.u32 %v4200, 2147483648
    %v4211 = vsel %vm4209, %v4210, %v4201
    %v4212 = vsel %vm4205, %v4208, %v4211
    %v4213 = vsel %vm4202, nan, %v4212
    %v4214 = vand.u32 2147483647, %v371
    %vm4215 = vcmp.le.f32.partialorder %v4214, 0.7853982
    %vm4216 = vcmp.lt.s32.totalorder %v371, 0
    %v4217 = vand.u32 %v371, 2139095040
    %v4218 = vshrl.u32 %v4217, 23
    %v4219 = vsub.s32 %v4218, 127
    %v4220 = vand.u32 2147483647, %v371
    %v4221 = vand.u32 %v4220, 8388607
    %v4222 = vor.u32 %v4221, 8388608
    %v4223 = vsub.s32 0, %v4222
    %v4224 = vadd.s32 %v4219, 1
    %vm4225 = vcmp.gt.s32.totalorder %v4224, 0
    %v4226 = vsel %vm4225, %v4224, 0
    %v4227 = vshrl.u32 %v4226, 5
    %v4228 = vand.u32 %v4226, 31
    %v4229 = vsub.s32 32, %v4228
    %v4230 = vshrl.u32 683565275, %v4229
    %v4231 = vshll.u32 683565275, %v4228
    %v4232 = vshrl.u32 2475754826, %v4229
    %v4233 = vor.u32 %v4231, %v4232
    %v4234 = vshll.u32 2475754826, %v4228
    %v4235 = vshrl.u32 2131351028, %v4229
    %v4236 = vor.u32 %v4234, %v4235
    %v4237 = vshll.u32 2131351028, %v4228
    %v4238 = vshrl.u32 2102212464, %v4229
    %v4239 = vor.u32 %v4237, %v4238
    %v4240 = vshll.u32 2102212464, %v4228
    %v4241 = vshrl.u32 920167782, %v4229
    %v4242 = vor.u32 %v4240, %v4241
    %v4243 = vshll.u32 920167782, %v4228
    %v4244 = vshrl.u32 1326507024, %v4229
    %v4245 = vor.u32 %v4243, %v4244
    %vm4246 = vcmp.lt.s32.totalorder %v4227, 1
    %vm4247 = vcmp.lt.s32.totalorder %v4227, 2
    %vm4248 = vcmp.lt.s32.totalorder %v4227, 3
    %vm4249 = vcmp.lt.s32.totalorder %v4227, 4
    %v4250 = vsel %vm4246, %v4230, %v4233
    %v4251 = vsel %vm4249, %v4239, 2102212464
    %v4252 = vsel %vm4248, %v4236, %v4251
    %v4253 = vsel %vm4247, %v4250, %v4252
    %v4254 = vsel %vm4246, %v4233, %v4236
    %v4255 = vsel %vm4249, %v4242, 920167782
    %v4256 = vsel %vm4248, %v4239, %v4255
    %v4257 = vsel %vm4247, %v4254, %v4256
    %v4258 = vsel %vm4246, %v4236, %v4239
    %v4259 = vsel %vm4249, %v4245, 1326507024
    %v4260 = vsel %vm4248, %v4242, %v4259
    %v4261 = vsel %vm4247, %v4258, %v4260
    %v4262 = vshll.u32 %v4222, 8
    %v4263 = vmul.u32.u64.compose %v4262, %v4261
    %v4264 = vextract.low.u32 %v4263
    %v4265 = vextract.high.u32 %v4263
    %v4266 = vmul.u32.u64.compose %v4262, %v4257
    %v4267 = vextract.low.u32 %v4266
    %v4268 = vextract.high.u32 %v4266
    %v4269 = vmul.u32 %v4262, %v4253
    %v4270 = vadd.s32 %v4265, %v4267
    %vm4271 = vc.u32 %v4265, %v4267
    %v4272 = vadd.s32 %v4268, 1
    %v4273 = vsel %vm4271, %v4272, %v4268
    %v4274 = vadd.s32 %v4269, %v4273
    %v4275 = vadd.s32 %v4274, 536870912
    %v4276 = vshrl.u32 %v4275, 30
    %v4277 = vshll.u32 %v4276, 30
    %v4278 = vsub.s32 %v4274, %v4277
    %vm4279 = vcmp.lt.s32.totalorder %v4278, 0
    %v4280 = vsub.s32 0, %v4278
    %v4281 = vsel %vm4279, %v4280, %v4278
    %v4282 = vclz %v4281
    %v4283 = vsub.s32 %v4282, 2
    %vm4284 = vcmp.gt.s32.totalorder 0, %v4283
    %v4285 = vsel %vm4284, 0, %v4283
    %v4286 = vsub.s32 32, %v4285
    %v4287 = vshll.u32 %v4278, %v4285
    %v4288 = vshrl.u32 %v4270, %v4286
    %v4289 = vor.u32 %v4287, %v4288
    %v4290 = vsub.s32 4294967266, %v4285
    %v4291 = vadd.s32 %v4290, 127
    %v4292 = vshll.u32 %v4291, 23
    %v4293 = vor.u32 4788187, %v4292
    %v4294 = vand.u32 2147483647, %v4293
    %v4296 = vcvt.s32.f32 %v4289
    %v4297 = vmul.f32 %v4296, %v4294
    %v4298 = vxor.u32 %v4297, 2147483648
    %v4299 = vsel %vm4216, %v4298, %v4297
    %v4300 = vsub.s32 4, %v4276
    %v4301 = vsel %vm4216, %v4300, %v4276
    %v4302 = vsel %vm4215, %v371, %v4299
    %v4303 = vsel %vm4215, 0, %v4301
    %v4304 = vcosq.f32.pop %v4302
    %v4305 = vsinq.f32.pop %v4302
    %vm4306 = vweird.f32 %v371
    %v4307 = vadd.s32 %v4303, 3
    %v4308 = vand.u32 %v4307, 3
    %vm4309 = vcmp.lt.s32.totalorder %v4308, 2
    %vm4310 = vcmp.eq.s32.totalorder %v4308, 0
    %v4311 = vxor.u32 %v4305, 2147483648
    %v4312 = vsel %vm4310, %v4304, %v4311
    %vm4313 = vcmp.eq.s32.totalorder %v4308, 2
    %v4314 = vxor.u32 %v4304, 2147483648
    %v4315 = vsel %vm4313, %v4314, %v4305
    %v4316 = vsel %vm4309, %v4312, %v4315
    %v4317 = vsel %vm4306, nan, %v4316
    %v4318 = vand.u32 2147483647, %v372
    %vm4319 = vcmp.le.f32.partialorder %v4318, 0.7853982
    %vm4320 = vcmp.lt.s32.totalorder %v372, 0
    %v4321 = vand.u32 %v372, 2139095040
    %v4322 = vshrl.u32 %v4321, 23
    %v4323 = vsub.s32 %v4322, 127
    %v4324 = vand.u32 2147483647, %v372
    %v4325 = vand.u32 %v4324, 8388607
    %v4326 = vor.u32 %v4325, 8388608
    %v4327 = vsub.s32 0, %v4326
    %v4328 = vadd.s32 %v4323, 1
    %vm4329 = vcmp.gt.s32.totalorder %v4328, 0
    %v4330 = vsel %vm4329, %v4328, 0
    %v4331 = vshrl.u32 %v4330, 5
    %v4332 = vand.u32 %v4330, 31
    %v4333 = vsub.s32 32, %v4332
    %v4334 = vshrl.u32 683565275, %v4333
    %v4335 = vshll.u32 683565275, %v4332
    %v4336 = vshrl.u32 2475754826, %v4333
    %v4337 = vor.u32 %v4335, %v4336
    %v4338 = vshll.u32 2475754826, %v4332
    %v4339 = vshrl.u32 2131351028, %v4333
    %v4340 = vor.u32 %v4338, %v4339
    %v4341 = vshll.u32 2131351028, %v4332
    %v4342 = vshrl.u32 2102212464, %v4333
    %v4343 = vor.u32 %v4341, %v4342
    %v4344 = vshll.u32 2102212464, %v4332
    %v4345 = vshrl.u32 920167782, %v4333
    %v4346 = vor.u32 %v4344, %v4345
    %v4347 = vshll.u32 920167782, %v4332
    %v4348 = vshrl.u32 1326507024, %v4333
    %v4349 = vor.u32 %v4347, %v4348
    %vm4350 = vcmp.lt.s32.totalorder %v4331, 1
    %vm4351 = vcmp.lt.s32.totalorder %v4331, 2
    %vm4352 = vcmp.lt.s32.totalorder %v4331, 3
    %vm4353 = vcmp.lt.s32.totalorder %v4331, 4
    %v4354 = vsel %vm4350, %v4334, %v4337
    %v4355 = vsel %vm4353, %v4343, 2102212464
    %v4356 = vsel %vm4352, %v4340, %v4355
    %v4357 = vsel %vm4351, %v4354, %v4356
    %v4358 = vsel %vm4350, %v4337, %v4340
    %v4359 = vsel %vm4353, %v4346, 920167782
    %v4360 = vsel %vm4352, %v4343, %v4359
    %v4361 = vsel %vm4351, %v4358, %v4360
    %v4362 = vsel %vm4350, %v4340, %v4343
    %v4363 = vsel %vm4353, %v4349, 1326507024
    %v4364 = vsel %vm4352, %v4346, %v4363
    %v4365 = vsel %vm4351, %v4362, %v4364
    %v4366 = vshll.u32 %v4326, 8
    %v4367 = vmul.u32.u64.compose %v4366, %v4365
    %v4368 = vextract.low.u32 %v4367
    %v4369 = vextract.high.u32 %v4367
    %v4370 = vmul.u32.u64.compose %v4366, %v4361
    %v4371 = vextract.low.u32 %v4370
    %v4372 = vextract.high.u32 %v4370
    %v4373 = vmul.u32 %v4366, %v4357
    %v4374 = vadd.s32 %v4369, %v4371
    %vm4375 = vc.u32 %v4369, %v4371
    %v4376 = vadd.s32 %v4372, 1
    %v4377 = vsel %vm4375, %v4376, %v4372
    %v4378 = vadd.s32 %v4373, %v4377
    %v4379 = vadd.s32 %v4378, 536870912
    %v4380 = vshrl.u32 %v4379, 30
    %v4381 = vshll.u32 %v4380, 30
    %v4382 = vsub.s32 %v4378, %v4381
    %vm4383 = vcmp.lt.s32.totalorder %v4382, 0
    %v4384 = vsub.s32 0, %v4382
    %v4385 = vsel %vm4383, %v4384, %v4382
    %v4386 = vclz %v4385
    %v4387 = vsub.s32 %v4386, 2
    %vm4388 = vcmp.gt.s32.totalorder 0, %v4387
    %v4389 = vsel %vm4388, 0, %v4387
    %v4390 = vsub.s32 32, %v4389
    %v4391 = vshll.u32 %v4382, %v4389
    %v4392 = vshrl.u32 %v4374, %v4390
    %v4393 = vor.u32 %v4391, %v4392
    %v4394 = vsub.s32 4294967266, %v4389
    %v4395 = vadd.s32 %v4394, 127
    %v4396 = vshll.u32 %v4395, 23
    %v4397 = vor.u32 4788187, %v4396
    %v4398 = vand.u32 2147483647, %v4397
    %v4400 = vcvt.s32.f32 %v4393
    %v4401 = vmul.f32 %v4400, %v4398
    %v4402 = vxor.u32 %v4401, 2147483648
    %v4403 = vsel %vm4320, %v4402, %v4401
    %v4404 = vsub.s32 4, %v4380
    %v4405 = vsel %vm4320, %v4404, %v4380
    %v4406 = vsel %vm4319, %v372, %v4403
    %v4407 = vsel %vm4319, 0, %v4405
    %v4408 = vcosq.f32.pop %v4406
    %v4409 = vsinq.f32.pop %v4406
    %vm4410 = vweird.f32 %v372
    %v4411 = vadd.s32 %v4407, 3
    %v4412 = vand.u32 %v4411, 3
    %vm4413 = vcmp.lt.s32.totalorder %v4412, 2
    %vm4414 = vcmp.eq.s32.totalorder %v4412, 0
    %v4415 = vxor.u32 %v4409, 2147483648
    %v4416 = vsel %vm4414, %v4408, %v4415
    %vm4417 = vcmp.eq.s32.totalorder %v4412, 2
    %v4418 = vxor.u32 %v4408, 2147483648
    %v4419 = vsel %vm4417, %v4418, %v4409
    %v4420 = vsel %vm4413, %v4416, %v4419
    %v4421 = vsel %vm4410, nan, %v4420
    %v4422 = vand.u32 2147483647, %v373
    %vm4423 = vcmp.le.f32.partialorder %v4422, 0.7853982
    %vm4424 = vcmp.lt.s32.totalorder %v373, 0
    %v4425 = vand.u32 %v373, 2139095040
    %v4426 = vshrl.u32 %v4425, 23
    %v4427 = vsub.s32 %v4426, 127
    %v4428 = vand.u32 2147483647, %v373
    %v4429 = vand.u32 %v4428, 8388607
    %v4430 = vor.u32 %v4429, 8388608
    %v4431 = vsub.s32 0, %v4430
    %v4432 = vadd.s32 %v4427, 1
    %vm4433 = vcmp.gt.s32.totalorder %v4432, 0
    %v4434 = vsel %vm4433, %v4432, 0
    %v4435 = vshrl.u32 %v4434, 5
    %v4436 = vand.u32 %v4434, 31
    %v4437 = vsub.s32 32, %v4436
    %v4438 = vshrl.u32 683565275, %v4437
    %v4439 = vshll.u32 683565275, %v4436
    %v4440 = vshrl.u32 2475754826, %v4437
    %v4441 = vor.u32 %v4439, %v4440
    %v4442 = vshll.u32 2475754826, %v4436
    %v4443 = vshrl.u32 2131351028, %v4437
    %v4444 = vor.u32 %v4442, %v4443
    %v4445 = vshll.u32 2131351028, %v4436
    %v4446 = vshrl.u32 2102212464, %v4437
    %v4447 = vor.u32 %v4445, %v4446
    %v4448 = vshll.u32 2102212464, %v4436
    %v4449 = vshrl.u32 920167782, %v4437
    %v4450 = vor.u32 %v4448, %v4449
    %v4451 = vshll.u32 920167782, %v4436
    %v4452 = vshrl.u32 1326507024, %v4437
    %v4453 = vor.u32 %v4451, %v4452
    %vm4454 = vcmp.lt.s32.totalorder %v4435, 1
    %vm4455 = vcmp.lt.s32.totalorder %v4435, 2
    %vm4456 = vcmp.lt.s32.totalorder %v4435, 3
    %vm4457 = vcmp.lt.s32.totalorder %v4435, 4
    %v4458 = vsel %vm4454, %v4438, %v4441
    %v4459 = vsel %vm4457, %v4447, 2102212464
    %v4460 = vsel %vm4456, %v4444, %v4459
    %v4461 = vsel %vm4455, %v4458, %v4460
    %v4462 = vsel %vm4454, %v4441, %v4444
    %v4463 = vsel %vm4457, %v4450, 920167782
    %v4464 = vsel %vm4456, %v4447, %v4463
    %v4465 = vsel %vm4455, %v4462, %v4464
    %v4466 = vsel %vm4454, %v4444, %v4447
    %v4467 = vsel %vm4457, %v4453, 1326507024
    %v4468 = vsel %vm4456, %v4450, %v4467
    %v4469 = vsel %vm4455, %v4466, %v4468
    %v4470 = vshll.u32 %v4430, 8
    %v4471 = vmul.u32.u64.compose %v4470, %v4469
    %v4472 = vextract.low.u32 %v4471
    %v4473 = vextract.high.u32 %v4471
    %v4474 = vmul.u32.u64.compose %v4470, %v4465
    %v4475 = vextract.low.u32 %v4474
    %v4476 = vextract.high.u32 %v4474
    %v4477 = vmul.u32 %v4470, %v4461
    %v4478 = vadd.s32 %v4473, %v4475
    %vm4479 = vc.u32 %v4473, %v4475
    %v4480 = vadd.s32 %v4476, 1
    %v4481 = vsel %vm4479, %v4480, %v4476
    %v4482 = vadd.s32 %v4477, %v4481
    %v4483 = vadd.s32 %v4482, 536870912
    %v4484 = vshrl.u32 %v4483, 30
    %v4485 = vshll.u32 %v4484, 30
    %v4486 = vsub.s32 %v4482, %v4485
    %vm4487 = vcmp.lt.s32.totalorder %v4486, 0
    %v4488 = vsub.s32 0, %v4486
    %v4489 = vsel %vm4487, %v4488, %v4486
    %v4490 = vclz %v4489
    %v4491 = vsub.s32 %v4490, 2
    %vm4492 = vcmp.gt.s32.totalorder 0, %v4491
    %v4493 = vsel %vm4492, 0, %v4491
    %v4494 = vsub.s32 32, %v4493
    %v4495 = vshll.u32 %v4486, %v4493
    %v4496 = vshrl.u32 %v4478, %v4494
    %v4497 = vor.u32 %v4495, %v4496
    %v4498 = vsub.s32 4294967266, %v4493
    %v4499 = vadd.s32 %v4498, 127
    %v4500 = vshll.u32 %v4499, 23
    %v4501 = vor.u32 4788187, %v4500
    %v4502 = vand.u32 2147483647, %v4501
    %v4504 = vcvt.s32.f32 %v4497
    %v4505 = vmul.f32 %v4504, %v4502
    %v4506 = vxor.u32 %v4505, 2147483648
    %v4507 = vsel %vm4424, %v4506, %v4505
    %v4508 = vsub.s32 4, %v4484
    %v4509 = vsel %vm4424, %v4508, %v4484
    %v4510 = vsel %vm4423, %v373, %v4507
    %v4511 = vsel %vm4423, 0, %v4509
    %v4512 = vcosq.f32.pop %v4510
    %v4513 = vsinq.f32.pop %v4510
    %vm4514 = vweird.f32 %v373
    %v4515 = vadd.s32 %v4511, 3
    %v4516 = vand.u32 %v4515, 3
    %vm4517 = vcmp.lt.s32.totalorder %v4516, 2
    %vm4518 = vcmp.eq.s32.totalorder %v4516, 0
    %v4519 = vxor.u32 %v4513, 2147483648
    %v4520 = vsel %vm4518, %v4512, %v4519
    %vm4521 = vcmp.eq.s32.totalorder %v4516, 2
    %v4522 = vxor.u32 %v4512, 2147483648
    %v4523 = vsel %vm4521, %v4522, %v4513
    %v4524 = vsel %vm4517, %v4520, %v4523
    %v4525 = vsel %vm4514, nan, %v4524
    %v4526 = vand.u32 2147483647, %v374
    %vm4527 = vcmp.le.f32.partialorder %v4526, 0.7853982
    %vm4528 = vcmp.lt.s32.totalorder %v374, 0
    %v4529 = vand.u32 %v374, 2139095040
    %v4530 = vshrl.u32 %v4529, 23
    %v4531 = vsub.s32 %v4530, 127
    %v4532 = vand.u32 2147483647, %v374
    %v4533 = vand.u32 %v4532, 8388607
    %v4534 = vor.u32 %v4533, 8388608
    %v4535 = vsub.s32 0, %v4534
    %v4536 = vadd.s32 %v4531, 1
    %vm4537 = vcmp.gt.s32.totalorder %v4536, 0
    %v4538 = vsel %vm4537, %v4536, 0
    %v4539 = vshrl.u32 %v4538, 5
    %v4540 = vand.u32 %v4538, 31
    %v4541 = vsub.s32 32, %v4540
    %v4542 = vshrl.u32 683565275, %v4541
    %v4543 = vshll.u32 683565275, %v4540
    %v4544 = vshrl.u32 2475754826, %v4541
    %v4545 = vor.u32 %v4543, %v4544
    %v4546 = vshll.u32 2475754826, %v4540
    %v4547 = vshrl.u32 2131351028, %v4541
    %v4548 = vor.u32 %v4546, %v4547
    %v4549 = vshll.u32 2131351028, %v4540
    %v4550 = vshrl.u32 2102212464, %v4541
    %v4551 = vor.u32 %v4549, %v4550
    %v4552 = vshll.u32 2102212464, %v4540
    %v4553 = vshrl.u32 920167782, %v4541
    %v4554 = vor.u32 %v4552, %v4553
    %v4555 = vshll.u32 920167782, %v4540
    %v4556 = vshrl.u32 1326507024, %v4541
    %v4557 = vor.u32 %v4555, %v4556
    %vm4558 = vcmp.lt.s32.totalorder %v4539, 1
    %vm4559 = vcmp.lt.s32.totalorder %v4539, 2
    %vm4560 = vcmp.lt.s32.totalorder %v4539, 3
    %vm4561 = vcmp.lt.s32.totalorder %v4539, 4
    %v4562 = vsel %vm4558, %v4542, %v4545
    %v4563 = vsel %vm4561, %v4551, 2102212464
    %v4564 = vsel %vm4560, %v4548, %v4563
    %v4565 = vsel %vm4559, %v4562, %v4564
    %v4566 = vsel %vm4558, %v4545, %v4548
    %v4567 = vsel %vm4561, %v4554, 920167782
    %v4568 = vsel %vm4560, %v4551, %v4567
    %v4569 = vsel %vm4559, %v4566, %v4568
    %v4570 = vsel %vm4558, %v4548, %v4551
    %v4571 = vsel %vm4561, %v4557, 1326507024
    %v4572 = vsel %vm4560, %v4554, %v4571
    %v4573 = vsel %vm4559, %v4570, %v4572
    %v4574 = vshll.u32 %v4534, 8
    %v4575 = vmul.u32.u64.compose %v4574, %v4573
    %v4576 = vextract.low.u32 %v4575
    %v4577 = vextract.high.u32 %v4575
    %v4578 = vmul.u32.u64.compose %v4574, %v4569
    %v4579 = vextract.low.u32 %v4578
    %v4580 = vextract.high.u32 %v4578
    %v4581 = vmul.u32 %v4574, %v4565
    %v4582 = vadd.s32 %v4577, %v4579
    %vm4583 = vc.u32 %v4577, %v4579
    %v4584 = vadd.s32 %v4580, 1
    %v4585 = vsel %vm4583, %v4584, %v4580
    %v4586 = vadd.s32 %v4581, %v4585
    %v4587 = vadd.s32 %v4586, 536870912
    %v4588 = vshrl.u32 %v4587, 30
    %v4589 = vshll.u32 %v4588, 30
    %v4590 = vsub.s32 %v4586, %v4589
    %vm4591 = vcmp.lt.s32.totalorder %v4590, 0
    %v4592 = vsub.s32 0, %v4590
    %v4593 = vsel %vm4591, %v4592, %v4590
    %v4594 = vclz %v4593
    %v4595 = vsub.s32 %v4594, 2
    %vm4596 = vcmp.gt.s32.totalorder 0, %v4595
    %v4597 = vsel %vm4596, 0, %v4595
    %v4598 = vsub.s32 32, %v4597
    %v4599 = vshll.u32 %v4590, %v4597
    %v4600 = vshrl.u32 %v4582, %v4598
    %v4601 = vor.u32 %v4599, %v4600
    %v4602 = vsub.s32 4294967266, %v4597
    %v4603 = vadd.s32 %v4602, 127
    %v4604 = vshll.u32 %v4603, 23
    %v4605 = vor.u32 4788187, %v4604
    %v4606 = vand.u32 2147483647, %v4605
    %v4608 = vcvt.s32.f32 %v4601
    %v4609 = vmul.f32 %v4608, %v4606
    %v4610 = vxor.u32 %v4609, 2147483648
    %v4611 = vsel %vm4528, %v4610, %v4609
    %v4612 = vsub.s32 4, %v4588
    %v4613 = vsel %vm4528, %v4612, %v4588
    %v4614 = vsel %vm4527, %v374, %v4611
    %v4615 = vsel %vm4527, 0, %v4613
    %v4616 = vcosq.f32.pop %v4614
    %v4617 = vsinq.f32.pop %v4614
    %vm4618 = vweird.f32 %v374
    %v4619 = vadd.s32 %v4615, 3
    %v4620 = vand.u32 %v4619, 3
    %vm4621 = vcmp.lt.s32.totalorder %v4620, 2
    %vm4622 = vcmp.eq.s32.totalorder %v4620, 0
    %v4623 = vxor.u32 %v4617, 2147483648
    %v4624 = vsel %vm4622, %v4616, %v4623
    %vm4625 = vcmp.eq.s32.totalorder %v4620, 2
    %v4626 = vxor.u32 %v4616, 2147483648
    %v4627 = vsel %vm4625, %v4626, %v4617
    %v4628 = vsel %vm4621, %v4624, %v4627
    %v4629 = vsel %vm4618, nan, %v4628
    %v4630 = vand.u32 2147483647, %v375
    %vm4631 = vcmp.le.f32.partialorder %v4630, 0.7853982
    %vm4632 = vcmp.lt.s32.totalorder %v375, 0
    %v4633 = vand.u32 %v375, 2139095040
    %v4634 = vshrl.u32 %v4633, 23
    %v4635 = vsub.s32 %v4634, 127
    %v4636 = vand.u32 2147483647, %v375
    %v4637 = vand.u32 %v4636, 8388607
    %v4638 = vor.u32 %v4637, 8388608
    %v4639 = vsub.s32 0, %v4638
    %v4640 = vadd.s32 %v4635, 1
    %vm4641 = vcmp.gt.s32.totalorder %v4640, 0
    %v4642 = vsel %vm4641, %v4640, 0
    %v4643 = vshrl.u32 %v4642, 5
    %v4644 = vand.u32 %v4642, 31
    %v4645 = vsub.s32 32, %v4644
    %v4646 = vshrl.u32 683565275, %v4645
    %v4647 = vshll.u32 683565275, %v4644
    %v4648 = vshrl.u32 2475754826, %v4645
    %v4649 = vor.u32 %v4647, %v4648
    %v4650 = vshll.u32 2475754826, %v4644
    %v4651 = vshrl.u32 2131351028, %v4645
    %v4652 = vor.u32 %v4650, %v4651
    %v4653 = vshll.u32 2131351028, %v4644
    %v4654 = vshrl.u32 2102212464, %v4645
    %v4655 = vor.u32 %v4653, %v4654
    %v4656 = vshll.u32 2102212464, %v4644
    %v4657 = vshrl.u32 920167782, %v4645
    %v4658 = vor.u32 %v4656, %v4657
    %v4659 = vshll.u32 920167782, %v4644
    %v4660 = vshrl.u32 1326507024, %v4645
    %v4661 = vor.u32 %v4659, %v4660
    %vm4662 = vcmp.lt.s32.totalorder %v4643, 1
    %vm4663 = vcmp.lt.s32.totalorder %v4643, 2
    %vm4664 = vcmp.lt.s32.totalorder %v4643, 3
    %vm4665 = vcmp.lt.s32.totalorder %v4643, 4
    %v4666 = vsel %vm4662, %v4646, %v4649
    %v4667 = vsel %vm4665, %v4655, 2102212464
    %v4668 = vsel %vm4664, %v4652, %v4667
    %v4669 = vsel %vm4663, %v4666, %v4668
    %v4670 = vsel %vm4662, %v4649, %v4652
    %v4671 = vsel %vm4665, %v4658, 920167782
    %v4672 = vsel %vm4664, %v4655, %v4671
    %v4673 = vsel %vm4663, %v4670, %v4672
    %v4674 = vsel %vm4662, %v4652, %v4655
    %v4675 = vsel %vm4665, %v4661, 1326507024
    %v4676 = vsel %vm4664, %v4658, %v4675
    %v4677 = vsel %vm4663, %v4674, %v4676
    %v4678 = vshll.u32 %v4638, 8
    %v4679 = vmul.u32.u64.compose %v4678, %v4677
    %v4680 = vextract.low.u32 %v4679
    %v4681 = vextract.high.u32 %v4679
    %v4682 = vmul.u32.u64.compose %v4678, %v4673
    %v4683 = vextract.low.u32 %v4682
    %v4684 = vextract.high.u32 %v4682
    %v4685 = vmul.u32 %v4678, %v4669
    %v4686 = vadd.s32 %v4681, %v4683
    %vm4687 = vc.u32 %v4681, %v4683
    %v4688 = vadd.s32 %v4684, 1
    %v4689 = vsel %vm4687, %v4688, %v4684
    %v4690 = vadd.s32 %v4685, %v4689
    %v4691 = vadd.s32 %v4690, 536870912
    %v4692 = vshrl.u32 %v4691, 30
    %v4693 = vshll.u32 %v4692, 30
    %v4694 = vsub.s32 %v4690, %v4693
    %vm4695 = vcmp.lt.s32.totalorder %v4694, 0
    %v4696 = vsub.s32 0, %v4694
    %v4697 = vsel %vm4695, %v4696, %v4694
    %v4698 = vclz %v4697
    %v4699 = vsub.s32 %v4698, 2
    %vm4700 = vcmp.gt.s32.totalorder 0, %v4699
    %v4701 = vsel %vm4700, 0, %v4699
    %v4702 = vsub.s32 32, %v4701
    %v4703 = vshll.u32 %v4694, %v4701
    %v4704 = vshrl.u32 %v4686, %v4702
    %v4705 = vor.u32 %v4703, %v4704
    %v4706 = vsub.s32 4294967266, %v4701
    %v4707 = vadd.s32 %v4706, 127
    %v4708 = vshll.u32 %v4707, 23
    %v4709 = vor.u32 4788187, %v4708
    %v4710 = vand.u32 2147483647, %v4709
    %v4712 = vcvt.s32.f32 %v4705
    %v4713 = vmul.f32 %v4712, %v4710
    %v4714 = vxor.u32 %v4713, 2147483648
    %v4715 = vsel %vm4632, %v4714, %v4713
    %v4716 = vsub.s32 4, %v4692
    %v4717 = vsel %vm4632, %v4716, %v4692
    %v4718 = vsel %vm4631, %v375, %v4715
    %v4719 = vsel %vm4631, 0, %v4717
    %v4720 = vcosq.f32.pop %v4718
    %v4721 = vsinq.f32.pop %v4718
    %vm4722 = vweird.f32 %v375
    %v4723 = vadd.s32 %v4719, 3
    %v4724 = vand.u32 %v4723, 3
    %vm4725 = vcmp.lt.s32.totalorder %v4724, 2
    %vm4726 = vcmp.eq.s32.totalorder %v4724, 0
    %v4727 = vxor.u32 %v4721, 2147483648
    %v4728 = vsel %vm4726, %v4720, %v4727
    %vm4729 = vcmp.eq.s32.totalorder %v4724, 2
    %v4730 = vxor.u32 %v4720, 2147483648
    %v4731 = vsel %vm4729, %v4730, %v4721
    %v4732 = vsel %vm4725, %v4728, %v4731
    %v4733 = vsel %vm4722, nan, %v4732
    %v4734 = vand.u32 2147483647, %v376
    %vm4735 = vcmp.le.f32.partialorder %v4734, 0.7853982
    %vm4736 = vcmp.lt.s32.totalorder %v376, 0
    %v4737 = vand.u32 %v376, 2139095040
    %v4738 = vshrl.u32 %v4737, 23
    %v4739 = vsub.s32 %v4738, 127
    %v4740 = vand.u32 2147483647, %v376
    %v4741 = vand.u32 %v4740, 8388607
    %v4742 = vor.u32 %v4741, 8388608
    %v4743 = vsub.s32 0, %v4742
    %v4744 = vadd.s32 %v4739, 1
    %vm4745 = vcmp.gt.s32.totalorder %v4744, 0
    %v4746 = vsel %vm4745, %v4744, 0
    %v4747 = vshrl.u32 %v4746, 5
    %v4748 = vand.u32 %v4746, 31
    %v4749 = vsub.s32 32, %v4748
    %v4750 = vshrl.u32 683565275, %v4749
    %v4751 = vshll.u32 683565275, %v4748
    %v4752 = vshrl.u32 2475754826, %v4749
    %v4753 = vor.u32 %v4751, %v4752
    %v4754 = vshll.u32 2475754826, %v4748
    %v4755 = vshrl.u32 2131351028, %v4749
    %v4756 = vor.u32 %v4754, %v4755
    %v4757 = vshll.u32 2131351028, %v4748
    %v4758 = vshrl.u32 2102212464, %v4749
    %v4759 = vor.u32 %v4757, %v4758
    %v4760 = vshll.u32 2102212464, %v4748
    %v4761 = vshrl.u32 920167782, %v4749
    %v4762 = vor.u32 %v4760, %v4761
    %v4763 = vshll.u32 920167782, %v4748
    %v4764 = vshrl.u32 1326507024, %v4749
    %v4765 = vor.u32 %v4763, %v4764
    %vm4766 = vcmp.lt.s32.totalorder %v4747, 1
    %vm4767 = vcmp.lt.s32.totalorder %v4747, 2
    %vm4768 = vcmp.lt.s32.totalorder %v4747, 3
    %vm4769 = vcmp.lt.s32.totalorder %v4747, 4
    %v4770 = vsel %vm4766, %v4750, %v4753
    %v4771 = vsel %vm4769, %v4759, 2102212464
    %v4772 = vsel %vm4768, %v4756, %v4771
    %v4773 = vsel %vm4767, %v4770, %v4772
    %v4774 = vsel %vm4766, %v4753, %v4756
    %v4775 = vsel %vm4769, %v4762, 920167782
    %v4776 = vsel %vm4768, %v4759, %v4775
    %v4777 = vsel %vm4767, %v4774, %v4776
    %v4778 = vsel %vm4766, %v4756, %v4759
    %v4779 = vsel %vm4769, %v4765, 1326507024
    %v4780 = vsel %vm4768, %v4762, %v4779
    %v4781 = vsel %vm4767, %v4778, %v4780
    %v4782 = vshll.u32 %v4742, 8
    %v4783 = vmul.u32.u64.compose %v4782, %v4781
    %v4784 = vextract.low.u32 %v4783
    %v4785 = vextract.high.u32 %v4783
    %v4786 = vmul.u32.u64.compose %v4782, %v4777
    %v4787 = vextract.low.u32 %v4786
    %v4788 = vextract.high.u32 %v4786
    %v4789 = vmul.u32 %v4782, %v4773
    %v4790 = vadd.s32 %v4785, %v4787
    %vm4791 = vc.u32 %v4785, %v4787
    %v4792 = vadd.s32 %v4788, 1
    %v4793 = vsel %vm4791, %v4792, %v4788
    %v4794 = vadd.s32 %v4789, %v4793
    %v4795 = vadd.s32 %v4794, 536870912
    %v4796 = vshrl.u32 %v4795, 30
    %v4797 = vshll.u32 %v4796, 30
    %v4798 = vsub.s32 %v4794, %v4797
    %vm4799 = vcmp.lt.s32.totalorder %v4798, 0
    %v4800 = vsub.s32 0, %v4798
    %v4801 = vsel %vm4799, %v4800, %v4798
    %v4802 = vclz %v4801
    %v4803 = vsub.s32 %v4802, 2
    %vm4804 = vcmp.gt.s32.totalorder 0, %v4803
    %v4805 = vsel %vm4804, 0, %v4803
    %v4806 = vsub.s32 32, %v4805
    %v4807 = vshll.u32 %v4798, %v4805
    %v4808 = vshrl.u32 %v4790, %v4806
    %v4809 = vor.u32 %v4807, %v4808
    %v4810 = vsub.s32 4294967266, %v4805
    %v4811 = vadd.s32 %v4810, 127
    %v4812 = vshll.u32 %v4811, 23
    %v4813 = vor.u32 4788187, %v4812
    %v4814 = vand.u32 2147483647, %v4813
    %v4816 = vcvt.s32.f32 %v4809
    %v4817 = vmul.f32 %v4816, %v4814
    %v4818 = vxor.u32 %v4817, 2147483648
    %v4819 = vsel %vm4736, %v4818, %v4817
    %v4820 = vsub.s32 4, %v4796
    %v4821 = vsel %vm4736, %v4820, %v4796
    %v4822 = vsel %vm4735, %v376, %v4819
    %v4823 = vsel %vm4735, 0, %v4821
    %v4824 = vcosq.f32.pop %v4822
    %v4825 = vsinq.f32.pop %v4822
    %vm4826 = vweird.f32 %v376
    %v4827 = vadd.s32 %v4823, 3
    %v4828 = vand.u32 %v4827, 3
    %vm4829 = vcmp.lt.s32.totalorder %v4828, 2
    %vm4830 = vcmp.eq.s32.totalorder %v4828, 0
    %v4831 = vxor.u32 %v4825, 2147483648
    %v4832 = vsel %vm4830, %v4824, %v4831
    %vm4833 = vcmp.eq.s32.totalorder %v4828, 2
    %v4834 = vxor.u32 %v4824, 2147483648
    %v4835 = vsel %vm4833, %v4834, %v4825
    %v4836 = vsel %vm4829, %v4832, %v4835
    %v4837 = vsel %vm4826, nan, %v4836
    %v4838 = vand.u32 2147483647, %v377
    %vm4839 = vcmp.le.f32.partialorder %v4838, 0.7853982
    %vm4840 = vcmp.lt.s32.totalorder %v377, 0
    %v4841 = vand.u32 %v377, 2139095040
    %v4842 = vshrl.u32 %v4841, 23
    %v4843 = vsub.s32 %v4842, 127
    %v4844 = vand.u32 2147483647, %v377
    %v4845 = vand.u32 %v4844, 8388607
    %v4846 = vor.u32 %v4845, 8388608
    %v4847 = vsub.s32 0, %v4846
    %v4848 = vadd.s32 %v4843, 1
    %vm4849 = vcmp.gt.s32.totalorder %v4848, 0
    %v4850 = vsel %vm4849, %v4848, 0
    %v4851 = vshrl.u32 %v4850, 5
    %v4852 = vand.u32 %v4850, 31
    %v4853 = vsub.s32 32, %v4852
    %v4854 = vshrl.u32 683565275, %v4853
    %v4855 = vshll.u32 683565275, %v4852
    %v4856 = vshrl.u32 2475754826, %v4853
    %v4857 = vor.u32 %v4855, %v4856
    %v4858 = vshll.u32 2475754826, %v4852
    %v4859 = vshrl.u32 2131351028, %v4853
    %v4860 = vor.u32 %v4858, %v4859
    %v4861 = vshll.u32 2131351028, %v4852
    %v4862 = vshrl.u32 2102212464, %v4853
    %v4863 = vor.u32 %v4861, %v4862
    %v4864 = vshll.u32 2102212464, %v4852
    %v4865 = vshrl.u32 920167782, %v4853
    %v4866 = vor.u32 %v4864, %v4865
    %v4867 = vshll.u32 920167782, %v4852
    %v4868 = vshrl.u32 1326507024, %v4853
    %v4869 = vor.u32 %v4867, %v4868
    %vm4870 = vcmp.lt.s32.totalorder %v4851, 1
    %vm4871 = vcmp.lt.s32.totalorder %v4851, 2
    %vm4872 = vcmp.lt.s32.totalorder %v4851, 3
    %vm4873 = vcmp.lt.s32.totalorder %v4851, 4
    %v4874 = vsel %vm4870, %v4854, %v4857
    %v4875 = vsel %vm4873, %v4863, 2102212464
    %v4876 = vsel %vm4872, %v4860, %v4875
    %v4877 = vsel %vm4871, %v4874, %v4876
    %v4878 = vsel %vm4870, %v4857, %v4860
    %v4879 = vsel %vm4873, %v4866, 920167782
    %v4880 = vsel %vm4872, %v4863, %v4879
    %v4881 = vsel %vm4871, %v4878, %v4880
    %v4882 = vsel %vm4870, %v4860, %v4863
    %v4883 = vsel %vm4873, %v4869, 1326507024
    %v4884 = vsel %vm4872, %v4866, %v4883
    %v4885 = vsel %vm4871, %v4882, %v4884
    %v4886 = vshll.u32 %v4846, 8
    %v4887 = vmul.u32.u64.compose %v4886, %v4885
    %v4888 = vextract.low.u32 %v4887
    %v4889 = vextract.high.u32 %v4887
    %v4890 = vmul.u32.u64.compose %v4886, %v4881
    %v4891 = vextract.low.u32 %v4890
    %v4892 = vextract.high.u32 %v4890
    %v4893 = vmul.u32 %v4886, %v4877
    %v4894 = vadd.s32 %v4889, %v4891
    %vm4895 = vc.u32 %v4889, %v4891
    %v4896 = vadd.s32 %v4892, 1
    %v4897 = vsel %vm4895, %v4896, %v4892
    %v4898 = vadd.s32 %v4893, %v4897
    %v4899 = vadd.s32 %v4898, 536870912
    %v4900 = vshrl.u32 %v4899, 30
    %v4901 = vshll.u32 %v4900, 30
    %v4902 = vsub.s32 %v4898, %v4901
    %vm4903 = vcmp.lt.s32.totalorder %v4902, 0
    %v4904 = vsub.s32 0, %v4902
    %v4905 = vsel %vm4903, %v4904, %v4902
    %v4906 = vclz %v4905
    %v4907 = vsub.s32 %v4906, 2
    %vm4908 = vcmp.gt.s32.totalorder 0, %v4907
    %v4909 = vsel %vm4908, 0, %v4907
    %v4910 = vsub.s32 32, %v4909
    %v4911 = vshll.u32 %v4902, %v4909
    %v4912 = vshrl.u32 %v4894, %v4910
    %v4913 = vor.u32 %v4911, %v4912
    %v4914 = vsub.s32 4294967266, %v4909
    %v4915 = vadd.s32 %v4914, 127
    %v4916 = vshll.u32 %v4915, 23
    %v4917 = vor.u32 4788187, %v4916
    %v4918 = vand.u32 2147483647, %v4917
    %v4920 = vcvt.s32.f32 %v4913
    %v4921 = vmul.f32 %v4920, %v4918
    %v4922 = vxor.u32 %v4921, 2147483648
    %v4923 = vsel %vm4840, %v4922, %v4921
    %v4924 = vsub.s32 4, %v4900
    %v4925 = vsel %vm4840, %v4924, %v4900
    %v4926 = vsel %vm4839, %v377, %v4923
    %v4927 = vsel %vm4839, 0, %v4925
    %v4928 = vcosq.f32.pop %v4926
    %v4929 = vsinq.f32.pop %v4926
    %vm4930 = vweird.f32 %v377
    %v4931 = vadd.s32 %v4927, 3
    %v4932 = vand.u32 %v4931, 3
    %vm4933 = vcmp.lt.s32.totalorder %v4932, 2
    %vm4934 = vcmp.eq.s32.totalorder %v4932, 0
    %v4935 = vxor.u32 %v4929, 2147483648
    %v4936 = vsel %vm4934, %v4928, %v4935
    %vm4937 = vcmp.eq.s32.totalorder %v4932, 2
    %v4938 = vxor.u32 %v4928, 2147483648
    %v4939 = vsel %vm4937, %v4938, %v4929
    %v4940 = vsel %vm4933, %v4936, %v4939
    %v4941 = vsel %vm4930, nan, %v4940
    %v4942 = vand.u32 2147483647, %v378
    %vm4943 = vcmp.le.f32.partialorder %v4942, 0.7853982
    %vm4944 = vcmp.lt.s32.totalorder %v378, 0
    %v4945 = vand.u32 %v378, 2139095040
    %v4946 = vshrl.u32 %v4945, 23
    %v4947 = vsub.s32 %v4946, 127
    %v4948 = vand.u32 2147483647, %v378
    %v4949 = vand.u32 %v4948, 8388607
    %v4950 = vor.u32 %v4949, 8388608
    %v4951 = vsub.s32 0, %v4950
    %v4952 = vadd.s32 %v4947, 1
    %vm4953 = vcmp.gt.s32.totalorder %v4952, 0
    %v4954 = vsel %vm4953, %v4952, 0
    %v4955 = vshrl.u32 %v4954, 5
    %v4956 = vand.u32 %v4954, 31
    %v4957 = vsub.s32 32, %v4956
    %v4958 = vshrl.u32 683565275, %v4957
    %v4959 = vshll.u32 683565275, %v4956
    %v4960 = vshrl.u32 2475754826, %v4957
    %v4961 = vor.u32 %v4959, %v4960
    %v4962 = vshll.u32 2475754826, %v4956
    %v4963 = vshrl.u32 2131351028, %v4957
    %v4964 = vor.u32 %v4962, %v4963
    %v4965 = vshll.u32 2131351028, %v4956
    %v4966 = vshrl.u32 2102212464, %v4957
    %v4967 = vor.u32 %v4965, %v4966
    %v4968 = vshll.u32 2102212464, %v4956
    %v4969 = vshrl.u32 920167782, %v4957
    %v4970 = vor.u32 %v4968, %v4969
    %v4971 = vshll.u32 920167782, %v4956
    %v4972 = vshrl.u32 1326507024, %v4957
    %v4973 = vor.u32 %v4971, %v4972
    %vm4974 = vcmp.lt.s32.totalorder %v4955, 1
    %vm4975 = vcmp.lt.s32.totalorder %v4955, 2
    %vm4976 = vcmp.lt.s32.totalorder %v4955, 3
    %vm4977 = vcmp.lt.s32.totalorder %v4955, 4
    %v4978 = vsel %vm4974, %v4958, %v4961
    %v4979 = vsel %vm4977, %v4967, 2102212464
    %v4980 = vsel %vm4976, %v4964, %v4979
    %v4981 = vsel %vm4975, %v4978, %v4980
    %v4982 = vsel %vm4974, %v4961, %v4964
    %v4983 = vsel %vm4977, %v4970, 920167782
    %v4984 = vsel %vm4976, %v4967, %v4983
    %v4985 = vsel %vm4975, %v4982, %v4984
    %v4986 = vsel %vm4974, %v4964, %v4967
    %v4987 = vsel %vm4977, %v4973, 1326507024
    %v4988 = vsel %vm4976, %v4970, %v4987
    %v4989 = vsel %vm4975, %v4986, %v4988
    %v4990 = vshll.u32 %v4950, 8
    %v4991 = vmul.u32.u64.compose %v4990, %v4989
    %v4992 = vextract.low.u32 %v4991
    %v4993 = vextract.high.u32 %v4991
    %v4994 = vmul.u32.u64.compose %v4990, %v4985
    %v4995 = vextract.low.u32 %v4994
    %v4996 = vextract.high.u32 %v4994
    %v4997 = vmul.u32 %v4990, %v4981
    %v4998 = vadd.s32 %v4993, %v4995
    %vm4999 = vc.u32 %v4993, %v4995
    %v5000 = vadd.s32 %v4996, 1
    %v5001 = vsel %vm4999, %v5000, %v4996
    %v5002 = vadd.s32 %v4997, %v5001
    %v5003 = vadd.s32 %v5002, 536870912
    %v5004 = vshrl.u32 %v5003, 30
    %v5005 = vshll.u32 %v5004, 30
    %v5006 = vsub.s32 %v5002, %v5005
    %vm5007 = vcmp.lt.s32.totalorder %v5006, 0
    %v5008 = vsub.s32 0, %v5006
    %v5009 = vsel %vm5007, %v5008, %v5006
    %v5010 = vclz %v5009
    %v5011 = vsub.s32 %v5010, 2
    %vm5012 = vcmp.gt.s32.totalorder 0, %v5011
    %v5013 = vsel %vm5012, 0, %v5011
    %v5014 = vsub.s32 32, %v5013
    %v5015 = vshll.u32 %v5006, %v5013
    %v5016 = vshrl.u32 %v4998, %v5014
    %v5017 = vor.u32 %v5015, %v5016
    %v5018 = vsub.s32 4294967266, %v5013
    %v5019 = vadd.s32 %v5018, 127
    %v5020 = vshll.u32 %v5019, 23
    %v5021 = vor.u32 4788187, %v5020
    %v5022 = vand.u32 2147483647, %v5021
    %v5024 = vcvt.s32.f32 %v5017
    %v5025 = vmul.f32 %v5024, %v5022
    %v5026 = vxor.u32 %v5025, 2147483648
    %v5027 = vsel %vm4944, %v5026, %v5025
    %v5028 = vsub.s32 4, %v5004
    %v5029 = vsel %vm4944, %v5028, %v5004
    %v5030 = vsel %vm4943, %v378, %v5027
    %v5031 = vsel %vm4943, 0, %v5029
    %v5032 = vcosq.f32.pop %v5030
    %v5033 = vsinq.f32.pop %v5030
    %vm5034 = vweird.f32 %v378
    %v5035 = vadd.s32 %v5031, 3
    %v5036 = vand.u32 %v5035, 3
    %vm5037 = vcmp.lt.s32.totalorder %v5036, 2
    %vm5038 = vcmp.eq.s32.totalorder %v5036, 0
    %v5039 = vxor.u32 %v5033, 2147483648
    %v5040 = vsel %vm5038, %v5032, %v5039
    %vm5041 = vcmp.eq.s32.totalorder %v5036, 2
    %v5042 = vxor.u32 %v5032, 2147483648
    %v5043 = vsel %vm5041, %v5042, %v5033
    %v5044 = vsel %vm5037, %v5040, %v5043
    %v5045 = vsel %vm5034, nan, %v5044
    %v5046 = vand.u32 2147483647, %v379
    %vm5047 = vcmp.le.f32.partialorder %v5046, 0.7853982
    %vm5048 = vcmp.lt.s32.totalorder %v379, 0
    %v5049 = vand.u32 %v379, 2139095040
    %v5050 = vshrl.u32 %v5049, 23
    %v5051 = vsub.s32 %v5050, 127
    %v5052 = vand.u32 2147483647, %v379
    %v5053 = vand.u32 %v5052, 8388607
    %v5054 = vor.u32 %v5053, 8388608
    %v5055 = vsub.s32 0, %v5054
    %v5056 = vadd.s32 %v5051, 1
    %vm5057 = vcmp.gt.s32.totalorder %v5056, 0
    %v5058 = vsel %vm5057, %v5056, 0
    %v5059 = vshrl.u32 %v5058, 5
    %v5060 = vand.u32 %v5058, 31
    %v5061 = vsub.s32 32, %v5060
    %v5062 = vshrl.u32 683565275, %v5061
    %v5063 = vshll.u32 683565275, %v5060
    %v5064 = vshrl.u32 2475754826, %v5061
    %v5065 = vor.u32 %v5063, %v5064
    %v5066 = vshll.u32 2475754826, %v5060
    %v5067 = vshrl.u32 2131351028, %v5061
    %v5068 = vor.u32 %v5066, %v5067
    %v5069 = vshll.u32 2131351028, %v5060
    %v5070 = vshrl.u32 2102212464, %v5061
    %v5071 = vor.u32 %v5069, %v5070
    %v5072 = vshll.u32 2102212464, %v5060
    %v5073 = vshrl.u32 920167782, %v5061
    %v5074 = vor.u32 %v5072, %v5073
    %v5075 = vshll.u32 920167782, %v5060
    %v5076 = vshrl.u32 1326507024, %v5061
    %v5077 = vor.u32 %v5075, %v5076
    %vm5078 = vcmp.lt.s32.totalorder %v5059, 1
    %vm5079 = vcmp.lt.s32.totalorder %v5059, 2
    %vm5080 = vcmp.lt.s32.totalorder %v5059, 3
    %vm5081 = vcmp.lt.s32.totalorder %v5059, 4
    %v5082 = vsel %vm5078, %v5062, %v5065
    %v5083 = vsel %vm5081, %v5071, 2102212464
    %v5084 = vsel %vm5080, %v5068, %v5083
    %v5085 = vsel %vm5079, %v5082, %v5084
    %v5086 = vsel %vm5078, %v5065, %v5068
    %v5087 = vsel %vm5081, %v5074, 920167782
    %v5088 = vsel %vm5080, %v5071, %v5087
    %v5089 = vsel %vm5079, %v5086, %v5088
    %v5090 = vsel %vm5078, %v5068, %v5071
    %v5091 = vsel %vm5081, %v5077, 1326507024
    %v5092 = vsel %vm5080, %v5074, %v5091
    %v5093 = vsel %vm5079, %v5090, %v5092
    %v5094 = vshll.u32 %v5054, 8
    %v5095 = vmul.u32.u64.compose %v5094, %v5093
    %v5096 = vextract.low.u32 %v5095
    %v5097 = vextract.high.u32 %v5095
    %v5098 = vmul.u32.u64.compose %v5094, %v5089
    %v5099 = vextract.low.u32 %v5098
    %v5100 = vextract.high.u32 %v5098
    %v5101 = vmul.u32 %v5094, %v5085
    %v5102 = vadd.s32 %v5097, %v5099
    %vm5103 = vc.u32 %v5097, %v5099
    %v5104 = vadd.s32 %v5100, 1
    %v5105 = vsel %vm5103, %v5104, %v5100
    %v5106 = vadd.s32 %v5101, %v5105
    %v5107 = vadd.s32 %v5106, 536870912
    %v5108 = vshrl.u32 %v5107, 30
    %v5109 = vshll.u32 %v5108, 30
    %v5110 = vsub.s32 %v5106, %v5109
    %vm5111 = vcmp.lt.s32.totalorder %v5110, 0
    %v5112 = vsub.s32 0, %v5110
    %v5113 = vsel %vm5111, %v5112, %v5110
    %v5114 = vclz %v5113
    %v5115 = vsub.s32 %v5114, 2
    %vm5116 = vcmp.gt.s32.totalorder 0, %v5115
    %v5117 = vsel %vm5116, 0, %v5115
    %v5118 = vsub.s32 32, %v5117
    %v5119 = vshll.u32 %v5110, %v5117
    %v5120 = vshrl.u32 %v5102, %v5118
    %v5121 = vor.u32 %v5119, %v5120
    %v5122 = vsub.s32 4294967266, %v5117
    %v5123 = vadd.s32 %v5122, 127
    %v5124 = vshll.u32 %v5123, 23
    %v5125 = vor.u32 4788187, %v5124
    %v5126 = vand.u32 2147483647, %v5125
    %v5128 = vcvt.s32.f32 %v5121
    %v5129 = vmul.f32 %v5128, %v5126
    %v5130 = vxor.u32 %v5129, 2147483648
    %v5131 = vsel %vm5048, %v5130, %v5129
    %v5132 = vsub.s32 4, %v5108
    %v5133 = vsel %vm5048, %v5132, %v5108
    %v5134 = vsel %vm5047, %v379, %v5131
    %v5135 = vsel %vm5047, 0, %v5133
    %v5136 = vcosq.f32.pop %v5134
    %v5137 = vsinq.f32.pop %v5134
    %vm5138 = vweird.f32 %v379
    %v5139 = vadd.s32 %v5135, 3
    %v5140 = vand.u32 %v5139, 3
    %vm5141 = vcmp.lt.s32.totalorder %v5140, 2
    %vm5142 = vcmp.eq.s32.totalorder %v5140, 0
    %v5143 = vxor.u32 %v5137, 2147483648
    %v5144 = vsel %vm5142, %v5136, %v5143
    %vm5145 = vcmp.eq.s32.totalorder %v5140, 2
    %v5146 = vxor.u32 %v5136, 2147483648
    %v5147 = vsel %vm5145, %v5146, %v5137
    %v5148 = vsel %vm5141, %v5144, %v5147
    %v5149 = vsel %vm5138, nan, %v5148
    %v5150 = vand.u32 2147483647, %v380
    %vm5151 = vcmp.le.f32.partialorder %v5150, 0.7853982
    %vm5152 = vcmp.lt.s32.totalorder %v380, 0
    %v5153 = vand.u32 %v380, 2139095040
    %v5154 = vshrl.u32 %v5153, 23
    %v5155 = vsub.s32 %v5154, 127
    %v5156 = vand.u32 2147483647, %v380
    %v5157 = vand.u32 %v5156, 8388607
    %v5158 = vor.u32 %v5157, 8388608
    %v5159 = vsub.s32 0, %v5158
    %v5160 = vadd.s32 %v5155, 1
    %vm5161 = vcmp.gt.s32.totalorder %v5160, 0
    %v5162 = vsel %vm5161, %v5160, 0
    %v5163 = vshrl.u32 %v5162, 5
    %v5164 = vand.u32 %v5162, 31
    %v5165 = vsub.s32 32, %v5164
    %v5166 = vshrl.u32 683565275, %v5165
    %v5167 = vshll.u32 683565275, %v5164
    %v5168 = vshrl.u32 2475754826, %v5165
    %v5169 = vor.u32 %v5167, %v5168
    %v5170 = vshll.u32 2475754826, %v5164
    %v5171 = vshrl.u32 2131351028, %v5165
    %v5172 = vor.u32 %v5170, %v5171
    %v5173 = vshll.u32 2131351028, %v5164
    %v5174 = vshrl.u32 2102212464, %v5165
    %v5175 = vor.u32 %v5173, %v5174
    %v5176 = vshll.u32 2102212464, %v5164
    %v5177 = vshrl.u32 920167782, %v5165
    %v5178 = vor.u32 %v5176, %v5177
    %v5179 = vshll.u32 920167782, %v5164
    %v5180 = vshrl.u32 1326507024, %v5165
    %v5181 = vor.u32 %v5179, %v5180
    %vm5182 = vcmp.lt.s32.totalorder %v5163, 1
    %vm5183 = vcmp.lt.s32.totalorder %v5163, 2
    %vm5184 = vcmp.lt.s32.totalorder %v5163, 3
    %vm5185 = vcmp.lt.s32.totalorder %v5163, 4
    %v5186 = vsel %vm5182, %v5166, %v5169
    %v5187 = vsel %vm5185, %v5175, 2102212464
    %v5188 = vsel %vm5184, %v5172, %v5187
    %v5189 = vsel %vm5183, %v5186, %v5188
    %v5190 = vsel %vm5182, %v5169, %v5172
    %v5191 = vsel %vm5185, %v5178, 920167782
    %v5192 = vsel %vm5184, %v5175, %v5191
    %v5193 = vsel %vm5183, %v5190, %v5192
    %v5194 = vsel %vm5182, %v5172, %v5175
    %v5195 = vsel %vm5185, %v5181, 1326507024
    %v5196 = vsel %vm5184, %v5178, %v5195
    %v5197 = vsel %vm5183, %v5194, %v5196
    %v5198 = vshll.u32 %v5158, 8
    %v5199 = vmul.u32.u64.compose %v5198, %v5197
    %v5200 = vextract.low.u32 %v5199
    %v5201 = vextract.high.u32 %v5199
    %v5202 = vmul.u32.u64.compose %v5198, %v5193
    %v5203 = vextract.low.u32 %v5202
    %v5204 = vextract.high.u32 %v5202
    %v5205 = vmul.u32 %v5198, %v5189
    %v5206 = vadd.s32 %v5201, %v5203
    %vm5207 = vc.u32 %v5201, %v5203
    %v5208 = vadd.s32 %v5204, 1
    %v5209 = vsel %vm5207, %v5208, %v5204
    %v5210 = vadd.s32 %v5205, %v5209
    %v5211 = vadd.s32 %v5210, 536870912
    %v5212 = vshrl.u32 %v5211, 30
    %v5213 = vshll.u32 %v5212, 30
    %v5214 = vsub.s32 %v5210, %v5213
    %vm5215 = vcmp.lt.s32.totalorder %v5214, 0
    %v5216 = vsub.s32 0, %v5214
    %v5217 = vsel %vm5215, %v5216, %v5214
    %v5218 = vclz %v5217
    %v5219 = vsub.s32 %v5218, 2
    %vm5220 = vcmp.gt.s32.totalorder 0, %v5219
    %v5221 = vsel %vm5220, 0, %v5219
    %v5222 = vsub.s32 32, %v5221
    %v5223 = vshll.u32 %v5214, %v5221
    %v5224 = vshrl.u32 %v5206, %v5222
    %v5225 = vor.u32 %v5223, %v5224
    %v5226 = vsub.s32 4294967266, %v5221
    %v5227 = vadd.s32 %v5226, 127
    %v5228 = vshll.u32 %v5227, 23
    %v5229 = vor.u32 4788187, %v5228
    %v5230 = vand.u32 2147483647, %v5229
    %v5232 = vcvt.s32.f32 %v5225
    %v5233 = vmul.f32 %v5232, %v5230
    %v5234 = vxor.u32 %v5233, 2147483648
    %v5235 = vsel %vm5152, %v5234, %v5233
    %v5236 = vsub.s32 4, %v5212
    %v5237 = vsel %vm5152, %v5236, %v5212
    %v5238 = vsel %vm5151, %v380, %v5235
    %v5239 = vsel %vm5151, 0, %v5237
    %v5240 = vcosq.f32.pop %v5238
    %v5241 = vsinq.f32.pop %v5238
    %vm5242 = vweird.f32 %v380
    %v5243 = vadd.s32 %v5239, 3
    %v5244 = vand.u32 %v5243, 3
    %vm5245 = vcmp.lt.s32.totalorder %v5244, 2
    %vm5246 = vcmp.eq.s32.totalorder %v5244, 0
    %v5247 = vxor.u32 %v5241, 2147483648
    %v5248 = vsel %vm5246, %v5240, %v5247
    %vm5249 = vcmp.eq.s32.totalorder %v5244, 2
    %v5250 = vxor.u32 %v5240, 2147483648
    %v5251 = vsel %vm5249, %v5250, %v5241
    %v5252 = vsel %vm5245, %v5248, %v5251
    %v5253 = vsel %vm5242, nan, %v5252
    %v5254 = vand.u32 2147483647, %v381
    %vm5255 = vcmp.le.f32.partialorder %v5254, 0.7853982
    %vm5256 = vcmp.lt.s32.totalorder %v381, 0
    %v5257 = vand.u32 %v381, 2139095040
    %v5258 = vshrl.u32 %v5257, 23
    %v5259 = vsub.s32 %v5258, 127
    %v5260 = vand.u32 2147483647, %v381
    %v5261 = vand.u32 %v5260, 8388607
    %v5262 = vor.u32 %v5261, 8388608
    %v5263 = vsub.s32 0, %v5262
    %v5264 = vadd.s32 %v5259, 1
    %vm5265 = vcmp.gt.s32.totalorder %v5264, 0
    %v5266 = vsel %vm5265, %v5264, 0
    %v5267 = vshrl.u32 %v5266, 5
    %v5268 = vand.u32 %v5266, 31
    %v5269 = vsub.s32 32, %v5268
    %v5270 = vshrl.u32 683565275, %v5269
    %v5271 = vshll.u32 683565275, %v5268
    %v5272 = vshrl.u32 2475754826, %v5269
    %v5273 = vor.u32 %v5271, %v5272
    %v5274 = vshll.u32 2475754826, %v5268
    %v5275 = vshrl.u32 2131351028, %v5269
    %v5276 = vor.u32 %v5274, %v5275
    %v5277 = vshll.u32 2131351028, %v5268
    %v5278 = vshrl.u32 2102212464, %v5269
    %v5279 = vor.u32 %v5277, %v5278
    %v5280 = vshll.u32 2102212464, %v5268
    %v5281 = vshrl.u32 920167782, %v5269
    %v5282 = vor.u32 %v5280, %v5281
    %v5283 = vshll.u32 920167782, %v5268
    %v5284 = vshrl.u32 1326507024, %v5269
    %v5285 = vor.u32 %v5283, %v5284
    %vm5286 = vcmp.lt.s32.totalorder %v5267, 1
    %vm5287 = vcmp.lt.s32.totalorder %v5267, 2
    %vm5288 = vcmp.lt.s32.totalorder %v5267, 3
    %vm5289 = vcmp.lt.s32.totalorder %v5267, 4
    %v5290 = vsel %vm5286, %v5270, %v5273
    %v5291 = vsel %vm5289, %v5279, 2102212464
    %v5292 = vsel %vm5288, %v5276, %v5291
    %v5293 = vsel %vm5287, %v5290, %v5292
    %v5294 = vsel %vm5286, %v5273, %v5276
    %v5295 = vsel %vm5289, %v5282, 920167782
    %v5296 = vsel %vm5288, %v5279, %v5295
    %v5297 = vsel %vm5287, %v5294, %v5296
    %v5298 = vsel %vm5286, %v5276, %v5279
    %v5299 = vsel %vm5289, %v5285, 1326507024
    %v5300 = vsel %vm5288, %v5282, %v5299
    %v5301 = vsel %vm5287, %v5298, %v5300
    %v5302 = vshll.u32 %v5262, 8
    %v5303 = vmul.u32.u64.compose %v5302, %v5301
    %v5304 = vextract.low.u32 %v5303
    %v5305 = vextract.high.u32 %v5303
    %v5306 = vmul.u32.u64.compose %v5302, %v5297
    %v5307 = vextract.low.u32 %v5306
    %v5308 = vextract.high.u32 %v5306
    %v5309 = vmul.u32 %v5302, %v5293
    %v5310 = vadd.s32 %v5305, %v5307
    %vm5311 = vc.u32 %v5305, %v5307
    %v5312 = vadd.s32 %v5308, 1
    %v5313 = vsel %vm5311, %v5312, %v5308
    %v5314 = vadd.s32 %v5309, %v5313
    %v5315 = vadd.s32 %v5314, 536870912
    %v5316 = vshrl.u32 %v5315, 30
    %v5317 = vshll.u32 %v5316, 30
    %v5318 = vsub.s32 %v5314, %v5317
    %vm5319 = vcmp.lt.s32.totalorder %v5318, 0
    %v5320 = vsub.s32 0, %v5318
    %v5321 = vsel %vm5319, %v5320, %v5318
    %v5322 = vclz %v5321
    %v5323 = vsub.s32 %v5322, 2
    %vm5324 = vcmp.gt.s32.totalorder 0, %v5323
    %v5325 = vsel %vm5324, 0, %v5323
    %v5326 = vsub.s32 32, %v5325
    %v5327 = vshll.u32 %v5318, %v5325
    %v5328 = vshrl.u32 %v5310, %v5326
    %v5329 = vor.u32 %v5327, %v5328
    %v5330 = vsub.s32 4294967266, %v5325
    %v5331 = vadd.s32 %v5330, 127
    %v5332 = vshll.u32 %v5331, 23
    %v5333 = vor.u32 4788187, %v5332
    %v5334 = vand.u32 2147483647, %v5333
    %v5336 = vcvt.s32.f32 %v5329
    %v5337 = vmul.f32 %v5336, %v5334
    %v5338 = vxor.u32 %v5337, 2147483648
    %v5339 = vsel %vm5256, %v5338, %v5337
    %v5340 = vsub.s32 4, %v5316
    %v5341 = vsel %vm5256, %v5340, %v5316
    %v5342 = vsel %vm5255, %v381, %v5339
    %v5343 = vsel %vm5255, 0, %v5341
    %v5344 = vcosq.f32.pop %v5342
    %v5345 = vsinq.f32.pop %v5342
    %vm5346 = vweird.f32 %v381
    %v5347 = vadd.s32 %v5343, 3
    %v5348 = vand.u32 %v5347, 3
    %vm5349 = vcmp.lt.s32.totalorder %v5348, 2
    %vm5350 = vcmp.eq.s32.totalorder %v5348, 0
    %v5351 = vxor.u32 %v5345, 2147483648
    %v5352 = vsel %vm5350, %v5344, %v5351
    %vm5353 = vcmp.eq.s32.totalorder %v5348, 2
    %v5354 = vxor.u32 %v5344, 2147483648
    %v5355 = vsel %vm5353, %v5354, %v5345
    %v5356 = vsel %vm5349, %v5352, %v5355
    %v5357 = vsel %vm5346, nan, %v5356
    %v5358 = vand.u32 2147483647, %v382
    %vm5359 = vcmp.le.f32.partialorder %v5358, 0.7853982
    %vm5360 = vcmp.lt.s32.totalorder %v382, 0
    %v5361 = vand.u32 %v382, 2139095040
    %v5362 = vshrl.u32 %v5361, 23
    %v5363 = vsub.s32 %v5362, 127
    %v5364 = vand.u32 2147483647, %v382
    %v5365 = vand.u32 %v5364, 8388607
    %v5366 = vor.u32 %v5365, 8388608
    %v5367 = vsub.s32 0, %v5366
    %v5368 = vadd.s32 %v5363, 1
    %vm5369 = vcmp.gt.s32.totalorder %v5368, 0
    %v5370 = vsel %vm5369, %v5368, 0
    %v5371 = vshrl.u32 %v5370, 5
    %v5372 = vand.u32 %v5370, 31
    %v5373 = vsub.s32 32, %v5372
    %v5374 = vshrl.u32 683565275, %v5373
    %v5375 = vshll.u32 683565275, %v5372
    %v5376 = vshrl.u32 2475754826, %v5373
    %v5377 = vor.u32 %v5375, %v5376
    %v5378 = vshll.u32 2475754826, %v5372
    %v5379 = vshrl.u32 2131351028, %v5373
    %v5380 = vor.u32 %v5378, %v5379
    %v5381 = vshll.u32 2131351028, %v5372
    %v5382 = vshrl.u32 2102212464, %v5373
    %v5383 = vor.u32 %v5381, %v5382
    %v5384 = vshll.u32 2102212464, %v5372
    %v5385 = vshrl.u32 920167782, %v5373
    %v5386 = vor.u32 %v5384, %v5385
    %v5387 = vshll.u32 920167782, %v5372
    %v5388 = vshrl.u32 1326507024, %v5373
    %v5389 = vor.u32 %v5387, %v5388
    %vm5390 = vcmp.lt.s32.totalorder %v5371, 1
    %vm5391 = vcmp.lt.s32.totalorder %v5371, 2
    %vm5392 = vcmp.lt.s32.totalorder %v5371, 3
    %vm5393 = vcmp.lt.s32.totalorder %v5371, 4
    %v5394 = vsel %vm5390, %v5374, %v5377
    %v5395 = vsel %vm5393, %v5383, 2102212464
    %v5396 = vsel %vm5392, %v5380, %v5395
    %v5397 = vsel %vm5391, %v5394, %v5396
    %v5398 = vsel %vm5390, %v5377, %v5380
    %v5399 = vsel %vm5393, %v5386, 920167782
    %v5400 = vsel %vm5392, %v5383, %v5399
    %v5401 = vsel %vm5391, %v5398, %v5400
    %v5402 = vsel %vm5390, %v5380, %v5383
    %v5403 = vsel %vm5393, %v5389, 1326507024
    %v5404 = vsel %vm5392, %v5386, %v5403
    %v5405 = vsel %vm5391, %v5402, %v5404
    %v5406 = vshll.u32 %v5366, 8
    %v5407 = vmul.u32.u64.compose %v5406, %v5405
    %v5408 = vextract.low.u32 %v5407
    %v5409 = vextract.high.u32 %v5407
    %v5410 = vmul.u32.u64.compose %v5406, %v5401
    %v5411 = vextract.low.u32 %v5410
    %v5412 = vextract.high.u32 %v5410
    %v5413 = vmul.u32 %v5406, %v5397
    %v5414 = vadd.s32 %v5409, %v5411
    %vm5415 = vc.u32 %v5409, %v5411
    %v5416 = vadd.s32 %v5412, 1
    %v5417 = vsel %vm5415, %v5416, %v5412
    %v5418 = vadd.s32 %v5413, %v5417
    %v5419 = vadd.s32 %v5418, 536870912
    %v5420 = vshrl.u32 %v5419, 30
    %v5421 = vshll.u32 %v5420, 30
    %v5422 = vsub.s32 %v5418, %v5421
    %vm5423 = vcmp.lt.s32.totalorder %v5422, 0
    %v5424 = vsub.s32 0, %v5422
    %v5425 = vsel %vm5423, %v5424, %v5422
    %v5426 = vclz %v5425
    %v5427 = vsub.s32 %v5426, 2
    %vm5428 = vcmp.gt.s32.totalorder 0, %v5427
    %v5429 = vsel %vm5428, 0, %v5427
    %v5430 = vsub.s32 32, %v5429
    %v5431 = vshll.u32 %v5422, %v5429
    %v5432 = vshrl.u32 %v5414, %v5430
    %v5433 = vor.u32 %v5431, %v5432
    %v5434 = vsub.s32 4294967266, %v5429
    %v5435 = vadd.s32 %v5434, 127
    %v5436 = vshll.u32 %v5435, 23
    %v5437 = vor.u32 4788187, %v5436
    %v5438 = vand.u32 2147483647, %v5437
    %v5440 = vcvt.s32.f32 %v5433
    %v5441 = vmul.f32 %v5440, %v5438
    %v5442 = vxor.u32 %v5441, 2147483648
    %v5443 = vsel %vm5360, %v5442, %v5441
    %v5444 = vsub.s32 4, %v5420
    %v5445 = vsel %vm5360, %v5444, %v5420
    %v5446 = vsel %vm5359, %v382, %v5443
    %v5447 = vsel %vm5359, 0, %v5445
    %v5448 = vcosq.f32.pop %v5446
    %v5449 = vsinq.f32.pop %v5446
    %vm5450 = vweird.f32 %v382
    %v5451 = vadd.s32 %v5447, 3
    %v5452 = vand.u32 %v5451, 3
    %vm5453 = vcmp.lt.s32.totalorder %v5452, 2
    %vm5454 = vcmp.eq.s32.totalorder %v5452, 0
    %v5455 = vxor.u32 %v5449, 2147483648
    %v5456 = vsel %vm5454, %v5448, %v5455
    %vm5457 = vcmp.eq.s32.totalorder %v5452, 2
    %v5458 = vxor.u32 %v5448, 2147483648
    %v5459 = vsel %vm5457, %v5458, %v5449
    %v5460 = vsel %vm5453, %v5456, %v5459
    %v5461 = vsel %vm5450, nan, %v5460
    %v5462 = vand.u32 2147483647, %v383
    %vm5463 = vcmp.le.f32.partialorder %v5462, 0.7853982
    %vm5464 = vcmp.lt.s32.totalorder %v383, 0
    %v5465 = vand.u32 %v383, 2139095040
    %v5466 = vshrl.u32 %v5465, 23
    %v5467 = vsub.s32 %v5466, 127
    %v5468 = vand.u32 2147483647, %v383
    %v5469 = vand.u32 %v5468, 8388607
    %v5470 = vor.u32 %v5469, 8388608
    %v5471 = vsub.s32 0, %v5470
    %v5472 = vadd.s32 %v5467, 1
    %vm5473 = vcmp.gt.s32.totalorder %v5472, 0
    %v5474 = vsel %vm5473, %v5472, 0
    %v5475 = vshrl.u32 %v5474, 5
    %v5476 = vand.u32 %v5474, 31
    %v5477 = vsub.s32 32, %v5476
    %v5478 = vshrl.u32 683565275, %v5477
    %v5479 = vshll.u32 683565275, %v5476
    %v5480 = vshrl.u32 2475754826, %v5477
    %v5481 = vor.u32 %v5479, %v5480
    %v5482 = vshll.u32 2475754826, %v5476
    %v5483 = vshrl.u32 2131351028, %v5477
    %v5484 = vor.u32 %v5482, %v5483
    %v5485 = vshll.u32 2131351028, %v5476
    %v5486 = vshrl.u32 2102212464, %v5477
    %v5487 = vor.u32 %v5485, %v5486
    %v5488 = vshll.u32 2102212464, %v5476
    %v5489 = vshrl.u32 920167782, %v5477
    %v5490 = vor.u32 %v5488, %v5489
    %v5491 = vshll.u32 920167782, %v5476
    %v5492 = vshrl.u32 1326507024, %v5477
    %v5493 = vor.u32 %v5491, %v5492
    %vm5494 = vcmp.lt.s32.totalorder %v5475, 1
    %vm5495 = vcmp.lt.s32.totalorder %v5475, 2
    %vm5496 = vcmp.lt.s32.totalorder %v5475, 3
    %vm5497 = vcmp.lt.s32.totalorder %v5475, 4
    %v5498 = vsel %vm5494, %v5478, %v5481
    %v5499 = vsel %vm5497, %v5487, 2102212464
    %v5500 = vsel %vm5496, %v5484, %v5499
    %v5501 = vsel %vm5495, %v5498, %v5500
    %v5502 = vsel %vm5494, %v5481, %v5484
    %v5503 = vsel %vm5497, %v5490, 920167782
    %v5504 = vsel %vm5496, %v5487, %v5503
    %v5505 = vsel %vm5495, %v5502, %v5504
    %v5506 = vsel %vm5494, %v5484, %v5487
    %v5507 = vsel %vm5497, %v5493, 1326507024
    %v5508 = vsel %vm5496, %v5490, %v5507
    %v5509 = vsel %vm5495, %v5506, %v5508
    %v5510 = vshll.u32 %v5470, 8
    %v5511 = vmul.u32.u64.compose %v5510, %v5509
    %v5512 = vextract.low.u32 %v5511
    %v5513 = vextract.high.u32 %v5511
    %v5514 = vmul.u32.u64.compose %v5510, %v5505
    %v5515 = vextract.low.u32 %v5514
    %v5516 = vextract.high.u32 %v5514
    %v5517 = vmul.u32 %v5510, %v5501
    %v5518 = vadd.s32 %v5513, %v5515
    %vm5519 = vc.u32 %v5513, %v5515
    %v5520 = vadd.s32 %v5516, 1
    %v5521 = vsel %vm5519, %v5520, %v5516
    %v5522 = vadd.s32 %v5517, %v5521
    %v5523 = vadd.s32 %v5522, 536870912
    %v5524 = vshrl.u32 %v5523, 30
    %v5525 = vshll.u32 %v5524, 30
    %v5526 = vsub.s32 %v5522, %v5525
    %vm5527 = vcmp.lt.s32.totalorder %v5526, 0
    %v5528 = vsub.s32 0, %v5526
    %v5529 = vsel %vm5527, %v5528, %v5526
    %v5530 = vclz %v5529
    %v5531 = vsub.s32 %v5530, 2
    %vm5532 = vcmp.gt.s32.totalorder 0, %v5531
    %v5533 = vsel %vm5532, 0, %v5531
    %v5534 = vsub.s32 32, %v5533
    %v5535 = vshll.u32 %v5526, %v5533
    %v5536 = vshrl.u32 %v5518, %v5534
    %v5537 = vor.u32 %v5535, %v5536
    %v5538 = vsub.s32 4294967266, %v5533
    %v5539 = vadd.s32 %v5538, 127
    %v5540 = vshll.u32 %v5539, 23
    %v5541 = vor.u32 4788187, %v5540
    %v5542 = vand.u32 2147483647, %v5541
    %v5544 = vcvt.s32.f32 %v5537
    %v5545 = vmul.f32 %v5544, %v5542
    %v5546 = vxor.u32 %v5545, 2147483648
    %v5547 = vsel %vm5464, %v5546, %v5545
    %v5548 = vsub.s32 4, %v5524
    %v5549 = vsel %vm5464, %v5548, %v5524
    %v5550 = vsel %vm5463, %v383, %v5547
    %v5551 = vsel %vm5463, 0, %v5549
    %v5552 = vcosq.f32.pop %v5550
    %v5553 = vsinq.f32.pop %v5550
    %vm5554 = vweird.f32 %v383
    %v5555 = vadd.s32 %v5551, 3
    %v5556 = vand.u32 %v5555, 3
    %vm5557 = vcmp.lt.s32.totalorder %v5556, 2
    %vm5558 = vcmp.eq.s32.totalorder %v5556, 0
    %v5559 = vxor.u32 %v5553, 2147483648
    %v5560 = vsel %vm5558, %v5552, %v5559
    %vm5561 = vcmp.eq.s32.totalorder %v5556, 2
    %v5562 = vxor.u32 %v5552, 2147483648
    %v5563 = vsel %vm5561, %v5562, %v5553
    %v5564 = vsel %vm5557, %v5560, %v5563
    %v5565 = vsel %vm5554, nan, %v5564
    %v5566 = vand.u32 2147483647, %v384
    %vm5567 = vcmp.le.f32.partialorder %v5566, 0.7853982
    %vm5568 = vcmp.lt.s32.totalorder %v384, 0
    %v5569 = vand.u32 %v384, 2139095040
    %v5570 = vshrl.u32 %v5569, 23
    %v5571 = vsub.s32 %v5570, 127
    %v5572 = vand.u32 2147483647, %v384
    %v5573 = vand.u32 %v5572, 8388607
    %v5574 = vor.u32 %v5573, 8388608
    %v5575 = vsub.s32 0, %v5574
    %v5576 = vadd.s32 %v5571, 1
    %vm5577 = vcmp.gt.s32.totalorder %v5576, 0
    %v5578 = vsel %vm5577, %v5576, 0
    %v5579 = vshrl.u32 %v5578, 5
    %v5580 = vand.u32 %v5578, 31
    %v5581 = vsub.s32 32, %v5580
    %v5582 = vshrl.u32 683565275, %v5581
    %v5583 = vshll.u32 683565275, %v5580
    %v5584 = vshrl.u32 2475754826, %v5581
    %v5585 = vor.u32 %v5583, %v5584
    %v5586 = vshll.u32 2475754826, %v5580
    %v5587 = vshrl.u32 2131351028, %v5581
    %v5588 = vor.u32 %v5586, %v5587
    %v5589 = vshll.u32 2131351028, %v5580
    %v5590 = vshrl.u32 2102212464, %v5581
    %v5591 = vor.u32 %v5589, %v5590
    %v5592 = vshll.u32 2102212464, %v5580
    %v5593 = vshrl.u32 920167782, %v5581
    %v5594 = vor.u32 %v5592, %v5593
    %v5595 = vshll.u32 920167782, %v5580
    %v5596 = vshrl.u32 1326507024, %v5581
    %v5597 = vor.u32 %v5595, %v5596
    %vm5598 = vcmp.lt.s32.totalorder %v5579, 1
    %vm5599 = vcmp.lt.s32.totalorder %v5579, 2
    %vm5600 = vcmp.lt.s32.totalorder %v5579, 3
    %vm5601 = vcmp.lt.s32.totalorder %v5579, 4
    %v5602 = vsel %vm5598, %v5582, %v5585
    %v5603 = vsel %vm5601, %v5591, 2102212464
    %v5604 = vsel %vm5600, %v5588, %v5603
    %v5605 = vsel %vm5599, %v5602, %v5604
    %v5606 = vsel %vm5598, %v5585, %v5588
    %v5607 = vsel %vm5601, %v5594, 920167782
    %v5608 = vsel %vm5600, %v5591, %v5607
    %v5609 = vsel %vm5599, %v5606, %v5608
    %v5610 = vsel %vm5598, %v5588, %v5591
    %v5611 = vsel %vm5601, %v5597, 1326507024
    %v5612 = vsel %vm5600, %v5594, %v5611
    %v5613 = vsel %vm5599, %v5610, %v5612
    %v5614 = vshll.u32 %v5574, 8
    %v5615 = vmul.u32.u64.compose %v5614, %v5613
    %v5616 = vextract.low.u32 %v5615
    %v5617 = vextract.high.u32 %v5615
    %v5618 = vmul.u32.u64.compose %v5614, %v5609
    %v5619 = vextract.low.u32 %v5618
    %v5620 = vextract.high.u32 %v5618
    %v5621 = vmul.u32 %v5614, %v5605
    %v5622 = vadd.s32 %v5617, %v5619
    %vm5623 = vc.u32 %v5617, %v5619
    %v5624 = vadd.s32 %v5620, 1
    %v5625 = vsel %vm5623, %v5624, %v5620
    %v5626 = vadd.s32 %v5621, %v5625
    %v5627 = vadd.s32 %v5626, 536870912
    %v5628 = vshrl.u32 %v5627, 30
    %v5629 = vshll.u32 %v5628, 30
    %v5630 = vsub.s32 %v5626, %v5629
    %vm5631 = vcmp.lt.s32.totalorder %v5630, 0
    %v5632 = vsub.s32 0, %v5630
    %v5633 = vsel %vm5631, %v5632, %v5630
    %v5634 = vclz %v5633
    %v5635 = vsub.s32 %v5634, 2
    %vm5636 = vcmp.gt.s32.totalorder 0, %v5635
    %v5637 = vsel %vm5636, 0, %v5635
    %v5638 = vsub.s32 32, %v5637
    %v5639 = vshll.u32 %v5630, %v5637
    %v5640 = vshrl.u32 %v5622, %v5638
    %v5641 = vor.u32 %v5639, %v5640
    %v5642 = vsub.s32 4294967266, %v5637
    %v5643 = vadd.s32 %v5642, 127
    %v5644 = vshll.u32 %v5643, 23
    %v5645 = vor.u32 4788187, %v5644
    %v5646 = vand.u32 2147483647, %v5645
    %v5648 = vcvt.s32.f32 %v5641
    %v5649 = vmul.f32 %v5648, %v5646
    %v5650 = vxor.u32 %v5649, 2147483648
    %v5651 = vsel %vm5568, %v5650, %v5649
    %v5652 = vsub.s32 4, %v5628
    %v5653 = vsel %vm5568, %v5652, %v5628
    %v5654 = vsel %vm5567, %v384, %v5651
    %v5655 = vsel %vm5567, 0, %v5653
    %v5656 = vcosq.f32.pop %v5654
    %v5657 = vsinq.f32.pop %v5654
    %vm5658 = vweird.f32 %v384
    %v5659 = vadd.s32 %v5655, 3
    %v5660 = vand.u32 %v5659, 3
    %vm5661 = vcmp.lt.s32.totalorder %v5660, 2
    %vm5662 = vcmp.eq.s32.totalorder %v5660, 0
    %v5663 = vxor.u32 %v5657, 2147483648
    %v5664 = vsel %vm5662, %v5656, %v5663
    %vm5665 = vcmp.eq.s32.totalorder %v5660, 2
    %v5666 = vxor.u32 %v5656, 2147483648
    %v5667 = vsel %vm5665, %v5666, %v5657
    %v5668 = vsel %vm5661, %v5664, %v5667
    %v5669 = vsel %vm5658, nan, %v5668
    %v5670 = vand.u32 2147483647, %v385
    %vm5671 = vcmp.le.f32.partialorder %v5670, 0.7853982
    %vm5672 = vcmp.lt.s32.totalorder %v385, 0
    %v5673 = vand.u32 %v385, 2139095040
    %v5674 = vshrl.u32 %v5673, 23
    %v5675 = vsub.s32 %v5674, 127
    %v5676 = vand.u32 2147483647, %v385
    %v5677 = vand.u32 %v5676, 8388607
    %v5678 = vor.u32 %v5677, 8388608
    %v5679 = vsub.s32 0, %v5678
    %v5680 = vadd.s32 %v5675, 1
    %vm5681 = vcmp.gt.s32.totalorder %v5680, 0
    %v5682 = vsel %vm5681, %v5680, 0
    %v5683 = vshrl.u32 %v5682, 5
    %v5684 = vand.u32 %v5682, 31
    %v5685 = vsub.s32 32, %v5684
    %v5686 = vshrl.u32 683565275, %v5685
    %v5687 = vshll.u32 683565275, %v5684
    %v5688 = vshrl.u32 2475754826, %v5685
    %v5689 = vor.u32 %v5687, %v5688
    %v5690 = vshll.u32 2475754826, %v5684
    %v5691 = vshrl.u32 2131351028, %v5685
    %v5692 = vor.u32 %v5690, %v5691
    %v5693 = vshll.u32 2131351028, %v5684
    %v5694 = vshrl.u32 2102212464, %v5685
    %v5695 = vor.u32 %v5693, %v5694
    %v5696 = vshll.u32 2102212464, %v5684
    %v5697 = vshrl.u32 920167782, %v5685
    %v5698 = vor.u32 %v5696, %v5697
    %v5699 = vshll.u32 920167782, %v5684
    %v5700 = vshrl.u32 1326507024, %v5685
    %v5701 = vor.u32 %v5699, %v5700
    %vm5702 = vcmp.lt.s32.totalorder %v5683, 1
    %vm5703 = vcmp.lt.s32.totalorder %v5683, 2
    %vm5704 = vcmp.lt.s32.totalorder %v5683, 3
    %vm5705 = vcmp.lt.s32.totalorder %v5683, 4
    %v5706 = vsel %vm5702, %v5686, %v5689
    %v5707 = vsel %vm5705, %v5695, 2102212464
    %v5708 = vsel %vm5704, %v5692, %v5707
    %v5709 = vsel %vm5703, %v5706, %v5708
    %v5710 = vsel %vm5702, %v5689, %v5692
    %v5711 = vsel %vm5705, %v5698, 920167782
    %v5712 = vsel %vm5704, %v5695, %v5711
    %v5713 = vsel %vm5703, %v5710, %v5712
    %v5714 = vsel %vm5702, %v5692, %v5695
    %v5715 = vsel %vm5705, %v5701, 1326507024
    %v5716 = vsel %vm5704, %v5698, %v5715
    %v5717 = vsel %vm5703, %v5714, %v5716
    %v5718 = vshll.u32 %v5678, 8
    %v5719 = vmul.u32.u64.compose %v5718, %v5717
    %v5720 = vextract.low.u32 %v5719
    %v5721 = vextract.high.u32 %v5719
    %v5722 = vmul.u32.u64.compose %v5718, %v5713
    %v5723 = vextract.low.u32 %v5722
    %v5724 = vextract.high.u32 %v5722
    %v5725 = vmul.u32 %v5718, %v5709
    %v5726 = vadd.s32 %v5721, %v5723
    %vm5727 = vc.u32 %v5721, %v5723
    %v5728 = vadd.s32 %v5724, 1
    %v5729 = vsel %vm5727, %v5728, %v5724
    %v5730 = vadd.s32 %v5725, %v5729
    %v5731 = vadd.s32 %v5730, 536870912
    %v5732 = vshrl.u32 %v5731, 30
    %v5733 = vshll.u32 %v5732, 30
    %v5734 = vsub.s32 %v5730, %v5733
    %vm5735 = vcmp.lt.s32.totalorder %v5734, 0
    %v5736 = vsub.s32 0, %v5734
    %v5737 = vsel %vm5735, %v5736, %v5734
    %v5738 = vclz %v5737
    %v5739 = vsub.s32 %v5738, 2
    %vm5740 = vcmp.gt.s32.totalorder 0, %v5739
    %v5741 = vsel %vm5740, 0, %v5739
    %v5742 = vsub.s32 32, %v5741
    %v5743 = vshll.u32 %v5734, %v5741
    %v5744 = vshrl.u32 %v5726, %v5742
    %v5745 = vor.u32 %v5743, %v5744
    %v5746 = vsub.s32 4294967266, %v5741
    %v5747 = vadd.s32 %v5746, 127
    %v5748 = vshll.u32 %v5747, 23
    %v5749 = vor.u32 4788187, %v5748
    %v5750 = vand.u32 2147483647, %v5749
    %v5752 = vcvt.s32.f32 %v5745
    %v5753 = vmul.f32 %v5752, %v5750
    %v5754 = vxor.u32 %v5753, 2147483648
    %v5755 = vsel %vm5672, %v5754, %v5753
    %v5756 = vsub.s32 4, %v5732
    %v5757 = vsel %vm5672, %v5756, %v5732
    %v5758 = vsel %vm5671, %v385, %v5755
    %v5759 = vsel %vm5671, 0, %v5757
    %v5760 = vcosq.f32.pop %v5758
    %v5761 = vsinq.f32.pop %v5758
    %vm5762 = vweird.f32 %v385
    %v5763 = vadd.s32 %v5759, 3
    %v5764 = vand.u32 %v5763, 3
    %vm5765 = vcmp.lt.s32.totalorder %v5764, 2
    %vm5766 = vcmp.eq.s32.totalorder %v5764, 0
    %v5767 = vxor.u32 %v5761, 2147483648
    %v5768 = vsel %vm5766, %v5760, %v5767
    %vm5769 = vcmp.eq.s32.totalorder %v5764, 2
    %v5770 = vxor.u32 %v5760, 2147483648
    %v5771 = vsel %vm5769, %v5770, %v5761
    %v5772 = vsel %vm5765, %v5768, %v5771
    %v5773 = vsel %vm5762, nan, %v5772
    %v5774 = vand.u32 2147483647, %v386
    %vm5775 = vcmp.le.f32.partialorder %v5774, 0.7853982
    %vm5776 = vcmp.lt.s32.totalorder %v386, 0
    %v5777 = vand.u32 %v386, 2139095040
    %v5778 = vshrl.u32 %v5777, 23
    %v5779 = vsub.s32 %v5778, 127
    %v5780 = vand.u32 2147483647, %v386
    %v5781 = vand.u32 %v5780, 8388607
    %v5782 = vor.u32 %v5781, 8388608
    %v5783 = vsub.s32 0, %v5782
    %v5784 = vadd.s32 %v5779, 1
    %vm5785 = vcmp.gt.s32.totalorder %v5784, 0
    %v5786 = vsel %vm5785, %v5784, 0
    %v5787 = vshrl.u32 %v5786, 5
    %v5788 = vand.u32 %v5786, 31
    %v5789 = vsub.s32 32, %v5788
    %v5790 = vshrl.u32 683565275, %v5789
    %v5791 = vshll.u32 683565275, %v5788
    %v5792 = vshrl.u32 2475754826, %v5789
    %v5793 = vor.u32 %v5791, %v5792
    %v5794 = vshll.u32 2475754826, %v5788
    %v5795 = vshrl.u32 2131351028, %v5789
    %v5796 = vor.u32 %v5794, %v5795
    %v5797 = vshll.u32 2131351028, %v5788
    %v5798 = vshrl.u32 2102212464, %v5789
    %v5799 = vor.u32 %v5797, %v5798
    %v5800 = vshll.u32 2102212464, %v5788
    %v5801 = vshrl.u32 920167782, %v5789
    %v5802 = vor.u32 %v5800, %v5801
    %v5803 = vshll.u32 920167782, %v5788
    %v5804 = vshrl.u32 1326507024, %v5789
    %v5805 = vor.u32 %v5803, %v5804
    %vm5806 = vcmp.lt.s32.totalorder %v5787, 1
    %vm5807 = vcmp.lt.s32.totalorder %v5787, 2
    %vm5808 = vcmp.lt.s32.totalorder %v5787, 3
    %vm5809 = vcmp.lt.s32.totalorder %v5787, 4
    %v5810 = vsel %vm5806, %v5790, %v5793
    %v5811 = vsel %vm5809, %v5799, 2102212464
    %v5812 = vsel %vm5808, %v5796, %v5811
    %v5813 = vsel %vm5807, %v5810, %v5812
    %v5814 = vsel %vm5806, %v5793, %v5796
    %v5815 = vsel %vm5809, %v5802, 920167782
    %v5816 = vsel %vm5808, %v5799, %v5815
    %v5817 = vsel %vm5807, %v5814, %v5816
    %v5818 = vsel %vm5806, %v5796, %v5799
    %v5819 = vsel %vm5809, %v5805, 1326507024
    %v5820 = vsel %vm5808, %v5802, %v5819
    %v5821 = vsel %vm5807, %v5818, %v5820
    %v5822 = vshll.u32 %v5782, 8
    %v5823 = vmul.u32.u64.compose %v5822, %v5821
    %v5824 = vextract.low.u32 %v5823
    %v5825 = vextract.high.u32 %v5823
    %v5826 = vmul.u32.u64.compose %v5822, %v5817
    %v5827 = vextract.low.u32 %v5826
    %v5828 = vextract.high.u32 %v5826
    %v5829 = vmul.u32 %v5822, %v5813
    %v5830 = vadd.s32 %v5825, %v5827
    %vm5831 = vc.u32 %v5825, %v5827
    %v5832 = vadd.s32 %v5828, 1
    %v5833 = vsel %vm5831, %v5832, %v5828
    %v5834 = vadd.s32 %v5829, %v5833
    %v5835 = vadd.s32 %v5834, 536870912
    %v5836 = vshrl.u32 %v5835, 30
    %v5837 = vshll.u32 %v5836, 30
    %v5838 = vsub.s32 %v5834, %v5837
    %vm5839 = vcmp.lt.s32.totalorder %v5838, 0
    %v5840 = vsub.s32 0, %v5838
    %v5841 = vsel %vm5839, %v5840, %v5838
    %v5842 = vclz %v5841
    %v5843 = vsub.s32 %v5842, 2
    %vm5844 = vcmp.gt.s32.totalorder 0, %v5843
    %v5845 = vsel %vm5844, 0, %v5843
    %v5846 = vsub.s32 32, %v5845
    %v5847 = vshll.u32 %v5838, %v5845
    %v5848 = vshrl.u32 %v5830, %v5846
    %v5849 = vor.u32 %v5847, %v5848
    %v5850 = vsub.s32 4294967266, %v5845
    %v5851 = vadd.s32 %v5850, 127
    %v5852 = vshll.u32 %v5851, 23
    %v5853 = vor.u32 4788187, %v5852
    %v5854 = vand.u32 2147483647, %v5853
    %v5856 = vcvt.s32.f32 %v5849
    %v5857 = vmul.f32 %v5856, %v5854
    %v5858 = vxor.u32 %v5857, 2147483648
    %v5859 = vsel %vm5776, %v5858, %v5857
    %v5860 = vsub.s32 4, %v5836
    %v5861 = vsel %vm5776, %v5860, %v5836
    %v5862 = vsel %vm5775, %v386, %v5859
    %v5863 = vsel %vm5775, 0, %v5861
    %v5864 = vcosq.f32.pop %v5862
    %v5865 = vsinq.f32.pop %v5862
    %vm5866 = vweird.f32 %v386
    %v5867 = vadd.s32 %v5863, 3
    %v5868 = vand.u32 %v5867, 3
    %vm5869 = vcmp.lt.s32.totalorder %v5868, 2
    %vm5870 = vcmp.eq.s32.totalorder %v5868, 0
    %v5871 = vxor.u32 %v5865, 2147483648
    %v5872 = vsel %vm5870, %v5864, %v5871
    %vm5873 = vcmp.eq.s32.totalorder %v5868, 2
    %v5874 = vxor.u32 %v5864, 2147483648
    %v5875 = vsel %vm5873, %v5874, %v5865
    %v5876 = vsel %vm5869, %v5872, %v5875
    %v5877 = vsel %vm5866, nan, %v5876
    %v5878 = vand.u32 2147483647, %v387
    %vm5879 = vcmp.le.f32.partialorder %v5878, 0.7853982
    %vm5880 = vcmp.lt.s32.totalorder %v387, 0
    %v5881 = vand.u32 %v387, 2139095040
    %v5882 = vshrl.u32 %v5881, 23
    %v5883 = vsub.s32 %v5882, 127
    %v5884 = vand.u32 2147483647, %v387
    %v5885 = vand.u32 %v5884, 8388607
    %v5886 = vor.u32 %v5885, 8388608
    %v5887 = vsub.s32 0, %v5886
    %v5888 = vadd.s32 %v5883, 1
    %vm5889 = vcmp.gt.s32.totalorder %v5888, 0
    %v5890 = vsel %vm5889, %v5888, 0
    %v5891 = vshrl.u32 %v5890, 5
    %v5892 = vand.u32 %v5890, 31
    %v5893 = vsub.s32 32, %v5892
    %v5894 = vshrl.u32 683565275, %v5893
    %v5895 = vshll.u32 683565275, %v5892
    %v5896 = vshrl.u32 2475754826, %v5893
    %v5897 = vor.u32 %v5895, %v5896
    %v5898 = vshll.u32 2475754826, %v5892
    %v5899 = vshrl.u32 2131351028, %v5893
    %v5900 = vor.u32 %v5898, %v5899
    %v5901 = vshll.u32 2131351028, %v5892
    %v5902 = vshrl.u32 2102212464, %v5893
    %v5903 = vor.u32 %v5901, %v5902
    %v5904 = vshll.u32 2102212464, %v5892
    %v5905 = vshrl.u32 920167782, %v5893
    %v5906 = vor.u32 %v5904, %v5905
    %v5907 = vshll.u32 920167782, %v5892
    %v5908 = vshrl.u32 1326507024, %v5893
    %v5909 = vor.u32 %v5907, %v5908
    %vm5910 = vcmp.lt.s32.totalorder %v5891, 1
    %vm5911 = vcmp.lt.s32.totalorder %v5891, 2
    %vm5912 = vcmp.lt.s32.totalorder %v5891, 3
    %vm5913 = vcmp.lt.s32.totalorder %v5891, 4
    %v5914 = vsel %vm5910, %v5894, %v5897
    %v5915 = vsel %vm5913, %v5903, 2102212464
    %v5916 = vsel %vm5912, %v5900, %v5915
    %v5917 = vsel %vm5911, %v5914, %v5916
    %v5918 = vsel %vm5910, %v5897, %v5900
    %v5919 = vsel %vm5913, %v5906, 920167782
    %v5920 = vsel %vm5912, %v5903, %v5919
    %v5921 = vsel %vm5911, %v5918, %v5920
    %v5922 = vsel %vm5910, %v5900, %v5903
    %v5923 = vsel %vm5913, %v5909, 1326507024
    %v5924 = vsel %vm5912, %v5906, %v5923
    %v5925 = vsel %vm5911, %v5922, %v5924
    %v5926 = vshll.u32 %v5886, 8
    %v5927 = vmul.u32.u64.compose %v5926, %v5925
    %v5928 = vextract.low.u32 %v5927
    %v5929 = vextract.high.u32 %v5927
    %v5930 = vmul.u32.u64.compose %v5926, %v5921
    %v5931 = vextract.low.u32 %v5930
    %v5932 = vextract.high.u32 %v5930
    %v5933 = vmul.u32 %v5926, %v5917
    %v5934 = vadd.s32 %v5929, %v5931
    %vm5935 = vc.u32 %v5929, %v5931
    %v5936 = vadd.s32 %v5932, 1
    %v5937 = vsel %vm5935, %v5936, %v5932
    %v5938 = vadd.s32 %v5933, %v5937
    %v5939 = vadd.s32 %v5938, 536870912
    %v5940 = vshrl.u32 %v5939, 30
    %v5941 = vshll.u32 %v5940, 30
    %v5942 = vsub.s32 %v5938, %v5941
    %vm5943 = vcmp.lt.s32.totalorder %v5942, 0
    %v5944 = vsub.s32 0, %v5942
    %v5945 = vsel %vm5943, %v5944, %v5942
    %v5946 = vclz %v5945
    %v5947 = vsub.s32 %v5946, 2
    %vm5948 = vcmp.gt.s32.totalorder 0, %v5947
    %v5949 = vsel %vm5948, 0, %v5947
    %v5950 = vsub.s32 32, %v5949
    %v5951 = vshll.u32 %v5942, %v5949
    %v5952 = vshrl.u32 %v5934, %v5950
    %v5953 = vor.u32 %v5951, %v5952
    %v5954 = vsub.s32 4294967266, %v5949
    %v5955 = vadd.s32 %v5954, 127
    %v5956 = vshll.u32 %v5955, 23
    %v5957 = vor.u32 4788187, %v5956
    %v5958 = vand.u32 2147483647, %v5957
    %v5960 = vcvt.s32.f32 %v5953
    %v5961 = vmul.f32 %v5960, %v5958
    %v5962 = vxor.u32 %v5961, 2147483648
    %v5963 = vsel %vm5880, %v5962, %v5961
    %v5964 = vsub.s32 4, %v5940
    %v5965 = vsel %vm5880, %v5964, %v5940
    %v5966 = vsel %vm5879, %v387, %v5963
    %v5967 = vsel %vm5879, 0, %v5965
    %v5968 = vcosq.f32.pop %v5966
    %v5969 = vsinq.f32.pop %v5966
    %vm5970 = vweird.f32 %v387
    %v5971 = vadd.s32 %v5967, 3
    %v5972 = vand.u32 %v5971, 3
    %vm5973 = vcmp.lt.s32.totalorder %v5972, 2
    %vm5974 = vcmp.eq.s32.totalorder %v5972, 0
    %v5975 = vxor.u32 %v5969, 2147483648
    %v5976 = vsel %vm5974, %v5968, %v5975
    %vm5977 = vcmp.eq.s32.totalorder %v5972, 2
    %v5978 = vxor.u32 %v5968, 2147483648
    %v5979 = vsel %vm5977, %v5978, %v5969
    %v5980 = vsel %vm5973, %v5976, %v5979
    %v5981 = vsel %vm5970, nan, %v5980
    %v5982 = vand.u32 2147483647, %v388
    %vm5983 = vcmp.le.f32.partialorder %v5982, 0.7853982
    %vm5984 = vcmp.lt.s32.totalorder %v388, 0
    %v5985 = vand.u32 %v388, 2139095040
    %v5986 = vshrl.u32 %v5985, 23
    %v5987 = vsub.s32 %v5986, 127
    %v5988 = vand.u32 2147483647, %v388
    %v5989 = vand.u32 %v5988, 8388607
    %v5990 = vor.u32 %v5989, 8388608
    %v5991 = vsub.s32 0, %v5990
    %v5992 = vadd.s32 %v5987, 1
    %vm5993 = vcmp.gt.s32.totalorder %v5992, 0
    %v5994 = vsel %vm5993, %v5992, 0
    %v5995 = vshrl.u32 %v5994, 5
    %v5996 = vand.u32 %v5994, 31
    %v5997 = vsub.s32 32, %v5996
    %v5998 = vshrl.u32 683565275, %v5997
    %v5999 = vshll.u32 683565275, %v5996
    %v6000 = vshrl.u32 2475754826, %v5997
    %v6001 = vor.u32 %v5999, %v6000
    %v6002 = vshll.u32 2475754826, %v5996
    %v6003 = vshrl.u32 2131351028, %v5997
    %v6004 = vor.u32 %v6002, %v6003
    %v6005 = vshll.u32 2131351028, %v5996
    %v6006 = vshrl.u32 2102212464, %v5997
    %v6007 = vor.u32 %v6005, %v6006
    %v6008 = vshll.u32 2102212464, %v5996
    %v6009 = vshrl.u32 920167782, %v5997
    %v6010 = vor.u32 %v6008, %v6009
    %v6011 = vshll.u32 920167782, %v5996
    %v6012 = vshrl.u32 1326507024, %v5997
    %v6013 = vor.u32 %v6011, %v6012
    %vm6014 = vcmp.lt.s32.totalorder %v5995, 1
    %vm6015 = vcmp.lt.s32.totalorder %v5995, 2
    %vm6016 = vcmp.lt.s32.totalorder %v5995, 3
    %vm6017 = vcmp.lt.s32.totalorder %v5995, 4
    %v6018 = vsel %vm6014, %v5998, %v6001
    %v6019 = vsel %vm6017, %v6007, 2102212464
    %v6020 = vsel %vm6016, %v6004, %v6019
    %v6021 = vsel %vm6015, %v6018, %v6020
    %v6022 = vsel %vm6014, %v6001, %v6004
    %v6023 = vsel %vm6017, %v6010, 920167782
    %v6024 = vsel %vm6016, %v6007, %v6023
    %v6025 = vsel %vm6015, %v6022, %v6024
    %v6026 = vsel %vm6014, %v6004, %v6007
    %v6027 = vsel %vm6017, %v6013, 1326507024
    %v6028 = vsel %vm6016, %v6010, %v6027
    %v6029 = vsel %vm6015, %v6026, %v6028
    %v6030 = vshll.u32 %v5990, 8
    %v6031 = vmul.u32.u64.compose %v6030, %v6029
    %v6032 = vextract.low.u32 %v6031
    %v6033 = vextract.high.u32 %v6031
    %v6034 = vmul.u32.u64.compose %v6030, %v6025
    %v6035 = vextract.low.u32 %v6034
    %v6036 = vextract.high.u32 %v6034
    %v6037 = vmul.u32 %v6030, %v6021
    %v6038 = vadd.s32 %v6033, %v6035
    %vm6039 = vc.u32 %v6033, %v6035
    %v6040 = vadd.s32 %v6036, 1
    %v6041 = vsel %vm6039, %v6040, %v6036
    %v6042 = vadd.s32 %v6037, %v6041
    %v6043 = vadd.s32 %v6042, 536870912
    %v6044 = vshrl.u32 %v6043, 30
    %v6045 = vshll.u32 %v6044, 30
    %v6046 = vsub.s32 %v6042, %v6045
    %vm6047 = vcmp.lt.s32.totalorder %v6046, 0
    %v6048 = vsub.s32 0, %v6046
    %v6049 = vsel %vm6047, %v6048, %v6046
    %v6050 = vclz %v6049
    %v6051 = vsub.s32 %v6050, 2
    %vm6052 = vcmp.gt.s32.totalorder 0, %v6051
    %v6053 = vsel %vm6052, 0, %v6051
    %v6054 = vsub.s32 32, %v6053
    %v6055 = vshll.u32 %v6046, %v6053
    %v6056 = vshrl.u32 %v6038, %v6054
    %v6057 = vor.u32 %v6055, %v6056
    %v6058 = vsub.s32 4294967266, %v6053
    %v6059 = vadd.s32 %v6058, 127
    %v6060 = vshll.u32 %v6059, 23
    %v6061 = vor.u32 4788187, %v6060
    %v6062 = vand.u32 2147483647, %v6061
    %v6064 = vcvt.s32.f32 %v6057
    %v6065 = vmul.f32 %v6064, %v6062
    %v6066 = vxor.u32 %v6065, 2147483648
    %v6067 = vsel %vm5984, %v6066, %v6065
    %v6068 = vsub.s32 4, %v6044
    %v6069 = vsel %vm5984, %v6068, %v6044
    %v6070 = vsel %vm5983, %v388, %v6067
    %v6071 = vsel %vm5983, 0, %v6069
    %v6072 = vcosq.f32.pop %v6070
    %v6073 = vsinq.f32.pop %v6070
    %vm6074 = vweird.f32 %v388
    %v6075 = vadd.s32 %v6071, 3
    %v6076 = vand.u32 %v6075, 3
    %vm6077 = vcmp.lt.s32.totalorder %v6076, 2
    %vm6078 = vcmp.eq.s32.totalorder %v6076, 0
    %v6079 = vxor.u32 %v6073, 2147483648
    %v6080 = vsel %vm6078, %v6072, %v6079
    %vm6081 = vcmp.eq.s32.totalorder %v6076, 2
    %v6082 = vxor.u32 %v6072, 2147483648
    %v6083 = vsel %vm6081, %v6082, %v6073
    %v6084 = vsel %vm6077, %v6080, %v6083
    %v6085 = vsel %vm6074, nan, %v6084
    %v6086 = vand.u32 2147483647, %v389
    %vm6087 = vcmp.le.f32.partialorder %v6086, 0.7853982
    %vm6088 = vcmp.lt.s32.totalorder %v389, 0
    %v6089 = vand.u32 %v389, 2139095040
    %v6090 = vshrl.u32 %v6089, 23
    %v6091 = vsub.s32 %v6090, 127
    %v6092 = vand.u32 2147483647, %v389
    %v6093 = vand.u32 %v6092, 8388607
    %v6094 = vor.u32 %v6093, 8388608
    %v6095 = vsub.s32 0, %v6094
    %v6096 = vadd.s32 %v6091, 1
    %vm6097 = vcmp.gt.s32.totalorder %v6096, 0
    %v6098 = vsel %vm6097, %v6096, 0
    %v6099 = vshrl.u32 %v6098, 5
    %v6100 = vand.u32 %v6098, 31
    %v6101 = vsub.s32 32, %v6100
    %v6102 = vshrl.u32 683565275, %v6101
    %v6103 = vshll.u32 683565275, %v6100
    %v6104 = vshrl.u32 2475754826, %v6101
    %v6105 = vor.u32 %v6103, %v6104
    %v6106 = vshll.u32 2475754826, %v6100
    %v6107 = vshrl.u32 2131351028, %v6101
    %v6108 = vor.u32 %v6106, %v6107
    %v6109 = vshll.u32 2131351028, %v6100
    %v6110 = vshrl.u32 2102212464, %v6101
    %v6111 = vor.u32 %v6109, %v6110
    %v6112 = vshll.u32 2102212464, %v6100
    %v6113 = vshrl.u32 920167782, %v6101
    %v6114 = vor.u32 %v6112, %v6113
    %v6115 = vshll.u32 920167782, %v6100
    %v6116 = vshrl.u32 1326507024, %v6101
    %v6117 = vor.u32 %v6115, %v6116
    %vm6118 = vcmp.lt.s32.totalorder %v6099, 1
    %vm6119 = vcmp.lt.s32.totalorder %v6099, 2
    %vm6120 = vcmp.lt.s32.totalorder %v6099, 3
    %vm6121 = vcmp.lt.s32.totalorder %v6099, 4
    %v6122 = vsel %vm6118, %v6102, %v6105
    %v6123 = vsel %vm6121, %v6111, 2102212464
    %v6124 = vsel %vm6120, %v6108, %v6123
    %v6125 = vsel %vm6119, %v6122, %v6124
    %v6126 = vsel %vm6118, %v6105, %v6108
    %v6127 = vsel %vm6121, %v6114, 920167782
    %v6128 = vsel %vm6120, %v6111, %v6127
    %v6129 = vsel %vm6119, %v6126, %v6128
    %v6130 = vsel %vm6118, %v6108, %v6111
    %v6131 = vsel %vm6121, %v6117, 1326507024
    %v6132 = vsel %vm6120, %v6114, %v6131
    %v6133 = vsel %vm6119, %v6130, %v6132
    %v6134 = vshll.u32 %v6094, 8
    %v6135 = vmul.u32.u64.compose %v6134, %v6133
    %v6136 = vextract.low.u32 %v6135
    %v6137 = vextract.high.u32 %v6135
    %v6138 = vmul.u32.u64.compose %v6134, %v6129
    %v6139 = vextract.low.u32 %v6138
    %v6140 = vextract.high.u32 %v6138
    %v6141 = vmul.u32 %v6134, %v6125
    %v6142 = vadd.s32 %v6137, %v6139
    %vm6143 = vc.u32 %v6137, %v6139
    %v6144 = vadd.s32 %v6140, 1
    %v6145 = vsel %vm6143, %v6144, %v6140
    %v6146 = vadd.s32 %v6141, %v6145
    %v6147 = vadd.s32 %v6146, 536870912
    %v6148 = vshrl.u32 %v6147, 30
    %v6149 = vshll.u32 %v6148, 30
    %v6150 = vsub.s32 %v6146, %v6149
    %vm6151 = vcmp.lt.s32.totalorder %v6150, 0
    %v6152 = vsub.s32 0, %v6150
    %v6153 = vsel %vm6151, %v6152, %v6150
    %v6154 = vclz %v6153
    %v6155 = vsub.s32 %v6154, 2
    %vm6156 = vcmp.gt.s32.totalorder 0, %v6155
    %v6157 = vsel %vm6156, 0, %v6155
    %v6158 = vsub.s32 32, %v6157
    %v6159 = vshll.u32 %v6150, %v6157
    %v6160 = vshrl.u32 %v6142, %v6158
    %v6161 = vor.u32 %v6159, %v6160
    %v6162 = vsub.s32 4294967266, %v6157
    %v6163 = vadd.s32 %v6162, 127
    %v6164 = vshll.u32 %v6163, 23
    %v6165 = vor.u32 4788187, %v6164
    %v6166 = vand.u32 2147483647, %v6165
    %v6168 = vcvt.s32.f32 %v6161
    %v6169 = vmul.f32 %v6168, %v6166
    %v6170 = vxor.u32 %v6169, 2147483648
    %v6171 = vsel %vm6088, %v6170, %v6169
    %v6172 = vsub.s32 4, %v6148
    %v6173 = vsel %vm6088, %v6172, %v6148
    %v6174 = vsel %vm6087, %v389, %v6171
    %v6175 = vsel %vm6087, 0, %v6173
    %v6176 = vcosq.f32.pop %v6174
    %v6177 = vsinq.f32.pop %v6174
    %vm6178 = vweird.f32 %v389
    %v6179 = vadd.s32 %v6175, 3
    %v6180 = vand.u32 %v6179, 3
    %vm6181 = vcmp.lt.s32.totalorder %v6180, 2
    %vm6182 = vcmp.eq.s32.totalorder %v6180, 0
    %v6183 = vxor.u32 %v6177, 2147483648
    %v6184 = vsel %vm6182, %v6176, %v6183
    %vm6185 = vcmp.eq.s32.totalorder %v6180, 2
    %v6186 = vxor.u32 %v6176, 2147483648
    %v6187 = vsel %vm6185, %v6186, %v6177
    %v6188 = vsel %vm6181, %v6184, %v6187
    %v6189 = vsel %vm6178, nan, %v6188
    %v6190 = vand.u32 2147483647, %v390
    %vm6191 = vcmp.le.f32.partialorder %v6190, 0.7853982
    %vm6192 = vcmp.lt.s32.totalorder %v390, 0
    %v6193 = vand.u32 %v390, 2139095040
    %v6194 = vshrl.u32 %v6193, 23
    %v6195 = vsub.s32 %v6194, 127
    %v6196 = vand.u32 2147483647, %v390
    %v6197 = vand.u32 %v6196, 8388607
    %v6198 = vor.u32 %v6197, 8388608
    %v6199 = vsub.s32 0, %v6198
    %v6200 = vadd.s32 %v6195, 1
    %vm6201 = vcmp.gt.s32.totalorder %v6200, 0
    %v6202 = vsel %vm6201, %v6200, 0
    %v6203 = vshrl.u32 %v6202, 5
    %v6204 = vand.u32 %v6202, 31
    %v6205 = vsub.s32 32, %v6204
    %v6206 = vshrl.u32 683565275, %v6205
    %v6207 = vshll.u32 683565275, %v6204
    %v6208 = vshrl.u32 2475754826, %v6205
    %v6209 = vor.u32 %v6207, %v6208
    %v6210 = vshll.u32 2475754826, %v6204
    %v6211 = vshrl.u32 2131351028, %v6205
    %v6212 = vor.u32 %v6210, %v6211
    %v6213 = vshll.u32 2131351028, %v6204
    %v6214 = vshrl.u32 2102212464, %v6205
    %v6215 = vor.u32 %v6213, %v6214
    %v6216 = vshll.u32 2102212464, %v6204
    %v6217 = vshrl.u32 920167782, %v6205
    %v6218 = vor.u32 %v6216, %v6217
    %v6219 = vshll.u32 920167782, %v6204
    %v6220 = vshrl.u32 1326507024, %v6205
    %v6221 = vor.u32 %v6219, %v6220
    %vm6222 = vcmp.lt.s32.totalorder %v6203, 1
    %vm6223 = vcmp.lt.s32.totalorder %v6203, 2
    %vm6224 = vcmp.lt.s32.totalorder %v6203, 3
    %vm6225 = vcmp.lt.s32.totalorder %v6203, 4
    %v6226 = vsel %vm6222, %v6206, %v6209
    %v6227 = vsel %vm6225, %v6215, 2102212464
    %v6228 = vsel %vm6224, %v6212, %v6227
    %v6229 = vsel %vm6223, %v6226, %v6228
    %v6230 = vsel %vm6222, %v6209, %v6212
    %v6231 = vsel %vm6225, %v6218, 920167782
    %v6232 = vsel %vm6224, %v6215, %v6231
    %v6233 = vsel %vm6223, %v6230, %v6232
    %v6234 = vsel %vm6222, %v6212, %v6215
    %v6235 = vsel %vm6225, %v6221, 1326507024
    %v6236 = vsel %vm6224, %v6218, %v6235
    %v6237 = vsel %vm6223, %v6234, %v6236
    %v6238 = vshll.u32 %v6198, 8
    %v6239 = vmul.u32.u64.compose %v6238, %v6237
    %v6240 = vextract.low.u32 %v6239
    %v6241 = vextract.high.u32 %v6239
    %v6242 = vmul.u32.u64.compose %v6238, %v6233
    %v6243 = vextract.low.u32 %v6242
    %v6244 = vextract.high.u32 %v6242
    %v6245 = vmul.u32 %v6238, %v6229
    %v6246 = vadd.s32 %v6241, %v6243
    %vm6247 = vc.u32 %v6241, %v6243
    %v6248 = vadd.s32 %v6244, 1
    %v6249 = vsel %vm6247, %v6248, %v6244
    %v6250 = vadd.s32 %v6245, %v6249
    %v6251 = vadd.s32 %v6250, 536870912
    %v6252 = vshrl.u32 %v6251, 30
    %v6253 = vshll.u32 %v6252, 30
    %v6254 = vsub.s32 %v6250, %v6253
    %vm6255 = vcmp.lt.s32.totalorder %v6254, 0
    %v6256 = vsub.s32 0, %v6254
    %v6257 = vsel %vm6255, %v6256, %v6254
    %v6258 = vclz %v6257
    %v6259 = vsub.s32 %v6258, 2
    %vm6260 = vcmp.gt.s32.totalorder 0, %v6259
    %v6261 = vsel %vm6260, 0, %v6259
    %v6262 = vsub.s32 32, %v6261
    %v6263 = vshll.u32 %v6254, %v6261
    %v6264 = vshrl.u32 %v6246, %v6262
    %v6265 = vor.u32 %v6263, %v6264
    %v6266 = vsub.s32 4294967266, %v6261
    %v6267 = vadd.s32 %v6266, 127
    %v6268 = vshll.u32 %v6267, 23
    %v6269 = vor.u32 4788187, %v6268
    %v6270 = vand.u32 2147483647, %v6269
    %v6272 = vcvt.s32.f32 %v6265
    %v6273 = vmul.f32 %v6272, %v6270
    %v6274 = vxor.u32 %v6273, 2147483648
    %v6275 = vsel %vm6192, %v6274, %v6273
    %v6276 = vsub.s32 4, %v6252
    %v6277 = vsel %vm6192, %v6276, %v6252
    %v6278 = vsel %vm6191, %v390, %v6275
    %v6279 = vsel %vm6191, 0, %v6277
    %v6280 = vcosq.f32.pop %v6278
    %v6281 = vsinq.f32.pop %v6278
    %vm6282 = vweird.f32 %v390
    %v6283 = vadd.s32 %v6279, 3
    %v6284 = vand.u32 %v6283, 3
    %vm6285 = vcmp.lt.s32.totalorder %v6284, 2
    %vm6286 = vcmp.eq.s32.totalorder %v6284, 0
    %v6287 = vxor.u32 %v6281, 2147483648
    %v6288 = vsel %vm6286, %v6280, %v6287
    %vm6289 = vcmp.eq.s32.totalorder %v6284, 2
    %v6290 = vxor.u32 %v6280, 2147483648
    %v6291 = vsel %vm6289, %v6290, %v6281
    %v6292 = vsel %vm6285, %v6288, %v6291
    %v6293 = vsel %vm6282, nan, %v6292
    %v6294 = vand.u32 2147483647, %v391
    %vm6295 = vcmp.le.f32.partialorder %v6294, 0.7853982
    %vm6296 = vcmp.lt.s32.totalorder %v391, 0
    %v6297 = vand.u32 %v391, 2139095040
    %v6298 = vshrl.u32 %v6297, 23
    %v6299 = vsub.s32 %v6298, 127
    %v6300 = vand.u32 2147483647, %v391
    %v6301 = vand.u32 %v6300, 8388607
    %v6302 = vor.u32 %v6301, 8388608
    %v6303 = vsub.s32 0, %v6302
    %v6304 = vadd.s32 %v6299, 1
    %vm6305 = vcmp.gt.s32.totalorder %v6304, 0
    %v6306 = vsel %vm6305, %v6304, 0
    %v6307 = vshrl.u32 %v6306, 5
    %v6308 = vand.u32 %v6306, 31
    %v6309 = vsub.s32 32, %v6308
    %v6310 = vshrl.u32 683565275, %v6309
    %v6311 = vshll.u32 683565275, %v6308
    %v6312 = vshrl.u32 2475754826, %v6309
    %v6313 = vor.u32 %v6311, %v6312
    %v6314 = vshll.u32 2475754826, %v6308
    %v6315 = vshrl.u32 2131351028, %v6309
    %v6316 = vor.u32 %v6314, %v6315
    %v6317 = vshll.u32 2131351028, %v6308
    %v6318 = vshrl.u32 2102212464, %v6309
    %v6319 = vor.u32 %v6317, %v6318
    %v6320 = vshll.u32 2102212464, %v6308
    %v6321 = vshrl.u32 920167782, %v6309
    %v6322 = vor.u32 %v6320, %v6321
    %v6323 = vshll.u32 920167782, %v6308
    %v6324 = vshrl.u32 1326507024, %v6309
    %v6325 = vor.u32 %v6323, %v6324
    %vm6326 = vcmp.lt.s32.totalorder %v6307, 1
    %vm6327 = vcmp.lt.s32.totalorder %v6307, 2
    %vm6328 = vcmp.lt.s32.totalorder %v6307, 3
    %vm6329 = vcmp.lt.s32.totalorder %v6307, 4
    %v6330 = vsel %vm6326, %v6310, %v6313
    %v6331 = vsel %vm6329, %v6319, 2102212464
    %v6332 = vsel %vm6328, %v6316, %v6331
    %v6333 = vsel %vm6327, %v6330, %v6332
    %v6334 = vsel %vm6326, %v6313, %v6316
    %v6335 = vsel %vm6329, %v6322, 920167782
    %v6336 = vsel %vm6328, %v6319, %v6335
    %v6337 = vsel %vm6327, %v6334, %v6336
    %v6338 = vsel %vm6326, %v6316, %v6319
    %v6339 = vsel %vm6329, %v6325, 1326507024
    %v6340 = vsel %vm6328, %v6322, %v6339
    %v6341 = vsel %vm6327, %v6338, %v6340
    %v6342 = vshll.u32 %v6302, 8
    %v6343 = vmul.u32.u64.compose %v6342, %v6341
    %v6344 = vextract.low.u32 %v6343
    %v6345 = vextract.high.u32 %v6343
    %v6346 = vmul.u32.u64.compose %v6342, %v6337
    %v6347 = vextract.low.u32 %v6346
    %v6348 = vextract.high.u32 %v6346
    %v6349 = vmul.u32 %v6342, %v6333
    %v6350 = vadd.s32 %v6345, %v6347
    %vm6351 = vc.u32 %v6345, %v6347
    %v6352 = vadd.s32 %v6348, 1
    %v6353 = vsel %vm6351, %v6352, %v6348
    %v6354 = vadd.s32 %v6349, %v6353
    %v6355 = vadd.s32 %v6354, 536870912
    %v6356 = vshrl.u32 %v6355, 30
    %v6357 = vshll.u32 %v6356, 30
    %v6358 = vsub.s32 %v6354, %v6357
    %vm6359 = vcmp.lt.s32.totalorder %v6358, 0
    %v6360 = vsub.s32 0, %v6358
    %v6361 = vsel %vm6359, %v6360, %v6358
    %v6362 = vclz %v6361
    %v6363 = vsub.s32 %v6362, 2
    %vm6364 = vcmp.gt.s32.totalorder 0, %v6363
    %v6365 = vsel %vm6364, 0, %v6363
    %v6366 = vsub.s32 32, %v6365
    %v6367 = vshll.u32 %v6358, %v6365
    %v6368 = vshrl.u32 %v6350, %v6366
    %v6369 = vor.u32 %v6367, %v6368
    %v6370 = vsub.s32 4294967266, %v6365
    %v6371 = vadd.s32 %v6370, 127
    %v6372 = vshll.u32 %v6371, 23
    %v6373 = vor.u32 4788187, %v6372
    %v6374 = vand.u32 2147483647, %v6373
    %v6376 = vcvt.s32.f32 %v6369
    %v6377 = vmul.f32 %v6376, %v6374
    %v6378 = vxor.u32 %v6377, 2147483648
    %v6379 = vsel %vm6296, %v6378, %v6377
    %v6380 = vsub.s32 4, %v6356
    %v6381 = vsel %vm6296, %v6380, %v6356
    %v6382 = vsel %vm6295, %v391, %v6379
    %v6383 = vsel %vm6295, 0, %v6381
    %v6384 = vcosq.f32.pop %v6382
    %v6385 = vsinq.f32.pop %v6382
    %vm6386 = vweird.f32 %v391
    %v6387 = vadd.s32 %v6383, 3
    %v6388 = vand.u32 %v6387, 3
    %vm6389 = vcmp.lt.s32.totalorder %v6388, 2
    %vm6390 = vcmp.eq.s32.totalorder %v6388, 0
    %v6391 = vxor.u32 %v6385, 2147483648
    %v6392 = vsel %vm6390, %v6384, %v6391
    %vm6393 = vcmp.eq.s32.totalorder %v6388, 2
    %v6394 = vxor.u32 %v6384, 2147483648
    %v6395 = vsel %vm6393, %v6394, %v6385
    %v6396 = vsel %vm6389, %v6392, %v6395
    %v6397 = vsel %vm6386, nan, %v6396
    %v6398 = vand.u32 2147483647, %v392
    %vm6399 = vcmp.le.f32.partialorder %v6398, 0.7853982
    %vm6400 = vcmp.lt.s32.totalorder %v392, 0
    %v6401 = vand.u32 %v392, 2139095040
    %v6402 = vshrl.u32 %v6401, 23
    %v6403 = vsub.s32 %v6402, 127
    %v6404 = vand.u32 2147483647, %v392
    %v6405 = vand.u32 %v6404, 8388607
    %v6406 = vor.u32 %v6405, 8388608
    %v6407 = vsub.s32 0, %v6406
    %v6408 = vadd.s32 %v6403, 1
    %vm6409 = vcmp.gt.s32.totalorder %v6408, 0
    %v6410 = vsel %vm6409, %v6408, 0
    %v6411 = vshrl.u32 %v6410, 5
    %v6412 = vand.u32 %v6410, 31
    %v6413 = vsub.s32 32, %v6412
    %v6414 = vshrl.u32 683565275, %v6413
    %v6415 = vshll.u32 683565275, %v6412
    %v6416 = vshrl.u32 2475754826, %v6413
    %v6417 = vor.u32 %v6415, %v6416
    %v6418 = vshll.u32 2475754826, %v6412
    %v6419 = vshrl.u32 2131351028, %v6413
    %v6420 = vor.u32 %v6418, %v6419
    %v6421 = vshll.u32 2131351028, %v6412
    %v6422 = vshrl.u32 2102212464, %v6413
    %v6423 = vor.u32 %v6421, %v6422
    %v6424 = vshll.u32 2102212464, %v6412
    %v6425 = vshrl.u32 920167782, %v6413
    %v6426 = vor.u32 %v6424, %v6425
    %v6427 = vshll.u32 920167782, %v6412
    %v6428 = vshrl.u32 1326507024, %v6413
    %v6429 = vor.u32 %v6427, %v6428
    %vm6430 = vcmp.lt.s32.totalorder %v6411, 1
    %vm6431 = vcmp.lt.s32.totalorder %v6411, 2
    %vm6432 = vcmp.lt.s32.totalorder %v6411, 3
    %vm6433 = vcmp.lt.s32.totalorder %v6411, 4
    %v6434 = vsel %vm6430, %v6414, %v6417
    %v6435 = vsel %vm6433, %v6423, 2102212464
    %v6436 = vsel %vm6432, %v6420, %v6435
    %v6437 = vsel %vm6431, %v6434, %v6436
    %v6438 = vsel %vm6430, %v6417, %v6420
    %v6439 = vsel %vm6433, %v6426, 920167782
    %v6440 = vsel %vm6432, %v6423, %v6439
    %v6441 = vsel %vm6431, %v6438, %v6440
    %v6442 = vsel %vm6430, %v6420, %v6423
    %v6443 = vsel %vm6433, %v6429, 1326507024
    %v6444 = vsel %vm6432, %v6426, %v6443
    %v6445 = vsel %vm6431, %v6442, %v6444
    %v6446 = vshll.u32 %v6406, 8
    %v6447 = vmul.u32.u64.compose %v6446, %v6445
    %v6448 = vextract.low.u32 %v6447
    %v6449 = vextract.high.u32 %v6447
    %v6450 = vmul.u32.u64.compose %v6446, %v6441
    %v6451 = vextract.low.u32 %v6450
    %v6452 = vextract.high.u32 %v6450
    %v6453 = vmul.u32 %v6446, %v6437
    %v6454 = vadd.s32 %v6449, %v6451
    %vm6455 = vc.u32 %v6449, %v6451
    %v6456 = vadd.s32 %v6452, 1
    %v6457 = vsel %vm6455, %v6456, %v6452
    %v6458 = vadd.s32 %v6453, %v6457
    %v6459 = vadd.s32 %v6458, 536870912
    %v6460 = vshrl.u32 %v6459, 30
    %v6461 = vshll.u32 %v6460, 30
    %v6462 = vsub.s32 %v6458, %v6461
    %vm6463 = vcmp.lt.s32.totalorder %v6462, 0
    %v6464 = vsub.s32 0, %v6462
    %v6465 = vsel %vm6463, %v6464, %v6462
    %v6466 = vclz %v6465
    %v6467 = vsub.s32 %v6466, 2
    %vm6468 = vcmp.gt.s32.totalorder 0, %v6467
    %v6469 = vsel %vm6468, 0, %v6467
    %v6470 = vsub.s32 32, %v6469
    %v6471 = vshll.u32 %v6462, %v6469
    %v6472 = vshrl.u32 %v6454, %v6470
    %v6473 = vor.u32 %v6471, %v6472
    %v6474 = vsub.s32 4294967266, %v6469
    %v6475 = vadd.s32 %v6474, 127
    %v6476 = vshll.u32 %v6475, 23
    %v6477 = vor.u32 4788187, %v6476
    %v6478 = vand.u32 2147483647, %v6477
    %v6480 = vcvt.s32.f32 %v6473
    %v6481 = vmul.f32 %v6480, %v6478
    %v6482 = vxor.u32 %v6481, 2147483648
    %v6483 = vsel %vm6400, %v6482, %v6481
    %v6484 = vsub.s32 4, %v6460
    %v6485 = vsel %vm6400, %v6484, %v6460
    %v6486 = vsel %vm6399, %v392, %v6483
    %v6487 = vsel %vm6399, 0, %v6485
    %v6488 = vcosq.f32.pop %v6486
    %v6489 = vsinq.f32.pop %v6486
    %vm6490 = vweird.f32 %v392
    %v6491 = vadd.s32 %v6487, 3
    %v6492 = vand.u32 %v6491, 3
    %vm6493 = vcmp.lt.s32.totalorder %v6492, 2
    %vm6494 = vcmp.eq.s32.totalorder %v6492, 0
    %v6495 = vxor.u32 %v6489, 2147483648
    %v6496 = vsel %vm6494, %v6488, %v6495
    %vm6497 = vcmp.eq.s32.totalorder %v6492, 2
    %v6498 = vxor.u32 %v6488, 2147483648
    %v6499 = vsel %vm6497, %v6498, %v6489
    %v6500 = vsel %vm6493, %v6496, %v6499
    %v6501 = vsel %vm6490, nan, %v6500
    %v6502 = vand.u32 2147483647, %v393
    %vm6503 = vcmp.le.f32.partialorder %v6502, 0.7853982
    %vm6504 = vcmp.lt.s32.totalorder %v393, 0
    %v6505 = vand.u32 %v393, 2139095040
    %v6506 = vshrl.u32 %v6505, 23
    %v6507 = vsub.s32 %v6506, 127
    %v6508 = vand.u32 2147483647, %v393
    %v6509 = vand.u32 %v6508, 8388607
    %v6510 = vor.u32 %v6509, 8388608
    %v6511 = vsub.s32 0, %v6510
    %v6512 = vadd.s32 %v6507, 1
    %vm6513 = vcmp.gt.s32.totalorder %v6512, 0
    %v6514 = vsel %vm6513, %v6512, 0
    %v6515 = vshrl.u32 %v6514, 5
    %v6516 = vand.u32 %v6514, 31
    %v6517 = vsub.s32 32, %v6516
    %v6518 = vshrl.u32 683565275, %v6517
    %v6519 = vshll.u32 683565275, %v6516
    %v6520 = vshrl.u32 2475754826, %v6517
    %v6521 = vor.u32 %v6519, %v6520
    %v6522 = vshll.u32 2475754826, %v6516
    %v6523 = vshrl.u32 2131351028, %v6517
    %v6524 = vor.u32 %v6522, %v6523
    %v6525 = vshll.u32 2131351028, %v6516
    %v6526 = vshrl.u32 2102212464, %v6517
    %v6527 = vor.u32 %v6525, %v6526
    %v6528 = vshll.u32 2102212464, %v6516
    %v6529 = vshrl.u32 920167782, %v6517
    %v6530 = vor.u32 %v6528, %v6529
    %v6531 = vshll.u32 920167782, %v6516
    %v6532 = vshrl.u32 1326507024, %v6517
    %v6533 = vor.u32 %v6531, %v6532
    %vm6534 = vcmp.lt.s32.totalorder %v6515, 1
    %vm6535 = vcmp.lt.s32.totalorder %v6515, 2
    %vm6536 = vcmp.lt.s32.totalorder %v6515, 3
    %vm6537 = vcmp.lt.s32.totalorder %v6515, 4
    %v6538 = vsel %vm6534, %v6518, %v6521
    %v6539 = vsel %vm6537, %v6527, 2102212464
    %v6540 = vsel %vm6536, %v6524, %v6539
    %v6541 = vsel %vm6535, %v6538, %v6540
    %v6542 = vsel %vm6534, %v6521, %v6524
    %v6543 = vsel %vm6537, %v6530, 920167782
    %v6544 = vsel %vm6536, %v6527, %v6543
    %v6545 = vsel %vm6535, %v6542, %v6544
    %v6546 = vsel %vm6534, %v6524, %v6527
    %v6547 = vsel %vm6537, %v6533, 1326507024
    %v6548 = vsel %vm6536, %v6530, %v6547
    %v6549 = vsel %vm6535, %v6546, %v6548
    %v6550 = vshll.u32 %v6510, 8
    %v6551 = vmul.u32.u64.compose %v6550, %v6549
    %v6552 = vextract.low.u32 %v6551
    %v6553 = vextract.high.u32 %v6551
    %v6554 = vmul.u32.u64.compose %v6550, %v6545
    %v6555 = vextract.low.u32 %v6554
    %v6556 = vextract.high.u32 %v6554
    %v6557 = vmul.u32 %v6550, %v6541
    %v6558 = vadd.s32 %v6553, %v6555
    %vm6559 = vc.u32 %v6553, %v6555
    %v6560 = vadd.s32 %v6556, 1
    %v6561 = vsel %vm6559, %v6560, %v6556
    %v6562 = vadd.s32 %v6557, %v6561
    %v6563 = vadd.s32 %v6562, 536870912
    %v6564 = vshrl.u32 %v6563, 30
    %v6565 = vshll.u32 %v6564, 30
    %v6566 = vsub.s32 %v6562, %v6565
    %vm6567 = vcmp.lt.s32.totalorder %v6566, 0
    %v6568 = vsub.s32 0, %v6566
    %v6569 = vsel %vm6567, %v6568, %v6566
    %v6570 = vclz %v6569
    %v6571 = vsub.s32 %v6570, 2
    %vm6572 = vcmp.gt.s32.totalorder 0, %v6571
    %v6573 = vsel %vm6572, 0, %v6571
    %v6574 = vsub.s32 32, %v6573
    %v6575 = vshll.u32 %v6566, %v6573
    %v6576 = vshrl.u32 %v6558, %v6574
    %v6577 = vor.u32 %v6575, %v6576
    %v6578 = vsub.s32 4294967266, %v6573
    %v6579 = vadd.s32 %v6578, 127
    %v6580 = vshll.u32 %v6579, 23
    %v6581 = vor.u32 4788187, %v6580
    %v6582 = vand.u32 2147483647, %v6581
    %v6584 = vcvt.s32.f32 %v6577
    %v6585 = vmul.f32 %v6584, %v6582
    %v6586 = vxor.u32 %v6585, 2147483648
    %v6587 = vsel %vm6504, %v6586, %v6585
    %v6588 = vsub.s32 4, %v6564
    %v6589 = vsel %vm6504, %v6588, %v6564
    %v6590 = vsel %vm6503, %v393, %v6587
    %v6591 = vsel %vm6503, 0, %v6589
    %v6592 = vcosq.f32.pop %v6590
    %v6593 = vsinq.f32.pop %v6590
    %vm6594 = vweird.f32 %v393
    %v6595 = vadd.s32 %v6591, 3
    %v6596 = vand.u32 %v6595, 3
    %vm6597 = vcmp.lt.s32.totalorder %v6596, 2
    %vm6598 = vcmp.eq.s32.totalorder %v6596, 0
    %v6599 = vxor.u32 %v6593, 2147483648
    %v6600 = vsel %vm6598, %v6592, %v6599
    %vm6601 = vcmp.eq.s32.totalorder %v6596, 2
    %v6602 = vxor.u32 %v6592, 2147483648
    %v6603 = vsel %vm6601, %v6602, %v6593
    %v6604 = vsel %vm6597, %v6600, %v6603
    %v6605 = vsel %vm6594, nan, %v6604
    %v6606 = vand.u32 2147483647, %v394
    %vm6607 = vcmp.le.f32.partialorder %v6606, 0.7853982
    %vm6608 = vcmp.lt.s32.totalorder %v394, 0
    %v6609 = vand.u32 %v394, 2139095040
    %v6610 = vshrl.u32 %v6609, 23
    %v6611 = vsub.s32 %v6610, 127
    %v6612 = vand.u32 2147483647, %v394
    %v6613 = vand.u32 %v6612, 8388607
    %v6614 = vor.u32 %v6613, 8388608
    %v6615 = vsub.s32 0, %v6614
    %v6616 = vadd.s32 %v6611, 1
    %vm6617 = vcmp.gt.s32.totalorder %v6616, 0
    %v6618 = vsel %vm6617, %v6616, 0
    %v6619 = vshrl.u32 %v6618, 5
    %v6620 = vand.u32 %v6618, 31
    %v6621 = vsub.s32 32, %v6620
    %v6622 = vshrl.u32 683565275, %v6621
    %v6623 = vshll.u32 683565275, %v6620
    %v6624 = vshrl.u32 2475754826, %v6621
    %v6625 = vor.u32 %v6623, %v6624
    %v6626 = vshll.u32 2475754826, %v6620
    %v6627 = vshrl.u32 2131351028, %v6621
    %v6628 = vor.u32 %v6626, %v6627
    %v6629 = vshll.u32 2131351028, %v6620
    %v6630 = vshrl.u32 2102212464, %v6621
    %v6631 = vor.u32 %v6629, %v6630
    %v6632 = vshll.u32 2102212464, %v6620
    %v6633 = vshrl.u32 920167782, %v6621
    %v6634 = vor.u32 %v6632, %v6633
    %v6635 = vshll.u32 920167782, %v6620
    %v6636 = vshrl.u32 1326507024, %v6621
    %v6637 = vor.u32 %v6635, %v6636
    %vm6638 = vcmp.lt.s32.totalorder %v6619, 1
    %vm6639 = vcmp.lt.s32.totalorder %v6619, 2
    %vm6640 = vcmp.lt.s32.totalorder %v6619, 3
    %vm6641 = vcmp.lt.s32.totalorder %v6619, 4
    %v6642 = vsel %vm6638, %v6622, %v6625
    %v6643 = vsel %vm6641, %v6631, 2102212464
    %v6644 = vsel %vm6640, %v6628, %v6643
    %v6645 = vsel %vm6639, %v6642, %v6644
    %v6646 = vsel %vm6638, %v6625, %v6628
    %v6647 = vsel %vm6641, %v6634, 920167782
    %v6648 = vsel %vm6640, %v6631, %v6647
    %v6649 = vsel %vm6639, %v6646, %v6648
    %v6650 = vsel %vm6638, %v6628, %v6631
    %v6651 = vsel %vm6641, %v6637, 1326507024
    %v6652 = vsel %vm6640, %v6634, %v6651
    %v6653 = vsel %vm6639, %v6650, %v6652
    %v6654 = vshll.u32 %v6614, 8
    %v6655 = vmul.u32.u64.compose %v6654, %v6653
    %v6656 = vextract.low.u32 %v6655
    %v6657 = vextract.high.u32 %v6655
    %v6658 = vmul.u32.u64.compose %v6654, %v6649
    %v6659 = vextract.low.u32 %v6658
    %v6660 = vextract.high.u32 %v6658
    %v6661 = vmul.u32 %v6654, %v6645
    %v6662 = vadd.s32 %v6657, %v6659
    %vm6663 = vc.u32 %v6657, %v6659
    %v6664 = vadd.s32 %v6660, 1
    %v6665 = vsel %vm6663, %v6664, %v6660
    %v6666 = vadd.s32 %v6661, %v6665
    %v6667 = vadd.s32 %v6666, 536870912
    %v6668 = vshrl.u32 %v6667, 30
    %v6669 = vshll.u32 %v6668, 30
    %v6670 = vsub.s32 %v6666, %v6669
    %vm6671 = vcmp.lt.s32.totalorder %v6670, 0
    %v6672 = vsub.s32 0, %v6670
    %v6673 = vsel %vm6671, %v6672, %v6670
    %v6674 = vclz %v6673
    %v6675 = vsub.s32 %v6674, 2
    %vm6676 = vcmp.gt.s32.totalorder 0, %v6675
    %v6677 = vsel %vm6676, 0, %v6675
    %v6678 = vsub.s32 32, %v6677
    %v6679 = vshll.u32 %v6670, %v6677
    %v6680 = vshrl.u32 %v6662, %v6678
    %v6681 = vor.u32 %v6679, %v6680
    %v6682 = vsub.s32 4294967266, %v6677
    %v6683 = vadd.s32 %v6682, 127
    %v6684 = vshll.u32 %v6683, 23
    %v6685 = vor.u32 4788187, %v6684
    %v6686 = vand.u32 2147483647, %v6685
    %v6688 = vcvt.s32.f32 %v6681
    %v6689 = vmul.f32 %v6688, %v6686
    %v6690 = vxor.u32 %v6689, 2147483648
    %v6691 = vsel %vm6608, %v6690, %v6689
    %v6692 = vsub.s32 4, %v6668
    %v6693 = vsel %vm6608, %v6692, %v6668
    %v6694 = vsel %vm6607, %v394, %v6691
    %v6695 = vsel %vm6607, 0, %v6693
    %v6696 = vcosq.f32.pop %v6694
    %v6697 = vsinq.f32.pop %v6694
    %vm6698 = vweird.f32 %v394
    %v6699 = vadd.s32 %v6695, 3
    %v6700 = vand.u32 %v6699, 3
    %vm6701 = vcmp.lt.s32.totalorder %v6700, 2
    %vm6702 = vcmp.eq.s32.totalorder %v6700, 0
    %v6703 = vxor.u32 %v6697, 2147483648
    %v6704 = vsel %vm6702, %v6696, %v6703
    %vm6705 = vcmp.eq.s32.totalorder %v6700, 2
    %v6706 = vxor.u32 %v6696, 2147483648
    %v6707 = vsel %vm6705, %v6706, %v6697
    %v6708 = vsel %vm6701, %v6704, %v6707
    %v6709 = vsel %vm6698, nan, %v6708
    %v6710 = vand.u32 2147483647, %v395
    %vm6711 = vcmp.le.f32.partialorder %v6710, 0.7853982
    %vm6712 = vcmp.lt.s32.totalorder %v395, 0
    %v6713 = vand.u32 %v395, 2139095040
    %v6714 = vshrl.u32 %v6713, 23
    %v6715 = vsub.s32 %v6714, 127
    %v6716 = vand.u32 2147483647, %v395
    %v6717 = vand.u32 %v6716, 8388607
    %v6718 = vor.u32 %v6717, 8388608
    %v6719 = vsub.s32 0, %v6718
    %v6720 = vadd.s32 %v6715, 1
    %vm6721 = vcmp.gt.s32.totalorder %v6720, 0
    %v6722 = vsel %vm6721, %v6720, 0
    %v6723 = vshrl.u32 %v6722, 5
    %v6724 = vand.u32 %v6722, 31
    %v6725 = vsub.s32 32, %v6724
    %v6726 = vshrl.u32 683565275, %v6725
    %v6727 = vshll.u32 683565275, %v6724
    %v6728 = vshrl.u32 2475754826, %v6725
    %v6729 = vor.u32 %v6727, %v6728
    %v6730 = vshll.u32 2475754826, %v6724
    %v6731 = vshrl.u32 2131351028, %v6725
    %v6732 = vor.u32 %v6730, %v6731
    %v6733 = vshll.u32 2131351028, %v6724
    %v6734 = vshrl.u32 2102212464, %v6725
    %v6735 = vor.u32 %v6733, %v6734
    %v6736 = vshll.u32 2102212464, %v6724
    %v6737 = vshrl.u32 920167782, %v6725
    %v6738 = vor.u32 %v6736, %v6737
    %v6739 = vshll.u32 920167782, %v6724
    %v6740 = vshrl.u32 1326507024, %v6725
    %v6741 = vor.u32 %v6739, %v6740
    %vm6742 = vcmp.lt.s32.totalorder %v6723, 1
    %vm6743 = vcmp.lt.s32.totalorder %v6723, 2
    %vm6744 = vcmp.lt.s32.totalorder %v6723, 3
    %vm6745 = vcmp.lt.s32.totalorder %v6723, 4
    %v6746 = vsel %vm6742, %v6726, %v6729
    %v6747 = vsel %vm6745, %v6735, 2102212464
    %v6748 = vsel %vm6744, %v6732, %v6747
    %v6749 = vsel %vm6743, %v6746, %v6748
    %v6750 = vsel %vm6742, %v6729, %v6732
    %v6751 = vsel %vm6745, %v6738, 920167782
    %v6752 = vsel %vm6744, %v6735, %v6751
    %v6753 = vsel %vm6743, %v6750, %v6752
    %v6754 = vsel %vm6742, %v6732, %v6735
    %v6755 = vsel %vm6745, %v6741, 1326507024
    %v6756 = vsel %vm6744, %v6738, %v6755
    %v6757 = vsel %vm6743, %v6754, %v6756
    %v6758 = vshll.u32 %v6718, 8
    %v6759 = vmul.u32.u64.compose %v6758, %v6757
    %v6760 = vextract.low.u32 %v6759
    %v6761 = vextract.high.u32 %v6759
    %v6762 = vmul.u32.u64.compose %v6758, %v6753
    %v6763 = vextract.low.u32 %v6762
    %v6764 = vextract.high.u32 %v6762
    %v6765 = vmul.u32 %v6758, %v6749
    %v6766 = vadd.s32 %v6761, %v6763
    %vm6767 = vc.u32 %v6761, %v6763
    %v6768 = vadd.s32 %v6764, 1
    %v6769 = vsel %vm6767, %v6768, %v6764
    %v6770 = vadd.s32 %v6765, %v6769
    %v6771 = vadd.s32 %v6770, 536870912
    %v6772 = vshrl.u32 %v6771, 30
    %v6773 = vshll.u32 %v6772, 30
    %v6774 = vsub.s32 %v6770, %v6773
    %vm6775 = vcmp.lt.s32.totalorder %v6774, 0
    %v6776 = vsub.s32 0, %v6774
    %v6777 = vsel %vm6775, %v6776, %v6774
    %v6778 = vclz %v6777
    %v6779 = vsub.s32 %v6778, 2
    %vm6780 = vcmp.gt.s32.totalorder 0, %v6779
    %v6781 = vsel %vm6780, 0, %v6779
    %v6782 = vsub.s32 32, %v6781
    %v6783 = vshll.u32 %v6774, %v6781
    %v6784 = vshrl.u32 %v6766, %v6782
    %v6785 = vor.u32 %v6783, %v6784
    %v6786 = vsub.s32 4294967266, %v6781
    %v6787 = vadd.s32 %v6786, 127
    %v6788 = vshll.u32 %v6787, 23
    %v6789 = vor.u32 4788187, %v6788
    %v6790 = vand.u32 2147483647, %v6789
    %v6792 = vcvt.s32.f32 %v6785
    %v6793 = vmul.f32 %v6792, %v6790
    %v6794 = vxor.u32 %v6793, 2147483648
    %v6795 = vsel %vm6712, %v6794, %v6793
    %v6796 = vsub.s32 4, %v6772
    %v6797 = vsel %vm6712, %v6796, %v6772
    %v6798 = vsel %vm6711, %v395, %v6795
    %v6799 = vsel %vm6711, 0, %v6797
    %v6800 = vcosq.f32.pop %v6798
    %v6801 = vsinq.f32.pop %v6798
    %vm6802 = vweird.f32 %v395
    %v6803 = vadd.s32 %v6799, 3
    %v6804 = vand.u32 %v6803, 3
    %vm6805 = vcmp.lt.s32.totalorder %v6804, 2
    %vm6806 = vcmp.eq.s32.totalorder %v6804, 0
    %v6807 = vxor.u32 %v6801, 2147483648
    %v6808 = vsel %vm6806, %v6800, %v6807
    %vm6809 = vcmp.eq.s32.totalorder %v6804, 2
    %v6810 = vxor.u32 %v6800, 2147483648
    %v6811 = vsel %vm6809, %v6810, %v6801
    %v6812 = vsel %vm6805, %v6808, %v6811
    %v6813 = vsel %vm6802, nan, %v6812
    %v6814 = vand.u32 2147483647, %v396
    %vm6815 = vcmp.le.f32.partialorder %v6814, 0.7853982
    %vm6816 = vcmp.lt.s32.totalorder %v396, 0
    %v6817 = vand.u32 %v396, 2139095040
    %v6818 = vshrl.u32 %v6817, 23
    %v6819 = vsub.s32 %v6818, 127
    %v6820 = vand.u32 2147483647, %v396
    %v6821 = vand.u32 %v6820, 8388607
    %v6822 = vor.u32 %v6821, 8388608
    %v6823 = vsub.s32 0, %v6822
    %v6824 = vadd.s32 %v6819, 1
    %vm6825 = vcmp.gt.s32.totalorder %v6824, 0
    %v6826 = vsel %vm6825, %v6824, 0
    %v6827 = vshrl.u32 %v6826, 5
    %v6828 = vand.u32 %v6826, 31
    %v6829 = vsub.s32 32, %v6828
    %v6830 = vshrl.u32 683565275, %v6829
    %v6831 = vshll.u32 683565275, %v6828
    %v6832 = vshrl.u32 2475754826, %v6829
    %v6833 = vor.u32 %v6831, %v6832
    %v6834 = vshll.u32 2475754826, %v6828
    %v6835 = vshrl.u32 2131351028, %v6829
    %v6836 = vor.u32 %v6834, %v6835
    %v6837 = vshll.u32 2131351028, %v6828
    %v6838 = vshrl.u32 2102212464, %v6829
    %v6839 = vor.u32 %v6837, %v6838
    %v6840 = vshll.u32 2102212464, %v6828
    %v6841 = vshrl.u32 920167782, %v6829
    %v6842 = vor.u32 %v6840, %v6841
    %v6843 = vshll.u32 920167782, %v6828
    %v6844 = vshrl.u32 1326507024, %v6829
    %v6845 = vor.u32 %v6843, %v6844
    %vm6846 = vcmp.lt.s32.totalorder %v6827, 1
    %vm6847 = vcmp.lt.s32.totalorder %v6827, 2
    %vm6848 = vcmp.lt.s32.totalorder %v6827, 3
    %vm6849 = vcmp.lt.s32.totalorder %v6827, 4
    %v6850 = vsel %vm6846, %v6830, %v6833
    %v6851 = vsel %vm6849, %v6839, 2102212464
    %v6852 = vsel %vm6848, %v6836, %v6851
    %v6853 = vsel %vm6847, %v6850, %v6852
    %v6854 = vsel %vm6846, %v6833, %v6836
    %v6855 = vsel %vm6849, %v6842, 920167782
    %v6856 = vsel %vm6848, %v6839, %v6855
    %v6857 = vsel %vm6847, %v6854, %v6856
    %v6858 = vsel %vm6846, %v6836, %v6839
    %v6859 = vsel %vm6849, %v6845, 1326507024
    %v6860 = vsel %vm6848, %v6842, %v6859
    %v6861 = vsel %vm6847, %v6858, %v6860
    %v6862 = vshll.u32 %v6822, 8
    %v6863 = vmul.u32.u64.compose %v6862, %v6861
    %v6864 = vextract.low.u32 %v6863
    %v6865 = vextract.high.u32 %v6863
    %v6866 = vmul.u32.u64.compose %v6862, %v6857
    %v6867 = vextract.low.u32 %v6866
    %v6868 = vextract.high.u32 %v6866
    %v6869 = vmul.u32 %v6862, %v6853
    %v6870 = vadd.s32 %v6865, %v6867
    %vm6871 = vc.u32 %v6865, %v6867
    %v6872 = vadd.s32 %v6868, 1
    %v6873 = vsel %vm6871, %v6872, %v6868
    %v6874 = vadd.s32 %v6869, %v6873
    %v6875 = vadd.s32 %v6874, 536870912
    %v6876 = vshrl.u32 %v6875, 30
    %v6877 = vshll.u32 %v6876, 30
    %v6878 = vsub.s32 %v6874, %v6877
    %vm6879 = vcmp.lt.s32.totalorder %v6878, 0
    %v6880 = vsub.s32 0, %v6878
    %v6881 = vsel %vm6879, %v6880, %v6878
    %v6882 = vclz %v6881
    %v6883 = vsub.s32 %v6882, 2
    %vm6884 = vcmp.gt.s32.totalorder 0, %v6883
    %v6885 = vsel %vm6884, 0, %v6883
    %v6886 = vsub.s32 32, %v6885
    %v6887 = vshll.u32 %v6878, %v6885
    %v6888 = vshrl.u32 %v6870, %v6886
    %v6889 = vor.u32 %v6887, %v6888
    %v6890 = vsub.s32 4294967266, %v6885
    %v6891 = vadd.s32 %v6890, 127
    %v6892 = vshll.u32 %v6891, 23
    %v6893 = vor.u32 4788187, %v6892
    %v6894 = vand.u32 2147483647, %v6893
    %v6896 = vcvt.s32.f32 %v6889
    %v6897 = vmul.f32 %v6896, %v6894
    %v6898 = vxor.u32 %v6897, 2147483648
    %v6899 = vsel %vm6816, %v6898, %v6897
    %v6900 = vsub.s32 4, %v6876
    %v6901 = vsel %vm6816, %v6900, %v6876
    %v6902 = vsel %vm6815, %v396, %v6899
    %v6903 = vsel %vm6815, 0, %v6901
    %v6904 = vcosq.f32.pop %v6902
    %v6905 = vsinq.f32.pop %v6902
    %vm6906 = vweird.f32 %v396
    %v6907 = vadd.s32 %v6903, 3
    %v6908 = vand.u32 %v6907, 3
    %vm6909 = vcmp.lt.s32.totalorder %v6908, 2
    %vm6910 = vcmp.eq.s32.totalorder %v6908, 0
    %v6911 = vxor.u32 %v6905, 2147483648
    %v6912 = vsel %vm6910, %v6904, %v6911
    %vm6913 = vcmp.eq.s32.totalorder %v6908, 2
    %v6914 = vxor.u32 %v6904, 2147483648
    %v6915 = vsel %vm6913, %v6914, %v6905
    %v6916 = vsel %vm6909, %v6912, %v6915
    %v6917 = vsel %vm6906, nan, %v6916
    %v6918 = vand.u32 2147483647, %v397
    %vm6919 = vcmp.le.f32.partialorder %v6918, 0.7853982
    %vm6920 = vcmp.lt.s32.totalorder %v397, 0
    %v6921 = vand.u32 %v397, 2139095040
    %v6922 = vshrl.u32 %v6921, 23
    %v6923 = vsub.s32 %v6922, 127
    %v6924 = vand.u32 2147483647, %v397
    %v6925 = vand.u32 %v6924, 8388607
    %v6926 = vor.u32 %v6925, 8388608
    %v6927 = vsub.s32 0, %v6926
    %v6928 = vadd.s32 %v6923, 1
    %vm6929 = vcmp.gt.s32.totalorder %v6928, 0
    %v6930 = vsel %vm6929, %v6928, 0
    %v6931 = vshrl.u32 %v6930, 5
    %v6932 = vand.u32 %v6930, 31
    %v6933 = vsub.s32 32, %v6932
    %v6934 = vshrl.u32 683565275, %v6933
    %v6935 = vshll.u32 683565275, %v6932
    %v6936 = vshrl.u32 2475754826, %v6933
    %v6937 = vor.u32 %v6935, %v6936
    %v6938 = vshll.u32 2475754826, %v6932
    %v6939 = vshrl.u32 2131351028, %v6933
    %v6940 = vor.u32 %v6938, %v6939
    %v6941 = vshll.u32 2131351028, %v6932
    %v6942 = vshrl.u32 2102212464, %v6933
    %v6943 = vor.u32 %v6941, %v6942
    %v6944 = vshll.u32 2102212464, %v6932
    %v6945 = vshrl.u32 920167782, %v6933
    %v6946 = vor.u32 %v6944, %v6945
    %v6947 = vshll.u32 920167782, %v6932
    %v6948 = vshrl.u32 1326507024, %v6933
    %v6949 = vor.u32 %v6947, %v6948
    %vm6950 = vcmp.lt.s32.totalorder %v6931, 1
    %vm6951 = vcmp.lt.s32.totalorder %v6931, 2
    %vm6952 = vcmp.lt.s32.totalorder %v6931, 3
    %vm6953 = vcmp.lt.s32.totalorder %v6931, 4
    %v6954 = vsel %vm6950, %v6934, %v6937
    %v6955 = vsel %vm6953, %v6943, 2102212464
    %v6956 = vsel %vm6952, %v6940, %v6955
    %v6957 = vsel %vm6951, %v6954, %v6956
    %v6958 = vsel %vm6950, %v6937, %v6940
    %v6959 = vsel %vm6953, %v6946, 920167782
    %v6960 = vsel %vm6952, %v6943, %v6959
    %v6961 = vsel %vm6951, %v6958, %v6960
    %v6962 = vsel %vm6950, %v6940, %v6943
    %v6963 = vsel %vm6953, %v6949, 1326507024
    %v6964 = vsel %vm6952, %v6946, %v6963
    %v6965 = vsel %vm6951, %v6962, %v6964
    %v6966 = vshll.u32 %v6926, 8
    %v6967 = vmul.u32.u64.compose %v6966, %v6965
    %v6968 = vextract.low.u32 %v6967
    %v6969 = vextract.high.u32 %v6967
    %v6970 = vmul.u32.u64.compose %v6966, %v6961
    %v6971 = vextract.low.u32 %v6970
    %v6972 = vextract.high.u32 %v6970
    %v6973 = vmul.u32 %v6966, %v6957
    %v6974 = vadd.s32 %v6969, %v6971
    %vm6975 = vc.u32 %v6969, %v6971
    %v6976 = vadd.s32 %v6972, 1
    %v6977 = vsel %vm6975, %v6976, %v6972
    %v6978 = vadd.s32 %v6973, %v6977
    %v6979 = vadd.s32 %v6978, 536870912
    %v6980 = vshrl.u32 %v6979, 30
    %v6981 = vshll.u32 %v6980, 30
    %v6982 = vsub.s32 %v6978, %v6981
    %vm6983 = vcmp.lt.s32.totalorder %v6982, 0
    %v6984 = vsub.s32 0, %v6982
    %v6985 = vsel %vm6983, %v6984, %v6982
    %v6986 = vclz %v6985
    %v6987 = vsub.s32 %v6986, 2
    %vm6988 = vcmp.gt.s32.totalorder 0, %v6987
    %v6989 = vsel %vm6988, 0, %v6987
    %v6990 = vsub.s32 32, %v6989
    %v6991 = vshll.u32 %v6982, %v6989
    %v6992 = vshrl.u32 %v6974, %v6990
    %v6993 = vor.u32 %v6991, %v6992
    %v6994 = vsub.s32 4294967266, %v6989
    %v6995 = vadd.s32 %v6994, 127
    %v6996 = vshll.u32 %v6995, 23
    %v6997 = vor.u32 4788187, %v6996
    %v6998 = vand.u32 2147483647, %v6997
    %v7000 = vcvt.s32.f32 %v6993
    %v7001 = vmul.f32 %v7000, %v6998
    %v7002 = vxor.u32 %v7001, 2147483648
    %v7003 = vsel %vm6920, %v7002, %v7001
    %v7004 = vsub.s32 4, %v6980
    %v7005 = vsel %vm6920, %v7004, %v6980
    %v7006 = vsel %vm6919, %v397, %v7003
    %v7007 = vsel %vm6919, 0, %v7005
    %v7008 = vcosq.f32.pop %v7006
    %v7009 = vsinq.f32.pop %v7006
    %vm7010 = vweird.f32 %v397
    %v7011 = vadd.s32 %v7007, 3
    %v7012 = vand.u32 %v7011, 3
    %vm7013 = vcmp.lt.s32.totalorder %v7012, 2
    %vm7014 = vcmp.eq.s32.totalorder %v7012, 0
    %v7015 = vxor.u32 %v7009, 2147483648
    %v7016 = vsel %vm7014, %v7008, %v7015
    %vm7017 = vcmp.eq.s32.totalorder %v7012, 2
    %v7018 = vxor.u32 %v7008, 2147483648
    %v7019 = vsel %vm7017, %v7018, %v7009
    %v7020 = vsel %vm7013, %v7016, %v7019
    %v7021 = vsel %vm7010, nan, %v7020
    %v7022 = vlaneseq
    %v7023 = vand.u32 %v7022, 127
    %v7024 = vstv %s79
    %v7025 = vadd.s32 %v7024, %v7023
    %7026 = vset.pattern.permute.xlu0 0
    %7027 = vperm.xlu0 %7026, %v70
    %v7028 = vpop.permute.xlu0 %7027
    %vm7029 = vcmp.lt.s32.totalorder %v7025, %v7028
    %v7030 = vsel %vm7029, 1, 0
    %v7031 = vcvt.s32.f32 %v7030
    %v7033 = vcombine.high %v7031, %v7031
    %v7035 = vunpack.c.l.s4 1966171168
    %v7036 = vunpack.c.0.s8 %v7035
    %v7037 = vlaneseq
    %v7038 = vshrl.u32 %v7037, 7
    %v7039 = vsub.s32 %v7036, %v7038
    %v7040 = vrot.slane %v7031, %v7039
    %v7042 = vunpack.c.l.s4 1966171168
    %v7043 = vunpack.c.0.s8 %v7042
    %v7044 = vlaneseq
    %v7045 = vshrl.u32 %v7044, 7
    %v7046 = vsub.s32 %v7043, %v7045
    %v7047 = vrot.slane %v7033, %v7046
    %v7048 = vcombine.high %v7040, %v7040
    %v7049 = vcombine.high %v7047, %v7047
    %v7051 = vunpack.c.l.s4 1966171168
    %v7052 = vunpack.c.0.s8 %v7051
    %v7053 = vlaneseq
    %v7054 = vshrl.u32 %v7053, 7
    %v7055 = vsub.s32 %v7052, %v7054
    %v7056 = vrot.slane %v7040, %v7055
    %v7058 = vunpack.c.l.s4 1966171168
    %v7059 = vunpack.c.0.s8 %v7058
    %v7060 = vlaneseq
    %v7061 = vshrl.u32 %v7060, 7
    %v7062 = vsub.s32 %v7059, %v7061
    %v7063 = vrot.slane %v7047, %v7062
    %v7065 = vunpack.c.l.s4 1966171168
    %v7066 = vunpack.c.0.s8 %v7065
    %v7067 = vlaneseq
    %v7068 = vshrl.u32 %v7067, 7
    %v7069 = vsub.s32 %v7066, %v7068
    %v7070 = vrot.slane %v7048, %v7069
    %v7072 = vunpack.c.l.s4 1966171168
    %v7073 = vunpack.c.0.s8 %v7072
    %v7074 = vlaneseq
    %v7075 = vshrl.u32 %v7074, 7
    %v7076 = vsub.s32 %v7073, %v7075
    %v7077 = vrot.slane %v7049, %v7076
    %v7078 = vcombine.high %v7056, %v7056
    %v7079 = vcombine.high %v7063, %v7063
    %v7080 = vcombine.high %v7070, %v7070
    %v7081 = vcombine.high %v7077, %v7077
    %v7082 = vld [vmem:[#allocation2] sm:$0xff]
    %v7083 = vlaneseq
    %v7084 = vshrl.u32 %v7083, 7
    %v7085 = vsub.s32 0, %v7084
    %v7086 = vrot.slane %v7056, %v7085
    %v7087 = vlaneseq
    %v7088 = vshrl.u32 %v7087, 7
    %v7089 = vsub.s32 0, %v7088
    %v7090 = vrot.slane %v7070, %v7089
    %v7091 = vlaneseq
    %v7092 = vshrl.u32 %v7091, 7
    %v7093 = vsub.s32 0, %v7092
    %v7094 = vrot.slane %v7078, %v7093
    %v7095 = vlaneseq
    %v7096 = vshrl.u32 %v7095, 7
    %v7097 = vsub.s32 0, %v7096
    %v7098 = vrot.slane %v7080, %v7097
    %v7099 = vlaneseq
    %v7100 = vshrl.u32 %v7099, 7
    %v7101 = vsub.s32 0, %v7100
    %v7102 = vrot.slane %v7063, %v7101
    %v7103 = vlaneseq
    %v7104 = vshrl.u32 %v7103, 7
    %v7105 = vsub.s32 0, %v7104
    %v7106 = vrot.slane %v7077, %v7105
    %v7107 = vlaneseq
    %v7108 = vshrl.u32 %v7107, 7
    %v7109 = vsub.s32 0, %v7108
    %v7110 = vrot.slane %v7079, %v7109
    %v7111 = vlaneseq
    %v7112 = vshrl.u32 %v7111, 7
    %v7113 = vsub.s32 0, %v7112
    %v7114 = vrot.slane %v7081, %v7113
    %v7123 = vmul.f32 %v500, %v7086
    %v7124 = vmul.f32 %v603, %v7086
    %v7125 = vmul.f32 %v706, %v7086
    %v7126 = vmul.f32 %v809, %v7086
    %v7127 = vmul.f32 %v912, %v7090
    %v7128 = vmul.f32 %v1015, %v7090
    %v7129 = vmul.f32 %v1118, %v7090
    %v7130 = vmul.f32 %v1221, %v7090
    %v7131 = vmul.f32 %v1324, %v7094
    %v7132 = vmul.f32 %v1427, %v7094
    %v7133 = vmul.f32 %v1530, %v7094
    %v7134 = vmul.f32 %v1633, %v7094
    %v7135 = vmul.f32 %v1736, %v7098
    %v7136 = vmul.f32 %v1839, %v7098
    %v7137 = vmul.f32 %v1942, %v7098
    %v7138 = vmul.f32 %v2045, %v7098
    %v7139 = vmul.f32 %v2148, %v7102
    %v7140 = vmul.f32 %v2251, %v7102
    %v7141 = vmul.f32 %v2354, %v7102
    %v7142 = vmul.f32 %v2457, %v7102
    %v7143 = vmul.f32 %v2560, %v7106
    %v7144 = vmul.f32 %v2663, %v7106
    %v7145 = vmul.f32 %v2766, %v7106
    %v7146 = vmul.f32 %v2869, %v7106
    %v7147 = vmul.f32 %v2972, %v7110
    %v7148 = vmul.f32 %v3075, %v7110
    %v7149 = vmul.f32 %v3178, %v7110
    %v7150 = vmul.f32 %v3281, %v7110
    %v7151 = vmul.f32 %v3384, %v7114
    %v7152 = vmul.f32 %v3487, %v7114
    %v7153 = vmul.f32 %v3590, %v7114
    %v7154 = vmul.f32 %v3693, %v7114
    %7155 = vadd.xlane.f32.xlu0 %v7123
    %v7156 = vpop.xlane.xlu0 %7155
    %7157 = vadd.xlane.f32.xlu0 %v7124
    %v7158 = vpop.xlane.xlu0 %7157
    %7159 = vadd.xlane.f32.xlu0 %v7125
    %v7160 = vpop.xlane.xlu0 %7159
    %7161 = vadd.xlane.f32.xlu0 %v7126
    %v7162 = vpop.xlane.xlu0 %7161
    %7163 = vadd.xlane.f32.xlu0 %v7127
    %v7164 = vpop.xlane.xlu0 %7163
    %7165 = vadd.xlane.f32.xlu0 %v7128
    %v7166 = vpop.xlane.xlu0 %7165
    %7167 = vadd.xlane.f32.xlu0 %v7129
    %v7168 = vpop.xlane.xlu0 %7167
    %7169 = vadd.xlane.f32.xlu0 %v7130
    %v7170 = vpop.xlane.xlu0 %7169
    %7171 = vadd.xlane.f32.xlu0 %v7131
    %v7172 = vpop.xlane.xlu0 %7171
    %7173 = vadd.xlane.f32.xlu0 %v7132
    %v7174 = vpop.xlane.xlu0 %7173
    %7175 = vadd.xlane.f32.xlu0 %v7133
    %v7176 = vpop.xlane.xlu0 %7175
    %7177 = vadd.xlane.f32.xlu0 %v7134
    %v7178 = vpop.xlane.xlu0 %7177
    %7179 = vadd.xlane.f32.xlu0 %v7135
    %v7180 = vpop.xlane.xlu0 %7179
    %7181 = vadd.xlane.f32.xlu0 %v7136
    %v7182 = vpop.xlane.xlu0 %7181
    %7183 = vadd.xlane.f32.xlu0 %v7137
    %v7184 = vpop.xlane.xlu0 %7183
    %7185 = vadd.xlane.f32.xlu0 %v7138
    %v7186 = vpop.xlane.xlu0 %7185
    %7187 = vadd.xlane.f32.xlu0 %v7139
    %v7188 = vpop.xlane.xlu0 %7187
    %7189 = vadd.xlane.f32.xlu0 %v7140
    %v7190 = vpop.xlane.xlu0 %7189
    %7191 = vadd.xlane.f32.xlu0 %v7141
    %v7192 = vpop.xlane.xlu0 %7191
    %7193 = vadd.xlane.f32.xlu0 %v7142
    %v7194 = vpop.xlane.xlu0 %7193
    %7195 = vadd.xlane.f32.xlu0 %v7143
    %v7196 = vpop.xlane.xlu0 %7195
    %7197 = vadd.xlane.f32.xlu0 %v7144
    %v7198 = vpop.xlane.xlu0 %7197
    %7199 = vadd.xlane.f32.xlu0 %v7145
    %v7200 = vpop.xlane.xlu0 %7199
    %7201 = vadd.xlane.f32.xlu0 %v7146
    %v7202 = vpop.xlane.xlu0 %7201
    %7203 = vadd.xlane.f32.xlu0 %v7147
    %v7204 = vpop.xlane.xlu0 %7203
    %7205 = vadd.xlane.f32.xlu0 %v7148
    %v7206 = vpop.xlane.xlu0 %7205
    %7207 = vadd.xlane.f32.xlu0 %v7149
    %v7208 = vpop.xlane.xlu0 %7207
    %7209 = vadd.xlane.f32.xlu0 %v7150
    %v7210 = vpop.xlane.xlu0 %7209
    %7211 = vadd.xlane.f32.xlu0 %v7151
    %v7212 = vpop.xlane.xlu0 %7211
    %7213 = vadd.xlane.f32.xlu0 %v7152
    %v7214 = vpop.xlane.xlu0 %7213
    %7215 = vadd.xlane.f32.xlu0 %v7153
    %v7216 = vpop.xlane.xlu0 %7215
    %7217 = vadd.xlane.f32.xlu0 %v7154
    %v7218 = vpop.xlane.xlu0 %7217
    %v7251 = vlaneseq
    %v7252 = vshrl.u32 %v7251, 7
    %v7253 = vsub.s32 %v7023, %v7252
    %v7254 = vrot.slane %v7156, %v7253
    %v7255 = vadd.s32 %v7023, 4294967288
    %v7256 = vlaneseq
    %v7257 = vshrl.u32 %v7256, 7
    %v7258 = vsub.s32 %v7255, %v7257
    %v7259 = vrot.slane %v7158, %v7258
    %vm7260 = vcmask 130112
    %v7261 = vsel %vm7260, %v7259, %v7254
    %v7262 = vadd.s32 %v7023, 4294967280
    %v7263 = vlaneseq
    %v7264 = vshrl.u32 %v7263, 7
    %v7265 = vsub.s32 %v7262, %v7264
    %v7266 = vrot.slane %v7160, %v7265
    %vm7267 = vcmask 195712
    %v7268 = vsel %vm7267, %v7266, %v7261
    %v7269 = vadd.s32 %v7023, 4294967272
    %v7270 = vlaneseq
    %v7271 = vshrl.u32 %v7270, 7
    %v7272 = vsub.s32 %v7269, %v7271
    %v7273 = vrot.slane %v7162, %v7272
    %vm7274 = vcmask 261312
    %v7275 = vsel %vm7274, %v7273, %v7268
    %v7276 = vlaneseq
    %v7277 = vshrl.u32 %v7276, 7
    %v7278 = vsub.s32 %v7023, %v7277
    %v7279 = vrot.slane %v7164, %v7278
    %v7280 = vlaneseq
    %v7281 = vshrl.u32 %v7280, 7
    %v7282 = vsub.s32 %v7255, %v7281
    %v7283 = vrot.slane %v7166, %v7282
    %v7284 = vsel %vm7260, %v7283, %v7279
    %v7285 = vlaneseq
    %v7286 = vshrl.u32 %v7285, 7
    %v7287 = vsub.s32 %v7262, %v7286
    %v7288 = vrot.slane %v7168, %v7287
    %v7289 = vsel %vm7267, %v7288, %v7284
    %v7290 = vlaneseq
    %v7291 = vshrl.u32 %v7290, 7
    %v7292 = vsub.s32 %v7269, %v7291
    %v7293 = vrot.slane %v7170, %v7292
    %v7294 = vsel %vm7274, %v7293, %v7289
    %v7295 = vlaneseq
    %v7296 = vshrl.u32 %v7295, 7
    %v7297 = vsub.s32 %v7023, %v7296
    %v7298 = vrot.slane %v7172, %v7297
    %v7299 = vlaneseq
    %v7300 = vshrl.u32 %v7299, 7
    %v7301 = vsub.s32 %v7255, %v7300
    %v7302 = vrot.slane %v7174, %v7301
    %v7303 = vsel %vm7260, %v7302, %v7298
    %v7304 = vlaneseq
    %v7305 = vshrl.u32 %v7304, 7
    %v7306 = vsub.s32 %v7262, %v7305
    %v7307 = vrot.slane %v7176, %v7306
    %v7308 = vsel %vm7267, %v7307, %v7303
    %v7309 = vlaneseq
    %v7310 = vshrl.u32 %v7309, 7
    %v7311 = vsub.s32 %v7269, %v7310
    %v7312 = vrot.slane %v7178, %v7311
    %v7313 = vsel %vm7274, %v7312, %v7308
    %v7314 = vlaneseq
    %v7315 = vshrl.u32 %v7314, 7
    %v7316 = vsub.s32 %v7023, %v7315
    %v7317 = vrot.slane %v7180, %v7316
    %v7318 = vlaneseq
    %v7319 = vshrl.u32 %v7318, 7
    %v7320 = vsub.s32 %v7255, %v7319
    %v7321 = vrot.slane %v7182, %v7320
    %v7322 = vsel %vm7260, %v7321, %v7317
    %v7323 = vlaneseq
    %v7324 = vshrl.u32 %v7323, 7
    %v7325 = vsub.s32 %v7262, %v7324
    %v7326 = vrot.slane %v7184, %v7325
    %v7327 = vsel %vm7267, %v7326, %v7322
    %v7328 = vlaneseq
    %v7329 = vshrl.u32 %v7328, 7
    %v7330 = vsub.s32 %v7269, %v7329
    %v7331 = vrot.slane %v7186, %v7330
    %v7332 = vsel %vm7274, %v7331, %v7327
    %v7333 = vlaneseq
    %v7334 = vshrl.u32 %v7333, 7
    %v7335 = vsub.s32 %v7023, %v7334
    %v7336 = vrot.slane %v7188, %v7335
    %v7337 = vlaneseq
    %v7338 = vshrl.u32 %v7337, 7
    %v7339 = vsub.s32 %v7255, %v7338
    %v7340 = vrot.slane %v7190, %v7339
    %v7341 = vsel %vm7260, %v7340, %v7336
    %v7342 = vlaneseq
    %v7343 = vshrl.u32 %v7342, 7
    %v7344 = vsub.s32 %v7262, %v7343
    %v7345 = vrot.slane %v7192, %v7344
    %v7346 = vsel %vm7267, %v7345, %v7341
    %v7347 = vlaneseq
    %v7348 = vshrl.u32 %v7347, 7
    %v7349 = vsub.s32 %v7269, %v7348
    %v7350 = vrot.slane %v7194, %v7349
    %v7351 = vsel %vm7274, %v7350, %v7346
    %v7352 = vlaneseq
    %v7353 = vshrl.u32 %v7352, 7
    %v7354 = vsub.s32 %v7023, %v7353
    %v7355 = vrot.slane %v7196, %v7354
    %v7356 = vlaneseq
    %v7357 = vshrl.u32 %v7356, 7
    %v7358 = vsub.s32 %v7255, %v7357
    %v7359 = vrot.slane %v7198, %v7358
    %v7360 = vsel %vm7260, %v7359, %v7355
    %v7361 = vlaneseq
    %v7362 = vshrl.u32 %v7361, 7
    %v7363 = vsub.s32 %v7262, %v7362
    %v7364 = vrot.slane %v7200, %v7363
    %v7365 = vsel %vm7267, %v7364, %v7360
    %v7366 = vlaneseq
    %v7367 = vshrl.u32 %v7366, 7
    %v7368 = vsub.s32 %v7269, %v7367
    %v7369 = vrot.slane %v7202, %v7368
    %v7370 = vsel %vm7274, %v7369, %v7365
    %v7371 = vlaneseq
    %v7372 = vshrl.u32 %v7371, 7
    %v7373 = vsub.s32 %v7023, %v7372
    %v7374 = vrot.slane %v7204, %v7373
    %v7375 = vlaneseq
    %v7376 = vshrl.u32 %v7375, 7
    %v7377 = vsub.s32 %v7255, %v7376
    %v7378 = vrot.slane %v7206, %v7377
    %v7379 = vsel %vm7260, %v7378, %v7374
    %v7380 = vlaneseq
    %v7381 = vshrl.u32 %v7380, 7
    %v7382 = vsub.s32 %v7262, %v7381
    %v7383 = vrot.slane %v7208, %v7382
    %v7384 = vsel %vm7267, %v7383, %v7379
    %v7385 = vlaneseq
    %v7386 = vshrl.u32 %v7385, 7
    %v7387 = vsub.s32 %v7269, %v7386
    %v7388 = vrot.slane %v7210, %v7387
    %v7389 = vsel %vm7274, %v7388, %v7384
    %v7390 = vlaneseq
    %v7391 = vshrl.u32 %v7390, 7
    %v7392 = vsub.s32 %v7023, %v7391
    %v7393 = vrot.slane %v7212, %v7392
    %v7394 = vlaneseq
    %v7395 = vshrl.u32 %v7394, 7
    %v7396 = vsub.s32 %v7255, %v7395
    %v7397 = vrot.slane %v7214, %v7396
    %v7398 = vsel %vm7260, %v7397, %v7393
    %v7399 = vlaneseq
    %v7400 = vshrl.u32 %v7399, 7
    %v7401 = vsub.s32 %v7262, %v7400
    %v7402 = vrot.slane %v7216, %v7401
    %v7403 = vsel %vm7267, %v7402, %v7398
    %v7404 = vlaneseq
    %v7405 = vshrl.u32 %v7404, 7
    %v7406 = vsub.s32 %v7269, %v7405
    %v7407 = vrot.slane %v7218, %v7406
    %v7408 = vsel %vm7274, %v7407, %v7403
    %vm7409 = vcmask 1041409
    %v7410 = vsel %vm7409, %v7294, %v7275
    %vm7411 = vcmask 1042434
    %v7412 = vsel %vm7411, %v7313, %v7410
    %vm7413 = vcmask 1043459
    %v7414 = vsel %vm7413, %v7332, %v7412
    %vm7415 = vcmask 1044484
    %v7416 = vsel %vm7415, %v7351, %v7414
    %vm7417 = vcmask 1045509
    %v7418 = vsel %vm7417, %v7370, %v7416
    %vm7419 = vcmask 1046534
    %v7420 = vsel %vm7419, %v7389, %v7418
    %vm7421 = vcmask 1047559
    %v7422 = vsel %vm7421, %v7408, %v7420
    %v7424 = vadd.f32 %v7082, %v7422
    %vm7425 = vcmask 261120
    %7426 = vst.msk [vmem:[#allocation2] sm:$0xff] %vm7425, %v7424
    %v7427 = vld [vmem:[#allocation3] sm:$0xff]
    %v7428 = vmul.f32 %v3797, %v7086
    %v7429 = vmul.f32 %v3901, %v7086
    %v7430 = vmul.f32 %v4005, %v7086
    %v7431 = vmul.f32 %v4109, %v7086
    %v7432 = vmul.f32 %v4213, %v7090
    %v7433 = vmul.f32 %v4317, %v7090
    %v7434 = vmul.f32 %v4421, %v7090
    %v7435 = vmul.f32 %v4525, %v7090
    %v7436 = vmul.f32 %v4629, %v7094
    %v7437 = vmul.f32 %v4733, %v7094
    %v7438 = vmul.f32 %v4837, %v7094
    %v7439 = vmul.f32 %v4941, %v7094
    %v7440 = vmul.f32 %v5045, %v7098
    %v7441 = vmul.f32 %v5149, %v7098
    %v7442 = vmul.f32 %v5253, %v7098
    %v7443 = vmul.f32 %v5357, %v7098
    %v7444 = vmul.f32 %v5461, %v7102
    %v7445 = vmul.f32 %v5565, %v7102
    %v7446 = vmul.f32 %v5669, %v7102
    %v7447 = vmul.f32 %v5773, %v7102
    %v7448 = vmul.f32 %v5877, %v7106
    %v7449 = vmul.f32 %v5981, %v7106
    %v7450 = vmul.f32 %v6085, %v7106
    %v7451 = vmul.f32 %v6189, %v7106
    %v7452 = vmul.f32 %v6293, %v7110
    %v7453 = vmul.f32 %v6397, %v7110
    %v7454 = vmul.f32 %v6501, %v7110
    %v7455 = vmul.f32 %v6605, %v7110
    %v7456 = vmul.f32 %v6709, %v7114
    %v7457 = vmul.f32 %v6813, %v7114
    %v7458 = vmul.f32 %v6917, %v7114
    %v7459 = vmul.f32 %v7021, %v7114
    %7460 = vadd.xlane.f32.xlu0 %v7428
    %v7461 = vpop.xlane.xlu0 %7460
    %7462 = vadd.xlane.f32.xlu0 %v7429
    %v7463 = vpop.xlane.xlu0 %7462
    %7464 = vadd.xlane.f32.xlu0 %v7430
    %v7465 = vpop.xlane.xlu0 %7464
    %7466 = vadd.xlane.f32.xlu0 %v7431
    %v7467 = vpop.xlane.xlu0 %7466
    %7468 = vadd.xlane.f32.xlu0 %v7432
    %v7469 = vpop.xlane.xlu0 %7468
    %7470 = vadd.xlane.f32.xlu0 %v7433
    %v7471 = vpop.xlane.xlu0 %7470
    %7472 = vadd.xlane.f32.xlu0 %v7434
    %v7473 = vpop.xlane.xlu0 %7472
    %7474 = vadd.xlane.f32.xlu0 %v7435
    %v7475 = vpop.xlane.xlu0 %7474
    %7476 = vadd.xlane.f32.xlu0 %v7436
    %v7477 = vpop.xlane.xlu0 %7476
    %7478 = vadd.xlane.f32.xlu0 %v7437
    %v7479 = vpop.xlane.xlu0 %7478
    %7480 = vadd.xlane.f32.xlu0 %v7438
    %v7481 = vpop.xlane.xlu0 %7480
    %7482 = vadd.xlane.f32.xlu0 %v7439
    %v7483 = vpop.xlane.xlu0 %7482
    %7484 = vadd.xlane.f32.xlu0 %v7440
    %v7485 = vpop.xlane.xlu0 %7484
    %7486 = vadd.xlane.f32.xlu0 %v7441
    %v7487 = vpop.xlane.xlu0 %7486
    %7488 = vadd.xlane.f32.xlu0 %v7442
    %v7489 = vpop.xlane.xlu0 %7488
    %7490 = vadd.xlane.f32.xlu0 %v7443
    %v7491 = vpop.xlane.xlu0 %7490
    %7492 = vadd.xlane.f32.xlu0 %v7444
    %v7493 = vpop.xlane.xlu0 %7492
    %7494 = vadd.xlane.f32.xlu0 %v7445
    %v7495 = vpop.xlane.xlu0 %7494
    %7496 = vadd.xlane.f32.xlu0 %v7446
    %v7497 = vpop.xlane.xlu0 %7496
    %7498 = vadd.xlane.f32.xlu0 %v7447
    %v7499 = vpop.xlane.xlu0 %7498
    %7500 = vadd.xlane.f32.xlu0 %v7448
    %v7501 = vpop.xlane.xlu0 %7500
    %7502 = vadd.xlane.f32.xlu0 %v7449
    %v7503 = vpop.xlane.xlu0 %7502
    %7504 = vadd.xlane.f32.xlu0 %v7450
    %v7505 = vpop.xlane.xlu0 %7504
    %7506 = vadd.xlane.f32.xlu0 %v7451
    %v7507 = vpop.xlane.xlu0 %7506
    %7508 = vadd.xlane.f32.xlu0 %v7452
    %v7509 = vpop.xlane.xlu0 %7508
    %7510 = vadd.xlane.f32.xlu0 %v7453
    %v7511 = vpop.xlane.xlu0 %7510
    %7512 = vadd.xlane.f32.xlu0 %v7454
    %v7513 = vpop.xlane.xlu0 %7512
    %7514 = vadd.xlane.f32.xlu0 %v7455
    %v7515 = vpop.xlane.xlu0 %7514
    %7516 = vadd.xlane.f32.xlu0 %v7456
    %v7517 = vpop.xlane.xlu0 %7516
    %7518 = vadd.xlane.f32.xlu0 %v7457
    %v7519 = vpop.xlane.xlu0 %7518
    %7520 = vadd.xlane.f32.xlu0 %v7458
    %v7521 = vpop.xlane.xlu0 %7520
    %7522 = vadd.xlane.f32.xlu0 %v7459
    %v7523 = vpop.xlane.xlu0 %7522
    %v7556 = vlaneseq
    %v7557 = vshrl.u32 %v7556, 7
    %v7558 = vsub.s32 %v7023, %v7557
    %v7559 = vrot.slane %v7461, %v7558
    %v7560 = vlaneseq
    %v7561 = vshrl.u32 %v7560, 7
    %v7562 = vsub.s32 %v7255, %v7561
    %v7563 = vrot.slane %v7463, %v7562
    %v7564 = vsel %vm7260, %v7563, %v7559
    %v7565 = vlaneseq
    %v7566 = vshrl.u32 %v7565, 7
    %v7567 = vsub.s32 %v7262, %v7566
    %v7568 = vrot.slane %v7465, %v7567
    %v7569 = vsel %vm7267, %v7568, %v7564
    %v7570 = vlaneseq
    %v7571 = vshrl.u32 %v7570, 7
    %v7572 = vsub.s32 %v7269, %v7571
    %v7573 = vrot.slane %v7467, %v7572
    %v7574 = vsel %vm7274, %v7573, %v7569
    %v7575 = vlaneseq
    %v7576 = vshrl.u32 %v7575, 7
    %v7577 = vsub.s32 %v7023, %v7576
    %v7578 = vrot.slane %v7469, %v7577
    %v7579 = vlaneseq
    %v7580 = vshrl.u32 %v7579, 7
    %v7581 = vsub.s32 %v7255, %v7580
    %v7582 = vrot.slane %v7471, %v7581
    %v7583 = vsel %vm7260, %v7582, %v7578
    %v7584 = vlaneseq
    %v7585 = vshrl.u32 %v7584, 7
    %v7586 = vsub.s32 %v7262, %v7585
    %v7587 = vrot.slane %v7473, %v7586
    %v7588 = vsel %vm7267, %v7587, %v7583
    %v7589 = vlaneseq
    %v7590 = vshrl.u32 %v7589, 7
    %v7591 = vsub.s32 %v7269, %v7590
    %v7592 = vrot.slane %v7475, %v7591
    %v7593 = vsel %vm7274, %v7592, %v7588
    %v7594 = vlaneseq
    %v7595 = vshrl.u32 %v7594, 7
    %v7596 = vsub.s32 %v7023, %v7595
    %v7597 = vrot.slane %v7477, %v7596
    %v7598 = vlaneseq
    %v7599 = vshrl.u32 %v7598, 7
    %v7600 = vsub.s32 %v7255, %v7599
    %v7601 = vrot.slane %v7479, %v7600
    %v7602 = vsel %vm7260, %v7601, %v7597
    %v7603 = vlaneseq
    %v7604 = vshrl.u32 %v7603, 7
    %v7605 = vsub.s32 %v7262, %v7604
    %v7606 = vrot.slane %v7481, %v7605
    %v7607 = vsel %vm7267, %v7606, %v7602
    %v7608 = vlaneseq
    %v7609 = vshrl.u32 %v7608, 7
    %v7610 = vsub.s32 %v7269, %v7609
    %v7611 = vrot.slane %v7483, %v7610
    %v7612 = vsel %vm7274, %v7611, %v7607
    %v7613 = vlaneseq
    %v7614 = vshrl.u32 %v7613, 7
    %v7615 = vsub.s32 %v7023, %v7614
    %v7616 = vrot.slane %v7485, %v7615
    %v7617 = vlaneseq
    %v7618 = vshrl.u32 %v7617, 7
    %v7619 = vsub.s32 %v7255, %v7618
    %v7620 = vrot.slane %v7487, %v7619
    %v7621 = vsel %vm7260, %v7620, %v7616
    %v7622 = vlaneseq
    %v7623 = vshrl.u32 %v7622, 7
    %v7624 = vsub.s32 %v7262, %v7623
    %v7625 = vrot.slane %v7489, %v7624
    %v7626 = vsel %vm7267, %v7625, %v7621
    %v7627 = vlaneseq
    %v7628 = vshrl.u32 %v7627, 7
    %v7629 = vsub.s32 %v7269, %v7628
    %v7630 = vrot.slane %v7491, %v7629
    %v7631 = vsel %vm7274, %v7630, %v7626
    %v7632 = vlaneseq
    %v7633 = vshrl.u32 %v7632, 7
    %v7634 = vsub.s32 %v7023, %v7633
    %v7635 = vrot.slane %v7493, %v7634
    %v7636 = vlaneseq
    %v7637 = vshrl.u32 %v7636, 7
    %v7638 = vsub.s32 %v7255, %v7637
    %v7639 = vrot.slane %v7495, %v7638
    %v7640 = vsel %vm7260, %v7639, %v7635
    %v7641 = vlaneseq
    %v7642 = vshrl.u32 %v7641, 7
    %v7643 = vsub.s32 %v7262, %v7642
    %v7644 = vrot.slane %v7497, %v7643
    %v7645 = vsel %vm7267, %v7644, %v7640
    %v7646 = vlaneseq
    %v7647 = vshrl.u32 %v7646, 7
    %v7648 = vsub.s32 %v7269, %v7647
    %v7649 = vrot.slane %v7499, %v7648
    %v7650 = vsel %vm7274, %v7649, %v7645
    %v7651 = vlaneseq
    %v7652 = vshrl.u32 %v7651, 7
    %v7653 = vsub.s32 %v7023, %v7652
    %v7654 = vrot.slane %v7501, %v7653
    %v7655 = vlaneseq
    %v7656 = vshrl.u32 %v7655, 7
    %v7657 = vsub.s32 %v7255, %v7656
    %v7658 = vrot.slane %v7503, %v7657
    %v7659 = vsel %vm7260, %v7658, %v7654
    %v7660 = vlaneseq
    %v7661 = vshrl.u32 %v7660, 7
    %v7662 = vsub.s32 %v7262, %v7661
    %v7663 = vrot.slane %v7505, %v7662
    %v7664 = vsel %vm7267, %v7663, %v7659
    %v7665 = vlaneseq
    %v7666 = vshrl.u32 %v7665, 7
    %v7667 = vsub.s32 %v7269, %v7666
    %v7668 = vrot.slane %v7507, %v7667
    %v7669 = vsel %vm7274, %v7668, %v7664
    %v7670 = vlaneseq
    %v7671 = vshrl.u32 %v7670, 7
    %v7672 = vsub.s32 %v7023, %v7671
    %v7673 = vrot.slane %v7509, %v7672
    %v7674 = vlaneseq
    %v7675 = vshrl.u32 %v7674, 7
    %v7676 = vsub.s32 %v7255, %v7675
    %v7677 = vrot.slane %v7511, %v7676
    %v7678 = vsel %vm7260, %v7677, %v7673
    %v7679 = vlaneseq
    %v7680 = vshrl.u32 %v7679, 7
    %v7681 = vsub.s32 %v7262, %v7680
    %v7682 = vrot.slane %v7513, %v7681
    %v7683 = vsel %vm7267, %v7682, %v7678
    %v7684 = vlaneseq
    %v7685 = vshrl.u32 %v7684, 7
    %v7686 = vsub.s32 %v7269, %v7685
    %v7687 = vrot.slane %v7515, %v7686
    %v7688 = vsel %vm7274, %v7687, %v7683
    %v7689 = vlaneseq
    %v7690 = vshrl.u32 %v7689, 7
    %v7691 = vsub.s32 %v7023, %v7690
    %v7692 = vrot.slane %v7517, %v7691
    %v7693 = vlaneseq
    %v7694 = vshrl.u32 %v7693, 7
    %v7695 = vsub.s32 %v7255, %v7694
    %v7696 = vrot.slane %v7519, %v7695
    %v7697 = vsel %vm7260, %v7696, %v7692
    %v7698 = vlaneseq
    %v7699 = vshrl.u32 %v7698, 7
    %v7700 = vsub.s32 %v7262, %v7699
    %v7701 = vrot.slane %v7521, %v7700
    %v7702 = vsel %vm7267, %v7701, %v7697
    %v7703 = vlaneseq
    %v7704 = vshrl.u32 %v7703, 7
    %v7705 = vsub.s32 %v7269, %v7704
    %v7706 = vrot.slane %v7523, %v7705
    %v7707 = vsel %vm7274, %v7706, %v7702
    %v7708 = vsel %vm7409, %v7593, %v7574
    %v7709 = vsel %vm7411, %v7612, %v7708
    %v7710 = vsel %vm7413, %v7631, %v7709
    %v7711 = vsel %vm7415, %v7650, %v7710
    %v7712 = vsel %vm7417, %v7669, %v7711
    %v7713 = vsel %vm7419, %v7688, %v7712
    %v7714 = vsel %vm7421, %v7707, %v7713
    %v7716 = vsub.f32 %v7427, %v7714
    %7717 = vst.msk [vmem:[#allocation3] sm:$0xff] %vm7425, %v7716
    // Predicated region
    $region82: #{tpu_custom_call.1} parent=1 // pred_check
      %p7718 = pneg %p63
    $region83: #{tpu_custom_call.1} parent=1 // pred_check_branch
      %7720 = sbr.rel (%p7718) target = $region85
    $region84: #{tpu_custom_call.1} parent=1 // pred_region
      %v7721 = vld [vmem:[#allocation2] sm:$0xff]
      %v7722 = vld [vmem:[#allocation3] sm:$0xff]
      %v7723 = vmul.f32 %v7721, %v7721
      %v7724 = vmul.f32 %v7722, %v7722
      %v7725 = vadd.f32 %v7723, %v7724
      %v7726 = vrsqrt.pop %v7725
      %v7727 = vmul.f32 %v7725, %v7726
      %vm7728 = vcmp.eq.f32.partialorder %v7725, inf
      %v7729 = vsel %vm7728, %v7725, %v7727
      %vm7730 = vcmp.eq.f32.partialorder %v7725, 0.0
      %v7731 = vand.u32 %v7725, 2147483648
      %v7732 = vsel %vm7730, %v7731, %v7729
      %v7733 = vand.u32 2147483647, %v7721
      %v7734 = vand.u32 2147483647, %v7722
      %v7735 = vmax.f32 %v7733, %v7734
      %v7736 = vmin.f32 %v7733, %v7734
      %vm7737 = vcmp.eq.f32.partialorder %v7735, 0.0
      %v7738 = vsel %vm7737, 1.0, %v7735
      %v7739 = vrcp.pop %v7738
      %v7740 = vmul.f32 %v7736, %v7739
      %vm7741 = vcmp.gt.f32.partialorder %v7740, 0.41421357
      %v7742 = vsub.f32 %v7740, 1.0
      %v7743 = vadd.f32 %v7740, 1.0
      %v7744 = vrcp.pop %v7743
      %v7745 = vmul.f32 %v7742, %v7744
      %v7746 = vsel %vm7741, %v7745, %v7740
      %v7747 = vmul.f32 %v7746, %v7746
      %v7748 = vmul.f32 %v7747, 0.080537446
      %v7749 = vsub.f32 %v7748, 0.13877685
      %v7750 = vmul.f32 %v7749, %v7747
      %v7751 = vadd.f32 %v7750, 0.19977711
      %v7752 = vmul.f32 %v7751, %v7747
      %v7753 = vsub.f32 %v7752, 0.3333295
      %v7754 = vmul.f32 %v7753, %v7747
      %v7755 = vmul.f32 %v7754, %v7746
      %v7756 = vadd.f32 %v7755, %v7746
      %v7757 = vadd.f32 %v7756, 0.7853982
      %v7758 = vsel %vm7741, %v7757, %v7756
      %vm7759 = vcmp.gt.f32.partialorder %v7734, %v7733
      %v7760 = vsub.f32 1.5707964, %v7758
      %v7761 = vsel %vm7759, %v7760, %v7758
      %vm7762 = vcmp.lt.f32.partialorder %v7721, 0.0
      %v7763 = vsub.f32 3.1415927, %v7761
      %v7764 = vsel %vm7762, %v7763, %v7761
      %vm7765 = vcmp.lt.f32.partialorder %v7722, 0.0
      %v7766 = vsub.f32 0.0, %v7764
      %v7767 = vsel %vm7765, %v7766, %v7764
      %v7768 = vld [vmem:[%s5] sm:$0xff]
      %v7769 = vld [vmem:[%s5 + $0x8] sm:$0xff]
      %v7770 = vld [vmem:[%s5 + $0x10] sm:$0xff]
      %v7771 = vld [vmem:[%s5 + $0x18] sm:$0xff]
      %v7773 = vsel %vm7425, %v7732, 0
      %7775 = vmatprep.subr.mxu0 0.0
      %7776 = vmatpush1.msra.mxu0 0.0
      %7777 = vmatprep.subr.mxu0 0.0
      %7778 = vmatpush1.msra.mxu0 0.0
      %7779 = vmatprep.subr.mxu0 0.0
      %7780 = vmatpush1.msra.mxu0 0.0
      %7781 = vmatprep.subr.mxu0 0.0
      %7782 = vmatpush1.msra.mxu0 0.0
      %7783 = vmatprep.subr.mxu0 0.0
      %7784 = vmatpush1.msra.mxu0 0.0
      %7785 = vmatprep.subr.mxu0 0.0
      %7786 = vmatpush1.msra.mxu0 0.0
      %7787 = vmatprep.subr.mxu0 0.0
      %7788 = vmatpush1.msra.mxu0 0.0
      %7789 = vmatprep.subr.mxu0 0.0
      %7790 = vmatpush1.msra.mxu0 0.0
      %7791 = vmatprep.subr.mxu0 0.0
      %7792 = vmatpush1.msra.mxu0 0.0
      %7793 = vmatprep.subr.mxu0 0.0
      %7794 = vmatpush1.msra.mxu0 0.0
      %7795 = vmatprep.subr.mxu0 0.0
      %7796 = vmatpush1.msra.mxu0 0.0
      %7797 = vmatprep.subr.mxu0 0.0
      %7798 = vmatpush1.msra.mxu0 0.0
      %7799 = vmatprep.subr.mxu0 0.0
      %7800 = vmatpush1.msra.mxu0 %v7771
      %7801 = vmatprep.subr.mxu0 0.0
      %7802 = vmatpush1.msra.mxu0 %v7770
      %7803 = vmatprep.subr.mxu0 0.0
      %7804 = vmatpush1.msra.mxu0 %v7769
      %7805 = vmatprep.subr.mxu0 0.0
      %7806 = vmatpush1.msra.mxu0 %v7768
      %7807 = vmatprep.subr.mxu0 0.0
      %7808 = vmatpush2.msra.mxu0 0.0
      %7809 = vmatprep.subr.mxu0 0.0
      %7810 = vmatpush2.msra.mxu0 0.0
      %7811 = vmatprep.subr.mxu0 0.0
      %7812 = vmatpush2.msra.mxu0 0.0
      %7813 = vmatprep.subr.mxu0 0.0
      %7814 = vmatpush2.msra.mxu0 0.0
      %7815 = vmatprep.subr.mxu0 0.0
      %7816 = vmatpush2.msra.mxu0 0.0
      %7817 = vmatprep.subr.mxu0 0.0
      %7818 = vmatpush2.msra.mxu0 0.0
      %7819 = vmatprep.subr.mxu0 0.0
      %7820 = vmatpush2.msra.mxu0 0.0
      %7821 = vmatprep.subr.mxu0 0.0
      %7822 = vmatpush2.msra.mxu0 0.0
      %7823 = vmatprep.subr.mxu0 0.0
      %7824 = vmatpush2.msra.mxu0 0.0
      %7825 = vmatprep.subr.mxu0 0.0
      %7826 = vmatpush2.msra.mxu0 0.0
      %7827 = vmatprep.subr.mxu0 0.0
      %7828 = vmatpush2.msra.mxu0 0.0
      %7829 = vmatprep.subr.mxu0 0.0
      %7830 = vmatpush2.msra.mxu0 0.0
      %7831 = vmatprep.subr.mxu0 0.0
      %7832 = vmatpush2.msra.mxu0 0.0
      %7833 = vmatprep.subr.mxu0 0.0
      %7834 = vmatpush2.msra.mxu0 0.0
      %7835 = vmatprep.subr.mxu0 0.0
      %7836 = vmatpush2.msra.mxu0 0.0
      %7837 = vmatprep.subr.mxu0 0.0
      %7838 = vmatpush2.msra.mxu0 0.0
      %7839 = vmatprep.mubr.f32.mxu0 0.0
      %7840 = vmatmul.mubr.f32.gmra.mxu0 %v7773
      %v7841 = vpop.f32.mrf.mxu0
      %v7842 = vadd.f32 0.0, %v7841
      %v7843 = vpop.f32.mrf.mxu0
      %7844 = vdwg.mxu0
      %v7845 = vld [vmem:[%s6] sm:$0xff]
      %v7846 = vld [vmem:[%s6 + $0x8] sm:$0xff]
      %v7847 = vld [vmem:[%s6 + $0x10] sm:$0xff]
      %v7848 = vld [vmem:[%s6 + $0x18] sm:$0xff]
      %v7849 = vld [vmem:[%s7] sm:$0x1]
      %v7851 = vlaneseq
      %v7852 = vshrl.u32 %v7851, 7
      %v7853 = vsub.s32 0, %v7852
      %v7854 = vrot.slane %v7849, %v7853
      %v7857 = vsel %vm7425, %v7842, 0
      %7859 = vmatprep.subr.mxu0 0.0
      %7860 = vmatpush1.msra.mxu0 0.0
      %7861 = vmatprep.subr.mxu0 0.0
      %7862 = vmatpush1.msra.mxu0 0.0
      %7863 = vmatprep.subr.mxu0 0.0
      %7864 = vmatpush1.msra.mxu0 0.0
      %7865 = vmatprep.subr.mxu0 0.0
      %7866 = vmatpush1.msra.mxu0 0.0
      %7867 = vmatprep.subr.mxu0 0.0
      %7868 = vmatpush1.msra.mxu0 0.0
      %7869 = vmatprep.subr.mxu0 0.0
      %7870 = vmatpush1.msra.mxu0 0.0
      %7871 = vmatprep.subr.mxu0 0.0
      %7872 = vmatpush1.msra.mxu0 0.0
      %7873 = vmatprep.subr.mxu0 0.0
      %7874 = vmatpush1.msra.mxu0 0.0
      %7875 = vmatprep.subr.mxu0 0.0
      %7876 = vmatpush1.msra.mxu0 0.0
      %7877 = vmatprep.subr.mxu0 0.0
      %7878 = vmatpush1.msra.mxu0 0.0
      %7879 = vmatprep.subr.mxu0 0.0
      %7880 = vmatpush1.msra.mxu0 0.0
      %7881 = vmatprep.subr.mxu0 0.0
      %7882 = vmatpush1.msra.mxu0 0.0
      %7883 = vmatprep.subr.mxu0 0.0
      %7884 = vmatpush1.msra.mxu0 %v7848
      %7885 = vmatprep.subr.mxu0 0.0
      %7886 = vmatpush1.msra.mxu0 %v7847
      %7887 = vmatprep.subr.mxu0 0.0
      %7888 = vmatpush1.msra.mxu0 %v7846
      %7889 = vmatprep.subr.mxu0 0.0
      %7890 = vmatpush1.msra.mxu0 %v7845
      %7891 = vmatprep.subr.mxu0 0.0
      %7892 = vmatpush2.msra.mxu0 0.0
      %7893 = vmatprep.subr.mxu0 0.0
      %7894 = vmatpush2.msra.mxu0 0.0
      %7895 = vmatprep.subr.mxu0 0.0
      %7896 = vmatpush2.msra.mxu0 0.0
      %7897 = vmatprep.subr.mxu0 0.0
      %7898 = vmatpush2.msra.mxu0 0.0
      %7899 = vmatprep.subr.mxu0 0.0
      %7900 = vmatpush2.msra.mxu0 0.0
      %7901 = vmatprep.subr.mxu0 0.0
      %7902 = vmatpush2.msra.mxu0 0.0
      %7903 = vmatprep.subr.mxu0 0.0
      %7904 = vmatpush2.msra.mxu0 0.0
      %7905 = vmatprep.subr.mxu0 0.0
      %7906 = vmatpush2.msra.mxu0 0.0
      %7907 = vmatprep.subr.mxu0 0.0
      %7908 = vmatpush2.msra.mxu0 0.0
      %7909 = vmatprep.subr.mxu0 0.0
      %7910 = vmatpush2.msra.mxu0 0.0
      %7911 = vmatprep.subr.mxu0 0.0
      %7912 = vmatpush2.msra.mxu0 0.0
      %7913 = vmatprep.subr.mxu0 0.0
      %7914 = vmatpush2.msra.mxu0 0.0
      %7915 = vmatprep.subr.mxu0 0.0
      %7916 = vmatpush2.msra.mxu0 0.0
      %7917 = vmatprep.subr.mxu0 0.0
      %7918 = vmatpush2.msra.mxu0 0.0
      %7919 = vmatprep.subr.mxu0 0.0
      %7920 = vmatpush2.msra.mxu0 0.0
      %7921 = vmatprep.subr.mxu0 0.0
      %7922 = vmatpush2.msra.mxu0 0.0
      %7923 = vmatprep.mubr.f32.mxu0 0.0
      %7924 = vmatmul.mubr.f32.gmra.mxu0 %v7857
      %v7925 = vpop.f32.mrf.mxu0
      %v7926 = vadd.f32 %v7854, %v7925
      %v7927 = vpop.f32.mrf.mxu0
      %7928 = vdwg.mxu0
      %v7929 = vmax.f32 %v7926, 0.0
      %v7930 = vld [vmem:[%s8] sm:$0xff]
      %v7931 = vld [vmem:[%s8 + $0x8] sm:$0xff]
      %v7932 = vld [vmem:[%s8 + $0x10] sm:$0xff]
      %v7933 = vld [vmem:[%s8 + $0x18] sm:$0xff]
      %v7934 = vld [vmem:[%s8 + $0x20] sm:$0xff]
      %v7935 = vld [vmem:[%s8 + $0x28] sm:$0xff]
      %v7936 = vld [vmem:[%s8 + $0x30] sm:$0xff]
      %v7937 = vld [vmem:[%s8 + $0x38] sm:$0xff]
      %v7938 = vld [vmem:[%s9] sm:$0x1]
      %v7940 = vlaneseq
      %v7941 = vshrl.u32 %v7940, 7
      %v7942 = vsub.s32 0, %v7941
      %v7943 = vrot.slane %v7938, %v7942
      %vm7945 = vcmask 523264
      %v7947 = vsel %vm7945, %v7929, 0
      %7949 = vmatprep.subr.mxu0 0.0
      %7950 = vmatpush1.msra.mxu0 0.0
      %7951 = vmatprep.subr.mxu0 0.0
      %7952 = vmatpush1.msra.mxu0 0.0
      %7953 = vmatprep.subr.mxu0 0.0
      %7954 = vmatpush1.msra.mxu0 0.0
      %7955 = vmatprep.subr.mxu0 0.0
      %7956 = vmatpush1.msra.mxu0 0.0
      %7957 = vmatprep.subr.mxu0 0.0
      %7958 = vmatpush1.msra.mxu0 0.0
      %7959 = vmatprep.subr.mxu0 0.0
      %7960 = vmatpush1.msra.mxu0 0.0
      %7961 = vmatprep.subr.mxu0 0.0
      %7962 = vmatpush1.msra.mxu0 0.0
      %7963 = vmatprep.subr.mxu0 0.0
      %7964 = vmatpush1.msra.mxu0 0.0
      %7965 = vmatprep.subr.mxu0 0.0
      %7966 = vmatpush1.msra.mxu0 %v7937
      %7967 = vmatprep.subr.mxu0 0.0
      %7968 = vmatpush1.msra.mxu0 %v7936
      %7969 = vmatprep.subr.mxu0 0.0
      %7970 = vmatpush1.msra.mxu0 %v7935
      %7971 = vmatprep.subr.mxu0 0.0
      %7972 = vmatpush1.msra.mxu0 %v7934
      %7973 = vmatprep.subr.mxu0 0.0
      %7974 = vmatpush1.msra.mxu0 %v7933
      %7975 = vmatprep.subr.mxu0 0.0
      %7976 = vmatpush1.msra.mxu0 %v7932
      %7977 = vmatprep.subr.mxu0 0.0
      %7978 = vmatpush1.msra.mxu0 %v7931
      %7979 = vmatprep.subr.mxu0 0.0
      %7980 = vmatpush1.msra.mxu0 %v7930
      %7981 = vmatprep.subr.mxu0 0.0
      %7982 = vmatpush2.msra.mxu0 0.0
      %7983 = vmatprep.subr.mxu0 0.0
      %7984 = vmatpush2.msra.mxu0 0.0
      %7985 = vmatprep.subr.mxu0 0.0
      %7986 = vmatpush2.msra.mxu0 0.0
      %7987 = vmatprep.subr.mxu0 0.0
      %7988 = vmatpush2.msra.mxu0 0.0
      %7989 = vmatprep.subr.mxu0 0.0
      %7990 = vmatpush2.msra.mxu0 0.0
      %7991 = vmatprep.subr.mxu0 0.0
      %7992 = vmatpush2.msra.mxu0 0.0
      %7993 = vmatprep.subr.mxu0 0.0
      %7994 = vmatpush2.msra.mxu0 0.0
      %7995 = vmatprep.subr.mxu0 0.0
      %7996 = vmatpush2.msra.mxu0 0.0
      %7997 = vmatprep.subr.mxu0 0.0
      %7998 = vmatpush2.msra.mxu0 0.0
      %7999 = vmatprep.subr.mxu0 0.0
      %8000 = vmatpush2.msra.mxu0 0.0
      %8001 = vmatprep.subr.mxu0 0.0
      %8002 = vmatpush2.msra.mxu0 0.0
      %8003 = vmatprep.subr.mxu0 0.0
      %8004 = vmatpush2.msra.mxu0 0.0
      %8005 = vmatprep.subr.mxu0 0.0
      %8006 = vmatpush2.msra.mxu0 0.0
      %8007 = vmatprep.subr.mxu0 0.0
      %8008 = vmatpush2.msra.mxu0 0.0
      %8009 = vmatprep.subr.mxu0 0.0
      %8010 = vmatpush2.msra.mxu0 0.0
      %8011 = vmatprep.subr.mxu0 0.0
      %8012 = vmatpush2.msra.mxu0 0.0
      %8013 = vmatprep.mubr.f32.mxu0 0.0
      %8014 = vmatmul.mubr.f32.gmra.mxu0 %v7947
      %v8015 = vpop.f32.mrf.mxu0
      %v8016 = vadd.f32 %v7943, %v8015
      %v8017 = vpop.f32.mrf.mxu0
      %8018 = vdwg.mxu0
      %v8019 = vld [vmem:[%s10] sm:$0xff]
      %v8020 = vld [vmem:[%s10 + $0x8] sm:$0xff]
      %v8021 = vld [vmem:[%s10 + $0x10] sm:$0xff]
      %v8022 = vld [vmem:[%s10 + $0x18] sm:$0xff]
      %v8024 = vsel %vm7425, %v7767, 0
      %8026 = vmatprep.subr.mxu0 0.0
      %8027 = vmatpush1.msra.mxu0 0.0
      %8028 = vmatprep.subr.mxu0 0.0
      %8029 = vmatpush1.msra.mxu0 0.0
      %8030 = vmatprep.subr.mxu0 0.0
      %8031 = vmatpush1.msra.mxu0 0.0
      %8032 = vmatprep.subr.mxu0 0.0
      %8033 = vmatpush1.msra.mxu0 0.0
      %8034 = vmatprep.subr.mxu0 0.0
      %8035 = vmatpush1.msra.mxu0 0.0
      %8036 = vmatprep.subr.mxu0 0.0
      %8037 = vmatpush1.msra.mxu0 0.0
      %8038 = vmatprep.subr.mxu0 0.0
      %8039 = vmatpush1.msra.mxu0 0.0
      %8040 = vmatprep.subr.mxu0 0.0
      %8041 = vmatpush1.msra.mxu0 0.0
      %8042 = vmatprep.subr.mxu0 0.0
      %8043 = vmatpush1.msra.mxu0 0.0
      %8044 = vmatprep.subr.mxu0 0.0
      %8045 = vmatpush1.msra.mxu0 0.0
      %8046 = vmatprep.subr.mxu0 0.0
      %8047 = vmatpush1.msra.mxu0 0.0
      %8048 = vmatprep.subr.mxu0 0.0
      %8049 = vmatpush1.msra.mxu0 0.0
      %8050 = vmatprep.subr.mxu0 0.0
      %8051 = vmatpush1.msra.mxu0 %v8022
      %8052 = vmatprep.subr.mxu0 0.0
      %8053 = vmatpush1.msra.mxu0 %v8021
      %8054 = vmatprep.subr.mxu0 0.0
      %8055 = vmatpush1.msra.mxu0 %v8020
      %8056 = vmatprep.subr.mxu0 0.0
      %8057 = vmatpush1.msra.mxu0 %v8019
      %8058 = vmatprep.subr.mxu0 0.0
      %8059 = vmatpush2.msra.mxu0 0.0
      %8060 = vmatprep.subr.mxu0 0.0
      %8061 = vmatpush2.msra.mxu0 0.0
      %8062 = vmatprep.subr.mxu0 0.0
      %8063 = vmatpush2.msra.mxu0 0.0
      %8064 = vmatprep.subr.mxu0 0.0
      %8065 = vmatpush2.msra.mxu0 0.0
      %8066 = vmatprep.subr.mxu0 0.0
      %8067 = vmatpush2.msra.mxu0 0.0
      %8068 = vmatprep.subr.mxu0 0.0
      %8069 = vmatpush2.msra.mxu0 0.0
      %8070 = vmatprep.subr.mxu0 0.0
      %8071 = vmatpush2.msra.mxu0 0.0
      %8072 = vmatprep.subr.mxu0 0.0
      %8073 = vmatpush2.msra.mxu0 0.0
      %8074 = vmatprep.subr.mxu0 0.0
      %8075 = vmatpush2.msra.mxu0 0.0
      %8076 = vmatprep.subr.mxu0 0.0
      %8077 = vmatpush2.msra.mxu0 0.0
      %8078 = vmatprep.subr.mxu0 0.0
      %8079 = vmatpush2.msra.mxu0 0.0
      %8080 = vmatprep.subr.mxu0 0.0
      %8081 = vmatpush2.msra.mxu0 0.0
      %8082 = vmatprep.subr.mxu0 0.0
      %8083 = vmatpush2.msra.mxu0 0.0
      %8084 = vmatprep.subr.mxu0 0.0
      %8085 = vmatpush2.msra.mxu0 0.0
      %8086 = vmatprep.subr.mxu0 0.0
      %8087 = vmatpush2.msra.mxu0 0.0
      %8088 = vmatprep.subr.mxu0 0.0
      %8089 = vmatpush2.msra.mxu0 0.0
      %8090 = vmatprep.mubr.f32.mxu0 0.0
      %8091 = vmatmul.mubr.f32.gmra.mxu0 %v8024
      %v8092 = vpop.f32.mrf.mxu0
      %v8093 = vadd.f32 0.0, %v8092
      %v8094 = vpop.f32.mrf.mxu0
      %8095 = vdwg.mxu0
      %v8096 = vld [vmem:[%s11] sm:$0xff]
      %v8097 = vld [vmem:[%s11 + $0x8] sm:$0xff]
      %v8098 = vld [vmem:[%s11 + $0x10] sm:$0xff]
      %v8099 = vld [vmem:[%s11 + $0x18] sm:$0xff]
      %v8100 = vld [vmem:[%s12] sm:$0x1]
      %v8102 = vlaneseq
      %v8103 = vshrl.u32 %v8102, 7
      %v8104 = vsub.s32 0, %v8103
      %v8105 = vrot.slane %v8100, %v8104
      %v8108 = vsel %vm7425, %v8093, 0
      %8110 = vmatprep.subr.mxu0 0.0
      %8111 = vmatpush1.msra.mxu0 0.0
      %8112 = vmatprep.subr.mxu0 0.0
      %8113 = vmatpush1.msra.mxu0 0.0
      %8114 = vmatprep.subr.mxu0 0.0
      %8115 = vmatpush1.msra.mxu0 0.0
      %8116 = vmatprep.subr.mxu0 0.0
      %8117 = vmatpush1.msra.mxu0 0.0
      %8118 = vmatprep.subr.mxu0 0.0
      %8119 = vmatpush1.msra.mxu0 0.0
      %8120 = vmatprep.subr.mxu0 0.0
      %8121 = vmatpush1.msra.mxu0 0.0
      %8122 = vmatprep.subr.mxu0 0.0
      %8123 = vmatpush1.msra.mxu0 0.0
      %8124 = vmatprep.subr.mxu0 0.0
      %8125 = vmatpush1.msra.mxu0 0.0
      %8126 = vmatprep.subr.mxu0 0.0
      %8127 = vmatpush1.msra.mxu0 0.0
      %8128 = vmatprep.subr.mxu0 0.0
      %8129 = vmatpush1.msra.mxu0 0.0
      %8130 = vmatprep.subr.mxu0 0.0
      %8131 = vmatpush1.msra.mxu0 0.0
      %8132 = vmatprep.subr.mxu0 0.0
      %8133 = vmatpush1.msra.mxu0 0.0
      %8134 = vmatprep.subr.mxu0 0.0
      %8135 = vmatpush1.msra.mxu0 %v8099
      %8136 = vmatprep.subr.mxu0 0.0
      %8137 = vmatpush1.msra.mxu0 %v8098
      %8138 = vmatprep.subr.mxu0 0.0
      %8139 = vmatpush1.msra.mxu0 %v8097
      %8140 = vmatprep.subr.mxu0 0.0
      %8141 = vmatpush1.msra.mxu0 %v8096
      %8142 = vmatprep.subr.mxu0 0.0
      %8143 = vmatpush2.msra.mxu0 0.0
      %8144 = vmatprep.subr.mxu0 0.0
      %8145 = vmatpush2.msra.mxu0 0.0
      %8146 = vmatprep.subr.mxu0 0.0
      %8147 = vmatpush2.msra.mxu0 0.0
      %8148 = vmatprep.subr.mxu0 0.0
      %8149 = vmatpush2.msra.mxu0 0.0
      %8150 = vmatprep.subr.mxu0 0.0
      %8151 = vmatpush2.msra.mxu0 0.0
      %8152 = vmatprep.subr.mxu0 0.0
      %8153 = vmatpush2.msra.mxu0 0.0
      %8154 = vmatprep.subr.mxu0 0.0
      %8155 = vmatpush2.msra.mxu0 0.0
      %8156 = vmatprep.subr.mxu0 0.0
      %8157 = vmatpush2.msra.mxu0 0.0
      %8158 = vmatprep.subr.mxu0 0.0
      %8159 = vmatpush2.msra.mxu0 0.0
      %8160 = vmatprep.subr.mxu0 0.0
      %8161 = vmatpush2.msra.mxu0 0.0
      %8162 = vmatprep.subr.mxu0 0.0
      %8163 = vmatpush2.msra.mxu0 0.0
      %8164 = vmatprep.subr.mxu0 0.0
      %8165 = vmatpush2.msra.mxu0 0.0
      %8166 = vmatprep.subr.mxu0 0.0
      %8167 = vmatpush2.msra.mxu0 0.0
      %8168 = vmatprep.subr.mxu0 0.0
      %8169 = vmatpush2.msra.mxu0 0.0
      %8170 = vmatprep.subr.mxu0 0.0
      %8171 = vmatpush2.msra.mxu0 0.0
      %8172 = vmatprep.subr.mxu0 0.0
      %8173 = vmatpush2.msra.mxu0 0.0
      %8174 = vmatprep.mubr.f32.mxu0 0.0
      %8175 = vmatmul.mubr.f32.gmra.mxu0 %v8108
      %v8176 = vpop.f32.mrf.mxu0
      %v8177 = vadd.f32 %v8105, %v8176
      %v8178 = vpop.f32.mrf.mxu0
      %8179 = vdwg.mxu0
      %v8180 = vmax.f32 %v8177, 0.0
      %v8181 = vld [vmem:[%s13] sm:$0xff]
      %v8182 = vld [vmem:[%s13 + $0x8] sm:$0xff]
      %v8183 = vld [vmem:[%s13 + $0x10] sm:$0xff]
      %v8184 = vld [vmem:[%s13 + $0x18] sm:$0xff]
      %v8185 = vld [vmem:[%s13 + $0x20] sm:$0xff]
      %v8186 = vld [vmem:[%s13 + $0x28] sm:$0xff]
      %v8187 = vld [vmem:[%s13 + $0x30] sm:$0xff]
      %v8188 = vld [vmem:[%s13 + $0x38] sm:$0xff]
      %v8189 = vld [vmem:[%s14] sm:$0x1]
      %v8191 = vlaneseq
      %v8192 = vshrl.u32 %v8191, 7
      %v8193 = vsub.s32 0, %v8192
      %v8194 = vrot.slane %v8189, %v8193
      %v8197 = vsel %vm7945, %v8180, 0
      %8199 = vmatprep.subr.mxu0 0.0
      %8200 = vmatpush1.msra.mxu0 0.0
      %8201 = vmatprep.subr.mxu0 0.0
      %8202 = vmatpush1.msra.mxu0 0.0
      %8203 = vmatprep.subr.mxu0 0.0
      %8204 = vmatpush1.msra.mxu0 0.0
      %8205 = vmatprep.subr.mxu0 0.0
      %8206 = vmatpush1.msra.mxu0 0.0
      %8207 = vmatprep.subr.mxu0 0.0
      %8208 = vmatpush1.msra.mxu0 0.0
      %8209 = vmatprep.subr.mxu0 0.0
      %8210 = vmatpush1.msra.mxu0 0.0
      %8211 = vmatprep.subr.mxu0 0.0
      %8212 = vmatpush1.msra.mxu0 0.0
      %8213 = vmatprep.subr.mxu0 0.0
      %8214 = vmatpush1.msra.mxu0 0.0
      %8215 = vmatprep.subr.mxu0 0.0
      %8216 = vmatpush1.msra.mxu0 %v8188
      %8217 = vmatprep.subr.mxu0 0.0
      %8218 = vmatpush1.msra.mxu0 %v8187
      %8219 = vmatprep.subr.mxu0 0.0
      %8220 = vmatpush1.msra.mxu0 %v8186
      %8221 = vmatprep.subr.mxu0 0.0
      %8222 = vmatpush1.msra.mxu0 %v8185
      %8223 = vmatprep.subr.mxu0 0.0
      %8224 = vmatpush1.msra.mxu0 %v8184
      %8225 = vmatprep.subr.mxu0 0.0
      %8226 = vmatpush1.msra.mxu0 %v8183
      %8227 = vmatprep.subr.mxu0 0.0
      %8228 = vmatpush1.msra.mxu0 %v8182
      %8229 = vmatprep.subr.mxu0 0.0
      %8230 = vmatpush1.msra.mxu0 %v8181
      %8231 = vmatprep.subr.mxu0 0.0
      %8232 = vmatpush2.msra.mxu0 0.0
      %8233 = vmatprep.subr.mxu0 0.0
      %8234 = vmatpush2.msra.mxu0 0.0
      %8235 = vmatprep.subr.mxu0 0.0
      %8236 = vmatpush2.msra.mxu0 0.0
      %8237 = vmatprep.subr.mxu0 0.0
      %8238 = vmatpush2.msra.mxu0 0.0
      %8239 = vmatprep.subr.mxu0 0.0
      %8240 = vmatpush2.msra.mxu0 0.0
      %8241 = vmatprep.subr.mxu0 0.0
      %8242 = vmatpush2.msra.mxu0 0.0
      %8243 = vmatprep.subr.mxu0 0.0
      %8244 = vmatpush2.msra.mxu0 0.0
      %8245 = vmatprep.subr.mxu0 0.0
      %8246 = vmatpush2.msra.mxu0 0.0
      %8247 = vmatprep.subr.mxu0 0.0
      %8248 = vmatpush2.msra.mxu0 0.0
      %8249 = vmatprep.subr.mxu0 0.0
      %8250 = vmatpush2.msra.mxu0 0.0
      %8251 = vmatprep.subr.mxu0 0.0
      %8252 = vmatpush2.msra.mxu0 0.0
      %8253 = vmatprep.subr.mxu0 0.0
      %8254 = vmatpush2.msra.mxu0 0.0
      %8255 = vmatprep.subr.mxu0 0.0
      %8256 = vmatpush2.msra.mxu0 0.0
      %8257 = vmatprep.subr.mxu0 0.0
      %8258 = vmatpush2.msra.mxu0 0.0
      %8259 = vmatprep.subr.mxu0 0.0
      %8260 = vmatpush2.msra.mxu0 0.0
      %8261 = vmatprep.subr.mxu0 0.0
      %8262 = vmatpush2.msra.mxu0 0.0
      %8263 = vmatprep.mubr.f32.mxu0 0.0
      %8264 = vmatmul.mubr.f32.gmra.mxu0 %v8197
      %v8265 = vpop.f32.mrf.mxu0
      %v8266 = vadd.f32 %v8194, %v8265
      %v8267 = vpop.f32.mrf.mxu0
      %8268 = vdwg.mxu0
      %v8269 = vld [vmem:[%s15] sm:$0xff]
      %v8270 = vld [vmem:[%s15 + $0x8] sm:$0xff]
      %v8271 = vld [vmem:[%s15 + $0x10] sm:$0xff]
      %v8272 = vld [vmem:[%s15 + $0x18] sm:$0xff]
      %v8273 = vld [vmem:[%s15 + $0x20] sm:$0xff]
      %v8274 = vld [vmem:[%s15 + $0x28] sm:$0xff]
      %v8275 = vld [vmem:[%s15 + $0x30] sm:$0xff]
      %v8276 = vld [vmem:[%s15 + $0x38] sm:$0xff]
      %v8278 = vsel %vm7425, %v8266, 0
      %8280 = vmatprep.subr.mxu0 0.0
      %8281 = vmatpush1.msra.mxu0 0.0
      %8282 = vmatprep.subr.mxu0 0.0
      %8283 = vmatpush1.msra.mxu0 0.0
      %8284 = vmatprep.subr.mxu0 0.0
      %8285 = vmatpush1.msra.mxu0 0.0
      %8286 = vmatprep.subr.mxu0 0.0
      %8287 = vmatpush1.msra.mxu0 0.0
      %8288 = vmatprep.subr.mxu0 0.0
      %8289 = vmatpush1.msra.mxu0 0.0
      %8290 = vmatprep.subr.mxu0 0.0
      %8291 = vmatpush1.msra.mxu0 0.0
      %8292 = vmatprep.subr.mxu0 0.0
      %8293 = vmatpush1.msra.mxu0 0.0
      %8294 = vmatprep.subr.mxu0 0.0
      %8295 = vmatpush1.msra.mxu0 0.0
      %8296 = vmatprep.subr.mxu0 0.0
      %8297 = vmatpush1.msra.mxu0 0.0
      %8298 = vmatprep.subr.mxu0 0.0
      %8299 = vmatpush1.msra.mxu0 0.0
      %8300 = vmatprep.subr.mxu0 0.0
      %8301 = vmatpush1.msra.mxu0 0.0
      %8302 = vmatprep.subr.mxu0 0.0
      %8303 = vmatpush1.msra.mxu0 0.0
      %8304 = vmatprep.subr.mxu0 0.0
      %8305 = vmatpush1.msra.mxu0 %v8276
      %8306 = vmatprep.subr.mxu0 0.0
      %8307 = vmatpush1.msra.mxu0 %v8275
      %8308 = vmatprep.subr.mxu0 0.0
      %8309 = vmatpush1.msra.mxu0 %v8274
      %8310 = vmatprep.subr.mxu0 0.0
      %8311 = vmatpush1.msra.mxu0 %v8273
      %8312 = vmatprep.subr.mxu0 0.0
      %8313 = vmatpush2.msra.mxu0 0.0
      %8314 = vmatprep.subr.mxu0 0.0
      %8315 = vmatpush2.msra.mxu0 0.0
      %8316 = vmatprep.subr.mxu0 0.0
      %8317 = vmatpush2.msra.mxu0 0.0
      %8318 = vmatprep.subr.mxu0 0.0
      %8319 = vmatpush2.msra.mxu0 0.0
      %8320 = vmatprep.subr.mxu0 0.0
      %8321 = vmatpush2.msra.mxu0 0.0
      %8322 = vmatprep.subr.mxu0 0.0
      %8323 = vmatpush2.msra.mxu0 0.0
      %8324 = vmatprep.subr.mxu0 0.0
      %8325 = vmatpush2.msra.mxu0 0.0
      %8326 = vmatprep.subr.mxu0 0.0
      %8327 = vmatpush2.msra.mxu0 0.0
      %8328 = vmatprep.subr.mxu0 0.0
      %8329 = vmatpush2.msra.mxu0 0.0
      %8330 = vmatprep.subr.mxu0 0.0
      %8331 = vmatpush2.msra.mxu0 0.0
      %8332 = vmatprep.subr.mxu0 0.0
      %8333 = vmatpush2.msra.mxu0 0.0
      %8334 = vmatprep.subr.mxu0 0.0
      %8335 = vmatpush2.msra.mxu0 0.0
      %8336 = vmatprep.subr.mxu0 0.0
      %8337 = vmatpush2.msra.mxu0 0.0
      %8338 = vmatprep.subr.mxu0 0.0
      %8339 = vmatpush2.msra.mxu0 0.0
      %8340 = vmatprep.subr.mxu0 0.0
      %8341 = vmatpush2.msra.mxu0 0.0
      %8342 = vmatprep.subr.mxu0 0.0
      %8343 = vmatpush2.msra.mxu0 0.0
      %8344 = vmatprep.mubr.f32.mxu0 0.0
      %8345 = vmatmul.mubr.f32.gmra.mxu0 %v8278
      %v8346 = vpop.f32.mrf.mxu0
      %v8347 = vadd.f32 0.0, %v8346
      %v8348 = vpop.f32.mrf.mxu0
      %8349 = vdwg.mxu0
      %v8351 = vsel %vm7425, %v8016, 0
      %8353 = vmatprep.subr.mxu0 0.0
      %8354 = vmatpush1.msra.mxu0 0.0
      %8355 = vmatprep.subr.mxu0 0.0
      %8356 = vmatpush1.msra.mxu0 0.0
      %8357 = vmatprep.subr.mxu0 0.0
      %8358 = vmatpush1.msra.mxu0 0.0
      %8359 = vmatprep.subr.mxu0 0.0
      %8360 = vmatpush1.msra.mxu0 0.0
      %8361 = vmatprep.subr.mxu0 0.0
      %8362 = vmatpush1.msra.mxu0 0.0
      %8363 = vmatprep.subr.mxu0 0.0
      %8364 = vmatpush1.msra.mxu0 0.0
      %8365 = vmatprep.subr.mxu0 0.0
      %8366 = vmatpush1.msra.mxu0 0.0
      %8367 = vmatprep.subr.mxu0 0.0
      %8368 = vmatpush1.msra.mxu0 0.0
      %8369 = vmatprep.subr.mxu0 0.0
      %8370 = vmatpush1.msra.mxu0 0.0
      %8371 = vmatprep.subr.mxu0 0.0
      %8372 = vmatpush1.msra.mxu0 0.0
      %8373 = vmatprep.subr.mxu0 0.0
      %8374 = vmatpush1.msra.mxu0 0.0
      %8375 = vmatprep.subr.mxu0 0.0
      %8376 = vmatpush1.msra.mxu0 0.0
      %8377 = vmatprep.subr.mxu0 0.0
      %8378 = vmatpush1.msra.mxu0 %v8272
      %8379 = vmatprep.subr.mxu0 0.0
      %8380 = vmatpush1.msra.mxu0 %v8271
      %8381 = vmatprep.subr.mxu0 0.0
      %8382 = vmatpush1.msra.mxu0 %v8270
      %8383 = vmatprep.subr.mxu0 0.0
      %8384 = vmatpush1.msra.mxu0 %v8269
      %8385 = vmatprep.subr.mxu0 0.0
      %8386 = vmatpush2.msra.mxu0 0.0
      %8387 = vmatprep.subr.mxu0 0.0
      %8388 = vmatpush2.msra.mxu0 0.0
      %8389 = vmatprep.subr.mxu0 0.0
      %8390 = vmatpush2.msra.mxu0 0.0
      %8391 = vmatprep.subr.mxu0 0.0
      %8392 = vmatpush2.msra.mxu0 0.0
      %8393 = vmatprep.subr.mxu0 0.0
      %8394 = vmatpush2.msra.mxu0 0.0
      %8395 = vmatprep.subr.mxu0 0.0
      %8396 = vmatpush2.msra.mxu0 0.0
      %8397 = vmatprep.subr.mxu0 0.0
      %8398 = vmatpush2.msra.mxu0 0.0
      %8399 = vmatprep.subr.mxu0 0.0
      %8400 = vmatpush2.msra.mxu0 0.0
      %8401 = vmatprep.subr.mxu0 0.0
      %8402 = vmatpush2.msra.mxu0 0.0
      %8403 = vmatprep.subr.mxu0 0.0
      %8404 = vmatpush2.msra.mxu0 0.0
      %8405 = vmatprep.subr.mxu0 0.0
      %8406 = vmatpush2.msra.mxu0 0.0
      %8407 = vmatprep.subr.mxu0 0.0
      %8408 = vmatpush2.msra.mxu0 0.0
      %8409 = vmatprep.subr.mxu0 0.0
      %8410 = vmatpush2.msra.mxu0 0.0
      %8411 = vmatprep.subr.mxu0 0.0
      %8412 = vmatpush2.msra.mxu0 0.0
      %8413 = vmatprep.subr.mxu0 0.0
      %8414 = vmatpush2.msra.mxu0 0.0
      %8415 = vmatprep.subr.mxu0 0.0
      %8416 = vmatpush2.msra.mxu0 0.0
      %8417 = vmatprep.mubr.f32.mxu0 0.0
      %8418 = vmatmul.mubr.f32.gmra.mxu0 %v8351
      %v8419 = vpop.f32.mrf.mxu0
      %v8420 = vadd.f32 %v8347, %v8419
      %v8421 = vpop.f32.mrf.mxu0
      %8422 = vdwg.mxu0
      %v8423 = vld [vmem:[%s16] sm:$0x1]
      %v8425 = vlaneseq
      %v8426 = vshrl.u32 %v8425, 7
      %v8427 = vsub.s32 0, %v8426
      %v8428 = vrot.slane %v8423, %v8427
      %v8430 = vadd.f32 %v8420, %v8428
      %v8431 = vmax.f32 %v8430, 0.0
      %v8432 = vld [vmem:[%s17] sm:$0xff]
      %v8433 = vld [vmem:[%s17 + $0x8] sm:$0xff]
      %v8434 = vld [vmem:[%s17 + $0x10] sm:$0xff]
      %v8435 = vld [vmem:[%s17 + $0x18] sm:$0xff]
      %v8436 = vld [vmem:[%s17 + $0x20] sm:$0xff]
      %v8437 = vld [vmem:[%s17 + $0x28] sm:$0xff]
      %v8438 = vld [vmem:[%s17 + $0x30] sm:$0xff]
      %v8439 = vld [vmem:[%s17 + $0x38] sm:$0xff]
      %v8440 = vld [vmem:[%s18] sm:$0x1]
      %v8442 = vlaneseq
      %v8443 = vshrl.u32 %v8442, 7
      %v8444 = vsub.s32 0, %v8443
      %v8445 = vrot.slane %v8440, %v8444
      %v8448 = vsel %vm7945, %v8431, 0
      %8450 = vmatprep.subr.mxu0 0.0
      %8451 = vmatpush1.msra.mxu0 0.0
      %8452 = vmatprep.subr.mxu0 0.0
      %8453 = vmatpush1.msra.mxu0 0.0
      %8454 = vmatprep.subr.mxu0 0.0
      %8455 = vmatpush1.msra.mxu0 0.0
      %8456 = vmatprep.subr.mxu0 0.0
      %8457 = vmatpush1.msra.mxu0 0.0
      %8458 = vmatprep.subr.mxu0 0.0
      %8459 = vmatpush1.msra.mxu0 0.0
      %8460 = vmatprep.subr.mxu0 0.0
      %8461 = vmatpush1.msra.mxu0 0.0
      %8462 = vmatprep.subr.mxu0 0.0
      %8463 = vmatpush1.msra.mxu0 0.0
      %8464 = vmatprep.subr.mxu0 0.0
      %8465 = vmatpush1.msra.mxu0 0.0
      %8466 = vmatprep.subr.mxu0 0.0
      %8467 = vmatpush1.msra.mxu0 %v8439
      %8468 = vmatprep.subr.mxu0 0.0
      %8469 = vmatpush1.msra.mxu0 %v8438
      %8470 = vmatprep.subr.mxu0 0.0
      %8471 = vmatpush1.msra.mxu0 %v8437
      %8472 = vmatprep.subr.mxu0 0.0
      %8473 = vmatpush1.msra.mxu0 %v8436
      %8474 = vmatprep.subr.mxu0 0.0
      %8475 = vmatpush1.msra.mxu0 %v8435
      %8476 = vmatprep.subr.mxu0 0.0
      %8477 = vmatpush1.msra.mxu0 %v8434
      %8478 = vmatprep.subr.mxu0 0.0
      %8479 = vmatpush1.msra.mxu0 %v8433
      %8480 = vmatprep.subr.mxu0 0.0
      %8481 = vmatpush1.msra.mxu0 %v8432
      %8482 = vmatprep.subr.mxu0 0.0
      %8483 = vmatpush2.msra.mxu0 0.0
      %8484 = vmatprep.subr.mxu0 0.0
      %8485 = vmatpush2.msra.mxu0 0.0
      %8486 = vmatprep.subr.mxu0 0.0
      %8487 = vmatpush2.msra.mxu0 0.0
      %8488 = vmatprep.subr.mxu0 0.0
      %8489 = vmatpush2.msra.mxu0 0.0
      %8490 = vmatprep.subr.mxu0 0.0
      %8491 = vmatpush2.msra.mxu0 0.0
      %8492 = vmatprep.subr.mxu0 0.0
      %8493 = vmatpush2.msra.mxu0 0.0
      %8494 = vmatprep.subr.mxu0 0.0
      %8495 = vmatpush2.msra.mxu0 0.0
      %8496 = vmatprep.subr.mxu0 0.0
      %8497 = vmatpush2.msra.mxu0 0.0
      %8498 = vmatprep.subr.mxu0 0.0
      %8499 = vmatpush2.msra.mxu0 0.0
      %8500 = vmatprep.subr.mxu0 0.0
      %8501 = vmatpush2.msra.mxu0 0.0
      %8502 = vmatprep.subr.mxu0 0.0
      %8503 = vmatpush2.msra.mxu0 0.0
      %8504 = vmatprep.subr.mxu0 0.0
      %8505 = vmatpush2.msra.mxu0 0.0
      %8506 = vmatprep.subr.mxu0 0.0
      %8507 = vmatpush2.msra.mxu0 0.0
      %8508 = vmatprep.subr.mxu0 0.0
      %8509 = vmatpush2.msra.mxu0 0.0
      %8510 = vmatprep.subr.mxu0 0.0
      %8511 = vmatpush2.msra.mxu0 0.0
      %8512 = vmatprep.subr.mxu0 0.0
      %8513 = vmatpush2.msra.mxu0 0.0
      %8514 = vmatprep.mubr.f32.mxu0 0.0
      %8515 = vmatmul.mubr.f32.gmra.mxu0 %v8448
      %v8516 = vpop.f32.mrf.mxu0
      %v8517 = vadd.f32 %v8445, %v8516
      %v8518 = vpop.f32.mrf.mxu0
      %8519 = vdwg.mxu0
      %vm8520 = vcmask 130048
      %8521 = vst.msk [vmem:[#allocation4] sm:$0xff] %vm8520, %v8517
    $region85: #{tpu_custom_call.1} parent=1 // pred_fallthru
      _
    // Predicated region
    $region86: #{tpu_custom_call.1} parent=1 // pred_check
      _
    $region87: #{tpu_custom_call.1} parent=1 // pred_check_branch
      %8523 = sbr.rel (0) target = $region89
    $region88: #{tpu_custom_call.1} parent=1 // pred_region
      %s8525 = ssub.s32 128, 128
      %8526 = vsyncadd [#allocation5], %s8525
      %s8528 = sshll.u32 [#allocation4], 4
      %s8529 = int_to_ptr.vmem [resolvable:$true] %s8528
      %8531 = dma.vmem_to_hbm [thread:$0]  %s8529, 128, %s19, [#allocation5]
    $region89: #{tpu_custom_call.1} parent=1 // pred_fallthru
      _
    // Predicated region
    $region90: #{tpu_custom_call.1} parent=1 // pred_check
      _
    $region91: #{tpu_custom_call.1} parent=1 // pred_check_branch
      %8533 = sbr.rel (0) target = $region93
    $region92: #{tpu_custom_call.1} parent=1 // pred_region
      %8534 = dma.done [#allocation5], 128
    $region93: #{tpu_custom_call.1} parent=1 // pred_fallthru
      _
    %8535 = vsyncpa [#allocation5], 1

</llo_original>
